<compile_context>
chip_gen: v6e
topology: v6e:2x2x1
jax: 0.10.0
libtpu: 0.0.40
codegen_flags: <defaults>
</compile_context>

<pallas_src>
import jax
import jax.numpy as jnp
import numpy as np
from jax.experimental import pallas as pl
from jax.experimental.pallas import tpu as pltpu  # noqa: F401  (TPU backend assumed)

# ---------------- model hyper-params (small, consistent with the module) ----------
NUM_LAYERS = 2
D_MODEL    = 32
D_COND     = 64     # original default 1024 (shrunk for the small test)
D_PRE      = 16     # original default 978  (shrunk for the small test)
L_DRUG     = 8      # drug sequence length
MLP_HIDDEN = 32
NUM_HEADS  = 4
SIGMA_DATA = 0.5
LN_EPS     = 1e-5
NEG_INF    = -1e9

# ---------------- packed-slab layout constants ------------------------------------
# Non-layer constant slab `cnl`  (rows, D_MODEL lanes):
R_XDW   = 0                       # x_drug projection weight      (D_COND rows)
R_POS   = R_XDW + D_COND          # positional encoding           (D_PRE rows)
R_PREW  = R_POS + D_PRE           # pre-projection weight         (2 rows)
R_PREB  = R_PREW + 2              # pre-projection bias           (1 row)
R_XDB   = R_PREB + 1              # x_drug projection bias        (1 row)
R_OUTW  = R_XDB + 1               # output head weight (out_w.T)  (1 row)
R_OUTB  = R_OUTW + 1              # output head bias (broadcast)  (1 row)
R_HMASK = R_OUTB + 1              # per-head 0/1 block masks      (NUM_HEADS rows)
R_CNL   = R_HMASK + NUM_HEADS

# Per-layer slab `wl` (NUM_LAYERS, WROWS+1, WCOLS): rows 0..WROWS-1 weights,
# row WROWS biases.  Column blocks:
C_SAQKV = 0                                   # fused self-attn Wq|Wk|Wv (LN1+scale folded)
C_SAO   = C_SAQKV + 3 * D_MODEL               # self-attn out proj
C_CAQ   = C_SAO + D_MODEL                     # cross-attn Wq (LN3+scale folded)
C_CAO   = C_CAQ + D_MODEL                     # cross-attn out proj
C_GU    = C_CAO + D_MODEL                     # fused gate|up (LN4 folded)
C_WD    = C_GU + 2 * MLP_HIDDEN               # MLP down proj
WCOLS   = C_WD + D_MODEL
WROWS   = max(D_MODEL, MLP_HIDDEN)


# ---------------- single fused Pallas kernel --------------------------------------
def fused_edm_kernel(x_ref, xc_ref, xd_ref, cond_ref, mask_ref,
                     cnl_ref, wkv_ref, wl_ref, o_ref):
    """Whole EDM forward for the full (tiny) batch in one kernel invocation.
    Dropout is inference-mode identity."""
    B, Lq = x_ref.shape
    _, Lk, Dc = xd_ref.shape
    D, H, MH = D_MODEL, NUM_HEADS, MLP_HIDDEN
    NL = wl_ref.shape[0]
    f32 = jnp.float32

    # ---- call-invariant constants: one slab load, value slices --------------------
    cnl = cnl_ref[...]
    xdw   = cnl[R_XDW:R_XDW + Dc, :]            # (Dc, D)
    pos   = cnl[R_POS:R_POS + Lq, :]            # (Lq, D)
    prew0 = cnl[R_PREW:R_PREW + 1, :]           # (1, D)
    prew1 = cnl[R_PREW + 1:R_PREW + 2, :]       # (1, D)
    preb  = cnl[R_PREB:R_PREB + 1, :]           # (1, D)
    xdb   = cnl[R_XDB:R_XDB + 1, :]             # (1, D)
    outw  = cnl[R_OUTW:R_OUTW + 1, :]           # (1, D)
    outb  = cnl[R_OUTB:R_OUTB + 1, 0:1]         # (1, 1)
    hmask_b = cnl[R_HMASK:R_HMASK + H, :][None, :, None, :]   # (1, H, 1, D)

    # ---- per-batch conditioning (packed in one tiny operand) ----------------------
    cond = cond_ref[...]                        # (B, 3 + D)
    c_in    = cond[:, 0:1]                      # (B, 1)
    c_skip  = cond[:, 1:2]
    c_out   = cond[:, 2:3]
    sig_emb = cond[:, 3:3 + D][:, None, :]      # (B, 1, D)

    # additive key-padding bias (1.0 at padded positions -> NEG_INF)
    kp_bias = (mask_ref[...] * NEG_INF)[:, None, None, :]      # (B, 1, 1, Lk)

    def norm(v):
        # LayerNorm without affine: every affine (w, b) is folded into the
        # following linear layer at pack time.
        mu = jnp.mean(v, axis=-1, keepdims=True)
        var = jnp.mean((v - mu) * (v - mu), axis=-1, keepdims=True)
        return (v - mu) * jax.lax.rsqrt(var + LN_EPS)

    def mha(q, k, v, bias):
        # Batched over (batch, head) with 3-D contractions; heads are selected by
        # 0/1 block masks on K/V only (Q is just broadcast), so the contraction
        # runs over the full lane-dense D axis and the head sum == head concat.
        Lq_, Lk_ = q.shape[1], k.shape[1]
        qh = jnp.broadcast_to(q[:, None], (B, H, Lq_, D)).reshape(B * H, Lq_, D)
        kh = (k[:, None] * hmask_b).reshape(B * H, Lk_, D)
        vh = (v[:, None] * hmask_b).reshape(B * H, Lk_, D)
        s = jnp.einsum('xqd,xkd->xqk', qh, kh,
                       preferred_element_type=f32).reshape(B, H, Lq_, Lk_)
        if bias is not None:
            s = s + bias
        s = s - jnp.max(s, axis=-1, keepdims=True)
        p = jnp.exp(s)
        p = p * pl.reciprocal(jnp.sum(p, axis=-1, keepdims=True), approx=True)
        o = jnp.einsum('xqk,xkd->xqd', p.reshape(B * H, Lq_, Lk_), vh,
                       preferred_element_type=f32)
        return jnp.sum(o.reshape(B, H, Lq_, D), axis=1)        # (B, Lq_, D)

    # ---- pre-projection (Din=2 as elementwise VPU), sigma emb, pos enc ------------
    hs = ((c_in * x_ref[...])[:, :, None] * prew0
          + xc_ref[...][:, :, None] * prew1
          + preb + sig_emb + pos[None])                        # (B, Lq, D)

    # ---- drug branch: projection + LN + BOTH layers' fused KV (layer-invariant) ---
    hd = jnp.dot(xd_ref[...].reshape(B * Lk, Dc), xdw,
                 preferred_element_type=f32) + xdb
    hd = hd.reshape(B, Lk, D) + sig_emb                        # (B, Lk, D)
    wkv = wkv_ref[...]                                         # (D+1, NL*2*D)
    kv_all = (jnp.dot(norm(hd).reshape(B * Lk, D), wkv[0:D, :],
                      preferred_element_type=f32)
              + wkv[D:D + 1, :]).reshape(B, Lk, NL * 2 * D)

    # ---- transformer blocks (NL is tiny -> unrolled) -------------------------------
    for l in range(NL):
        wl = wl_ref[l]                                         # (WROWS+1, WCOLS)
        bl = wl[WROWS:WROWS + 1, :]                            # bias row

        # self attention (pre-norm; LN1 affine + 1/sqrt(head_dim) folded into W)
        qkv = (jnp.dot(norm(hs).reshape(B * Lq, D), wl[0:D, C_SAQKV:C_SAO],
                       preferred_element_type=f32)
               + bl[:, C_SAQKV:C_SAO]).reshape(B, Lq, 3 * D)
        a = mha(qkv[:, :, 0:D], qkv[:, :, D:2 * D], qkv[:, :, 2 * D:3 * D], None)
        hs = hs + (jnp.dot(a.reshape(B * Lq, D), wl[0:D, C_SAO:C_CAQ],
                           preferred_element_type=f32)
                   + bl[:, C_SAO:C_CAQ]).reshape(B, Lq, D)

        # cross attention over x_drug (LN3 folded into Wq; K/V hoisted above loop)
        qc = (jnp.dot(norm(hs).reshape(B * Lq, D), wl[0:D, C_CAQ:C_CAO],
                      preferred_element_type=f32)
              + bl[:, C_CAQ:C_CAO]).reshape(B, Lq, D)
        a = mha(qc,
                kv_all[:, :, 2 * D * l:2 * D * l + D],
                kv_all[:, :, 2 * D * l + D:2 * D * (l + 1)],
                kp_bias)
        hs = hs + (jnp.dot(a.reshape(B * Lq, D), wl[0:D, C_CAO:C_GU],
                           preferred_element_type=f32)
                   + bl[:, C_CAO:C_GU]).reshape(B, Lq, D)

        # gated MLP (LN4 affine folded into fused gate|up weights)
        # TODO(synk): GatedMLP source not provided; using SiLU-gated (SwiGLU) form.
        gu = (jnp.dot(norm(hs).reshape(B * Lq, D), wl[0:D, C_GU:C_WD],
                      preferred_element_type=f32) + bl[:, C_GU:C_WD])
        g = gu[:, 0:MH]
        u = gu[:, MH:2 * MH]
        ff = (g * jax.nn.sigmoid(g)) * u
        hs = hs + (jnp.dot(ff, wl[0:MH, C_WD:C_WD + D],
                           preferred_element_type=f32)
                   + bl[:, C_WD:C_WD + D]).reshape(B, Lq, D)

    # ---- output head (Dout=1 as lane reduction) + EDM epilogue, (B, Lq) store -----
    F_x = jnp.sum(hs * outw, axis=-1) + outb                   # (B, Lq)
    o_ref[...] = c_skip * x_ref[...] + c_out * F_x


# ---------------- one-time weight packing (hoisted out of the call path) ----------
def pack_params(raw):
    """Fold LN affines / attention scale into the linear layers and pack everything
    into three constant slabs.  Call ONCE at init; store the result."""
    D, H, MH = D_MODEL, NUM_HEADS, MLP_HIDDEN
    hd = D // H
    scale = float(hd) ** -0.5

    def _pr(w):  # pad a weight block to WROWS rows
        return jnp.pad(w, ((0, WROWS - w.shape[0]), (0, 0)))

    # ---- non-layer constant slab (R_CNL, D) ----
    hmask = jnp.repeat(jnp.eye(H, dtype=jnp.float32), hd, axis=1)       # (H, D)
    cnl = jnp.concatenate([
        raw["xdrug_w"],                               # (D_COND, D)
        raw["pos_enc"],                               # (D_PRE, D)
        raw["pre_w"],                                 # (2, D)
        raw["pre_b"],                                 # (1, D)
        raw["xdrug_b"],                               # (1, D)
        raw["out_w"].T,                               # (1, D)
        jnp.full((1, D), raw["out_b"][0, 0], jnp.float32),
        hmask,                                        # (H, D)
    ], axis=0)

    wl_rows, wkv_cols, bkv_cols = [], [], []
    for blk in raw["blocks"]:
        w1, b1 = blk["ln_w"][0], blk["ln_b"][0]
        w2, b2 = blk["ln_w"][1], blk["ln_b"][1]
        w3, b3 = blk["ln_w"][2], blk["ln_b"][2]
        w4, b4 = blk["ln_w"][3], blk["ln_b"][3]

        Wq, Wk, Wv, Wo = blk["sa_w"]
        bq, bk, bv, bo = blk["sa_b"]
        sa_wqkv = jnp.concatenate([scale * (w1[:, None] * Wq),
                                   w1[:, None] * Wk,
                                   w1[:, None] * Wv], axis=1)
        sa_bqkv = jnp.concatenate([scale * (b1 @ Wq + bq),
                                   b1 @ Wk + bk,
                                   b1 @ Wv + bv], axis=0)[None, :]

        cWq, cWk, cWv, cWo = blk["ca_w"]
        cbq, cbk, cbv, cbo = blk["ca_b"]
        ca_wq = scale * (w3[:, None] * cWq)
        ca_bq = (scale * (b3 @ cWq + cbq))[None, :]

        # layer-invariant drug branch: fold norm2 affine into fused K|V weights
        wkv_cols.append(jnp.concatenate([w2[:, None] * cWk,
                                         w2[:, None] * cWv], axis=1))   # (D, 2D)
        bkv_cols.append(jnp.concatenate([b2 @ cWk + cbk,
                                         b2 @ cWv + cbv], axis=0)[None, :])

        wgu = jnp.concatenate([w4[:, None] * blk["wg"],
                               w4[:, None] * blk["wu"]], axis=1)        # (D, 2*MH)
        bgu = jnp.concatenate([b4 @ blk["wg"] + blk["bg"][0],
                               b4 @ blk["wu"] + blk["bu"][0]], axis=0)[None, :]

        w_cat = jnp.concatenate([_pr(sa_wqkv), _pr(Wo), _pr(ca_wq), _pr(cWo),
                                 _pr(wgu), _pr(blk["wd"])], axis=1)     # (WROWS, WCOLS)
        b_cat = jnp.concatenate([sa_bqkv, bo[None, :], ca_bq, cbo[None, :],
                                 bgu, blk["bd"]], axis=1)               # (1, WCOLS)
        wl_rows.append(jnp.concatenate([w_cat, b_cat], axis=0))         # (WROWS+1, WCOLS)

    wl = jnp.stack(wl_rows, axis=0)                                      # (NL, WROWS+1, WCOLS)
    wkv = jnp.concatenate([jnp.concatenate(wkv_cols, axis=1),
                           jnp.concatenate(bkv_cols, axis=1)], axis=0)   # (D+1, NL*2D)

    return {"cnl": cnl, "wkv": wkv, "wl": wl}


# ---------------- per-call glue (tiny: only sigma-dependent preconditioning) ------
def sigma_embedding(c_noise, d_model):
    # TODO(synk): EDM_PositionalEmbedding source not provided; using the standard
    # Karras-EDM sinusoidal embedding, emb = [cos(x*f), sin(x*f)].
    half = d_model // 2
    freqs = (1.0 / 10000.0) ** (jnp.arange(half, dtype=jnp.float32) / half)
    args = c_noise[:, None] * freqs[None, :]
    return jnp.concatenate([jnp.cos(args), jnp.sin(args)], axis=-1)


@jax.jit
def edm_forward(packed, x, x_cond, x_drug, sigma, mask):
    x = x.astype(jnp.float32)
    x_cond = x_cond.astype(jnp.float32)
    x_drug = x_drug.astype(jnp.float32)
    sigma = sigma.astype(jnp.float32).reshape(-1, 1)                    # (B, 1)
    B, Lq = x.shape

    sd2 = SIGMA_DATA ** 2
    c_skip = sd2 / (sigma ** 2 + sd2)
    c_out = sigma * SIGMA_DATA / jnp.sqrt(sigma ** 2 + sd2)
    c_in = 1.0 / jnp.sqrt(sd2 + sigma ** 2)
    c_noise = jnp.log(sigma) / 4.0
    sig_emb = sigma_embedding(c_noise[:, 0], D_MODEL)                   # (B, D)
    cond = jnp.concatenate([c_in, c_skip, c_out, sig_emb], axis=-1)     # (B, 3+D)

    # TODO(synk): getmask() source not provided; `mask` is assumed to already be a
    # (B, Lk) bool key_padding_mask (True = padded position, PyTorch convention).
    maskf = mask.astype(jnp.float32)                                    # (B, Lk)

    return pl.pallas_call(
        fused_edm_kernel,
        out_shape=jax.ShapeDtypeStruct((B, Lq), jnp.float32),
    )(x, x_cond, x_drug, cond, maskf,
      packed["cnl"], packed["wkv"], packed["wl"])


# ---------------- pure-JAX reference (uses the RAW / unfolded params) -------------
def _ref_block(x, xd, mask_bias, p):
    def ln(v, w, b):
        mu = v.mean(-1, keepdims=True)
        var = ((v - mu) ** 2).mean(-1, keepdims=True)
        return (v - mu) / jnp.sqrt(var + LN_EPS) * w + b

    def attn(q_in, kv_in, w, b, bias):
        B, Lq, D = q_in.shape
        hd = D // NUM_HEADS
        q = q_in @ w[0] + b[0]
        k = kv_in @ w[1] + b[1]
        v = kv_in @ w[2] + b[2]
        qh = q.reshape(B, Lq, NUM_HEADS, hd).transpose(0, 2, 1, 3)
        kh = k.reshape(B, -1, NUM_HEADS, hd).transpose(0, 2, 1, 3)
        vh = v.reshape(B, -1, NUM_HEADS, hd).transpose(0, 2, 1, 3)
        s = jnp.einsum("bhqd,bhkd->bhqk", qh, kh) * (hd ** -0.5)
        if bias is not None:
            s = s + bias[:, None, :, :]
        pw = jax.nn.softmax(s, axis=-1)
        o = jnp.einsum("bhqk,bhkd->bhqd", pw, vh).transpose(0, 2, 1, 3).reshape(B, Lq, D)
        return o @ w[3] + b[3]

    lnw, lnb = p["ln_w"], p["ln_b"]
    x1 = ln(x, lnw[0], lnb[0])
    x = attn(x1, x1, p["sa_w"], p["sa_b"], None) + x
    xdn = ln(xd, lnw[1], lnb[1])
    x3 = ln(x, lnw[2], lnb[2])
    x = attn(x3, xdn, p["ca_w"], p["ca_b"], mask_bias) + x
    x4 = ln(x, lnw[3], lnb[3])
    g = x4 @ p["wg"] + p["bg"]
    u = x4 @ p["wu"] + p["bu"]
    ff = ((g * jax.nn.sigmoid(g)) * u) @ p["wd"] + p["bd"]
    return ff + x


def ref_forward(params, x, x_cond, x_drug, sigma, mask):
    x = x.astype(jnp.float32)
    sigma = sigma.astype(jnp.float32).reshape(-1, 1)
    sd2 = SIGMA_DATA ** 2
    c_skip = sd2 / (sigma ** 2 + sd2)
    c_out = sigma * SIGMA_DATA / jnp.sqrt(sigma ** 2 + sd2)
    c_in = 1.0 / jnp.sqrt(sd2 + sigma ** 2)
    c_noise = jnp.log(sigma) / 4.0
    B, Lq = x.shape
    x_input = jnp.stack([c_in * x, x_cond.astype(jnp.float32)], axis=-1)
    mask_bias = jnp.where(mask, NEG_INF, 0.0).astype(jnp.float32)[:, None, :]
    sig_emb = sigma_embedding(c_noise.reshape(-1), D_MODEL)
    h = x_input @ params["pre_w"] + params["pre_b"]
    hd_ = x_drug.astype(jnp.float32) @ params["xdrug_w"] + params["xdrug_b"]
    h = h + sig_emb[:, None, :] + params["pos_enc"][None]
    hd_ = hd_ + sig_emb[:, None, :]
    for blk in params["blocks"]:
        h = _ref_block(h, hd_, mask_bias, blk)
    F_x = (h @ params["out_w"] + params["out_b"]).reshape(B, Lq)
    return c_skip * x + c_out * F_x


# ---------------- deterministic parameter init ------------------------------------
def init_params(seed=117):
    key = jax.random.PRNGKey(seed)
    keys = iter(jax.random.split(key, 128))
    nk = lambda: next(keys)

    def nrm(k, shape, scale=0.05):
        return scale * jax.random.normal(k, shape, dtype=jnp.float32)

    params = {
        "pos_enc": jax.random.normal(nk(), (D_PRE, D_MODEL), dtype=jnp.float32),
        "pre_w": nrm(nk(), (2, D_MODEL)),
        "pre_b": nrm(nk(), (1, D_MODEL)),
        "xdrug_w": nrm(nk(), (D_COND, D_MODEL)),
        "xdrug_b": nrm(nk(), (1, D_MODEL)),
        "out_w": nrm(nk(), (D_MODEL, 1)),
        "out_b": nrm(nk(), (1, 1)),
        "blocks": [],
    }
    for _ in range(NUM_LAYERS):
        params["blocks"].append({
            # non-trivial LN affines / biases so the pack-time folding is exercised
            "ln_w": 1.0 + nrm(nk(), (4, D_MODEL), 0.1),
            "ln_b": nrm(nk(), (4, D_MODEL)),
            "sa_w": nrm(nk(), (4, D_MODEL, D_MODEL)),   # rows: Wq, Wk, Wv, Wo
            "sa_b": nrm(nk(), (4, D_MODEL)),
            "ca_w": nrm(nk(), (4, D_MODEL, D_MODEL)),
            "ca_b": nrm(nk(), (4, D_MODEL)),
            "wg": nrm(nk(), (D_MODEL, MLP_HIDDEN)),
            "bg": nrm(nk(), (1, MLP_HIDDEN)),
            "wu": nrm(nk(), (D_MODEL, MLP_HIDDEN)),
            "bu": nrm(nk(), (1, MLP_HIDDEN)),
            "wd": nrm(nk(), (MLP_HIDDEN, D_MODEL)),
            "bd": nrm(nk(), (1, D_MODEL)),
        })
    return params


# ---------------- main --------------------------------------------------------------
if __name__ == "__main__":
    B = 2
    key = jax.random.PRNGKey(0)
    k1, k2, k3, k4 = jax.random.split(key, 4)
    x = jax.random.normal(k1, (B, D_PRE), dtype=jnp.float32)
    x_cond = jax.random.normal(k2, (B, D_PRE), dtype=jnp.float32)
    x_drug = jax.random.normal(k3, (B, L_DRUG, D_COND), dtype=jnp.float32)
    sigma = jnp.exp(0.5 * jax.random.normal(k4, (B,), dtype=jnp.float32))  # > 0
    mask = jnp.zeros((B, L_DRUG), dtype=bool)
    mask = mask.at[0, L_DRUG - 2:].set(True).at[1, L_DRUG - 3:].set(True)

    raw_params = init_params(117)
    packed = pack_params(raw_params)        # ONCE at init; reused every call

    out = jax.block_until_ready(edm_forward(packed, x, x_cond, x_drug, sigma, mask))
    ref = ref_forward(raw_params, x, x_cond, x_drug, sigma, mask)
    np.testing.assert_allclose(np.asarray(out), np.asarray(ref), rtol=1e-3, atol=1e-3)
    print("KERNEL_OK")
</pallas_src>

<mosaic_0001>
module attributes {stable_mosaic.version = 11 : i64} {
  func.func @fused_edm_kernel(%arg0: memref<2x16xf32, #tpu.memory_space<vmem>>, %arg1: memref<2x16xf32, #tpu.memory_space<vmem>>, %arg2: memref<2x8x64xf32, #tpu.memory_space<vmem>>, %arg3: memref<2x35xf32, #tpu.memory_space<vmem>>, %arg4: memref<2x8xf32, #tpu.memory_space<vmem>>, %arg5: memref<90x32xf32, #tpu.memory_space<vmem>>, %arg6: memref<33x128xf32, #tpu.memory_space<vmem>>, %arg7: memref<2x33x288xf32, #tpu.memory_space<vmem>>, %arg8: memref<2x16xf32, #tpu.memory_space<vmem>>) attributes {dimension_semantics = [], scalar_prefetch = 0 : i64, scratch_operands = 0 : i64, tpu.core_type = #tpu.core_type<tc>} {
    %c0 = arith.constant 0 : index
    %c0_0 = arith.constant 0 : index
    %0 = vector.load %arg5[%c0, %c0_0] : memref<90x32xf32, #tpu.memory_space<vmem>>, vector<90x32xf32>
    %1 = vector.extract_strided_slice %0 {offsets = [0, 0], sizes = [64, 32], strides = [1, 1]} : vector<90x32xf32> to vector<64x32xf32>
    %2 = vector.extract_strided_slice %0 {offsets = [64, 0], sizes = [16, 32], strides = [1, 1]} : vector<90x32xf32> to vector<16x32xf32>
    %3 = vector.extract_strided_slice %0 {offsets = [80, 0], sizes = [1, 32], strides = [1, 1]} : vector<90x32xf32> to vector<1x32xf32>
    %4 = vector.extract_strided_slice %0 {offsets = [81, 0], sizes = [1, 32], strides = [1, 1]} : vector<90x32xf32> to vector<1x32xf32>
    %5 = vector.extract_strided_slice %0 {offsets = [82, 0], sizes = [1, 32], strides = [1, 1]} : vector<90x32xf32> to vector<1x32xf32>
    %6 = vector.extract_strided_slice %0 {offsets = [83, 0], sizes = [1, 32], strides = [1, 1]} : vector<90x32xf32> to vector<1x32xf32>
    %7 = vector.extract_strided_slice %0 {offsets = [84, 0], sizes = [1, 32], strides = [1, 1]} : vector<90x32xf32> to vector<1x32xf32>
    %8 = vector.extract_strided_slice %0 {offsets = [85, 0], sizes = [1, 1], strides = [1, 1]} : vector<90x32xf32> to vector<1x1xf32>
    %9 = vector.extract_strided_slice %0 {offsets = [86, 0], sizes = [4, 32], strides = [1, 1]} : vector<90x32xf32> to vector<4x32xf32>
    %10 = vector.shape_cast %9 : vector<4x32xf32> to vector<1x4x1x32xf32>
    %c0_1 = arith.constant 0 : index
    %c0_2 = arith.constant 0 : index
    %11 = vector.load %arg3[%c0_1, %c0_2] : memref<2x35xf32, #tpu.memory_space<vmem>>, vector<2x35xf32>
    %12 = vector.extract_strided_slice %11 {offsets = [0, 0], sizes = [2, 1], strides = [1, 1]} : vector<2x35xf32> to vector<2x1xf32>
    %13 = vector.extract_strided_slice %11 {offsets = [0, 1], sizes = [2, 1], strides = [1, 1]} : vector<2x35xf32> to vector<2x1xf32>
    %14 = vector.extract_strided_slice %11 {offsets = [0, 2], sizes = [2, 1], strides = [1, 1]} : vector<2x35xf32> to vector<2x1xf32>
    %15 = vector.extract_strided_slice %11 {offsets = [0, 3], sizes = [2, 32], strides = [1, 1]} : vector<2x35xf32> to vector<2x32xf32>
    %16 = vector.shape_cast %15 : vector<2x32xf32> to vector<2x1x32xf32>
    %c0_3 = arith.constant 0 : index
    %c0_4 = arith.constant 0 : index
    %17 = vector.load %arg4[%c0_3, %c0_4] : memref<2x8xf32, #tpu.memory_space<vmem>>, vector<2x8xf32>
    %cst = arith.constant -1.000000e+09 : f32
    %18 = vector.broadcast %cst : f32 to vector<2x8xf32>
    %19 = arith.mulf %17, %18 : vector<2x8xf32>
    %20 = vector.shape_cast %19 : vector<2x8xf32> to vector<2x1x1x8xf32>
    %c0_5 = arith.constant 0 : index
    %c0_6 = arith.constant 0 : index
    %21 = vector.load %arg0[%c0_5, %c0_6] : memref<2x16xf32, #tpu.memory_space<vmem>>, vector<2x16xf32>
    %22 = vector.broadcast %12 : vector<2x1xf32> to vector<2x16xf32>
    %23 = arith.mulf %22, %21 : vector<2x16xf32>
    %24 = vector.shape_cast %23 : vector<2x16xf32> to vector<2x16x1xf32>
    %25 = vector.shape_cast %3 : vector<1x32xf32> to vector<1x1x32xf32>
    %26 = vector.broadcast %24 : vector<2x16x1xf32> to vector<2x16x32xf32>
    %27 = vector.broadcast %25 : vector<1x1x32xf32> to vector<2x16x32xf32>
    %28 = arith.mulf %26, %27 : vector<2x16x32xf32>
    %c0_7 = arith.constant 0 : index
    %c0_8 = arith.constant 0 : index
    %29 = vector.load %arg1[%c0_7, %c0_8] : memref<2x16xf32, #tpu.memory_space<vmem>>, vector<2x16xf32>
    %30 = vector.shape_cast %29 : vector<2x16xf32> to vector<2x16x1xf32>
    %31 = vector.shape_cast %4 : vector<1x32xf32> to vector<1x1x32xf32>
    %32 = vector.broadcast %30 : vector<2x16x1xf32> to vector<2x16x32xf32>
    %33 = vector.broadcast %31 : vector<1x1x32xf32> to vector<2x16x32xf32>
    %34 = arith.mulf %32, %33 : vector<2x16x32xf32>
    %35 = arith.addf %28, %34 : vector<2x16x32xf32>
    %36 = vector.shape_cast %5 : vector<1x32xf32> to vector<1x1x32xf32>
    %37 = vector.broadcast %36 : vector<1x1x32xf32> to vector<2x16x32xf32>
    %38 = arith.addf %35, %37 : vector<2x16x32xf32>
    %39 = vector.broadcast %16 : vector<2x1x32xf32> to vector<2x16x32xf32>
    %40 = arith.addf %38, %39 : vector<2x16x32xf32>
    %41 = vector.shape_cast %2 : vector<16x32xf32> to vector<1x16x32xf32>
    %42 = vector.broadcast %41 : vector<1x16x32xf32> to vector<2x16x32xf32>
    %43 = arith.addf %40, %42 : vector<2x16x32xf32>
    %c0_9 = arith.constant 0 : index
    %c0_10 = arith.constant 0 : index
    %c0_11 = arith.constant 0 : index
    %44 = vector.load %arg2[%c0_9, %c0_10, %c0_11] : memref<2x8x64xf32, #tpu.memory_space<vmem>>, vector<2x8x64xf32>
    %45 = vector.shape_cast %44 : vector<2x8x64xf32> to vector<16x64xf32>
    %cst_12 = arith.constant dense<0.000000e+00> : vector<16x32xf32>
    %46 = tpu.matmul %45, %1, %cst_12 {dimension_numbers = #tpu.dot_dimension_numbers<[1], [0], [0], [1], [0, 0, 1, 1], [], []>} : vector<16x64xf32>, vector<64x32xf32>, vector<16x32xf32> -> vector<16x32xf32>
    %47 = vector.broadcast %6 : vector<1x32xf32> to vector<16x32xf32>
    %48 = arith.addf %46, %47 : vector<16x32xf32>
    %49 = vector.shape_cast %48 : vector<16x32xf32> to vector<2x8x32xf32>
    %50 = vector.broadcast %16 : vector<2x1x32xf32> to vector<2x8x32xf32>
    %51 = arith.addf %49, %50 : vector<2x8x32xf32>
    %c0_13 = arith.constant 0 : index
    %c0_14 = arith.constant 0 : index
    %52 = vector.load %arg6[%c0_13, %c0_14] : memref<33x128xf32, #tpu.memory_space<vmem>>, vector<33x128xf32>
    %cst_15 = arith.constant dense<0.000000e+00> : vector<2x8xf32>
    %53 = vector.multi_reduction <add>, %51, %cst_15 [2] : vector<2x8x32xf32> to vector<2x8xf32>
    %54 = vector.shape_cast %53 : vector<2x8xf32> to vector<2x8x1xf32>
    %cst_16 = arith.constant 3.200000e+01 : f32
    %55 = vector.broadcast %cst_16 : f32 to vector<2x8x1xf32>
    %56 = arith.divf %54, %55 : vector<2x8x1xf32>
    %57 = vector.broadcast %56 : vector<2x8x1xf32> to vector<2x8x32xf32>
    %58 = arith.subf %51, %57 : vector<2x8x32xf32>
    %59 = vector.broadcast %56 : vector<2x8x1xf32> to vector<2x8x32xf32>
    %60 = arith.subf %51, %59 : vector<2x8x32xf32>
    %61 = arith.mulf %58, %60 : vector<2x8x32xf32>
    %cst_17 = arith.constant dense<0.000000e+00> : vector<2x8xf32>
    %62 = vector.multi_reduction <add>, %61, %cst_17 [2] : vector<2x8x32xf32> to vector<2x8xf32>
    %63 = vector.shape_cast %62 : vector<2x8xf32> to vector<2x8x1xf32>
    %cst_18 = arith.constant 3.200000e+01 : f32
    %64 = vector.broadcast %cst_18 : f32 to vector<2x8x1xf32>
    %65 = arith.divf %63, %64 : vector<2x8x1xf32>
    %66 = vector.broadcast %56 : vector<2x8x1xf32> to vector<2x8x32xf32>
    %67 = arith.subf %51, %66 : vector<2x8x32xf32>
    %cst_19 = arith.constant 9.99999974E-6 : f32
    %68 = vector.broadcast %cst_19 : f32 to vector<2x8x1xf32>
    %69 = arith.addf %65, %68 : vector<2x8x1xf32>
    %70 = math.rsqrt %69 : vector<2x8x1xf32>
    %71 = vector.broadcast %70 : vector<2x8x1xf32> to vector<2x8x32xf32>
    %72 = arith.mulf %67, %71 : vector<2x8x32xf32>
    %73 = vector.shape_cast %72 : vector<2x8x32xf32> to vector<16x32xf32>
    %74 = vector.extract_strided_slice %52 {offsets = [0, 0], sizes = [32, 128], strides = [1, 1]} : vector<33x128xf32> to vector<32x128xf32>
    %cst_20 = arith.constant dense<0.000000e+00> : vector<16x128xf32>
    %75 = tpu.matmul %73, %74, %cst_20 {dimension_numbers = #tpu.dot_dimension_numbers<[1], [0], [0], [1], [0, 0, 1, 1], [], []>} : vector<16x32xf32>, vector<32x128xf32>, vector<16x128xf32> -> vector<16x128xf32>
    %76 = vector.extract_strided_slice %52 {offsets = [32, 0], sizes = [1, 128], strides = [1, 1]} : vector<33x128xf32> to vector<1x128xf32>
    %77 = vector.broadcast %76 : vector<1x128xf32> to vector<16x128xf32>
    %78 = arith.addf %75, %77 : vector<16x128xf32>
    %79 = vector.shape_cast %78 : vector<16x128xf32> to vector<2x8x128xf32>
    %c0_21 = arith.constant 0 : index
    %c0_22 = arith.constant 0 : index
    %c0_23 = arith.constant 0 : index
    %80 = vector.load %arg7[%c0_21, %c0_22, %c0_23] : memref<2x33x288xf32, #tpu.memory_space<vmem>>, vector<1x33x288xf32>
    %81 = vector.shape_cast %80 : vector<1x33x288xf32> to vector<33x288xf32>
    %82 = vector.extract_strided_slice %81 {offsets = [32, 0], sizes = [1, 288], strides = [1, 1]} : vector<33x288xf32> to vector<1x288xf32>
    %cst_24 = arith.constant dense<0.000000e+00> : vector<2x16xf32>
    %83 = vector.multi_reduction <add>, %43, %cst_24 [2] : vector<2x16x32xf32> to vector<2x16xf32>
    %84 = vector.shape_cast %83 : vector<2x16xf32> to vector<2x16x1xf32>
    %cst_25 = arith.constant 3.200000e+01 : f32
    %85 = vector.broadcast %cst_25 : f32 to vector<2x16x1xf32>
    %86 = arith.divf %84, %85 : vector<2x16x1xf32>
    %87 = vector.broadcast %86 : vector<2x16x1xf32> to vector<2x16x32xf32>
    %88 = arith.subf %43, %87 : vector<2x16x32xf32>
    %89 = vector.broadcast %86 : vector<2x16x1xf32> to vector<2x16x32xf32>
    %90 = arith.subf %43, %89 : vector<2x16x32xf32>
    %91 = arith.mulf %88, %90 : vector<2x16x32xf32>
    %cst_26 = arith.constant dense<0.000000e+00> : vector<2x16xf32>
    %92 = vector.multi_reduction <add>, %91, %cst_26 [2] : vector<2x16x32xf32> to vector<2x16xf32>
    %93 = vector.shape_cast %92 : vector<2x16xf32> to vector<2x16x1xf32>
    %cst_27 = arith.constant 3.200000e+01 : f32
    %94 = vector.broadcast %cst_27 : f32 to vector<2x16x1xf32>
    %95 = arith.divf %93, %94 : vector<2x16x1xf32>
    %96 = vector.broadcast %86 : vector<2x16x1xf32> to vector<2x16x32xf32>
    %97 = arith.subf %43, %96 : vector<2x16x32xf32>
    %cst_28 = arith.constant 9.99999974E-6 : f32
    %98 = vector.broadcast %cst_28 : f32 to vector<2x16x1xf32>
    %99 = arith.addf %95, %98 : vector<2x16x1xf32>
    %100 = math.rsqrt %99 : vector<2x16x1xf32>
    %101 = vector.broadcast %100 : vector<2x16x1xf32> to vector<2x16x32xf32>
    %102 = arith.mulf %97, %101 : vector<2x16x32xf32>
    %103 = vector.shape_cast %102 : vector<2x16x32xf32> to vector<32x32xf32>
    %104 = vector.extract_strided_slice %81 {offsets = [0, 0], sizes = [32, 96], strides = [1, 1]} : vector<33x288xf32> to vector<32x96xf32>
    %cst_29 = arith.constant dense<0.000000e+00> : vector<32x96xf32>
    %105 = tpu.matmul %103, %104, %cst_29 {dimension_numbers = #tpu.dot_dimension_numbers<[1], [0], [0], [1], [0, 0, 1, 1], [], []>} : vector<32x32xf32>, vector<32x96xf32>, vector<32x96xf32> -> vector<32x96xf32>
    %106 = vector.extract_strided_slice %82 {offsets = [0, 0], sizes = [1, 96], strides = [1, 1]} : vector<1x288xf32> to vector<1x96xf32>
    %107 = vector.broadcast %106 : vector<1x96xf32> to vector<32x96xf32>
    %108 = arith.addf %105, %107 : vector<32x96xf32>
    %109 = vector.shape_cast %108 : vector<32x96xf32> to vector<2x16x96xf32>
    %110 = vector.extract_strided_slice %109 {offsets = [0, 0, 0], sizes = [2, 16, 32], strides = [1, 1, 1]} : vector<2x16x96xf32> to vector<2x16x32xf32>
    %111 = vector.extract_strided_slice %109 {offsets = [0, 0, 32], sizes = [2, 16, 32], strides = [1, 1, 1]} : vector<2x16x96xf32> to vector<2x16x32xf32>
    %112 = vector.extract_strided_slice %109 {offsets = [0, 0, 64], sizes = [2, 16, 32], strides = [1, 1, 1]} : vector<2x16x96xf32> to vector<2x16x32xf32>
    %113 = vector.shape_cast %110 : vector<2x16x32xf32> to vector<2x1x16x32xf32>
    %114 = vector.shape_cast %113 : vector<2x1x16x32xf32> to vector<2x1x16x32xf32>
    %115 = vector.broadcast %114 : vector<2x1x16x32xf32> to vector<2x4x16x32xf32>
    %116 = vector.shape_cast %115 : vector<2x4x16x32xf32> to vector<8x16x32xf32>
    %117 = vector.shape_cast %111 : vector<2x16x32xf32> to vector<2x1x16x32xf32>
    %118 = vector.broadcast %117 : vector<2x1x16x32xf32> to vector<2x4x16x32xf32>
    %119 = vector.broadcast %10 : vector<1x4x1x32xf32> to vector<2x4x16x32xf32>
    %120 = arith.mulf %118, %119 : vector<2x4x16x32xf32>
    %121 = vector.shape_cast %120 : vector<2x4x16x32xf32> to vector<8x16x32xf32>
    %122 = vector.shape_cast %112 : vector<2x16x32xf32> to vector<2x1x16x32xf32>
    %123 = vector.broadcast %122 : vector<2x1x16x32xf32> to vector<2x4x16x32xf32>
    %124 = vector.broadcast %10 : vector<1x4x1x32xf32> to vector<2x4x16x32xf32>
    %125 = arith.mulf %123, %124 : vector<2x4x16x32xf32>
    %126 = vector.shape_cast %125 : vector<2x4x16x32xf32> to vector<8x16x32xf32>
    "tpu.trace_start"() <{level = 10 : i32, message = "xqd,xkd->xqk"}> : () -> ()
    %cst_30 = arith.constant dense<0.000000e+00> : vector<8x16x16xf32>
    %127 = tpu.matmul %116, %121, %cst_30 {dimension_numbers = #tpu.dot_dimension_numbers<[2], [2], [1], [1], [0, 0, 0, 1, 1, 1], [0], [0]>} : vector<8x16x32xf32>, vector<8x16x32xf32>, vector<8x16x16xf32> -> vector<8x16x16xf32>
    "tpu.trace_stop"() : () -> ()
    %128 = vector.shape_cast %127 : vector<8x16x16xf32> to vector<2x4x16x16xf32>
    %cst_31 = arith.constant dense<0xFF800000> : vector<2x4x16xf32>
    %129 = vector.multi_reduction <maximumf>, %128, %cst_31 [3] : vector<2x4x16x16xf32> to vector<2x4x16xf32>
    %130 = vector.shape_cast %129 : vector<2x4x16xf32> to vector<2x4x16x1xf32>
    %131 = vector.broadcast %130 : vector<2x4x16x1xf32> to vector<2x4x16x16xf32>
    %132 = arith.subf %128, %131 : vector<2x4x16x16xf32>
    %133 = math.exp %132 : vector<2x4x16x16xf32>
    %cst_32 = arith.constant dense<0.000000e+00> : vector<2x4x16xf32>
    %134 = vector.multi_reduction <add>, %133, %cst_32 [3] : vector<2x4x16x16xf32> to vector<2x4x16xf32>
    %135 = vector.shape_cast %134 : vector<2x4x16xf32> to vector<2x4x16x1xf32>
    %136 = tpu.reciprocal %135 {approx = true} : vector<2x4x16x1xf32> -> vector<2x4x16x1xf32>
    %137 = vector.broadcast %136 : vector<2x4x16x1xf32> to vector<2x4x16x16xf32>
    %138 = arith.mulf %133, %137 : vector<2x4x16x16xf32>
    %139 = vector.shape_cast %138 : vector<2x4x16x16xf32> to vector<8x16x16xf32>
    "tpu.trace_start"() <{level = 10 : i32, message = "xqk,xkd->xqd"}> : () -> ()
    %cst_33 = arith.constant dense<0.000000e+00> : vector<8x16x32xf32>
    %140 = tpu.matmul %139, %126, %cst_33 {dimension_numbers = #tpu.dot_dimension_numbers<[2], [1], [1], [2], [0, 0, 0, 1, 1, 2], [0], [0]>} : vector<8x16x16xf32>, vector<8x16x32xf32>, vector<8x16x32xf32> -> vector<8x16x32xf32>
    "tpu.trace_stop"() : () -> ()
    %141 = vector.shape_cast %140 : vector<8x16x32xf32> to vector<2x4x16x32xf32>
    %cst_34 = arith.constant dense<0.000000e+00> : vector<2x16x32xf32>
    %142 = vector.multi_reduction <add>, %141, %cst_34 [1] : vector<2x4x16x32xf32> to vector<2x16x32xf32>
    %143 = vector.shape_cast %142 : vector<2x16x32xf32> to vector<32x32xf32>
    %144 = vector.extract_strided_slice %81 {offsets = [0, 96], sizes = [32, 32], strides = [1, 1]} : vector<33x288xf32> to vector<32x32xf32>
    %cst_35 = arith.constant dense<0.000000e+00> : vector<32x32xf32>
    %145 = tpu.matmul %143, %144, %cst_35 {dimension_numbers = #tpu.dot_dimension_numbers<[1], [0], [0], [1], [0, 0, 1, 1], [], []>} : vector<32x32xf32>, vector<32x32xf32>, vector<32x32xf32> -> vector<32x32xf32>
    %146 = vector.extract_strided_slice %82 {offsets = [0, 96], sizes = [1, 32], strides = [1, 1]} : vector<1x288xf32> to vector<1x32xf32>
    %147 = vector.broadcast %146 : vector<1x32xf32> to vector<32x32xf32>
    %148 = arith.addf %145, %147 : vector<32x32xf32>
    %149 = vector.shape_cast %148 : vector<32x32xf32> to vector<2x16x32xf32>
    %150 = arith.addf %43, %149 : vector<2x16x32xf32>
    %cst_36 = arith.constant dense<0.000000e+00> : vector<2x16xf32>
    %151 = vector.multi_reduction <add>, %150, %cst_36 [2] : vector<2x16x32xf32> to vector<2x16xf32>
    %152 = vector.shape_cast %151 : vector<2x16xf32> to vector<2x16x1xf32>
    %cst_37 = arith.constant 3.200000e+01 : f32
    %153 = vector.broadcast %cst_37 : f32 to vector<2x16x1xf32>
    %154 = arith.divf %152, %153 : vector<2x16x1xf32>
    %155 = vector.broadcast %154 : vector<2x16x1xf32> to vector<2x16x32xf32>
    %156 = arith.subf %150, %155 : vector<2x16x32xf32>
    %157 = vector.broadcast %154 : vector<2x16x1xf32> to vector<2x16x32xf32>
    %158 = arith.subf %150, %157 : vector<2x16x32xf32>
    %159 = arith.mulf %156, %158 : vector<2x16x32xf32>
    %cst_38 = arith.constant dense<0.000000e+00> : vector<2x16xf32>
    %160 = vector.multi_reduction <add>, %159, %cst_38 [2] : vector<2x16x32xf32> to vector<2x16xf32>
    %161 = vector.shape_cast %160 : vector<2x16xf32> to vector<2x16x1xf32>
    %cst_39 = arith.constant 3.200000e+01 : f32
    %162 = vector.broadcast %cst_39 : f32 to vector<2x16x1xf32>
    %163 = arith.divf %161, %162 : vector<2x16x1xf32>
    %164 = vector.broadcast %154 : vector<2x16x1xf32> to vector<2x16x32xf32>
    %165 = arith.subf %150, %164 : vector<2x16x32xf32>
    %cst_40 = arith.constant 9.99999974E-6 : f32
    %166 = vector.broadcast %cst_40 : f32 to vector<2x16x1xf32>
    %167 = arith.addf %163, %166 : vector<2x16x1xf32>
    %168 = math.rsqrt %167 : vector<2x16x1xf32>
    %169 = vector.broadcast %168 : vector<2x16x1xf32> to vector<2x16x32xf32>
    %170 = arith.mulf %165, %169 : vector<2x16x32xf32>
    %171 = vector.shape_cast %170 : vector<2x16x32xf32> to vector<32x32xf32>
    %172 = vector.extract_strided_slice %81 {offsets = [0, 128], sizes = [32, 32], strides = [1, 1]} : vector<33x288xf32> to vector<32x32xf32>
    %cst_41 = arith.constant dense<0.000000e+00> : vector<32x32xf32>
    %173 = tpu.matmul %171, %172, %cst_41 {dimension_numbers = #tpu.dot_dimension_numbers<[1], [0], [0], [1], [0, 0, 1, 1], [], []>} : vector<32x32xf32>, vector<32x32xf32>, vector<32x32xf32> -> vector<32x32xf32>
    %174 = vector.extract_strided_slice %82 {offsets = [0, 128], sizes = [1, 32], strides = [1, 1]} : vector<1x288xf32> to vector<1x32xf32>
    %175 = vector.broadcast %174 : vector<1x32xf32> to vector<32x32xf32>
    %176 = arith.addf %173, %175 : vector<32x32xf32>
    %177 = vector.shape_cast %176 : vector<32x32xf32> to vector<2x16x32xf32>
    %178 = vector.extract_strided_slice %79 {offsets = [0, 0, 0], sizes = [2, 8, 32], strides = [1, 1, 1]} : vector<2x8x128xf32> to vector<2x8x32xf32>
    %179 = vector.extract_strided_slice %79 {offsets = [0, 0, 32], sizes = [2, 8, 32], strides = [1, 1, 1]} : vector<2x8x128xf32> to vector<2x8x32xf32>
    %180 = vector.shape_cast %177 : vector<2x16x32xf32> to vector<2x1x16x32xf32>
    %181 = vector.shape_cast %180 : vector<2x1x16x32xf32> to vector<2x1x16x32xf32>
    %182 = vector.broadcast %181 : vector<2x1x16x32xf32> to vector<2x4x16x32xf32>
    %183 = vector.shape_cast %182 : vector<2x4x16x32xf32> to vector<8x16x32xf32>
    %184 = vector.shape_cast %178 : vector<2x8x32xf32> to vector<2x1x8x32xf32>
    %185 = vector.broadcast %184 : vector<2x1x8x32xf32> to vector<2x4x8x32xf32>
    %186 = vector.broadcast %10 : vector<1x4x1x32xf32> to vector<2x4x8x32xf32>
    %187 = arith.mulf %185, %186 : vector<2x4x8x32xf32>
    %188 = vector.shape_cast %187 : vector<2x4x8x32xf32> to vector<8x8x32xf32>
    %189 = vector.shape_cast %179 : vector<2x8x32xf32> to vector<2x1x8x32xf32>
    %190 = vector.broadcast %189 : vector<2x1x8x32xf32> to vector<2x4x8x32xf32>
    %191 = vector.broadcast %10 : vector<1x4x1x32xf32> to vector<2x4x8x32xf32>
    %192 = arith.mulf %190, %191 : vector<2x4x8x32xf32>
    %193 = vector.shape_cast %192 : vector<2x4x8x32xf32> to vector<8x8x32xf32>
    "tpu.trace_start"() <{level = 10 : i32, message = "xqd,xkd->xqk"}> : () -> ()
    %cst_42 = arith.constant dense<0.000000e+00> : vector<8x16x8xf32>
    %194 = tpu.matmul %183, %188, %cst_42 {dimension_numbers = #tpu.dot_dimension_numbers<[2], [2], [1], [1], [0, 0, 0, 1, 1, 1], [0], [0]>} : vector<8x16x32xf32>, vector<8x8x32xf32>, vector<8x16x8xf32> -> vector<8x16x8xf32>
    "tpu.trace_stop"() : () -> ()
    %195 = vector.shape_cast %194 : vector<8x16x8xf32> to vector<2x4x16x8xf32>
    %196 = vector.broadcast %20 : vector<2x1x1x8xf32> to vector<2x4x16x8xf32>
    %197 = arith.addf %195, %196 : vector<2x4x16x8xf32>
    %cst_43 = arith.constant dense<0xFF800000> : vector<2x4x16xf32>
    %198 = vector.multi_reduction <maximumf>, %197, %cst_43 [3] : vector<2x4x16x8xf32> to vector<2x4x16xf32>
    %199 = vector.shape_cast %198 : vector<2x4x16xf32> to vector<2x4x16x1xf32>
    %200 = vector.broadcast %199 : vector<2x4x16x1xf32> to vector<2x4x16x8xf32>
    %201 = arith.subf %197, %200 : vector<2x4x16x8xf32>
    %202 = math.exp %201 : vector<2x4x16x8xf32>
    %cst_44 = arith.constant dense<0.000000e+00> : vector<2x4x16xf32>
    %203 = vector.multi_reduction <add>, %202, %cst_44 [3] : vector<2x4x16x8xf32> to vector<2x4x16xf32>
    %204 = vector.shape_cast %203 : vector<2x4x16xf32> to vector<2x4x16x1xf32>
    %205 = tpu.reciprocal %204 {approx = true} : vector<2x4x16x1xf32> -> vector<2x4x16x1xf32>
    %206 = vector.broadcast %205 : vector<2x4x16x1xf32> to vector<2x4x16x8xf32>
    %207 = arith.mulf %202, %206 : vector<2x4x16x8xf32>
    %208 = vector.shape_cast %207 : vector<2x4x16x8xf32> to vector<8x16x8xf32>
    "tpu.trace_start"() <{level = 10 : i32, message = "xqk,xkd->xqd"}> : () -> ()
    %cst_45 = arith.constant dense<0.000000e+00> : vector<8x16x32xf32>
    %209 = tpu.matmul %208, %193, %cst_45 {dimension_numbers = #tpu.dot_dimension_numbers<[2], [1], [1], [2], [0, 0, 0, 1, 1, 2], [0], [0]>} : vector<8x16x8xf32>, vector<8x8x32xf32>, vector<8x16x32xf32> -> vector<8x16x32xf32>
    "tpu.trace_stop"() : () -> ()
    %210 = vector.shape_cast %209 : vector<8x16x32xf32> to vector<2x4x16x32xf32>
    %cst_46 = arith.constant dense<0.000000e+00> : vector<2x16x32xf32>
    %211 = vector.multi_reduction <add>, %210, %cst_46 [1] : vector<2x4x16x32xf32> to vector<2x16x32xf32>
    %212 = vector.shape_cast %211 : vector<2x16x32xf32> to vector<32x32xf32>
    %213 = vector.extract_strided_slice %81 {offsets = [0, 160], sizes = [32, 32], strides = [1, 1]} : vector<33x288xf32> to vector<32x32xf32>
    %cst_47 = arith.constant dense<0.000000e+00> : vector<32x32xf32>
    %214 = tpu.matmul %212, %213, %cst_47 {dimension_numbers = #tpu.dot_dimension_numbers<[1], [0], [0], [1], [0, 0, 1, 1], [], []>} : vector<32x32xf32>, vector<32x32xf32>, vector<32x32xf32> -> vector<32x32xf32>
    %215 = vector.extract_strided_slice %82 {offsets = [0, 160], sizes = [1, 32], strides = [1, 1]} : vector<1x288xf32> to vector<1x32xf32>
    %216 = vector.broadcast %215 : vector<1x32xf32> to vector<32x32xf32>
    %217 = arith.addf %214, %216 : vector<32x32xf32>
    %218 = vector.shape_cast %217 : vector<32x32xf32> to vector<2x16x32xf32>
    %219 = arith.addf %150, %218 : vector<2x16x32xf32>
    %cst_48 = arith.constant dense<0.000000e+00> : vector<2x16xf32>
    %220 = vector.multi_reduction <add>, %219, %cst_48 [2] : vector<2x16x32xf32> to vector<2x16xf32>
    %221 = vector.shape_cast %220 : vector<2x16xf32> to vector<2x16x1xf32>
    %cst_49 = arith.constant 3.200000e+01 : f32
    %222 = vector.broadcast %cst_49 : f32 to vector<2x16x1xf32>
    %223 = arith.divf %221, %222 : vector<2x16x1xf32>
    %224 = vector.broadcast %223 : vector<2x16x1xf32> to vector<2x16x32xf32>
    %225 = arith.subf %219, %224 : vector<2x16x32xf32>
    %226 = vector.broadcast %223 : vector<2x16x1xf32> to vector<2x16x32xf32>
    %227 = arith.subf %219, %226 : vector<2x16x32xf32>
    %228 = arith.mulf %225, %227 : vector<2x16x32xf32>
    %cst_50 = arith.constant dense<0.000000e+00> : vector<2x16xf32>
    %229 = vector.multi_reduction <add>, %228, %cst_50 [2] : vector<2x16x32xf32> to vector<2x16xf32>
    %230 = vector.shape_cast %229 : vector<2x16xf32> to vector<2x16x1xf32>
    %cst_51 = arith.constant 3.200000e+01 : f32
    %231 = vector.broadcast %cst_51 : f32 to vector<2x16x1xf32>
    %232 = arith.divf %230, %231 : vector<2x16x1xf32>
    %233 = vector.broadcast %223 : vector<2x16x1xf32> to vector<2x16x32xf32>
    %234 = arith.subf %219, %233 : vector<2x16x32xf32>
    %cst_52 = arith.constant 9.99999974E-6 : f32
    %235 = vector.broadcast %cst_52 : f32 to vector<2x16x1xf32>
    %236 = arith.addf %232, %235 : vector<2x16x1xf32>
    %237 = math.rsqrt %236 : vector<2x16x1xf32>
    %238 = vector.broadcast %237 : vector<2x16x1xf32> to vector<2x16x32xf32>
    %239 = arith.mulf %234, %238 : vector<2x16x32xf32>
    %240 = vector.shape_cast %239 : vector<2x16x32xf32> to vector<32x32xf32>
    %241 = vector.extract_strided_slice %81 {offsets = [0, 192], sizes = [32, 64], strides = [1, 1]} : vector<33x288xf32> to vector<32x64xf32>
    %cst_53 = arith.constant dense<0.000000e+00> : vector<32x64xf32>
    %242 = tpu.matmul %240, %241, %cst_53 {dimension_numbers = #tpu.dot_dimension_numbers<[1], [0], [0], [1], [0, 0, 1, 1], [], []>} : vector<32x32xf32>, vector<32x64xf32>, vector<32x64xf32> -> vector<32x64xf32>
    %243 = vector.extract_strided_slice %82 {offsets = [0, 192], sizes = [1, 64], strides = [1, 1]} : vector<1x288xf32> to vector<1x64xf32>
    %244 = vector.broadcast %243 : vector<1x64xf32> to vector<32x64xf32>
    %245 = arith.addf %242, %244 : vector<32x64xf32>
    %246 = vector.extract_strided_slice %245 {offsets = [0, 0], sizes = [32, 32], strides = [1, 1]} : vector<32x64xf32> to vector<32x32xf32>
    %247 = vector.extract_strided_slice %245 {offsets = [0, 32], sizes = [32, 32], strides = [1, 1]} : vector<32x64xf32> to vector<32x32xf32>
    %248 = arith.negf %246 : vector<32x32xf32>
    %249 = math.exp %248 : vector<32x32xf32>
    %cst_54 = arith.constant 1.000000e+00 : f32
    %250 = vector.broadcast %cst_54 : f32 to vector<32x32xf32>
    %251 = arith.addf %250, %249 : vector<32x32xf32>
    %252 = arith.divf %250, %251 : vector<32x32xf32>
    %253 = arith.mulf %246, %252 : vector<32x32xf32>
    %254 = arith.mulf %253, %247 : vector<32x32xf32>
    %255 = vector.extract_strided_slice %81 {offsets = [0, 256], sizes = [32, 32], strides = [1, 1]} : vector<33x288xf32> to vector<32x32xf32>
    %cst_55 = arith.constant dense<0.000000e+00> : vector<32x32xf32>
    %256 = tpu.matmul %254, %255, %cst_55 {dimension_numbers = #tpu.dot_dimension_numbers<[1], [0], [0], [1], [0, 0, 1, 1], [], []>} : vector<32x32xf32>, vector<32x32xf32>, vector<32x32xf32> -> vector<32x32xf32>
    %257 = vector.extract_strided_slice %82 {offsets = [0, 256], sizes = [1, 32], strides = [1, 1]} : vector<1x288xf32> to vector<1x32xf32>
    %258 = vector.broadcast %257 : vector<1x32xf32> to vector<32x32xf32>
    %259 = arith.addf %256, %258 : vector<32x32xf32>
    %260 = vector.shape_cast %259 : vector<32x32xf32> to vector<2x16x32xf32>
    %261 = arith.addf %219, %260 : vector<2x16x32xf32>
    %c1 = arith.constant 1 : index
    %c0_56 = arith.constant 0 : index
    %c0_57 = arith.constant 0 : index
    %262 = vector.load %arg7[%c1, %c0_56, %c0_57] : memref<2x33x288xf32, #tpu.memory_space<vmem>>, vector<1x33x288xf32>
    %263 = vector.shape_cast %262 : vector<1x33x288xf32> to vector<33x288xf32>
    %264 = vector.extract_strided_slice %263 {offsets = [32, 0], sizes = [1, 288], strides = [1, 1]} : vector<33x288xf32> to vector<1x288xf32>
    %cst_58 = arith.constant dense<0.000000e+00> : vector<2x16xf32>
    %265 = vector.multi_reduction <add>, %261, %cst_58 [2] : vector<2x16x32xf32> to vector<2x16xf32>
    %266 = vector.shape_cast %265 : vector<2x16xf32> to vector<2x16x1xf32>
    %cst_59 = arith.constant 3.200000e+01 : f32
    %267 = vector.broadcast %cst_59 : f32 to vector<2x16x1xf32>
    %268 = arith.divf %266, %267 : vector<2x16x1xf32>
    %269 = vector.broadcast %268 : vector<2x16x1xf32> to vector<2x16x32xf32>
    %270 = arith.subf %261, %269 : vector<2x16x32xf32>
    %271 = vector.broadcast %268 : vector<2x16x1xf32> to vector<2x16x32xf32>
    %272 = arith.subf %261, %271 : vector<2x16x32xf32>
    %273 = arith.mulf %270, %272 : vector<2x16x32xf32>
    %cst_60 = arith.constant dense<0.000000e+00> : vector<2x16xf32>
    %274 = vector.multi_reduction <add>, %273, %cst_60 [2] : vector<2x16x32xf32> to vector<2x16xf32>
    %275 = vector.shape_cast %274 : vector<2x16xf32> to vector<2x16x1xf32>
    %cst_61 = arith.constant 3.200000e+01 : f32
    %276 = vector.broadcast %cst_61 : f32 to vector<2x16x1xf32>
    %277 = arith.divf %275, %276 : vector<2x16x1xf32>
    %278 = vector.broadcast %268 : vector<2x16x1xf32> to vector<2x16x32xf32>
    %279 = arith.subf %261, %278 : vector<2x16x32xf32>
    %cst_62 = arith.constant 9.99999974E-6 : f32
    %280 = vector.broadcast %cst_62 : f32 to vector<2x16x1xf32>
    %281 = arith.addf %277, %280 : vector<2x16x1xf32>
    %282 = math.rsqrt %281 : vector<2x16x1xf32>
    %283 = vector.broadcast %282 : vector<2x16x1xf32> to vector<2x16x32xf32>
    %284 = arith.mulf %279, %283 : vector<2x16x32xf32>
    %285 = vector.shape_cast %284 : vector<2x16x32xf32> to vector<32x32xf32>
    %286 = vector.extract_strided_slice %263 {offsets = [0, 0], sizes = [32, 96], strides = [1, 1]} : vector<33x288xf32> to vector<32x96xf32>
    %cst_63 = arith.constant dense<0.000000e+00> : vector<32x96xf32>
    %287 = tpu.matmul %285, %286, %cst_63 {dimension_numbers = #tpu.dot_dimension_numbers<[1], [0], [0], [1], [0, 0, 1, 1], [], []>} : vector<32x32xf32>, vector<32x96xf32>, vector<32x96xf32> -> vector<32x96xf32>
    %288 = vector.extract_strided_slice %264 {offsets = [0, 0], sizes = [1, 96], strides = [1, 1]} : vector<1x288xf32> to vector<1x96xf32>
    %289 = vector.broadcast %288 : vector<1x96xf32> to vector<32x96xf32>
    %290 = arith.addf %287, %289 : vector<32x96xf32>
    %291 = vector.shape_cast %290 : vector<32x96xf32> to vector<2x16x96xf32>
    %292 = vector.extract_strided_slice %291 {offsets = [0, 0, 0], sizes = [2, 16, 32], strides = [1, 1, 1]} : vector<2x16x96xf32> to vector<2x16x32xf32>
    %293 = vector.extract_strided_slice %291 {offsets = [0, 0, 32], sizes = [2, 16, 32], strides = [1, 1, 1]} : vector<2x16x96xf32> to vector<2x16x32xf32>
    %294 = vector.extract_strided_slice %291 {offsets = [0, 0, 64], sizes = [2, 16, 32], strides = [1, 1, 1]} : vector<2x16x96xf32> to vector<2x16x32xf32>
    %295 = vector.shape_cast %292 : vector<2x16x32xf32> to vector<2x1x16x32xf32>
    %296 = vector.shape_cast %295 : vector<2x1x16x32xf32> to vector<2x1x16x32xf32>
    %297 = vector.broadcast %296 : vector<2x1x16x32xf32> to vector<2x4x16x32xf32>
    %298 = vector.shape_cast %297 : vector<2x4x16x32xf32> to vector<8x16x32xf32>
    %299 = vector.shape_cast %293 : vector<2x16x32xf32> to vector<2x1x16x32xf32>
    %300 = vector.broadcast %299 : vector<2x1x16x32xf32> to vector<2x4x16x32xf32>
    %301 = vector.broadcast %10 : vector<1x4x1x32xf32> to vector<2x4x16x32xf32>
    %302 = arith.mulf %300, %301 : vector<2x4x16x32xf32>
    %303 = vector.shape_cast %302 : vector<2x4x16x32xf32> to vector<8x16x32xf32>
    %304 = vector.shape_cast %294 : vector<2x16x32xf32> to vector<2x1x16x32xf32>
    %305 = vector.broadcast %304 : vector<2x1x16x32xf32> to vector<2x4x16x32xf32>
    %306 = vector.broadcast %10 : vector<1x4x1x32xf32> to vector<2x4x16x32xf32>
    %307 = arith.mulf %305, %306 : vector<2x4x16x32xf32>
    %308 = vector.shape_cast %307 : vector<2x4x16x32xf32> to vector<8x16x32xf32>
    "tpu.trace_start"() <{level = 10 : i32, message = "xqd,xkd->xqk"}> : () -> ()
    %cst_64 = arith.constant dense<0.000000e+00> : vector<8x16x16xf32>
    %309 = tpu.matmul %298, %303, %cst_64 {dimension_numbers = #tpu.dot_dimension_numbers<[2], [2], [1], [1], [0, 0, 0, 1, 1, 1], [0], [0]>} : vector<8x16x32xf32>, vector<8x16x32xf32>, vector<8x16x16xf32> -> vector<8x16x16xf32>
    "tpu.trace_stop"() : () -> ()
    %310 = vector.shape_cast %309 : vector<8x16x16xf32> to vector<2x4x16x16xf32>
    %cst_65 = arith.constant dense<0xFF800000> : vector<2x4x16xf32>
    %311 = vector.multi_reduction <maximumf>, %310, %cst_65 [3] : vector<2x4x16x16xf32> to vector<2x4x16xf32>
    %312 = vector.shape_cast %311 : vector<2x4x16xf32> to vector<2x4x16x1xf32>
    %313 = vector.broadcast %312 : vector<2x4x16x1xf32> to vector<2x4x16x16xf32>
    %314 = arith.subf %310, %313 : vector<2x4x16x16xf32>
    %315 = math.exp %314 : vector<2x4x16x16xf32>
    %cst_66 = arith.constant dense<0.000000e+00> : vector<2x4x16xf32>
    %316 = vector.multi_reduction <add>, %315, %cst_66 [3] : vector<2x4x16x16xf32> to vector<2x4x16xf32>
    %317 = vector.shape_cast %316 : vector<2x4x16xf32> to vector<2x4x16x1xf32>
    %318 = tpu.reciprocal %317 {approx = true} : vector<2x4x16x1xf32> -> vector<2x4x16x1xf32>
    %319 = vector.broadcast %318 : vector<2x4x16x1xf32> to vector<2x4x16x16xf32>
    %320 = arith.mulf %315, %319 : vector<2x4x16x16xf32>
    %321 = vector.shape_cast %320 : vector<2x4x16x16xf32> to vector<8x16x16xf32>
    "tpu.trace_start"() <{level = 10 : i32, message = "xqk,xkd->xqd"}> : () -> ()
    %cst_67 = arith.constant dense<0.000000e+00> : vector<8x16x32xf32>
    %322 = tpu.matmul %321, %308, %cst_67 {dimension_numbers = #tpu.dot_dimension_numbers<[2], [1], [1], [2], [0, 0, 0, 1, 1, 2], [0], [0]>} : vector<8x16x16xf32>, vector<8x16x32xf32>, vector<8x16x32xf32> -> vector<8x16x32xf32>
    "tpu.trace_stop"() : () -> ()
    %323 = vector.shape_cast %322 : vector<8x16x32xf32> to vector<2x4x16x32xf32>
    %cst_68 = arith.constant dense<0.000000e+00> : vector<2x16x32xf32>
    %324 = vector.multi_reduction <add>, %323, %cst_68 [1] : vector<2x4x16x32xf32> to vector<2x16x32xf32>
    %325 = vector.shape_cast %324 : vector<2x16x32xf32> to vector<32x32xf32>
    %326 = vector.extract_strided_slice %263 {offsets = [0, 96], sizes = [32, 32], strides = [1, 1]} : vector<33x288xf32> to vector<32x32xf32>
    %cst_69 = arith.constant dense<0.000000e+00> : vector<32x32xf32>
    %327 = tpu.matmul %325, %326, %cst_69 {dimension_numbers = #tpu.dot_dimension_numbers<[1], [0], [0], [1], [0, 0, 1, 1], [], []>} : vector<32x32xf32>, vector<32x32xf32>, vector<32x32xf32> -> vector<32x32xf32>
    %328 = vector.extract_strided_slice %264 {offsets = [0, 96], sizes = [1, 32], strides = [1, 1]} : vector<1x288xf32> to vector<1x32xf32>
    %329 = vector.broadcast %328 : vector<1x32xf32> to vector<32x32xf32>
    %330 = arith.addf %327, %329 : vector<32x32xf32>
    %331 = vector.shape_cast %330 : vector<32x32xf32> to vector<2x16x32xf32>
    %332 = arith.addf %261, %331 : vector<2x16x32xf32>
    %cst_70 = arith.constant dense<0.000000e+00> : vector<2x16xf32>
    %333 = vector.multi_reduction <add>, %332, %cst_70 [2] : vector<2x16x32xf32> to vector<2x16xf32>
    %334 = vector.shape_cast %333 : vector<2x16xf32> to vector<2x16x1xf32>
    %cst_71 = arith.constant 3.200000e+01 : f32
    %335 = vector.broadcast %cst_71 : f32 to vector<2x16x1xf32>
    %336 = arith.divf %334, %335 : vector<2x16x1xf32>
    %337 = vector.broadcast %336 : vector<2x16x1xf32> to vector<2x16x32xf32>
    %338 = arith.subf %332, %337 : vector<2x16x32xf32>
    %339 = vector.broadcast %336 : vector<2x16x1xf32> to vector<2x16x32xf32>
    %340 = arith.subf %332, %339 : vector<2x16x32xf32>
    %341 = arith.mulf %338, %340 : vector<2x16x32xf32>
    %cst_72 = arith.constant dense<0.000000e+00> : vector<2x16xf32>
    %342 = vector.multi_reduction <add>, %341, %cst_72 [2] : vector<2x16x32xf32> to vector<2x16xf32>
    %343 = vector.shape_cast %342 : vector<2x16xf32> to vector<2x16x1xf32>
    %cst_73 = arith.constant 3.200000e+01 : f32
    %344 = vector.broadcast %cst_73 : f32 to vector<2x16x1xf32>
    %345 = arith.divf %343, %344 : vector<2x16x1xf32>
    %346 = vector.broadcast %336 : vector<2x16x1xf32> to vector<2x16x32xf32>
    %347 = arith.subf %332, %346 : vector<2x16x32xf32>
    %cst_74 = arith.constant 9.99999974E-6 : f32
    %348 = vector.broadcast %cst_74 : f32 to vector<2x16x1xf32>
    %349 = arith.addf %345, %348 : vector<2x16x1xf32>
    %350 = math.rsqrt %349 : vector<2x16x1xf32>
    %351 = vector.broadcast %350 : vector<2x16x1xf32> to vector<2x16x32xf32>
    %352 = arith.mulf %347, %351 : vector<2x16x32xf32>
    %353 = vector.shape_cast %352 : vector<2x16x32xf32> to vector<32x32xf32>
    %354 = vector.extract_strided_slice %263 {offsets = [0, 128], sizes = [32, 32], strides = [1, 1]} : vector<33x288xf32> to vector<32x32xf32>
    %cst_75 = arith.constant dense<0.000000e+00> : vector<32x32xf32>
    %355 = tpu.matmul %353, %354, %cst_75 {dimension_numbers = #tpu.dot_dimension_numbers<[1], [0], [0], [1], [0, 0, 1, 1], [], []>} : vector<32x32xf32>, vector<32x32xf32>, vector<32x32xf32> -> vector<32x32xf32>
    %356 = vector.extract_strided_slice %264 {offsets = [0, 128], sizes = [1, 32], strides = [1, 1]} : vector<1x288xf32> to vector<1x32xf32>
    %357 = vector.broadcast %356 : vector<1x32xf32> to vector<32x32xf32>
    %358 = arith.addf %355, %357 : vector<32x32xf32>
    %359 = vector.shape_cast %358 : vector<32x32xf32> to vector<2x16x32xf32>
    %360 = vector.extract_strided_slice %79 {offsets = [0, 0, 64], sizes = [2, 8, 32], strides = [1, 1, 1]} : vector<2x8x128xf32> to vector<2x8x32xf32>
    %361 = vector.extract_strided_slice %79 {offsets = [0, 0, 96], sizes = [2, 8, 32], strides = [1, 1, 1]} : vector<2x8x128xf32> to vector<2x8x32xf32>
    %362 = vector.shape_cast %359 : vector<2x16x32xf32> to vector<2x1x16x32xf32>
    %363 = vector.shape_cast %362 : vector<2x1x16x32xf32> to vector<2x1x16x32xf32>
    %364 = vector.broadcast %363 : vector<2x1x16x32xf32> to vector<2x4x16x32xf32>
    %365 = vector.shape_cast %364 : vector<2x4x16x32xf32> to vector<8x16x32xf32>
    %366 = vector.shape_cast %360 : vector<2x8x32xf32> to vector<2x1x8x32xf32>
    %367 = vector.broadcast %366 : vector<2x1x8x32xf32> to vector<2x4x8x32xf32>
    %368 = vector.broadcast %10 : vector<1x4x1x32xf32> to vector<2x4x8x32xf32>
    %369 = arith.mulf %367, %368 : vector<2x4x8x32xf32>
    %370 = vector.shape_cast %369 : vector<2x4x8x32xf32> to vector<8x8x32xf32>
    %371 = vector.shape_cast %361 : vector<2x8x32xf32> to vector<2x1x8x32xf32>
    %372 = vector.broadcast %371 : vector<2x1x8x32xf32> to vector<2x4x8x32xf32>
    %373 = vector.broadcast %10 : vector<1x4x1x32xf32> to vector<2x4x8x32xf32>
    %374 = arith.mulf %372, %373 : vector<2x4x8x32xf32>
    %375 = vector.shape_cast %374 : vector<2x4x8x32xf32> to vector<8x8x32xf32>
    "tpu.trace_start"() <{level = 10 : i32, message = "xqd,xkd->xqk"}> : () -> ()
    %cst_76 = arith.constant dense<0.000000e+00> : vector<8x16x8xf32>
    %376 = tpu.matmul %365, %370, %cst_76 {dimension_numbers = #tpu.dot_dimension_numbers<[2], [2], [1], [1], [0, 0, 0, 1, 1, 1], [0], [0]>} : vector<8x16x32xf32>, vector<8x8x32xf32>, vector<8x16x8xf32> -> vector<8x16x8xf32>
    "tpu.trace_stop"() : () -> ()
    %377 = vector.shape_cast %376 : vector<8x16x8xf32> to vector<2x4x16x8xf32>
    %378 = vector.broadcast %20 : vector<2x1x1x8xf32> to vector<2x4x16x8xf32>
    %379 = arith.addf %377, %378 : vector<2x4x16x8xf32>
    %cst_77 = arith.constant dense<0xFF800000> : vector<2x4x16xf32>
    %380 = vector.multi_reduction <maximumf>, %379, %cst_77 [3] : vector<2x4x16x8xf32> to vector<2x4x16xf32>
    %381 = vector.shape_cast %380 : vector<2x4x16xf32> to vector<2x4x16x1xf32>
    %382 = vector.broadcast %381 : vector<2x4x16x1xf32> to vector<2x4x16x8xf32>
    %383 = arith.subf %379, %382 : vector<2x4x16x8xf32>
    %384 = math.exp %383 : vector<2x4x16x8xf32>
    %cst_78 = arith.constant dense<0.000000e+00> : vector<2x4x16xf32>
    %385 = vector.multi_reduction <add>, %384, %cst_78 [3] : vector<2x4x16x8xf32> to vector<2x4x16xf32>
    %386 = vector.shape_cast %385 : vector<2x4x16xf32> to vector<2x4x16x1xf32>
    %387 = tpu.reciprocal %386 {approx = true} : vector<2x4x16x1xf32> -> vector<2x4x16x1xf32>
    %388 = vector.broadcast %387 : vector<2x4x16x1xf32> to vector<2x4x16x8xf32>
    %389 = arith.mulf %384, %388 : vector<2x4x16x8xf32>
    %390 = vector.shape_cast %389 : vector<2x4x16x8xf32> to vector<8x16x8xf32>
    "tpu.trace_start"() <{level = 10 : i32, message = "xqk,xkd->xqd"}> : () -> ()
    %cst_79 = arith.constant dense<0.000000e+00> : vector<8x16x32xf32>
    %391 = tpu.matmul %390, %375, %cst_79 {dimension_numbers = #tpu.dot_dimension_numbers<[2], [1], [1], [2], [0, 0, 0, 1, 1, 2], [0], [0]>} : vector<8x16x8xf32>, vector<8x8x32xf32>, vector<8x16x32xf32> -> vector<8x16x32xf32>
    "tpu.trace_stop"() : () -> ()
    %392 = vector.shape_cast %391 : vector<8x16x32xf32> to vector<2x4x16x32xf32>
    %cst_80 = arith.constant dense<0.000000e+00> : vector<2x16x32xf32>
    %393 = vector.multi_reduction <add>, %392, %cst_80 [1] : vector<2x4x16x32xf32> to vector<2x16x32xf32>
    %394 = vector.shape_cast %393 : vector<2x16x32xf32> to vector<32x32xf32>
    %395 = vector.extract_strided_slice %263 {offsets = [0, 160], sizes = [32, 32], strides = [1, 1]} : vector<33x288xf32> to vector<32x32xf32>
    %cst_81 = arith.constant dense<0.000000e+00> : vector<32x32xf32>
    %396 = tpu.matmul %394, %395, %cst_81 {dimension_numbers = #tpu.dot_dimension_numbers<[1], [0], [0], [1], [0, 0, 1, 1], [], []>} : vector<32x32xf32>, vector<32x32xf32>, vector<32x32xf32> -> vector<32x32xf32>
    %397 = vector.extract_strided_slice %264 {offsets = [0, 160], sizes = [1, 32], strides = [1, 1]} : vector<1x288xf32> to vector<1x32xf32>
    %398 = vector.broadcast %397 : vector<1x32xf32> to vector<32x32xf32>
    %399 = arith.addf %396, %398 : vector<32x32xf32>
    %400 = vector.shape_cast %399 : vector<32x32xf32> to vector<2x16x32xf32>
    %401 = arith.addf %332, %400 : vector<2x16x32xf32>
    %cst_82 = arith.constant dense<0.000000e+00> : vector<2x16xf32>
    %402 = vector.multi_reduction <add>, %401, %cst_82 [2] : vector<2x16x32xf32> to vector<2x16xf32>
    %403 = vector.shape_cast %402 : vector<2x16xf32> to vector<2x16x1xf32>
    %cst_83 = arith.constant 3.200000e+01 : f32
    %404 = vector.broadcast %cst_83 : f32 to vector<2x16x1xf32>
    %405 = arith.divf %403, %404 : vector<2x16x1xf32>
    %406 = vector.broadcast %405 : vector<2x16x1xf32> to vector<2x16x32xf32>
    %407 = arith.subf %401, %406 : vector<2x16x32xf32>
    %408 = vector.broadcast %405 : vector<2x16x1xf32> to vector<2x16x32xf32>
    %409 = arith.subf %401, %408 : vector<2x16x32xf32>
    %410 = arith.mulf %407, %409 : vector<2x16x32xf32>
    %cst_84 = arith.constant dense<0.000000e+00> : vector<2x16xf32>
    %411 = vector.multi_reduction <add>, %410, %cst_84 [2] : vector<2x16x32xf32> to vector<2x16xf32>
    %412 = vector.shape_cast %411 : vector<2x16xf32> to vector<2x16x1xf32>
    %cst_85 = arith.constant 3.200000e+01 : f32
    %413 = vector.broadcast %cst_85 : f32 to vector<2x16x1xf32>
    %414 = arith.divf %412, %413 : vector<2x16x1xf32>
    %415 = vector.broadcast %405 : vector<2x16x1xf32> to vector<2x16x32xf32>
    %416 = arith.subf %401, %415 : vector<2x16x32xf32>
    %cst_86 = arith.constant 9.99999974E-6 : f32
    %417 = vector.broadcast %cst_86 : f32 to vector<2x16x1xf32>
    %418 = arith.addf %414, %417 : vector<2x16x1xf32>
    %419 = math.rsqrt %418 : vector<2x16x1xf32>
    %420 = vector.broadcast %419 : vector<2x16x1xf32> to vector<2x16x32xf32>
    %421 = arith.mulf %416, %420 : vector<2x16x32xf32>
    %422 = vector.shape_cast %421 : vector<2x16x32xf32> to vector<32x32xf32>
    %423 = vector.extract_strided_slice %263 {offsets = [0, 192], sizes = [32, 64], strides = [1, 1]} : vector<33x288xf32> to vector<32x64xf32>
    %cst_87 = arith.constant dense<0.000000e+00> : vector<32x64xf32>
    %424 = tpu.matmul %422, %423, %cst_87 {dimension_numbers = #tpu.dot_dimension_numbers<[1], [0], [0], [1], [0, 0, 1, 1], [], []>} : vector<32x32xf32>, vector<32x64xf32>, vector<32x64xf32> -> vector<32x64xf32>
    %425 = vector.extract_strided_slice %264 {offsets = [0, 192], sizes = [1, 64], strides = [1, 1]} : vector<1x288xf32> to vector<1x64xf32>
    %426 = vector.broadcast %425 : vector<1x64xf32> to vector<32x64xf32>
    %427 = arith.addf %424, %426 : vector<32x64xf32>
    %428 = vector.extract_strided_slice %427 {offsets = [0, 0], sizes = [32, 32], strides = [1, 1]} : vector<32x64xf32> to vector<32x32xf32>
    %429 = vector.extract_strided_slice %427 {offsets = [0, 32], sizes = [32, 32], strides = [1, 1]} : vector<32x64xf32> to vector<32x32xf32>
    %430 = arith.negf %428 : vector<32x32xf32>
    %431 = math.exp %430 : vector<32x32xf32>
    %cst_88 = arith.constant 1.000000e+00 : f32
    %432 = vector.broadcast %cst_88 : f32 to vector<32x32xf32>
    %433 = arith.addf %432, %431 : vector<32x32xf32>
    %434 = arith.divf %432, %433 : vector<32x32xf32>
    %435 = arith.mulf %428, %434 : vector<32x32xf32>
    %436 = arith.mulf %435, %429 : vector<32x32xf32>
    %437 = vector.extract_strided_slice %263 {offsets = [0, 256], sizes = [32, 32], strides = [1, 1]} : vector<33x288xf32> to vector<32x32xf32>
    %cst_89 = arith.constant dense<0.000000e+00> : vector<32x32xf32>
    %438 = tpu.matmul %436, %437, %cst_89 {dimension_numbers = #tpu.dot_dimension_numbers<[1], [0], [0], [1], [0, 0, 1, 1], [], []>} : vector<32x32xf32>, vector<32x32xf32>, vector<32x32xf32> -> vector<32x32xf32>
    %439 = vector.extract_strided_slice %264 {offsets = [0, 256], sizes = [1, 32], strides = [1, 1]} : vector<1x288xf32> to vector<1x32xf32>
    %440 = vector.broadcast %439 : vector<1x32xf32> to vector<32x32xf32>
    %441 = arith.addf %438, %440 : vector<32x32xf32>
    %442 = vector.shape_cast %441 : vector<32x32xf32> to vector<2x16x32xf32>
    %443 = arith.addf %401, %442 : vector<2x16x32xf32>
    %444 = vector.shape_cast %7 : vector<1x32xf32> to vector<1x1x32xf32>
    %445 = vector.broadcast %444 : vector<1x1x32xf32> to vector<2x16x32xf32>
    %446 = arith.mulf %443, %445 : vector<2x16x32xf32>
    %cst_90 = arith.constant dense<0.000000e+00> : vector<2x16xf32>
    %447 = vector.multi_reduction <add>, %446, %cst_90 [2] : vector<2x16x32xf32> to vector<2x16xf32>
    %448 = vector.broadcast %8 : vector<1x1xf32> to vector<2x16xf32>
    %449 = arith.addf %447, %448 : vector<2x16xf32>
    %c0_91 = arith.constant 0 : index
    %c0_92 = arith.constant 0 : index
    %450 = vector.load %arg0[%c0_91, %c0_92] : memref<2x16xf32, #tpu.memory_space<vmem>>, vector<2x16xf32>
    %451 = vector.broadcast %13 : vector<2x1xf32> to vector<2x16xf32>
    %452 = arith.mulf %451, %450 : vector<2x16xf32>
    %453 = vector.broadcast %14 : vector<2x1xf32> to vector<2x16xf32>
    %454 = arith.mulf %453, %449 : vector<2x16xf32>
    %455 = arith.addf %452, %454 : vector<2x16xf32>
    %c0_93 = arith.constant 0 : index
    %c0_94 = arith.constant 0 : index
    %456 = vector.load %arg8[%c0_93, %c0_94] : memref<2x16xf32, #tpu.memory_space<vmem>>, vector<2x16xf32>
    tpu.vector_store %arg8[%c0_93, %c0_94], %455 {strides = array<i32>} : memref<2x16xf32, #tpu.memory_space<vmem>>, vector<2x16xf32>,
    return
  }
}

</mosaic_0001>

<llo_original>
// kernel: edm_forward.1
$region0: #{edm_forward.1}
  #allocation0 [shape = 'u32[]', space=smem, size = 0x4, offset = 0x4, fixed_abs, tag = 'smem constant byte address 0x4 - core index']
  #allocation1 [shape = 'u32[144,128]{1,0:T(1,128)}', space=vmem, size = 0x12000, scoped, tag = 'internal scratch']
  %s0 = inlined_call_operand.vmem [shape: f32[2,16], index: 0, kind: input, shape index: {}]
  %s1 = inlined_call_operand.vmem [shape: f32[2,16], index: 1, kind: input, shape index: {}]
  %s2 = inlined_call_operand.vmem [shape: f32[2,8,64], index: 2, kind: input, shape index: {}]
  %s3 = inlined_call_operand.vmem [shape: f32[2,35], index: 3, kind: input, shape index: {}]
  %s4 = inlined_call_operand.vmem [shape: f32[2,8], index: 4, kind: input, shape index: {}]
  %s5 = inlined_call_operand.vmem [shape: f32[90,32], index: 5, kind: input, shape index: {}]
  %s6 = inlined_call_operand.vmem [shape: f32[33,128], index: 6, kind: input, shape index: {}]
  %s7 = inlined_call_operand.vmem [shape: f32[2,33,288], index: 7, kind: input, shape index: {}]
  %s8 = inlined_call_operand.hbm [shape: f32[2,16], index: 8, kind: output, shape index: {}]
  %s9 = sld [smem:[#allocation0]]
  $region42: #{edm_forward.1} parent=0
    _
  %s11 = ssub.s32 1, %s9
  %s12 = scalar_select 0, %s11, %s9
  $region1: #{edm_forward.1} parent=0
    #allocation2 [shape = 'u8[1024]{0}', space=vmem, size = 0x400, scoped, tag = 'output window, operand 0, single buffered']
    #allocation3 [shape = 's32[1]{0}', space=sflag, size = 0x4, scoped, tag = 'scoped memory for edm_forward.1']
    %13 = vsyncpa [#allocation3], 0
    // Predicated region
    $region2: #{edm_forward.1} parent=1 // pred_check
      _
    $region3: #{edm_forward.1} parent=1 // pred_check_branch
      %15 = sbr.rel (0) target = $region5
    $region4: #{edm_forward.1} parent=1 // pred_region
      _
    $region5: #{edm_forward.1} parent=1 // pred_fallthru
      _
    // Predicated region
    $region6: #{edm_forward.1} parent=1 // pred_check
      _
    $region7: #{edm_forward.1} parent=1 // pred_check_branch
      %17 = sbr.rel (0) target = $region9
    $region8: #{edm_forward.1} parent=1 // pred_region
      _
    $region9: #{edm_forward.1} parent=1 // pred_fallthru
      _
    // Predicated region
    $region10: #{edm_forward.1} parent=1 // pred_check
      _
    $region11: #{edm_forward.1} parent=1 // pred_check_branch
      %19 = sbr.rel (0) target = $region13
    $region12: #{edm_forward.1} parent=1 // pred_region
      _
    $region13: #{edm_forward.1} parent=1 // pred_fallthru
      _
    // Predicated region
    $region14: #{edm_forward.1} parent=1 // pred_check
      _
    $region15: #{edm_forward.1} parent=1 // pred_check_branch
      %21 = sbr.rel (0) target = $region17
    $region16: #{edm_forward.1} parent=1 // pred_region
      _
    $region17: #{edm_forward.1} parent=1 // pred_fallthru
      _
    // Predicated region
    $region18: #{edm_forward.1} parent=1 // pred_check
      _
    $region19: #{edm_forward.1} parent=1 // pred_check_branch
      %23 = sbr.rel (0) target = $region21
    $region20: #{edm_forward.1} parent=1 // pred_region
      _
    $region21: #{edm_forward.1} parent=1 // pred_fallthru
      _
    // Predicated region
    $region22: #{edm_forward.1} parent=1 // pred_check
      _
    $region23: #{edm_forward.1} parent=1 // pred_check_branch
      %25 = sbr.rel (0) target = $region25
    $region24: #{edm_forward.1} parent=1 // pred_region
      _
    $region25: #{edm_forward.1} parent=1 // pred_fallthru
      _
    // Predicated region
    $region26: #{edm_forward.1} parent=1 // pred_check
      _
    $region27: #{edm_forward.1} parent=1 // pred_check_branch
      %27 = sbr.rel (0) target = $region29
    $region28: #{edm_forward.1} parent=1 // pred_region
      _
    $region29: #{edm_forward.1} parent=1 // pred_fallthru
      _
    // Predicated region
    $region30: #{edm_forward.1} parent=1 // pred_check
      _
    $region31: #{edm_forward.1} parent=1 // pred_check_branch
      %29 = sbr.rel (0) target = $region33
    $region32: #{edm_forward.1} parent=1 // pred_region
      _
    $region33: #{edm_forward.1} parent=1 // pred_fallthru
      _
    %v30 = vld [vmem:[%s5] sm:$0xff]
    %v31 = vld [vmem:[%s5 + $0x8] sm:$0xff]
    %v32 = vld [vmem:[%s5 + $0x10] sm:$0xff]
    %v33 = vld [vmem:[%s5 + $0x18] sm:$0xff]
    %v34 = vld [vmem:[%s5 + $0x20] sm:$0xff]
    %v35 = vld [vmem:[%s5 + $0x28] sm:$0xff]
    %v36 = vld [vmem:[%s5 + $0x30] sm:$0xff]
    %v37 = vld [vmem:[%s5 + $0x38] sm:$0xff]
    %v38 = vld [vmem:[%s5 + $0x40] sm:$0xff]
    %v39 = vld [vmem:[%s5 + $0x48] sm:$0xff]
    %v40 = vld [vmem:[%s5 + $0x50] sm:$0xff]
    %v41 = vld [vmem:[%s5 + $0x58] sm:$0x3]
    %v44 = vcombine.high %v40, %v40
    %v46 = vunpack.c.l.s4 1966171168
    %v47 = vunpack.c.0.s8 %v46
    %v48 = vlaneseq
    %v49 = vshrl.u32 %v48, 7
    %v50 = vsub.s32 %v47, %v49
    %v51 = vrot.slane %v44, %v50
    %v52 = vcombine.high %v51, %v51
    %v54 = vunpack.c.l.s4 1966171168
    %v55 = vunpack.c.0.s8 %v54
    %v56 = vlaneseq
    %v57 = vshrl.u32 %v56, 7
    %v58 = vsub.s32 %v55, %v57
    %v59 = vrot.slane %v51, %v58
    %v61 = vunpack.c.l.s4 1966171168
    %v62 = vunpack.c.0.s8 %v61
    %v63 = vlaneseq
    %v64 = vshrl.u32 %v63, 7
    %v65 = vsub.s32 %v62, %v64
    %v66 = vrot.slane %v52, %v65
    %v67 = vcombine.high %v59, %v59
    %v68 = vcombine.high %v66, %v66
    %v70 = vunpack.c.l.s4 1966171168
    %v71 = vunpack.c.0.s8 %v70
    %v72 = vlaneseq
    %v73 = vshrl.u32 %v72, 7
    %v74 = vsub.s32 %v71, %v73
    %v75 = vrot.slane %v41, %v74
    %v76 = vcombine.high %v75, %v75
    %v78 = vunpack.c.l.s4 1966171168
    %v79 = vunpack.c.0.s8 %v78
    %v80 = vlaneseq
    %v81 = vshrl.u32 %v80, 7
    %v82 = vsub.s32 %v79, %v81
    %v83 = vrot.slane %v75, %v82
    %v85 = vunpack.c.l.s4 1966171168
    %v86 = vunpack.c.0.s8 %v85
    %v87 = vlaneseq
    %v88 = vshrl.u32 %v87, 7
    %v89 = vsub.s32 %v86, %v88
    %v90 = vrot.slane %v76, %v89
    %v91 = vld [vmem:[%s3] sm:$0x3]
    %v94 = vunpack.c.l.s4 1966171168
    %v95 = vunpack.c.0.s8 %v94
    %v96 = vlaneseq
    %v97 = vshrl.u32 %v96, 7
    %v98 = vsub.s32 %v95, %v97
    %v99 = vrot.slane %v91, %v98
    %v100 = vcombine.high %v99, %v99
    %v102 = vunpack.c.l.s4 1966171168
    %v103 = vunpack.c.0.s8 %v102
    %v104 = vlaneseq
    %v105 = vshrl.u32 %v104, 7
    %v106 = vsub.s32 %v103, %v105
    %v107 = vrot.slane %v99, %v106
    %v109 = vunpack.c.l.s4 1966171168
    %v110 = vunpack.c.0.s8 %v109
    %v111 = vlaneseq
    %v112 = vshrl.u32 %v111, 7
    %v113 = vsub.s32 %v110, %v112
    %v114 = vrot.slane %v100, %v113
    %v115 = vld [vmem:[%s4] sm:$0x3]
    %v116 = vmul.f32 %v115, -1e+09
    %v119 = vunpack.c.l.s4 1966171168
    %v120 = vunpack.c.0.s8 %v119
    %v121 = vlaneseq
    %v122 = vshrl.u32 %v121, 7
    %v123 = vsub.s32 %v120, %v122
    %v124 = vrot.slane %v116, %v123
    %v125 = vcombine.high %v124, %v124
    %v127 = vunpack.c.l.s4 1966171168
    %v128 = vunpack.c.0.s8 %v127
    %v129 = vlaneseq
    %v130 = vshrl.u32 %v129, 7
    %v131 = vsub.s32 %v128, %v130
    %v132 = vrot.slane %v124, %v131
    %v134 = vunpack.c.l.s4 1966171168
    %v135 = vunpack.c.0.s8 %v134
    %v136 = vlaneseq
    %v137 = vshrl.u32 %v136, 7
    %v138 = vsub.s32 %v135, %v137
    %v139 = vrot.slane %v125, %v138
    %v140 = vld [vmem:[%s0] sm:$0x3]
    %141 = vset.pattern.permute.xlu0 0
    %142 = vperm.xlu0 %141, %v91
    %v143 = vpop.permute.xlu0 %142
    %v145 = vmul.f32 %v143, %v140
    %v146 = vlaneseq
    %v147 = vshrl.u32 %v146, 7
    %v148 = vsub.s32 0, %v147
    %v149 = vrot.slane %v145, %v148
    %151 = vbcast.lane.b32.xlu0 %v149, 256
    %v152 = vpop.permute.xlu0 %151
    %s154 = sor.u32 256, 8
    %155 = vbcast.lane.b32.xlu0 %v149, %s154
    %v156 = vpop.permute.xlu0 %155
    %v157 = vlaneseq
    %v158 = vshrl.u32 %v157, 7
    %v159 = vsub.s32 1, %v158
    %v160 = vrot.slane %v145, %v159
    %162 = vbcast.lane.b32.xlu0 %v160, 256
    %v163 = vpop.permute.xlu0 %162
    %s165 = sor.u32 256, 8
    %166 = vbcast.lane.b32.xlu0 %v160, %s165
    %v167 = vpop.permute.xlu0 %166
    %v168 = vlaneseq
    %v169 = vshrl.u32 %v168, 7
    %v170 = vsub.s32 0, %v169
    %v171 = vrot.slane %v40, %v170
    %v172 = vmul.f32 %v152, %v171
    %v173 = vmul.f32 %v156, %v171
    %v174 = vmul.f32 %v163, %v171
    %v175 = vmul.f32 %v167, %v171
    %v176 = vld [vmem:[%s1] sm:$0x3]
    %v177 = vlaneseq
    %v178 = vshrl.u32 %v177, 7
    %v179 = vsub.s32 0, %v178
    %v180 = vrot.slane %v176, %v179
    %182 = vbcast.lane.b32.xlu0 %v180, 256
    %v183 = vpop.permute.xlu0 %182
    %s185 = sor.u32 256, 8
    %186 = vbcast.lane.b32.xlu0 %v180, %s185
    %v187 = vpop.permute.xlu0 %186
    %v188 = vlaneseq
    %v189 = vshrl.u32 %v188, 7
    %v190 = vsub.s32 1, %v189
    %v191 = vrot.slane %v176, %v190
    %193 = vbcast.lane.b32.xlu0 %v191, 256
    %v194 = vpop.permute.xlu0 %193
    %s196 = sor.u32 256, 8
    %197 = vbcast.lane.b32.xlu0 %v191, %s196
    %v198 = vpop.permute.xlu0 %197
    %v199 = vlaneseq
    %v200 = vshrl.u32 %v199, 7
    %v201 = vsub.s32 1, %v200
    %v202 = vrot.slane %v40, %v201
    %v203 = vmul.f32 %v183, %v202
    %v204 = vmul.f32 %v187, %v202
    %v205 = vmul.f32 %v194, %v202
    %v206 = vmul.f32 %v198, %v202
    %v207 = vadd.f32 %v172, %v203
    %v208 = vadd.f32 %v173, %v204
    %v209 = vadd.f32 %v174, %v205
    %v210 = vadd.f32 %v175, %v206
    %v211 = vlaneseq
    %v212 = vshrl.u32 %v211, 7
    %v213 = vsub.s32 2, %v212
    %v214 = vrot.slane %v40, %v213
    %v215 = vadd.f32 %v207, %v214
    %v216 = vadd.f32 %v208, %v214
    %v217 = vadd.f32 %v209, %v214
    %v218 = vadd.f32 %v210, %v214
    %v219 = vlaneseq
    %v220 = vshrl.u32 %v219, 7
    %v221 = vsub.s32 0, %v220
    %v222 = vrot.slane %v107, %v221
    %v223 = vlaneseq
    %v224 = vshrl.u32 %v223, 7
    %v225 = vsub.s32 0, %v224
    %v226 = vrot.slane %v114, %v225
    %227 = vrot.lane.b32.xlu0 %v222, 125
    %v228 = vpop.permute.xlu0 %227
    %229 = vrot.lane.b32.xlu0 %v226, 125
    %v230 = vpop.permute.xlu0 %229
    %v233 = vadd.f32 %v215, %v228
    %v234 = vadd.f32 %v216, %v228
    %v235 = vadd.f32 %v217, %v230
    %v236 = vadd.f32 %v218, %v230
    %v237 = vadd.f32 %v233, %v38
    %v238 = vadd.f32 %v234, %v39
    %v239 = vadd.f32 %v235, %v38
    %v240 = vadd.f32 %v236, %v39
    %v241 = vld [vmem:[%s2] sm:$0xff]
    %v242 = vld [vmem:[%s2 + $0x8] sm:$0xff]
    %v243 = vlaneseq
    %v244 = vshrl.u32 %v243, 7
    %v245 = vsub.s32 3, %v244
    %v246 = vrot.slane %v40, %v245
    %vm247 = vcmask 523264
    %v249 = vsel %vm247, %v241, 0
    %v252 = vsel %vm247, %v242, 0
    %254 = vmatprep.subr.mxu0 0.0
    %255 = vmatpush1.msra.mxu0 0.0
    %256 = vmatprep.subr.mxu0 0.0
    %257 = vmatpush1.msra.mxu0 0.0
    %258 = vmatprep.subr.mxu0 0.0
    %259 = vmatpush1.msra.mxu0 0.0
    %260 = vmatprep.subr.mxu0 0.0
    %261 = vmatpush1.msra.mxu0 0.0
    %262 = vmatprep.subr.mxu0 0.0
    %263 = vmatpush1.msra.mxu0 0.0
    %264 = vmatprep.subr.mxu0 0.0
    %265 = vmatpush1.msra.mxu0 0.0
    %266 = vmatprep.subr.mxu0 0.0
    %267 = vmatpush1.msra.mxu0 0.0
    %268 = vmatprep.subr.mxu0 0.0
    %269 = vmatpush1.msra.mxu0 0.0
    %270 = vmatprep.subr.mxu0 0.0
    %271 = vmatpush1.msra.mxu0 %v37
    %272 = vmatprep.subr.mxu0 0.0
    %273 = vmatpush1.msra.mxu0 %v36
    %274 = vmatprep.subr.mxu0 0.0
    %275 = vmatpush1.msra.mxu0 %v35
    %276 = vmatprep.subr.mxu0 0.0
    %277 = vmatpush1.msra.mxu0 %v34
    %278 = vmatprep.subr.mxu0 0.0
    %279 = vmatpush1.msra.mxu0 %v33
    %280 = vmatprep.subr.mxu0 0.0
    %281 = vmatpush1.msra.mxu0 %v32
    %282 = vmatprep.subr.mxu0 0.0
    %283 = vmatpush1.msra.mxu0 %v31
    %284 = vmatprep.subr.mxu0 0.0
    %285 = vmatpush1.msra.mxu0 %v30
    %286 = vmatprep.subr.mxu0 0.0
    %287 = vmatpush2.msra.mxu0 0.0
    %288 = vmatprep.subr.mxu0 0.0
    %289 = vmatpush2.msra.mxu0 0.0
    %290 = vmatprep.subr.mxu0 0.0
    %291 = vmatpush2.msra.mxu0 0.0
    %292 = vmatprep.subr.mxu0 0.0
    %293 = vmatpush2.msra.mxu0 0.0
    %294 = vmatprep.subr.mxu0 0.0
    %295 = vmatpush2.msra.mxu0 0.0
    %296 = vmatprep.subr.mxu0 0.0
    %297 = vmatpush2.msra.mxu0 0.0
    %298 = vmatprep.subr.mxu0 0.0
    %299 = vmatpush2.msra.mxu0 0.0
    %300 = vmatprep.subr.mxu0 0.0
    %301 = vmatpush2.msra.mxu0 0.0
    %302 = vmatprep.subr.mxu0 0.0
    %303 = vmatpush2.msra.mxu0 0.0
    %304 = vmatprep.subr.mxu0 0.0
    %305 = vmatpush2.msra.mxu0 0.0
    %306 = vmatprep.subr.mxu0 0.0
    %307 = vmatpush2.msra.mxu0 0.0
    %308 = vmatprep.subr.mxu0 0.0
    %309 = vmatpush2.msra.mxu0 0.0
    %310 = vmatprep.subr.mxu0 0.0
    %311 = vmatpush2.msra.mxu0 0.0
    %312 = vmatprep.subr.mxu0 0.0
    %313 = vmatpush2.msra.mxu0 0.0
    %314 = vmatprep.subr.mxu0 0.0
    %315 = vmatpush2.msra.mxu0 0.0
    %316 = vmatprep.subr.mxu0 0.0
    %317 = vmatpush2.msra.mxu0 0.0
    %318 = vmatprep.mubr.f32.mxu0 0.0
    %319 = vmatmul.mubr.f32.gmra.mxu0 %v249
    %v320 = vpop.f32.mrf.mxu0
    %v321 = vadd.f32 %v246, %v320
    %v322 = vpop.f32.mrf.mxu0
    %323 = vmatprep.mubr.f32.mxu0 0.0
    %324 = vmatmul.mubr.f32.gmra.mxu0 %v252
    %v325 = vpop.f32.mrf.mxu0
    %v326 = vadd.f32 %v246, %v325
    %v327 = vpop.f32.mrf.mxu0
    %328 = vdwg.mxu0
    %v329 = vadd.f32 %v321, %v228
    %v330 = vadd.f32 %v326, %v230
    %v331 = vld [vmem:[%s6] sm:$0xff]
    %v332 = vld [vmem:[%s6 + $0x8] sm:$0xff]
    %v333 = vld [vmem:[%s6 + $0x10] sm:$0xff]
    %v334 = vld [vmem:[%s6 + $0x18] sm:$0xff]
    %v335 = vld [vmem:[%s6 + $0x20] sm:$0x1]
    %vm336 = vcmask 261120
    %v337 = vsel %vm336, %v329, 0.0
    %338 = vadd.xlane.f32.xlu0 %v337
    %v339 = vpop.xlane.xlu0 %338
    %v340 = vsel %vm336, %v330, 0.0
    %341 = vadd.xlane.f32.xlu0 %v340
    %v342 = vpop.xlane.xlu0 %341
    %v343 = vrcp.pop 32.0
    %v344 = vmul.f32 %v339, %v343
    %v345 = vmul.f32 %v342, %v343
    %v346 = vsub.f32 %v329, %v344
    %v347 = vsub.f32 %v330, %v345
    %v348 = vmul.f32 %v346, %v346
    %v349 = vmul.f32 %v347, %v347
    %v350 = vsel %vm336, %v348, 0.0
    %351 = vadd.xlane.f32.xlu0 %v350
    %v352 = vpop.xlane.xlu0 %351
    %v353 = vsel %vm336, %v349, 0.0
    %354 = vadd.xlane.f32.xlu0 %v353
    %v355 = vpop.xlane.xlu0 %354
    %v356 = vmul.f32 %v352, %v343
    %v357 = vmul.f32 %v355, %v343
    %v358 = vadd.f32 %v356, 1e-05
    %v359 = vadd.f32 %v357, 1e-05
    %v360 = vrsqrt.pop %v358
    %v361 = vrsqrt.pop %v359
    %v362 = vmul.f32 %v346, %v360
    %v363 = vmul.f32 %v347, %v361
    %v364 = vlaneseq
    %v365 = vshrl.u32 %v364, 7
    %v366 = vsub.s32 0, %v365
    %v367 = vrot.slane %v335, %v366
    %v369 = vsel %vm336, %v362, 0
    %v372 = vsel %vm336, %v363, 0
    %374 = vmatprep.subr.mxu0 0.0
    %375 = vmatpush1.msra.mxu0 0.0
    %376 = vmatprep.subr.mxu0 0.0
    %377 = vmatpush1.msra.mxu0 0.0
    %378 = vmatprep.subr.mxu0 0.0
    %379 = vmatpush1.msra.mxu0 0.0
    %380 = vmatprep.subr.mxu0 0.0
    %381 = vmatpush1.msra.mxu0 0.0
    %382 = vmatprep.subr.mxu0 0.0
    %383 = vmatpush1.msra.mxu0 0.0
    %384 = vmatprep.subr.mxu0 0.0
    %385 = vmatpush1.msra.mxu0 0.0
    %386 = vmatprep.subr.mxu0 0.0
    %387 = vmatpush1.msra.mxu0 0.0
    %388 = vmatprep.subr.mxu0 0.0
    %389 = vmatpush1.msra.mxu0 0.0
    %390 = vmatprep.subr.mxu0 0.0
    %391 = vmatpush1.msra.mxu0 0.0
    %392 = vmatprep.subr.mxu0 0.0
    %393 = vmatpush1.msra.mxu0 0.0
    %394 = vmatprep.subr.mxu0 0.0
    %395 = vmatpush1.msra.mxu0 0.0
    %396 = vmatprep.subr.mxu0 0.0
    %397 = vmatpush1.msra.mxu0 0.0
    %398 = vmatprep.subr.mxu0 0.0
    %399 = vmatpush1.msra.mxu0 %v334
    %400 = vmatprep.subr.mxu0 0.0
    %401 = vmatpush1.msra.mxu0 %v333
    %402 = vmatprep.subr.mxu0 0.0
    %403 = vmatpush1.msra.mxu0 %v332
    %404 = vmatprep.subr.mxu0 0.0
    %405 = vmatpush1.msra.mxu0 %v331
    %406 = vmatprep.subr.mxu0 0.0
    %407 = vmatpush2.msra.mxu0 0.0
    %408 = vmatprep.subr.mxu0 0.0
    %409 = vmatpush2.msra.mxu0 0.0
    %410 = vmatprep.subr.mxu0 0.0
    %411 = vmatpush2.msra.mxu0 0.0
    %412 = vmatprep.subr.mxu0 0.0
    %413 = vmatpush2.msra.mxu0 0.0
    %414 = vmatprep.subr.mxu0 0.0
    %415 = vmatpush2.msra.mxu0 0.0
    %416 = vmatprep.subr.mxu0 0.0
    %417 = vmatpush2.msra.mxu0 0.0
    %418 = vmatprep.subr.mxu0 0.0
    %419 = vmatpush2.msra.mxu0 0.0
    %420 = vmatprep.subr.mxu0 0.0
    %421 = vmatpush2.msra.mxu0 0.0
    %422 = vmatprep.subr.mxu0 0.0
    %423 = vmatpush2.msra.mxu0 0.0
    %424 = vmatprep.subr.mxu0 0.0
    %425 = vmatpush2.msra.mxu0 0.0
    %426 = vmatprep.subr.mxu0 0.0
    %427 = vmatpush2.msra.mxu0 0.0
    %428 = vmatprep.subr.mxu0 0.0
    %429 = vmatpush2.msra.mxu0 0.0
    %430 = vmatprep.subr.mxu0 0.0
    %431 = vmatpush2.msra.mxu0 0.0
    %432 = vmatprep.subr.mxu0 0.0
    %433 = vmatpush2.msra.mxu0 0.0
    %434 = vmatprep.subr.mxu0 0.0
    %435 = vmatpush2.msra.mxu0 0.0
    %436 = vmatprep.subr.mxu0 0.0
    %437 = vmatpush2.msra.mxu0 0.0
    %438 = vmatprep.mubr.f32.mxu0 0.0
    %439 = vmatmul.mubr.f32.gmra.mxu0 %v369
    %v440 = vpop.f32.mrf.mxu0
    %v441 = vadd.f32 %v367, %v440
    %v442 = vpop.f32.mrf.mxu0
    %443 = vmatprep.mubr.f32.mxu0 0.0
    %444 = vmatmul.mubr.f32.gmra.mxu0 %v372
    %v445 = vpop.f32.mrf.mxu0
    %v446 = vadd.f32 %v367, %v445
    %v447 = vpop.f32.mrf.mxu0
    %448 = vdwg.mxu0
    %v449 = vld [vmem:[%s7] sm:$0xff]
    %v450 = vld [vmem:[%s7 + $0x8] sm:$0xff]
    %v451 = vld [vmem:[%s7 + $0x10] sm:$0xff]
    %v452 = vld [vmem:[%s7 + $0x18] sm:$0xff]
    %v453 = vld [vmem:[%s7 + $0x20] sm:$0xff]
    %v454 = vld [vmem:[%s7 + $0x28] sm:$0xff]
    %v455 = vld [vmem:[%s7 + $0x30] sm:$0xff]
    %v456 = vld [vmem:[%s7 + $0x38] sm:$0xff]
    %v457 = vld [vmem:[%s7 + $0x40] sm:$0xff]
    %v458 = vld [vmem:[%s7 + $0x48] sm:$0xff]
    %v459 = vld [vmem:[%s7 + $0x50] sm:$0xff]
    %v460 = vld [vmem:[%s7 + $0x58] sm:$0xff]
    %v461 = vld [vmem:[%s7 + $0x60] sm:$0x1]
    %v462 = vld [vmem:[%s7 + $0x68] sm:$0x1]
    %v463 = vld [vmem:[%s7 + $0x70] sm:$0x1]
    %v464 = vsel %vm336, %v237, 0.0
    %465 = vadd.xlane.f32.xlu0 %v464
    %v466 = vpop.xlane.xlu0 %465
    %v467 = vsel %vm336, %v238, 0.0
    %468 = vadd.xlane.f32.xlu0 %v467
    %v469 = vpop.xlane.xlu0 %468
    %v470 = vsel %vm336, %v239, 0.0
    %471 = vadd.xlane.f32.xlu0 %v470
    %v472 = vpop.xlane.xlu0 %471
    %v473 = vsel %vm336, %v240, 0.0
    %474 = vadd.xlane.f32.xlu0 %v473
    %v475 = vpop.xlane.xlu0 %474
    %v476 = vmul.f32 %v466, %v343
    %v477 = vmul.f32 %v469, %v343
    %v478 = vmul.f32 %v472, %v343
    %v479 = vmul.f32 %v475, %v343
    %v480 = vsub.f32 %v237, %v476
    %v481 = vsub.f32 %v238, %v477
    %v482 = vsub.f32 %v239, %v478
    %v483 = vsub.f32 %v240, %v479
    %v484 = vmul.f32 %v480, %v480
    %v485 = vmul.f32 %v481, %v481
    %v486 = vmul.f32 %v482, %v482
    %v487 = vmul.f32 %v483, %v483
    %v488 = vsel %vm336, %v484, 0.0
    %489 = vadd.xlane.f32.xlu0 %v488
    %v490 = vpop.xlane.xlu0 %489
    %v491 = vsel %vm336, %v485, 0.0
    %492 = vadd.xlane.f32.xlu0 %v491
    %v493 = vpop.xlane.xlu0 %492
    %v494 = vsel %vm336, %v486, 0.0
    %495 = vadd.xlane.f32.xlu0 %v494
    %v496 = vpop.xlane.xlu0 %495
    %v497 = vsel %vm336, %v487, 0.0
    %498 = vadd.xlane.f32.xlu0 %v497
    %v499 = vpop.xlane.xlu0 %498
    %v500 = vmul.f32 %v490, %v343
    %v501 = vmul.f32 %v493, %v343
    %v502 = vmul.f32 %v496, %v343
    %v503 = vmul.f32 %v499, %v343
    %v504 = vadd.f32 %v500, 1e-05
    %v505 = vadd.f32 %v501, 1e-05
    %v506 = vadd.f32 %v502, 1e-05
    %v507 = vadd.f32 %v503, 1e-05
    %v508 = vrsqrt.pop %v504
    %v509 = vrsqrt.pop %v505
    %v510 = vrsqrt.pop %v506
    %v511 = vrsqrt.pop %v507
    %v512 = vmul.f32 %v480, %v508
    %v513 = vmul.f32 %v481, %v509
    %v514 = vmul.f32 %v482, %v510
    %v515 = vmul.f32 %v483, %v511
    %v516 = vlaneseq
    %v517 = vshrl.u32 %v516, 7
    %v518 = vsub.s32 0, %v517
    %v519 = vrot.slane %v461, %v518
    %v521 = vsel %vm336, %v512, 0
    %v524 = vsel %vm336, %v513, 0
    %v527 = vsel %vm336, %v514, 0
    %v530 = vsel %vm336, %v515, 0
    %532 = vmatprep.subr.mxu0 0.0
    %533 = vmatpush1.msra.mxu0 0.0
    %534 = vmatprep.subr.mxu0 0.0
    %535 = vmatpush1.msra.mxu0 0.0
    %536 = vmatprep.subr.mxu0 0.0
    %537 = vmatpush1.msra.mxu0 0.0
    %538 = vmatprep.subr.mxu0 0.0
    %539 = vmatpush1.msra.mxu0 0.0
    %540 = vmatprep.subr.mxu0 0.0
    %541 = vmatpush1.msra.mxu0 0.0
    %542 = vmatprep.subr.mxu0 0.0
    %543 = vmatpush1.msra.mxu0 0.0
    %544 = vmatprep.subr.mxu0 0.0
    %545 = vmatpush1.msra.mxu0 0.0
    %546 = vmatprep.subr.mxu0 0.0
    %547 = vmatpush1.msra.mxu0 0.0
    %548 = vmatprep.subr.mxu0 0.0
    %549 = vmatpush1.msra.mxu0 0.0
    %550 = vmatprep.subr.mxu0 0.0
    %551 = vmatpush1.msra.mxu0 0.0
    %552 = vmatprep.subr.mxu0 0.0
    %553 = vmatpush1.msra.mxu0 0.0
    %554 = vmatprep.subr.mxu0 0.0
    %555 = vmatpush1.msra.mxu0 0.0
    %556 = vmatprep.subr.mxu0 0.0
    %557 = vmatpush1.msra.mxu0 %v458
    %558 = vmatprep.subr.mxu0 0.0
    %559 = vmatpush1.msra.mxu0 %v455
    %560 = vmatprep.subr.mxu0 0.0
    %561 = vmatpush1.msra.mxu0 %v452
    %562 = vmatprep.subr.mxu0 0.0
    %563 = vmatpush1.msra.mxu0 %v449
    %564 = vmatprep.subr.mxu0 0.0
    %565 = vmatpush2.msra.mxu0 0.0
    %566 = vmatprep.subr.mxu0 0.0
    %567 = vmatpush2.msra.mxu0 0.0
    %568 = vmatprep.subr.mxu0 0.0
    %569 = vmatpush2.msra.mxu0 0.0
    %570 = vmatprep.subr.mxu0 0.0
    %571 = vmatpush2.msra.mxu0 0.0
    %572 = vmatprep.subr.mxu0 0.0
    %573 = vmatpush2.msra.mxu0 0.0
    %574 = vmatprep.subr.mxu0 0.0
    %575 = vmatpush2.msra.mxu0 0.0
    %576 = vmatprep.subr.mxu0 0.0
    %577 = vmatpush2.msra.mxu0 0.0
    %578 = vmatprep.subr.mxu0 0.0
    %579 = vmatpush2.msra.mxu0 0.0
    %580 = vmatprep.subr.mxu0 0.0
    %581 = vmatpush2.msra.mxu0 0.0
    %582 = vmatprep.subr.mxu0 0.0
    %583 = vmatpush2.msra.mxu0 0.0
    %584 = vmatprep.subr.mxu0 0.0
    %585 = vmatpush2.msra.mxu0 0.0
    %586 = vmatprep.subr.mxu0 0.0
    %587 = vmatpush2.msra.mxu0 0.0
    %588 = vmatprep.subr.mxu0 0.0
    %589 = vmatpush2.msra.mxu0 0.0
    %590 = vmatprep.subr.mxu0 0.0
    %591 = vmatpush2.msra.mxu0 0.0
    %592 = vmatprep.subr.mxu0 0.0
    %593 = vmatpush2.msra.mxu0 0.0
    %594 = vmatprep.subr.mxu0 0.0
    %595 = vmatpush2.msra.mxu0 0.0
    %596 = vmatprep.mubr.f32.mxu0 0.0
    %597 = vmatmul.mubr.f32.gmra.mxu0 %v521
    %v598 = vpop.f32.mrf.mxu0
    %v599 = vadd.f32 %v519, %v598
    %v600 = vpop.f32.mrf.mxu0
    %601 = vmatprep.mubr.f32.mxu0 0.0
    %602 = vmatmul.mubr.f32.gmra.mxu0 %v524
    %v603 = vpop.f32.mrf.mxu0
    %v604 = vadd.f32 %v519, %v603
    %v605 = vpop.f32.mrf.mxu0
    %606 = vmatprep.mubr.f32.mxu0 0.0
    %607 = vmatmul.mubr.f32.gmra.mxu0 %v527
    %v608 = vpop.f32.mrf.mxu0
    %v609 = vadd.f32 %v519, %v608
    %v610 = vpop.f32.mrf.mxu0
    %611 = vmatprep.mubr.f32.mxu0 0.0
    %612 = vmatmul.mubr.f32.gmra.mxu0 %v530
    %v613 = vpop.f32.mrf.mxu0
    %v614 = vadd.f32 %v519, %v613
    %v615 = vpop.f32.mrf.mxu0
    %616 = vdwg.mxu0
    %v617 = vlaneseq
    %v618 = vshrl.u32 %v617, 7
    %v619 = vsub.s32 0, %v618
    %v620 = vrot.slane %v67, %v619
    %v621 = vlaneseq
    %v622 = vshrl.u32 %v621, 7
    %v623 = vsub.s32 0, %v622
    %v624 = vrot.slane %v68, %v623
    %v625 = vlaneseq
    %v626 = vshrl.u32 %v625, 7
    %v627 = vsub.s32 0, %v626
    %v628 = vrot.slane %v83, %v627
    %v629 = vlaneseq
    %v630 = vshrl.u32 %v629, 7
    %v631 = vsub.s32 0, %v630
    %v632 = vrot.slane %v90, %v631
    %633 = vrot.lane.b32.xlu0 %v620, 32
    %v634 = vpop.permute.xlu0 %633
    %635 = vrot.lane.b32.xlu0 %v624, 32
    %v636 = vpop.permute.xlu0 %635
    %637 = vrot.lane.b32.xlu0 %v628, 32
    %v638 = vpop.permute.xlu0 %637
    %639 = vrot.lane.b32.xlu0 %v632, 32
    %v640 = vpop.permute.xlu0 %639
    %v645 = vmul.f32 %v599, %v634
    %v646 = vmul.f32 %v604, %v634
    %v647 = vmul.f32 %v599, %v636
    %v648 = vmul.f32 %v604, %v636
    %v649 = vmul.f32 %v599, %v638
    %v650 = vmul.f32 %v604, %v638
    %v651 = vmul.f32 %v599, %v640
    %v652 = vmul.f32 %v604, %v640
    %v653 = vmul.f32 %v609, %v634
    %v654 = vmul.f32 %v614, %v634
    %v655 = vmul.f32 %v609, %v636
    %v656 = vmul.f32 %v614, %v636
    %v657 = vmul.f32 %v609, %v638
    %v658 = vmul.f32 %v614, %v638
    %v659 = vmul.f32 %v609, %v640
    %v660 = vmul.f32 %v614, %v640
    %661 = vrot.lane.b32.xlu0 %v620, 64
    %v662 = vpop.permute.xlu0 %661
    %663 = vrot.lane.b32.xlu0 %v624, 64
    %v664 = vpop.permute.xlu0 %663
    %665 = vrot.lane.b32.xlu0 %v628, 64
    %v666 = vpop.permute.xlu0 %665
    %667 = vrot.lane.b32.xlu0 %v632, 64
    %v668 = vpop.permute.xlu0 %667
    %v673 = vmul.f32 %v599, %v662
    %v674 = vmul.f32 %v604, %v662
    %v675 = vmul.f32 %v599, %v664
    %v676 = vmul.f32 %v604, %v664
    %v677 = vmul.f32 %v599, %v666
    %v678 = vmul.f32 %v604, %v666
    %v679 = vmul.f32 %v599, %v668
    %v680 = vmul.f32 %v604, %v668
    %v681 = vmul.f32 %v609, %v662
    %v682 = vmul.f32 %v614, %v662
    %v683 = vmul.f32 %v609, %v664
    %v684 = vmul.f32 %v614, %v664
    %v685 = vmul.f32 %v609, %v666
    %v686 = vmul.f32 %v614, %v666
    %v687 = vmul.f32 %v609, %v668
    %v688 = vmul.f32 %v614, %v668
    %691 = vrot.lane.b32.xlu0 %v645, 96
    %v692 = vpop.permute.xlu0 %691
    %693 = vrot.lane.b32.xlu0 %v646, 96
    %v694 = vpop.permute.xlu0 %693
    %v696 = vsel %vm336, %v599, 0
    %v699 = vsel %vm336, %v604, 0
    %v701 = vsel %vm336, %v692, 0
    %v703 = vsel %vm336, %v694, 0
    %705 = vmatprep.subr.mxu0 0.0
    %706 = vmatpush1.xpose.msra.mxu0 0.0
    %707 = vmatprep.subr.mxu0 0.0
    %708 = vmatpush1.xpose.msra.mxu0 0.0
    %709 = vmatprep.subr.mxu0 0.0
    %710 = vmatpush1.xpose.msra.mxu0 0.0
    %711 = vmatprep.subr.mxu0 0.0
    %712 = vmatpush1.xpose.msra.mxu0 0.0
    %713 = vmatprep.subr.mxu0 0.0
    %714 = vmatpush1.xpose.msra.mxu0 0.0
    %715 = vmatprep.subr.mxu0 0.0
    %716 = vmatpush1.xpose.msra.mxu0 0.0
    %717 = vmatprep.subr.mxu0 0.0
    %718 = vmatpush1.xpose.msra.mxu0 0.0
    %719 = vmatprep.subr.mxu0 0.0
    %720 = vmatpush1.xpose.msra.mxu0 0.0
    %721 = vmatprep.subr.mxu0 0.0
    %722 = vmatpush1.xpose.msra.mxu0 0.0
    %723 = vmatprep.subr.mxu0 0.0
    %724 = vmatpush1.xpose.msra.mxu0 0.0
    %725 = vmatprep.subr.mxu0 0.0
    %726 = vmatpush1.xpose.msra.mxu0 0.0
    %727 = vmatprep.subr.mxu0 0.0
    %728 = vmatpush1.xpose.msra.mxu0 0.0
    %729 = vmatprep.subr.mxu0 0.0
    %730 = vmatpush1.xpose.msra.mxu0 0.0
    %731 = vmatprep.subr.mxu0 0.0
    %732 = vmatpush1.xpose.msra.mxu0 0.0
    %733 = vmatprep.subr.mxu0 0.0
    %734 = vmatpush1.xpose.msra.mxu0 %v703
    %735 = vmatprep.subr.mxu0 0.0
    %736 = vmatpush1.xpose.msra.mxu0 %v701
    %737 = vmatprep.subr.mxu0 0.0
    %738 = vmatpush2.xpose.msra.mxu0 0.0
    %739 = vmatprep.subr.mxu0 0.0
    %740 = vmatpush2.xpose.msra.mxu0 0.0
    %741 = vmatprep.subr.mxu0 0.0
    %742 = vmatpush2.xpose.msra.mxu0 0.0
    %743 = vmatprep.subr.mxu0 0.0
    %744 = vmatpush2.xpose.msra.mxu0 0.0
    %745 = vmatprep.subr.mxu0 0.0
    %746 = vmatpush2.xpose.msra.mxu0 0.0
    %747 = vmatprep.subr.mxu0 0.0
    %748 = vmatpush2.xpose.msra.mxu0 0.0
    %749 = vmatprep.subr.mxu0 0.0
    %750 = vmatpush2.xpose.msra.mxu0 0.0
    %751 = vmatprep.subr.mxu0 0.0
    %752 = vmatpush2.xpose.msra.mxu0 0.0
    %753 = vmatprep.subr.mxu0 0.0
    %754 = vmatpush2.xpose.msra.mxu0 0.0
    %755 = vmatprep.subr.mxu0 0.0
    %756 = vmatpush2.xpose.msra.mxu0 0.0
    %757 = vmatprep.subr.mxu0 0.0
    %758 = vmatpush2.xpose.msra.mxu0 0.0
    %759 = vmatprep.subr.mxu0 0.0
    %760 = vmatpush2.xpose.msra.mxu0 0.0
    %761 = vmatprep.subr.mxu0 0.0
    %762 = vmatpush2.xpose.msra.mxu0 0.0
    %763 = vmatprep.subr.mxu0 0.0
    %764 = vmatpush2.xpose.msra.mxu0 0.0
    %765 = vmatprep.subr.mxu0 0.0
    %766 = vmatpush2.xpose.msra.mxu0 0.0
    %767 = vmatprep.subr.mxu0 0.0
    %768 = vmatpush2.xpose.msra.mxu0 0.0
    %769 = vmatprep.mubr.f32.mxu0 0.0
    %770 = vmatmul.mubr.f32.gmra.mxu0 %v696
    %v771 = vpop.f32.mrf.mxu0
    %v772 = vadd.f32 0.0, %v771
    %v773 = vpop.f32.mrf.mxu0
    %774 = vmatprep.mubr.f32.mxu0 0.0
    %775 = vmatmul.mubr.f32.gmra.mxu0 %v699
    %v776 = vpop.f32.mrf.mxu0
    %v777 = vadd.f32 0.0, %v776
    %v778 = vpop.f32.mrf.mxu0
    %779 = vdwg.mxu0
    %782 = vrot.lane.b32.xlu0 %v647, 96
    %v783 = vpop.permute.xlu0 %782
    %784 = vrot.lane.b32.xlu0 %v648, 96
    %v785 = vpop.permute.xlu0 %784
    %v786 = vsel %vm336, %v783, 0
    %v788 = vsel %vm336, %v785, 0
    %790 = vmatprep.subr.mxu0 0.0
    %791 = vmatpush1.xpose.msra.mxu0 0.0
    %792 = vmatprep.subr.mxu0 0.0
    %793 = vmatpush1.xpose.msra.mxu0 0.0
    %794 = vmatprep.subr.mxu0 0.0
    %795 = vmatpush1.xpose.msra.mxu0 0.0
    %796 = vmatprep.subr.mxu0 0.0
    %797 = vmatpush1.xpose.msra.mxu0 0.0
    %798 = vmatprep.subr.mxu0 0.0
    %799 = vmatpush1.xpose.msra.mxu0 0.0
    %800 = vmatprep.subr.mxu0 0.0
    %801 = vmatpush1.xpose.msra.mxu0 0.0
    %802 = vmatprep.subr.mxu0 0.0
    %803 = vmatpush1.xpose.msra.mxu0 0.0
    %804 = vmatprep.subr.mxu0 0.0
    %805 = vmatpush1.xpose.msra.mxu0 0.0
    %806 = vmatprep.subr.mxu0 0.0
    %807 = vmatpush1.xpose.msra.mxu0 0.0
    %808 = vmatprep.subr.mxu0 0.0
    %809 = vmatpush1.xpose.msra.mxu0 0.0
    %810 = vmatprep.subr.mxu0 0.0
    %811 = vmatpush1.xpose.msra.mxu0 0.0
    %812 = vmatprep.subr.mxu0 0.0
    %813 = vmatpush1.xpose.msra.mxu0 0.0
    %814 = vmatprep.subr.mxu0 0.0
    %815 = vmatpush1.xpose.msra.mxu0 0.0
    %816 = vmatprep.subr.mxu0 0.0
    %817 = vmatpush1.xpose.msra.mxu0 0.0
    %818 = vmatprep.subr.mxu0 0.0
    %819 = vmatpush1.xpose.msra.mxu0 %v788
    %820 = vmatprep.subr.mxu0 0.0
    %821 = vmatpush1.xpose.msra.mxu0 %v786
    %822 = vmatprep.subr.mxu0 0.0
    %823 = vmatpush2.xpose.msra.mxu0 0.0
    %824 = vmatprep.subr.mxu0 0.0
    %825 = vmatpush2.xpose.msra.mxu0 0.0
    %826 = vmatprep.subr.mxu0 0.0
    %827 = vmatpush2.xpose.msra.mxu0 0.0
    %828 = vmatprep.subr.mxu0 0.0
    %829 = vmatpush2.xpose.msra.mxu0 0.0
    %830 = vmatprep.subr.mxu0 0.0
    %831 = vmatpush2.xpose.msra.mxu0 0.0
    %832 = vmatprep.subr.mxu0 0.0
    %833 = vmatpush2.xpose.msra.mxu0 0.0
    %834 = vmatprep.subr.mxu0 0.0
    %835 = vmatpush2.xpose.msra.mxu0 0.0
    %836 = vmatprep.subr.mxu0 0.0
    %837 = vmatpush2.xpose.msra.mxu0 0.0
    %838 = vmatprep.subr.mxu0 0.0
    %839 = vmatpush2.xpose.msra.mxu0 0.0
    %840 = vmatprep.subr.mxu0 0.0
    %841 = vmatpush2.xpose.msra.mxu0 0.0
    %842 = vmatprep.subr.mxu0 0.0
    %843 = vmatpush2.xpose.msra.mxu0 0.0
    %844 = vmatprep.subr.mxu0 0.0
    %845 = vmatpush2.xpose.msra.mxu0 0.0
    %846 = vmatprep.subr.mxu0 0.0
    %847 = vmatpush2.xpose.msra.mxu0 0.0
    %848 = vmatprep.subr.mxu0 0.0
    %849 = vmatpush2.xpose.msra.mxu0 0.0
    %850 = vmatprep.subr.mxu0 0.0
    %851 = vmatpush2.xpose.msra.mxu0 0.0
    %852 = vmatprep.subr.mxu0 0.0
    %853 = vmatpush2.xpose.msra.mxu0 0.0
    %854 = vmatprep.mubr.f32.mxu0 0.0
    %855 = vmatmul.mubr.f32.gmra.mxu0 %v696
    %v856 = vpop.f32.mrf.mxu0
    %v857 = vadd.f32 0.0, %v856
    %v858 = vpop.f32.mrf.mxu0
    %859 = vmatprep.mubr.f32.mxu0 0.0
    %860 = vmatmul.mubr.f32.gmra.mxu0 %v699
    %v861 = vpop.f32.mrf.mxu0
    %v862 = vadd.f32 0.0, %v861
    %v863 = vpop.f32.mrf.mxu0
    %864 = vdwg.mxu0
    %867 = vrot.lane.b32.xlu0 %v649, 96
    %v868 = vpop.permute.xlu0 %867
    %869 = vrot.lane.b32.xlu0 %v650, 96
    %v870 = vpop.permute.xlu0 %869
    %v871 = vsel %vm336, %v868, 0
    %v873 = vsel %vm336, %v870, 0
    %875 = vmatprep.subr.mxu0 0.0
    %876 = vmatpush1.xpose.msra.mxu0 0.0
    %877 = vmatprep.subr.mxu0 0.0
    %878 = vmatpush1.xpose.msra.mxu0 0.0
    %879 = vmatprep.subr.mxu0 0.0
    %880 = vmatpush1.xpose.msra.mxu0 0.0
    %881 = vmatprep.subr.mxu0 0.0
    %882 = vmatpush1.xpose.msra.mxu0 0.0
    %883 = vmatprep.subr.mxu0 0.0
    %884 = vmatpush1.xpose.msra.mxu0 0.0
    %885 = vmatprep.subr.mxu0 0.0
    %886 = vmatpush1.xpose.msra.mxu0 0.0
    %887 = vmatprep.subr.mxu0 0.0
    %888 = vmatpush1.xpose.msra.mxu0 0.0
    %889 = vmatprep.subr.mxu0 0.0
    %890 = vmatpush1.xpose.msra.mxu0 0.0
    %891 = vmatprep.subr.mxu0 0.0
    %892 = vmatpush1.xpose.msra.mxu0 0.0
    %893 = vmatprep.subr.mxu0 0.0
    %894 = vmatpush1.xpose.msra.mxu0 0.0
    %895 = vmatprep.subr.mxu0 0.0
    %896 = vmatpush1.xpose.msra.mxu0 0.0
    %897 = vmatprep.subr.mxu0 0.0
    %898 = vmatpush1.xpose.msra.mxu0 0.0
    %899 = vmatprep.subr.mxu0 0.0
    %900 = vmatpush1.xpose.msra.mxu0 0.0
    %901 = vmatprep.subr.mxu0 0.0
    %902 = vmatpush1.xpose.msra.mxu0 0.0
    %903 = vmatprep.subr.mxu0 0.0
    %904 = vmatpush1.xpose.msra.mxu0 %v873
    %905 = vmatprep.subr.mxu0 0.0
    %906 = vmatpush1.xpose.msra.mxu0 %v871
    %907 = vmatprep.subr.mxu0 0.0
    %908 = vmatpush2.xpose.msra.mxu0 0.0
    %909 = vmatprep.subr.mxu0 0.0
    %910 = vmatpush2.xpose.msra.mxu0 0.0
    %911 = vmatprep.subr.mxu0 0.0
    %912 = vmatpush2.xpose.msra.mxu0 0.0
    %913 = vmatprep.subr.mxu0 0.0
    %914 = vmatpush2.xpose.msra.mxu0 0.0
    %915 = vmatprep.subr.mxu0 0.0
    %916 = vmatpush2.xpose.msra.mxu0 0.0
    %917 = vmatprep.subr.mxu0 0.0
    %918 = vmatpush2.xpose.msra.mxu0 0.0
    %919 = vmatprep.subr.mxu0 0.0
    %920 = vmatpush2.xpose.msra.mxu0 0.0
    %921 = vmatprep.subr.mxu0 0.0
    %922 = vmatpush2.xpose.msra.mxu0 0.0
    %923 = vmatprep.subr.mxu0 0.0
    %924 = vmatpush2.xpose.msra.mxu0 0.0
    %925 = vmatprep.subr.mxu0 0.0
    %926 = vmatpush2.xpose.msra.mxu0 0.0
    %927 = vmatprep.subr.mxu0 0.0
    %928 = vmatpush2.xpose.msra.mxu0 0.0
    %929 = vmatprep.subr.mxu0 0.0
    %930 = vmatpush2.xpose.msra.mxu0 0.0
    %931 = vmatprep.subr.mxu0 0.0
    %932 = vmatpush2.xpose.msra.mxu0 0.0
    %933 = vmatprep.subr.mxu0 0.0
    %934 = vmatpush2.xpose.msra.mxu0 0.0
    %935 = vmatprep.subr.mxu0 0.0
    %936 = vmatpush2.xpose.msra.mxu0 0.0
    %937 = vmatprep.subr.mxu0 0.0
    %938 = vmatpush2.xpose.msra.mxu0 0.0
    %939 = vmatprep.mubr.f32.mxu0 0.0
    %940 = vmatmul.mubr.f32.gmra.mxu0 %v696
    %v941 = vpop.f32.mrf.mxu0
    %v942 = vadd.f32 0.0, %v941
    %v943 = vpop.f32.mrf.mxu0
    %944 = vmatprep.mubr.f32.mxu0 0.0
    %945 = vmatmul.mubr.f32.gmra.mxu0 %v699
    %v946 = vpop.f32.mrf.mxu0
    %v947 = vadd.f32 0.0, %v946
    %v948 = vpop.f32.mrf.mxu0
    %949 = vdwg.mxu0
    %952 = vrot.lane.b32.xlu0 %v651, 96
    %v953 = vpop.permute.xlu0 %952
    %954 = vrot.lane.b32.xlu0 %v652, 96
    %v955 = vpop.permute.xlu0 %954
    %v956 = vsel %vm336, %v953, 0
    %v958 = vsel %vm336, %v955, 0
    %960 = vmatprep.subr.mxu0 0.0
    %961 = vmatpush1.xpose.msra.mxu0 0.0
    %962 = vmatprep.subr.mxu0 0.0
    %963 = vmatpush1.xpose.msra.mxu0 0.0
    %964 = vmatprep.subr.mxu0 0.0
    %965 = vmatpush1.xpose.msra.mxu0 0.0
    %966 = vmatprep.subr.mxu0 0.0
    %967 = vmatpush1.xpose.msra.mxu0 0.0
    %968 = vmatprep.subr.mxu0 0.0
    %969 = vmatpush1.xpose.msra.mxu0 0.0
    %970 = vmatprep.subr.mxu0 0.0
    %971 = vmatpush1.xpose.msra.mxu0 0.0
    %972 = vmatprep.subr.mxu0 0.0
    %973 = vmatpush1.xpose.msra.mxu0 0.0
    %974 = vmatprep.subr.mxu0 0.0
    %975 = vmatpush1.xpose.msra.mxu0 0.0
    %976 = vmatprep.subr.mxu0 0.0
    %977 = vmatpush1.xpose.msra.mxu0 0.0
    %978 = vmatprep.subr.mxu0 0.0
    %979 = vmatpush1.xpose.msra.mxu0 0.0
    %980 = vmatprep.subr.mxu0 0.0
    %981 = vmatpush1.xpose.msra.mxu0 0.0
    %982 = vmatprep.subr.mxu0 0.0
    %983 = vmatpush1.xpose.msra.mxu0 0.0
    %984 = vmatprep.subr.mxu0 0.0
    %985 = vmatpush1.xpose.msra.mxu0 0.0
    %986 = vmatprep.subr.mxu0 0.0
    %987 = vmatpush1.xpose.msra.mxu0 0.0
    %988 = vmatprep.subr.mxu0 0.0
    %989 = vmatpush1.xpose.msra.mxu0 %v958
    %990 = vmatprep.subr.mxu0 0.0
    %991 = vmatpush1.xpose.msra.mxu0 %v956
    %992 = vmatprep.subr.mxu0 0.0
    %993 = vmatpush2.xpose.msra.mxu0 0.0
    %994 = vmatprep.subr.mxu0 0.0
    %995 = vmatpush2.xpose.msra.mxu0 0.0
    %996 = vmatprep.subr.mxu0 0.0
    %997 = vmatpush2.xpose.msra.mxu0 0.0
    %998 = vmatprep.subr.mxu0 0.0
    %999 = vmatpush2.xpose.msra.mxu0 0.0
    %1000 = vmatprep.subr.mxu0 0.0
    %1001 = vmatpush2.xpose.msra.mxu0 0.0
    %1002 = vmatprep.subr.mxu0 0.0
    %1003 = vmatpush2.xpose.msra.mxu0 0.0
    %1004 = vmatprep.subr.mxu0 0.0
    %1005 = vmatpush2.xpose.msra.mxu0 0.0
    %1006 = vmatprep.subr.mxu0 0.0
    %1007 = vmatpush2.xpose.msra.mxu0 0.0
    %1008 = vmatprep.subr.mxu0 0.0
    %1009 = vmatpush2.xpose.msra.mxu0 0.0
    %1010 = vmatprep.subr.mxu0 0.0
    %1011 = vmatpush2.xpose.msra.mxu0 0.0
    %1012 = vmatprep.subr.mxu0 0.0
    %1013 = vmatpush2.xpose.msra.mxu0 0.0
    %1014 = vmatprep.subr.mxu0 0.0
    %1015 = vmatpush2.xpose.msra.mxu0 0.0
    %1016 = vmatprep.subr.mxu0 0.0
    %1017 = vmatpush2.xpose.msra.mxu0 0.0
    %1018 = vmatprep.subr.mxu0 0.0
    %1019 = vmatpush2.xpose.msra.mxu0 0.0
    %1020 = vmatprep.subr.mxu0 0.0
    %1021 = vmatpush2.xpose.msra.mxu0 0.0
    %1022 = vmatprep.subr.mxu0 0.0
    %1023 = vmatpush2.xpose.msra.mxu0 0.0
    %1024 = vmatprep.mubr.f32.mxu0 0.0
    %1025 = vmatmul.mubr.f32.gmra.mxu0 %v696
    %v1026 = vpop.f32.mrf.mxu0
    %v1027 = vadd.f32 0.0, %v1026
    %v1028 = vpop.f32.mrf.mxu0
    %1029 = vmatprep.mubr.f32.mxu0 0.0
    %1030 = vmatmul.mubr.f32.gmra.mxu0 %v699
    %v1031 = vpop.f32.mrf.mxu0
    %v1032 = vadd.f32 0.0, %v1031
    %v1033 = vpop.f32.mrf.mxu0
    %1034 = vdwg.mxu0
    %1037 = vrot.lane.b32.xlu0 %v653, 96
    %v1038 = vpop.permute.xlu0 %1037
    %1039 = vrot.lane.b32.xlu0 %v654, 96
    %v1040 = vpop.permute.xlu0 %1039
    %v1042 = vsel %vm336, %v609, 0
    %v1045 = vsel %vm336, %v614, 0
    %v1047 = vsel %vm336, %v1038, 0
    %v1049 = vsel %vm336, %v1040, 0
    %1051 = vmatprep.subr.mxu0 0.0
    %1052 = vmatpush1.xpose.msra.mxu0 0.0
    %1053 = vmatprep.subr.mxu0 0.0
    %1054 = vmatpush1.xpose.msra.mxu0 0.0
    %1055 = vmatprep.subr.mxu0 0.0
    %1056 = vmatpush1.xpose.msra.mxu0 0.0
    %1057 = vmatprep.subr.mxu0 0.0
    %1058 = vmatpush1.xpose.msra.mxu0 0.0
    %1059 = vmatprep.subr.mxu0 0.0
    %1060 = vmatpush1.xpose.msra.mxu0 0.0
    %1061 = vmatprep.subr.mxu0 0.0
    %1062 = vmatpush1.xpose.msra.mxu0 0.0
    %1063 = vmatprep.subr.mxu0 0.0
    %1064 = vmatpush1.xpose.msra.mxu0 0.0
    %1065 = vmatprep.subr.mxu0 0.0
    %1066 = vmatpush1.xpose.msra.mxu0 0.0
    %1067 = vmatprep.subr.mxu0 0.0
    %1068 = vmatpush1.xpose.msra.mxu0 0.0
    %1069 = vmatprep.subr.mxu0 0.0
    %1070 = vmatpush1.xpose.msra.mxu0 0.0
    %1071 = vmatprep.subr.mxu0 0.0
    %1072 = vmatpush1.xpose.msra.mxu0 0.0
    %1073 = vmatprep.subr.mxu0 0.0
    %1074 = vmatpush1.xpose.msra.mxu0 0.0
    %1075 = vmatprep.subr.mxu0 0.0
    %1076 = vmatpush1.xpose.msra.mxu0 0.0
    %1077 = vmatprep.subr.mxu0 0.0
    %1078 = vmatpush1.xpose.msra.mxu0 0.0
    %1079 = vmatprep.subr.mxu0 0.0
    %1080 = vmatpush1.xpose.msra.mxu0 %v1049
    %1081 = vmatprep.subr.mxu0 0.0
    %1082 = vmatpush1.xpose.msra.mxu0 %v1047
    %1083 = vmatprep.subr.mxu0 0.0
    %1084 = vmatpush2.xpose.msra.mxu0 0.0
    %1085 = vmatprep.subr.mxu0 0.0
    %1086 = vmatpush2.xpose.msra.mxu0 0.0
    %1087 = vmatprep.subr.mxu0 0.0
    %1088 = vmatpush2.xpose.msra.mxu0 0.0
    %1089 = vmatprep.subr.mxu0 0.0
    %1090 = vmatpush2.xpose.msra.mxu0 0.0
    %1091 = vmatprep.subr.mxu0 0.0
    %1092 = vmatpush2.xpose.msra.mxu0 0.0
    %1093 = vmatprep.subr.mxu0 0.0
    %1094 = vmatpush2.xpose.msra.mxu0 0.0
    %1095 = vmatprep.subr.mxu0 0.0
    %1096 = vmatpush2.xpose.msra.mxu0 0.0
    %1097 = vmatprep.subr.mxu0 0.0
    %1098 = vmatpush2.xpose.msra.mxu0 0.0
    %1099 = vmatprep.subr.mxu0 0.0
    %1100 = vmatpush2.xpose.msra.mxu0 0.0
    %1101 = vmatprep.subr.mxu0 0.0
    %1102 = vmatpush2.xpose.msra.mxu0 0.0
    %1103 = vmatprep.subr.mxu0 0.0
    %1104 = vmatpush2.xpose.msra.mxu0 0.0
    %1105 = vmatprep.subr.mxu0 0.0
    %1106 = vmatpush2.xpose.msra.mxu0 0.0
    %1107 = vmatprep.subr.mxu0 0.0
    %1108 = vmatpush2.xpose.msra.mxu0 0.0
    %1109 = vmatprep.subr.mxu0 0.0
    %1110 = vmatpush2.xpose.msra.mxu0 0.0
    %1111 = vmatprep.subr.mxu0 0.0
    %1112 = vmatpush2.xpose.msra.mxu0 0.0
    %1113 = vmatprep.subr.mxu0 0.0
    %1114 = vmatpush2.xpose.msra.mxu0 0.0
    %1115 = vmatprep.mubr.f32.mxu0 0.0
    %1116 = vmatmul.mubr.f32.gmra.mxu0 %v1042
    %v1117 = vpop.f32.mrf.mxu0
    %v1118 = vadd.f32 0.0, %v1117
    %v1119 = vpop.f32.mrf.mxu0
    %1120 = vmatprep.mubr.f32.mxu0 0.0
    %1121 = vmatmul.mubr.f32.gmra.mxu0 %v1045
    %v1122 = vpop.f32.mrf.mxu0
    %v1123 = vadd.f32 0.0, %v1122
    %v1124 = vpop.f32.mrf.mxu0
    %1125 = vdwg.mxu0
    %1128 = vrot.lane.b32.xlu0 %v655, 96
    %v1129 = vpop.permute.xlu0 %1128
    %1130 = vrot.lane.b32.xlu0 %v656, 96
    %v1131 = vpop.permute.xlu0 %1130
    %v1132 = vsel %vm336, %v1129, 0
    %v1134 = vsel %vm336, %v1131, 0
    %1136 = vmatprep.subr.mxu0 0.0
    %1137 = vmatpush1.xpose.msra.mxu0 0.0
    %1138 = vmatprep.subr.mxu0 0.0
    %1139 = vmatpush1.xpose.msra.mxu0 0.0
    %1140 = vmatprep.subr.mxu0 0.0
    %1141 = vmatpush1.xpose.msra.mxu0 0.0
    %1142 = vmatprep.subr.mxu0 0.0
    %1143 = vmatpush1.xpose.msra.mxu0 0.0
    %1144 = vmatprep.subr.mxu0 0.0
    %1145 = vmatpush1.xpose.msra.mxu0 0.0
    %1146 = vmatprep.subr.mxu0 0.0
    %1147 = vmatpush1.xpose.msra.mxu0 0.0
    %1148 = vmatprep.subr.mxu0 0.0
    %1149 = vmatpush1.xpose.msra.mxu0 0.0
    %1150 = vmatprep.subr.mxu0 0.0
    %1151 = vmatpush1.xpose.msra.mxu0 0.0
    %1152 = vmatprep.subr.mxu0 0.0
    %1153 = vmatpush1.xpose.msra.mxu0 0.0
    %1154 = vmatprep.subr.mxu0 0.0
    %1155 = vmatpush1.xpose.msra.mxu0 0.0
    %1156 = vmatprep.subr.mxu0 0.0
    %1157 = vmatpush1.xpose.msra.mxu0 0.0
    %1158 = vmatprep.subr.mxu0 0.0
    %1159 = vmatpush1.xpose.msra.mxu0 0.0
    %1160 = vmatprep.subr.mxu0 0.0
    %1161 = vmatpush1.xpose.msra.mxu0 0.0
    %1162 = vmatprep.subr.mxu0 0.0
    %1163 = vmatpush1.xpose.msra.mxu0 0.0
    %1164 = vmatprep.subr.mxu0 0.0
    %1165 = vmatpush1.xpose.msra.mxu0 %v1134
    %1166 = vmatprep.subr.mxu0 0.0
    %1167 = vmatpush1.xpose.msra.mxu0 %v1132
    %1168 = vmatprep.subr.mxu0 0.0
    %1169 = vmatpush2.xpose.msra.mxu0 0.0
    %1170 = vmatprep.subr.mxu0 0.0
    %1171 = vmatpush2.xpose.msra.mxu0 0.0
    %1172 = vmatprep.subr.mxu0 0.0
    %1173 = vmatpush2.xpose.msra.mxu0 0.0
    %1174 = vmatprep.subr.mxu0 0.0
    %1175 = vmatpush2.xpose.msra.mxu0 0.0
    %1176 = vmatprep.subr.mxu0 0.0
    %1177 = vmatpush2.xpose.msra.mxu0 0.0
    %1178 = vmatprep.subr.mxu0 0.0
    %1179 = vmatpush2.xpose.msra.mxu0 0.0
    %1180 = vmatprep.subr.mxu0 0.0
    %1181 = vmatpush2.xpose.msra.mxu0 0.0
    %1182 = vmatprep.subr.mxu0 0.0
    %1183 = vmatpush2.xpose.msra.mxu0 0.0
    %1184 = vmatprep.subr.mxu0 0.0
    %1185 = vmatpush2.xpose.msra.mxu0 0.0
    %1186 = vmatprep.subr.mxu0 0.0
    %1187 = vmatpush2.xpose.msra.mxu0 0.0
    %1188 = vmatprep.subr.mxu0 0.0
    %1189 = vmatpush2.xpose.msra.mxu0 0.0
    %1190 = vmatprep.subr.mxu0 0.0
    %1191 = vmatpush2.xpose.msra.mxu0 0.0
    %1192 = vmatprep.subr.mxu0 0.0
    %1193 = vmatpush2.xpose.msra.mxu0 0.0
    %1194 = vmatprep.subr.mxu0 0.0
    %1195 = vmatpush2.xpose.msra.mxu0 0.0
    %1196 = vmatprep.subr.mxu0 0.0
    %1197 = vmatpush2.xpose.msra.mxu0 0.0
    %1198 = vmatprep.subr.mxu0 0.0
    %1199 = vmatpush2.xpose.msra.mxu0 0.0
    %1200 = vmatprep.mubr.f32.mxu0 0.0
    %1201 = vmatmul.mubr.f32.gmra.mxu0 %v1042
    %v1202 = vpop.f32.mrf.mxu0
    %v1203 = vadd.f32 0.0, %v1202
    %v1204 = vpop.f32.mrf.mxu0
    %1205 = vmatprep.mubr.f32.mxu0 0.0
    %1206 = vmatmul.mubr.f32.gmra.mxu0 %v1045
    %v1207 = vpop.f32.mrf.mxu0
    %v1208 = vadd.f32 0.0, %v1207
    %v1209 = vpop.f32.mrf.mxu0
    %1210 = vdwg.mxu0
    %1213 = vrot.lane.b32.xlu0 %v657, 96
    %v1214 = vpop.permute.xlu0 %1213
    %1215 = vrot.lane.b32.xlu0 %v658, 96
    %v1216 = vpop.permute.xlu0 %1215
    %v1217 = vsel %vm336, %v1214, 0
    %v1219 = vsel %vm336, %v1216, 0
    %1221 = vmatprep.subr.mxu0 0.0
    %1222 = vmatpush1.xpose.msra.mxu0 0.0
    %1223 = vmatprep.subr.mxu0 0.0
    %1224 = vmatpush1.xpose.msra.mxu0 0.0
    %1225 = vmatprep.subr.mxu0 0.0
    %1226 = vmatpush1.xpose.msra.mxu0 0.0
    %1227 = vmatprep.subr.mxu0 0.0
    %1228 = vmatpush1.xpose.msra.mxu0 0.0
    %1229 = vmatprep.subr.mxu0 0.0
    %1230 = vmatpush1.xpose.msra.mxu0 0.0
    %1231 = vmatprep.subr.mxu0 0.0
    %1232 = vmatpush1.xpose.msra.mxu0 0.0
    %1233 = vmatprep.subr.mxu0 0.0
    %1234 = vmatpush1.xpose.msra.mxu0 0.0
    %1235 = vmatprep.subr.mxu0 0.0
    %1236 = vmatpush1.xpose.msra.mxu0 0.0
    %1237 = vmatprep.subr.mxu0 0.0
    %1238 = vmatpush1.xpose.msra.mxu0 0.0
    %1239 = vmatprep.subr.mxu0 0.0
    %1240 = vmatpush1.xpose.msra.mxu0 0.0
    %1241 = vmatprep.subr.mxu0 0.0
    %1242 = vmatpush1.xpose.msra.mxu0 0.0
    %1243 = vmatprep.subr.mxu0 0.0
    %1244 = vmatpush1.xpose.msra.mxu0 0.0
    %1245 = vmatprep.subr.mxu0 0.0
    %1246 = vmatpush1.xpose.msra.mxu0 0.0
    %1247 = vmatprep.subr.mxu0 0.0
    %1248 = vmatpush1.xpose.msra.mxu0 0.0
    %1249 = vmatprep.subr.mxu0 0.0
    %1250 = vmatpush1.xpose.msra.mxu0 %v1219
    %1251 = vmatprep.subr.mxu0 0.0
    %1252 = vmatpush1.xpose.msra.mxu0 %v1217
    %1253 = vmatprep.subr.mxu0 0.0
    %1254 = vmatpush2.xpose.msra.mxu0 0.0
    %1255 = vmatprep.subr.mxu0 0.0
    %1256 = vmatpush2.xpose.msra.mxu0 0.0
    %1257 = vmatprep.subr.mxu0 0.0
    %1258 = vmatpush2.xpose.msra.mxu0 0.0
    %1259 = vmatprep.subr.mxu0 0.0
    %1260 = vmatpush2.xpose.msra.mxu0 0.0
    %1261 = vmatprep.subr.mxu0 0.0
    %1262 = vmatpush2.xpose.msra.mxu0 0.0
    %1263 = vmatprep.subr.mxu0 0.0
    %1264 = vmatpush2.xpose.msra.mxu0 0.0
    %1265 = vmatprep.subr.mxu0 0.0
    %1266 = vmatpush2.xpose.msra.mxu0 0.0
    %1267 = vmatprep.subr.mxu0 0.0
    %1268 = vmatpush2.xpose.msra.mxu0 0.0
    %1269 = vmatprep.subr.mxu0 0.0
    %1270 = vmatpush2.xpose.msra.mxu0 0.0
    %1271 = vmatprep.subr.mxu0 0.0
    %1272 = vmatpush2.xpose.msra.mxu0 0.0
    %1273 = vmatprep.subr.mxu0 0.0
    %1274 = vmatpush2.xpose.msra.mxu0 0.0
    %1275 = vmatprep.subr.mxu0 0.0
    %1276 = vmatpush2.xpose.msra.mxu0 0.0
    %1277 = vmatprep.subr.mxu0 0.0
    %1278 = vmatpush2.xpose.msra.mxu0 0.0
    %1279 = vmatprep.subr.mxu0 0.0
    %1280 = vmatpush2.xpose.msra.mxu0 0.0
    %1281 = vmatprep.subr.mxu0 0.0
    %1282 = vmatpush2.xpose.msra.mxu0 0.0
    %1283 = vmatprep.subr.mxu0 0.0
    %1284 = vmatpush2.xpose.msra.mxu0 0.0
    %1285 = vmatprep.mubr.f32.mxu0 0.0
    %1286 = vmatmul.mubr.f32.gmra.mxu0 %v1042
    %v1287 = vpop.f32.mrf.mxu0
    %v1288 = vadd.f32 0.0, %v1287
    %v1289 = vpop.f32.mrf.mxu0
    %1290 = vmatprep.mubr.f32.mxu0 0.0
    %1291 = vmatmul.mubr.f32.gmra.mxu0 %v1045
    %v1292 = vpop.f32.mrf.mxu0
    %v1293 = vadd.f32 0.0, %v1292
    %v1294 = vpop.f32.mrf.mxu0
    %1295 = vdwg.mxu0
    %1298 = vrot.lane.b32.xlu0 %v659, 96
    %v1299 = vpop.permute.xlu0 %1298
    %1300 = vrot.lane.b32.xlu0 %v660, 96
    %v1301 = vpop.permute.xlu0 %1300
    %v1302 = vsel %vm336, %v1299, 0
    %v1304 = vsel %vm336, %v1301, 0
    %1306 = vmatprep.subr.mxu0 0.0
    %1307 = vmatpush1.xpose.msra.mxu0 0.0
    %1308 = vmatprep.subr.mxu0 0.0
    %1309 = vmatpush1.xpose.msra.mxu0 0.0
    %1310 = vmatprep.subr.mxu0 0.0
    %1311 = vmatpush1.xpose.msra.mxu0 0.0
    %1312 = vmatprep.subr.mxu0 0.0
    %1313 = vmatpush1.xpose.msra.mxu0 0.0
    %1314 = vmatprep.subr.mxu0 0.0
    %1315 = vmatpush1.xpose.msra.mxu0 0.0
    %1316 = vmatprep.subr.mxu0 0.0
    %1317 = vmatpush1.xpose.msra.mxu0 0.0
    %1318 = vmatprep.subr.mxu0 0.0
    %1319 = vmatpush1.xpose.msra.mxu0 0.0
    %1320 = vmatprep.subr.mxu0 0.0
    %1321 = vmatpush1.xpose.msra.mxu0 0.0
    %1322 = vmatprep.subr.mxu0 0.0
    %1323 = vmatpush1.xpose.msra.mxu0 0.0
    %1324 = vmatprep.subr.mxu0 0.0
    %1325 = vmatpush1.xpose.msra.mxu0 0.0
    %1326 = vmatprep.subr.mxu0 0.0
    %1327 = vmatpush1.xpose.msra.mxu0 0.0
    %1328 = vmatprep.subr.mxu0 0.0
    %1329 = vmatpush1.xpose.msra.mxu0 0.0
    %1330 = vmatprep.subr.mxu0 0.0
    %1331 = vmatpush1.xpose.msra.mxu0 0.0
    %1332 = vmatprep.subr.mxu0 0.0
    %1333 = vmatpush1.xpose.msra.mxu0 0.0
    %1334 = vmatprep.subr.mxu0 0.0
    %1335 = vmatpush1.xpose.msra.mxu0 %v1304
    %1336 = vmatprep.subr.mxu0 0.0
    %1337 = vmatpush1.xpose.msra.mxu0 %v1302
    %1338 = vmatprep.subr.mxu0 0.0
    %1339 = vmatpush2.xpose.msra.mxu0 0.0
    %1340 = vmatprep.subr.mxu0 0.0
    %1341 = vmatpush2.xpose.msra.mxu0 0.0
    %1342 = vmatprep.subr.mxu0 0.0
    %1343 = vmatpush2.xpose.msra.mxu0 0.0
    %1344 = vmatprep.subr.mxu0 0.0
    %1345 = vmatpush2.xpose.msra.mxu0 0.0
    %1346 = vmatprep.subr.mxu0 0.0
    %1347 = vmatpush2.xpose.msra.mxu0 0.0
    %1348 = vmatprep.subr.mxu0 0.0
    %1349 = vmatpush2.xpose.msra.mxu0 0.0
    %1350 = vmatprep.subr.mxu0 0.0
    %1351 = vmatpush2.xpose.msra.mxu0 0.0
    %1352 = vmatprep.subr.mxu0 0.0
    %1353 = vmatpush2.xpose.msra.mxu0 0.0
    %1354 = vmatprep.subr.mxu0 0.0
    %1355 = vmatpush2.xpose.msra.mxu0 0.0
    %1356 = vmatprep.subr.mxu0 0.0
    %1357 = vmatpush2.xpose.msra.mxu0 0.0
    %1358 = vmatprep.subr.mxu0 0.0
    %1359 = vmatpush2.xpose.msra.mxu0 0.0
    %1360 = vmatprep.subr.mxu0 0.0
    %1361 = vmatpush2.xpose.msra.mxu0 0.0
    %1362 = vmatprep.subr.mxu0 0.0
    %1363 = vmatpush2.xpose.msra.mxu0 0.0
    %1364 = vmatprep.subr.mxu0 0.0
    %1365 = vmatpush2.xpose.msra.mxu0 0.0
    %1366 = vmatprep.subr.mxu0 0.0
    %1367 = vmatpush2.xpose.msra.mxu0 0.0
    %1368 = vmatprep.subr.mxu0 0.0
    %1369 = vmatpush2.xpose.msra.mxu0 0.0
    %1370 = vmatprep.mubr.f32.mxu0 0.0
    %1371 = vmatmul.mubr.f32.gmra.mxu0 %v1042
    %v1372 = vpop.f32.mrf.mxu0
    %v1373 = vadd.f32 0.0, %v1372
    %v1374 = vpop.f32.mrf.mxu0
    %1375 = vmatprep.mubr.f32.mxu0 0.0
    %1376 = vmatmul.mubr.f32.gmra.mxu0 %v1045
    %v1377 = vpop.f32.mrf.mxu0
    %v1378 = vadd.f32 0.0, %v1377
    %v1379 = vpop.f32.mrf.mxu0
    %1380 = vdwg.mxu0
    %vm1381 = vcmask 130048
    %v1382 = vsel %vm1381, %v772, -inf
    %1383 = vmax.xlane.f32.xlu0 %v1382
    %v1384 = vpop.xlane.xlu0 %1383
    %v1385 = vsel %vm1381, %v777, -inf
    %1386 = vmax.xlane.f32.xlu0 %v1385
    %v1387 = vpop.xlane.xlu0 %1386
    %v1388 = vsel %vm1381, %v857, -inf
    %1389 = vmax.xlane.f32.xlu0 %v1388
    %v1390 = vpop.xlane.xlu0 %1389
    %v1391 = vsel %vm1381, %v862, -inf
    %1392 = vmax.xlane.f32.xlu0 %v1391
    %v1393 = vpop.xlane.xlu0 %1392
    %v1394 = vsel %vm1381, %v942, -inf
    %1395 = vmax.xlane.f32.xlu0 %v1394
    %v1396 = vpop.xlane.xlu0 %1395
    %v1397 = vsel %vm1381, %v947, -inf
    %1398 = vmax.xlane.f32.xlu0 %v1397
    %v1399 = vpop.xlane.xlu0 %1398
    %v1400 = vsel %vm1381, %v1027, -inf
    %1401 = vmax.xlane.f32.xlu0 %v1400
    %v1402 = vpop.xlane.xlu0 %1401
    %v1403 = vsel %vm1381, %v1032, -inf
    %1404 = vmax.xlane.f32.xlu0 %v1403
    %v1405 = vpop.xlane.xlu0 %1404
    %v1406 = vsel %vm1381, %v1118, -inf
    %1407 = vmax.xlane.f32.xlu0 %v1406
    %v1408 = vpop.xlane.xlu0 %1407
    %v1409 = vsel %vm1381, %v1123, -inf
    %1410 = vmax.xlane.f32.xlu0 %v1409
    %v1411 = vpop.xlane.xlu0 %1410
    %v1412 = vsel %vm1381, %v1203, -inf
    %1413 = vmax.xlane.f32.xlu0 %v1412
    %v1414 = vpop.xlane.xlu0 %1413
    %v1415 = vsel %vm1381, %v1208, -inf
    %1416 = vmax.xlane.f32.xlu0 %v1415
    %v1417 = vpop.xlane.xlu0 %1416
    %v1418 = vsel %vm1381, %v1288, -inf
    %1419 = vmax.xlane.f32.xlu0 %v1418
    %v1420 = vpop.xlane.xlu0 %1419
    %v1421 = vsel %vm1381, %v1293, -inf
    %1422 = vmax.xlane.f32.xlu0 %v1421
    %v1423 = vpop.xlane.xlu0 %1422
    %v1424 = vsel %vm1381, %v1373, -inf
    %1425 = vmax.xlane.f32.xlu0 %v1424
    %v1426 = vpop.xlane.xlu0 %1425
    %v1427 = vsel %vm1381, %v1378, -inf
    %1428 = vmax.xlane.f32.xlu0 %v1427
    %v1429 = vpop.xlane.xlu0 %1428
    %v1430 = vsub.f32 %v772, %v1384
    %v1431 = vsub.f32 %v777, %v1387
    %v1432 = vsub.f32 %v857, %v1390
    %v1433 = vsub.f32 %v862, %v1393
    %v1434 = vsub.f32 %v942, %v1396
    %v1435 = vsub.f32 %v947, %v1399
    %v1436 = vsub.f32 %v1027, %v1402
    %v1437 = vsub.f32 %v1032, %v1405
    %v1438 = vsub.f32 %v1118, %v1408
    %v1439 = vsub.f32 %v1123, %v1411
    %v1440 = vsub.f32 %v1203, %v1414
    %v1441 = vsub.f32 %v1208, %v1417
    %v1442 = vsub.f32 %v1288, %v1420
    %v1443 = vsub.f32 %v1293, %v1423
    %v1444 = vsub.f32 %v1373, %v1426
    %v1445 = vsub.f32 %v1378, %v1429
    %v1446 = vmul.f32 %v1430, 1.442695
    %v1447 = vpow.pop %v1446
    %v1448 = vmul.f32 %v1431, 1.442695
    %v1449 = vpow.pop %v1448
    %v1450 = vmul.f32 %v1432, 1.442695
    %v1451 = vpow.pop %v1450
    %v1452 = vmul.f32 %v1433, 1.442695
    %v1453 = vpow.pop %v1452
    %v1454 = vmul.f32 %v1434, 1.442695
    %v1455 = vpow.pop %v1454
    %v1456 = vmul.f32 %v1435, 1.442695
    %v1457 = vpow.pop %v1456
    %v1458 = vmul.f32 %v1436, 1.442695
    %v1459 = vpow.pop %v1458
    %v1460 = vmul.f32 %v1437, 1.442695
    %v1461 = vpow.pop %v1460
    %v1462 = vmul.f32 %v1438, 1.442695
    %v1463 = vpow.pop %v1462
    %v1464 = vmul.f32 %v1439, 1.442695
    %v1465 = vpow.pop %v1464
    %v1466 = vmul.f32 %v1440, 1.442695
    %v1467 = vpow.pop %v1466
    %v1468 = vmul.f32 %v1441, 1.442695
    %v1469 = vpow.pop %v1468
    %v1470 = vmul.f32 %v1442, 1.442695
    %v1471 = vpow.pop %v1470
    %v1472 = vmul.f32 %v1443, 1.442695
    %v1473 = vpow.pop %v1472
    %v1474 = vmul.f32 %v1444, 1.442695
    %v1475 = vpow.pop %v1474
    %v1476 = vmul.f32 %v1445, 1.442695
    %v1477 = vpow.pop %v1476
    %v1478 = vsel %vm1381, %v1447, 0.0
    %1479 = vadd.xlane.f32.xlu0 %v1478
    %v1480 = vpop.xlane.xlu0 %1479
    %v1481 = vsel %vm1381, %v1449, 0.0
    %1482 = vadd.xlane.f32.xlu0 %v1481
    %v1483 = vpop.xlane.xlu0 %1482
    %v1484 = vsel %vm1381, %v1451, 0.0
    %1485 = vadd.xlane.f32.xlu0 %v1484
    %v1486 = vpop.xlane.xlu0 %1485
    %v1487 = vsel %vm1381, %v1453, 0.0
    %1488 = vadd.xlane.f32.xlu0 %v1487
    %v1489 = vpop.xlane.xlu0 %1488
    %v1490 = vsel %vm1381, %v1455, 0.0
    %1491 = vadd.xlane.f32.xlu0 %v1490
    %v1492 = vpop.xlane.xlu0 %1491
    %v1493 = vsel %vm1381, %v1457, 0.0
    %1494 = vadd.xlane.f32.xlu0 %v1493
    %v1495 = vpop.xlane.xlu0 %1494
    %v1496 = vsel %vm1381, %v1459, 0.0
    %1497 = vadd.xlane.f32.xlu0 %v1496
    %v1498 = vpop.xlane.xlu0 %1497
    %v1499 = vsel %vm1381, %v1461, 0.0
    %1500 = vadd.xlane.f32.xlu0 %v1499
    %v1501 = vpop.xlane.xlu0 %1500
    %v1502 = vsel %vm1381, %v1463, 0.0
    %1503 = vadd.xlane.f32.xlu0 %v1502
    %v1504 = vpop.xlane.xlu0 %1503
    %v1505 = vsel %vm1381, %v1465, 0.0
    %1506 = vadd.xlane.f32.xlu0 %v1505
    %v1507 = vpop.xlane.xlu0 %1506
    %v1508 = vsel %vm1381, %v1467, 0.0
    %1509 = vadd.xlane.f32.xlu0 %v1508
    %v1510 = vpop.xlane.xlu0 %1509
    %v1511 = vsel %vm1381, %v1469, 0.0
    %1512 = vadd.xlane.f32.xlu0 %v1511
    %v1513 = vpop.xlane.xlu0 %1512
    %v1514 = vsel %vm1381, %v1471, 0.0
    %1515 = vadd.xlane.f32.xlu0 %v1514
    %v1516 = vpop.xlane.xlu0 %1515
    %v1517 = vsel %vm1381, %v1473, 0.0
    %1518 = vadd.xlane.f32.xlu0 %v1517
    %v1519 = vpop.xlane.xlu0 %1518
    %v1520 = vsel %vm1381, %v1475, 0.0
    %1521 = vadd.xlane.f32.xlu0 %v1520
    %v1522 = vpop.xlane.xlu0 %1521
    %v1523 = vsel %vm1381, %v1477, 0.0
    %1524 = vadd.xlane.f32.xlu0 %v1523
    %v1525 = vpop.xlane.xlu0 %1524
    %v1526 = vrcp.pop %v1480
    %v1527 = vrcp.pop %v1483
    %v1528 = vrcp.pop %v1486
    %v1529 = vrcp.pop %v1489
    %v1530 = vrcp.pop %v1492
    %v1531 = vrcp.pop %v1495
    %v1532 = vrcp.pop %v1498
    %v1533 = vrcp.pop %v1501
    %v1534 = vrcp.pop %v1504
    %v1535 = vrcp.pop %v1507
    %v1536 = vrcp.pop %v1510
    %v1537 = vrcp.pop %v1513
    %v1538 = vrcp.pop %v1516
    %v1539 = vrcp.pop %v1519
    %v1540 = vrcp.pop %v1522
    %v1541 = vrcp.pop %v1525
    %v1542 = vmul.f32 %v1447, %v1526
    %v1543 = vmul.f32 %v1449, %v1527
    %v1544 = vmul.f32 %v1451, %v1528
    %v1545 = vmul.f32 %v1453, %v1529
    %v1546 = vmul.f32 %v1455, %v1530
    %v1547 = vmul.f32 %v1457, %v1531
    %v1548 = vmul.f32 %v1459, %v1532
    %v1549 = vmul.f32 %v1461, %v1533
    %v1550 = vmul.f32 %v1463, %v1534
    %v1551 = vmul.f32 %v1465, %v1535
    %v1552 = vmul.f32 %v1467, %v1536
    %v1553 = vmul.f32 %v1469, %v1537
    %v1554 = vmul.f32 %v1471, %v1538
    %v1555 = vmul.f32 %v1473, %v1539
    %v1556 = vmul.f32 %v1475, %v1540
    %v1557 = vmul.f32 %v1477, %v1541
    %1560 = vrot.lane.b32.xlu0 %v673, 64
    %v1561 = vpop.permute.xlu0 %1560
    %1562 = vrot.lane.b32.xlu0 %v674, 64
    %v1563 = vpop.permute.xlu0 %1562
    %v1567 = vsel %vm1381, %v1542, 0
    %v1570 = vsel %vm1381, %v1543, 0
    %1572 = vmatprep.subr.mxu0 0.0
    %1573 = vmatpush1.msra.mxu0 0.0
    %1574 = vmatprep.subr.mxu0 0.0
    %1575 = vmatpush1.msra.mxu0 0.0
    %1576 = vmatprep.subr.mxu0 0.0
    %1577 = vmatpush1.msra.mxu0 0.0
    %1578 = vmatprep.subr.mxu0 0.0
    %1579 = vmatpush1.msra.mxu0 0.0
    %1580 = vmatprep.subr.mxu0 0.0
    %1581 = vmatpush1.msra.mxu0 0.0
    %1582 = vmatprep.subr.mxu0 0.0
    %1583 = vmatpush1.msra.mxu0 0.0
    %1584 = vmatprep.subr.mxu0 0.0
    %1585 = vmatpush1.msra.mxu0 0.0
    %1586 = vmatprep.subr.mxu0 0.0
    %1587 = vmatpush1.msra.mxu0 0.0
    %1588 = vmatprep.subr.mxu0 0.0
    %1589 = vmatpush1.msra.mxu0 0.0
    %1590 = vmatprep.subr.mxu0 0.0
    %1591 = vmatpush1.msra.mxu0 0.0
    %1592 = vmatprep.subr.mxu0 0.0
    %1593 = vmatpush1.msra.mxu0 0.0
    %1594 = vmatprep.subr.mxu0 0.0
    %1595 = vmatpush1.msra.mxu0 0.0
    %1596 = vmatprep.subr.mxu0 0.0
    %1597 = vmatpush1.msra.mxu0 0.0
    %1598 = vmatprep.subr.mxu0 0.0
    %1599 = vmatpush1.msra.mxu0 0.0
    %1600 = vmatprep.subr.mxu0 0.0
    %1601 = vmatpush1.msra.mxu0 %v1563
    %1602 = vmatprep.subr.mxu0 0.0
    %1603 = vmatpush1.msra.mxu0 %v1561
    %1604 = vmatprep.subr.mxu0 0.0
    %1605 = vmatpush2.msra.mxu0 0.0
    %1606 = vmatprep.subr.mxu0 0.0
    %1607 = vmatpush2.msra.mxu0 0.0
    %1608 = vmatprep.subr.mxu0 0.0
    %1609 = vmatpush2.msra.mxu0 0.0
    %1610 = vmatprep.subr.mxu0 0.0
    %1611 = vmatpush2.msra.mxu0 0.0
    %1612 = vmatprep.subr.mxu0 0.0
    %1613 = vmatpush2.msra.mxu0 0.0
    %1614 = vmatprep.subr.mxu0 0.0
    %1615 = vmatpush2.msra.mxu0 0.0
    %1616 = vmatprep.subr.mxu0 0.0
    %1617 = vmatpush2.msra.mxu0 0.0
    %1618 = vmatprep.subr.mxu0 0.0
    %1619 = vmatpush2.msra.mxu0 0.0
    %1620 = vmatprep.subr.mxu0 0.0
    %1621 = vmatpush2.msra.mxu0 0.0
    %1622 = vmatprep.subr.mxu0 0.0
    %1623 = vmatpush2.msra.mxu0 0.0
    %1624 = vmatprep.subr.mxu0 0.0
    %1625 = vmatpush2.msra.mxu0 0.0
    %1626 = vmatprep.subr.mxu0 0.0
    %1627 = vmatpush2.msra.mxu0 0.0
    %1628 = vmatprep.subr.mxu0 0.0
    %1629 = vmatpush2.msra.mxu0 0.0
    %1630 = vmatprep.subr.mxu0 0.0
    %1631 = vmatpush2.msra.mxu0 0.0
    %1632 = vmatprep.subr.mxu0 0.0
    %1633 = vmatpush2.msra.mxu0 0.0
    %1634 = vmatprep.subr.mxu0 0.0
    %1635 = vmatpush2.msra.mxu0 0.0
    %1636 = vmatprep.mubr.f32.mxu0 0.0
    %1637 = vmatmul.mubr.f32.gmra.mxu0 %v1567
    %v1638 = vpop.f32.mrf.mxu0
    %v1639 = vadd.f32 0.0, %v1638
    %v1640 = vpop.f32.mrf.mxu0
    %1641 = vmatprep.mubr.f32.mxu0 0.0
    %1642 = vmatmul.mubr.f32.gmra.mxu0 %v1570
    %v1643 = vpop.f32.mrf.mxu0
    %v1644 = vadd.f32 0.0, %v1643
    %v1645 = vpop.f32.mrf.mxu0
    %1646 = vdwg.mxu0
    %1649 = vrot.lane.b32.xlu0 %v675, 64
    %v1650 = vpop.permute.xlu0 %1649
    %1651 = vrot.lane.b32.xlu0 %v676, 64
    %v1652 = vpop.permute.xlu0 %1651
    %v1656 = vsel %vm1381, %v1544, 0
    %v1659 = vsel %vm1381, %v1545, 0
    %1661 = vmatprep.subr.mxu0 0.0
    %1662 = vmatpush1.msra.mxu0 0.0
    %1663 = vmatprep.subr.mxu0 0.0
    %1664 = vmatpush1.msra.mxu0 0.0
    %1665 = vmatprep.subr.mxu0 0.0
    %1666 = vmatpush1.msra.mxu0 0.0
    %1667 = vmatprep.subr.mxu0 0.0
    %1668 = vmatpush1.msra.mxu0 0.0
    %1669 = vmatprep.subr.mxu0 0.0
    %1670 = vmatpush1.msra.mxu0 0.0
    %1671 = vmatprep.subr.mxu0 0.0
    %1672 = vmatpush1.msra.mxu0 0.0
    %1673 = vmatprep.subr.mxu0 0.0
    %1674 = vmatpush1.msra.mxu0 0.0
    %1675 = vmatprep.subr.mxu0 0.0
    %1676 = vmatpush1.msra.mxu0 0.0
    %1677 = vmatprep.subr.mxu0 0.0
    %1678 = vmatpush1.msra.mxu0 0.0
    %1679 = vmatprep.subr.mxu0 0.0
    %1680 = vmatpush1.msra.mxu0 0.0
    %1681 = vmatprep.subr.mxu0 0.0
    %1682 = vmatpush1.msra.mxu0 0.0
    %1683 = vmatprep.subr.mxu0 0.0
    %1684 = vmatpush1.msra.mxu0 0.0
    %1685 = vmatprep.subr.mxu0 0.0
    %1686 = vmatpush1.msra.mxu0 0.0
    %1687 = vmatprep.subr.mxu0 0.0
    %1688 = vmatpush1.msra.mxu0 0.0
    %1689 = vmatprep.subr.mxu0 0.0
    %1690 = vmatpush1.msra.mxu0 %v1652
    %1691 = vmatprep.subr.mxu0 0.0
    %1692 = vmatpush1.msra.mxu0 %v1650
    %1693 = vmatprep.subr.mxu0 0.0
    %1694 = vmatpush2.msra.mxu0 0.0
    %1695 = vmatprep.subr.mxu0 0.0
    %1696 = vmatpush2.msra.mxu0 0.0
    %1697 = vmatprep.subr.mxu0 0.0
    %1698 = vmatpush2.msra.mxu0 0.0
    %1699 = vmatprep.subr.mxu0 0.0
    %1700 = vmatpush2.msra.mxu0 0.0
    %1701 = vmatprep.subr.mxu0 0.0
    %1702 = vmatpush2.msra.mxu0 0.0
    %1703 = vmatprep.subr.mxu0 0.0
    %1704 = vmatpush2.msra.mxu0 0.0
    %1705 = vmatprep.subr.mxu0 0.0
    %1706 = vmatpush2.msra.mxu0 0.0
    %1707 = vmatprep.subr.mxu0 0.0
    %1708 = vmatpush2.msra.mxu0 0.0
    %1709 = vmatprep.subr.mxu0 0.0
    %1710 = vmatpush2.msra.mxu0 0.0
    %1711 = vmatprep.subr.mxu0 0.0
    %1712 = vmatpush2.msra.mxu0 0.0
    %1713 = vmatprep.subr.mxu0 0.0
    %1714 = vmatpush2.msra.mxu0 0.0
    %1715 = vmatprep.subr.mxu0 0.0
    %1716 = vmatpush2.msra.mxu0 0.0
    %1717 = vmatprep.subr.mxu0 0.0
    %1718 = vmatpush2.msra.mxu0 0.0
    %1719 = vmatprep.subr.mxu0 0.0
    %1720 = vmatpush2.msra.mxu0 0.0
    %1721 = vmatprep.subr.mxu0 0.0
    %1722 = vmatpush2.msra.mxu0 0.0
    %1723 = vmatprep.subr.mxu0 0.0
    %1724 = vmatpush2.msra.mxu0 0.0
    %1725 = vmatprep.mubr.f32.mxu0 0.0
    %1726 = vmatmul.mubr.f32.gmra.mxu0 %v1656
    %v1727 = vpop.f32.mrf.mxu0
    %v1728 = vadd.f32 0.0, %v1727
    %v1729 = vpop.f32.mrf.mxu0
    %1730 = vmatprep.mubr.f32.mxu0 0.0
    %1731 = vmatmul.mubr.f32.gmra.mxu0 %v1659
    %v1732 = vpop.f32.mrf.mxu0
    %v1733 = vadd.f32 0.0, %v1732
    %v1734 = vpop.f32.mrf.mxu0
    %1735 = vdwg.mxu0
    %1738 = vrot.lane.b32.xlu0 %v677, 64
    %v1739 = vpop.permute.xlu0 %1738
    %1740 = vrot.lane.b32.xlu0 %v678, 64
    %v1741 = vpop.permute.xlu0 %1740
    %v1745 = vsel %vm1381, %v1546, 0
    %v1748 = vsel %vm1381, %v1547, 0
    %1750 = vmatprep.subr.mxu0 0.0
    %1751 = vmatpush1.msra.mxu0 0.0
    %1752 = vmatprep.subr.mxu0 0.0
    %1753 = vmatpush1.msra.mxu0 0.0
    %1754 = vmatprep.subr.mxu0 0.0
    %1755 = vmatpush1.msra.mxu0 0.0
    %1756 = vmatprep.subr.mxu0 0.0
    %1757 = vmatpush1.msra.mxu0 0.0
    %1758 = vmatprep.subr.mxu0 0.0
    %1759 = vmatpush1.msra.mxu0 0.0
    %1760 = vmatprep.subr.mxu0 0.0
    %1761 = vmatpush1.msra.mxu0 0.0
    %1762 = vmatprep.subr.mxu0 0.0
    %1763 = vmatpush1.msra.mxu0 0.0
    %1764 = vmatprep.subr.mxu0 0.0
    %1765 = vmatpush1.msra.mxu0 0.0
    %1766 = vmatprep.subr.mxu0 0.0
    %1767 = vmatpush1.msra.mxu0 0.0
    %1768 = vmatprep.subr.mxu0 0.0
    %1769 = vmatpush1.msra.mxu0 0.0
    %1770 = vmatprep.subr.mxu0 0.0
    %1771 = vmatpush1.msra.mxu0 0.0
    %1772 = vmatprep.subr.mxu0 0.0
    %1773 = vmatpush1.msra.mxu0 0.0
    %1774 = vmatprep.subr.mxu0 0.0
    %1775 = vmatpush1.msra.mxu0 0.0
    %1776 = vmatprep.subr.mxu0 0.0
    %1777 = vmatpush1.msra.mxu0 0.0
    %1778 = vmatprep.subr.mxu0 0.0
    %1779 = vmatpush1.msra.mxu0 %v1741
    %1780 = vmatprep.subr.mxu0 0.0
    %1781 = vmatpush1.msra.mxu0 %v1739
    %1782 = vmatprep.subr.mxu0 0.0
    %1783 = vmatpush2.msra.mxu0 0.0
    %1784 = vmatprep.subr.mxu0 0.0
    %1785 = vmatpush2.msra.mxu0 0.0
    %1786 = vmatprep.subr.mxu0 0.0
    %1787 = vmatpush2.msra.mxu0 0.0
    %1788 = vmatprep.subr.mxu0 0.0
    %1789 = vmatpush2.msra.mxu0 0.0
    %1790 = vmatprep.subr.mxu0 0.0
    %1791 = vmatpush2.msra.mxu0 0.0
    %1792 = vmatprep.subr.mxu0 0.0
    %1793 = vmatpush2.msra.mxu0 0.0
    %1794 = vmatprep.subr.mxu0 0.0
    %1795 = vmatpush2.msra.mxu0 0.0
    %1796 = vmatprep.subr.mxu0 0.0
    %1797 = vmatpush2.msra.mxu0 0.0
    %1798 = vmatprep.subr.mxu0 0.0
    %1799 = vmatpush2.msra.mxu0 0.0
    %1800 = vmatprep.subr.mxu0 0.0
    %1801 = vmatpush2.msra.mxu0 0.0
    %1802 = vmatprep.subr.mxu0 0.0
    %1803 = vmatpush2.msra.mxu0 0.0
    %1804 = vmatprep.subr.mxu0 0.0
    %1805 = vmatpush2.msra.mxu0 0.0
    %1806 = vmatprep.subr.mxu0 0.0
    %1807 = vmatpush2.msra.mxu0 0.0
    %1808 = vmatprep.subr.mxu0 0.0
    %1809 = vmatpush2.msra.mxu0 0.0
    %1810 = vmatprep.subr.mxu0 0.0
    %1811 = vmatpush2.msra.mxu0 0.0
    %1812 = vmatprep.subr.mxu0 0.0
    %1813 = vmatpush2.msra.mxu0 0.0
    %1814 = vmatprep.mubr.f32.mxu0 0.0
    %1815 = vmatmul.mubr.f32.gmra.mxu0 %v1745
    %v1816 = vpop.f32.mrf.mxu0
    %v1817 = vadd.f32 0.0, %v1816
    %v1818 = vpop.f32.mrf.mxu0
    %1819 = vmatprep.mubr.f32.mxu0 0.0
    %1820 = vmatmul.mubr.f32.gmra.mxu0 %v1748
    %v1821 = vpop.f32.mrf.mxu0
    %v1822 = vadd.f32 0.0, %v1821
    %v1823 = vpop.f32.mrf.mxu0
    %1824 = vdwg.mxu0
    %1827 = vrot.lane.b32.xlu0 %v679, 64
    %v1828 = vpop.permute.xlu0 %1827
    %1829 = vrot.lane.b32.xlu0 %v680, 64
    %v1830 = vpop.permute.xlu0 %1829
    %v1834 = vsel %vm1381, %v1548, 0
    %v1837 = vsel %vm1381, %v1549, 0
    %1839 = vmatprep.subr.mxu0 0.0
    %1840 = vmatpush1.msra.mxu0 0.0
    %1841 = vmatprep.subr.mxu0 0.0
    %1842 = vmatpush1.msra.mxu0 0.0
    %1843 = vmatprep.subr.mxu0 0.0
    %1844 = vmatpush1.msra.mxu0 0.0
    %1845 = vmatprep.subr.mxu0 0.0
    %1846 = vmatpush1.msra.mxu0 0.0
    %1847 = vmatprep.subr.mxu0 0.0
    %1848 = vmatpush1.msra.mxu0 0.0
    %1849 = vmatprep.subr.mxu0 0.0
    %1850 = vmatpush1.msra.mxu0 0.0
    %1851 = vmatprep.subr.mxu0 0.0
    %1852 = vmatpush1.msra.mxu0 0.0
    %1853 = vmatprep.subr.mxu0 0.0
    %1854 = vmatpush1.msra.mxu0 0.0
    %1855 = vmatprep.subr.mxu0 0.0
    %1856 = vmatpush1.msra.mxu0 0.0
    %1857 = vmatprep.subr.mxu0 0.0
    %1858 = vmatpush1.msra.mxu0 0.0
    %1859 = vmatprep.subr.mxu0 0.0
    %1860 = vmatpush1.msra.mxu0 0.0
    %1861 = vmatprep.subr.mxu0 0.0
    %1862 = vmatpush1.msra.mxu0 0.0
    %1863 = vmatprep.subr.mxu0 0.0
    %1864 = vmatpush1.msra.mxu0 0.0
    %1865 = vmatprep.subr.mxu0 0.0
    %1866 = vmatpush1.msra.mxu0 0.0
    %1867 = vmatprep.subr.mxu0 0.0
    %1868 = vmatpush1.msra.mxu0 %v1830
    %1869 = vmatprep.subr.mxu0 0.0
    %1870 = vmatpush1.msra.mxu0 %v1828
    %1871 = vmatprep.subr.mxu0 0.0
    %1872 = vmatpush2.msra.mxu0 0.0
    %1873 = vmatprep.subr.mxu0 0.0
    %1874 = vmatpush2.msra.mxu0 0.0
    %1875 = vmatprep.subr.mxu0 0.0
    %1876 = vmatpush2.msra.mxu0 0.0
    %1877 = vmatprep.subr.mxu0 0.0
    %1878 = vmatpush2.msra.mxu0 0.0
    %1879 = vmatprep.subr.mxu0 0.0
    %1880 = vmatpush2.msra.mxu0 0.0
    %1881 = vmatprep.subr.mxu0 0.0
    %1882 = vmatpush2.msra.mxu0 0.0
    %1883 = vmatprep.subr.mxu0 0.0
    %1884 = vmatpush2.msra.mxu0 0.0
    %1885 = vmatprep.subr.mxu0 0.0
    %1886 = vmatpush2.msra.mxu0 0.0
    %1887 = vmatprep.subr.mxu0 0.0
    %1888 = vmatpush2.msra.mxu0 0.0
    %1889 = vmatprep.subr.mxu0 0.0
    %1890 = vmatpush2.msra.mxu0 0.0
    %1891 = vmatprep.subr.mxu0 0.0
    %1892 = vmatpush2.msra.mxu0 0.0
    %1893 = vmatprep.subr.mxu0 0.0
    %1894 = vmatpush2.msra.mxu0 0.0
    %1895 = vmatprep.subr.mxu0 0.0
    %1896 = vmatpush2.msra.mxu0 0.0
    %1897 = vmatprep.subr.mxu0 0.0
    %1898 = vmatpush2.msra.mxu0 0.0
    %1899 = vmatprep.subr.mxu0 0.0
    %1900 = vmatpush2.msra.mxu0 0.0
    %1901 = vmatprep.subr.mxu0 0.0
    %1902 = vmatpush2.msra.mxu0 0.0
    %1903 = vmatprep.mubr.f32.mxu0 0.0
    %1904 = vmatmul.mubr.f32.gmra.mxu0 %v1834
    %v1905 = vpop.f32.mrf.mxu0
    %v1906 = vadd.f32 0.0, %v1905
    %v1907 = vpop.f32.mrf.mxu0
    %1908 = vmatprep.mubr.f32.mxu0 0.0
    %1909 = vmatmul.mubr.f32.gmra.mxu0 %v1837
    %v1910 = vpop.f32.mrf.mxu0
    %v1911 = vadd.f32 0.0, %v1910
    %v1912 = vpop.f32.mrf.mxu0
    %1913 = vdwg.mxu0
    %1916 = vrot.lane.b32.xlu0 %v681, 64
    %v1917 = vpop.permute.xlu0 %1916
    %1918 = vrot.lane.b32.xlu0 %v682, 64
    %v1919 = vpop.permute.xlu0 %1918
    %v1923 = vsel %vm1381, %v1550, 0
    %v1926 = vsel %vm1381, %v1551, 0
    %1928 = vmatprep.subr.mxu0 0.0
    %1929 = vmatpush1.msra.mxu0 0.0
    %1930 = vmatprep.subr.mxu0 0.0
    %1931 = vmatpush1.msra.mxu0 0.0
    %1932 = vmatprep.subr.mxu0 0.0
    %1933 = vmatpush1.msra.mxu0 0.0
    %1934 = vmatprep.subr.mxu0 0.0
    %1935 = vmatpush1.msra.mxu0 0.0
    %1936 = vmatprep.subr.mxu0 0.0
    %1937 = vmatpush1.msra.mxu0 0.0
    %1938 = vmatprep.subr.mxu0 0.0
    %1939 = vmatpush1.msra.mxu0 0.0
    %1940 = vmatprep.subr.mxu0 0.0
    %1941 = vmatpush1.msra.mxu0 0.0
    %1942 = vmatprep.subr.mxu0 0.0
    %1943 = vmatpush1.msra.mxu0 0.0
    %1944 = vmatprep.subr.mxu0 0.0
    %1945 = vmatpush1.msra.mxu0 0.0
    %1946 = vmatprep.subr.mxu0 0.0
    %1947 = vmatpush1.msra.mxu0 0.0
    %1948 = vmatprep.subr.mxu0 0.0
    %1949 = vmatpush1.msra.mxu0 0.0
    %1950 = vmatprep.subr.mxu0 0.0
    %1951 = vmatpush1.msra.mxu0 0.0
    %1952 = vmatprep.subr.mxu0 0.0
    %1953 = vmatpush1.msra.mxu0 0.0
    %1954 = vmatprep.subr.mxu0 0.0
    %1955 = vmatpush1.msra.mxu0 0.0
    %1956 = vmatprep.subr.mxu0 0.0
    %1957 = vmatpush1.msra.mxu0 %v1919
    %1958 = vmatprep.subr.mxu0 0.0
    %1959 = vmatpush1.msra.mxu0 %v1917
    %1960 = vmatprep.subr.mxu0 0.0
    %1961 = vmatpush2.msra.mxu0 0.0
    %1962 = vmatprep.subr.mxu0 0.0
    %1963 = vmatpush2.msra.mxu0 0.0
    %1964 = vmatprep.subr.mxu0 0.0
    %1965 = vmatpush2.msra.mxu0 0.0
    %1966 = vmatprep.subr.mxu0 0.0
    %1967 = vmatpush2.msra.mxu0 0.0
    %1968 = vmatprep.subr.mxu0 0.0
    %1969 = vmatpush2.msra.mxu0 0.0
    %1970 = vmatprep.subr.mxu0 0.0
    %1971 = vmatpush2.msra.mxu0 0.0
    %1972 = vmatprep.subr.mxu0 0.0
    %1973 = vmatpush2.msra.mxu0 0.0
    %1974 = vmatprep.subr.mxu0 0.0
    %1975 = vmatpush2.msra.mxu0 0.0
    %1976 = vmatprep.subr.mxu0 0.0
    %1977 = vmatpush2.msra.mxu0 0.0
    %1978 = vmatprep.subr.mxu0 0.0
    %1979 = vmatpush2.msra.mxu0 0.0
    %1980 = vmatprep.subr.mxu0 0.0
    %1981 = vmatpush2.msra.mxu0 0.0
    %1982 = vmatprep.subr.mxu0 0.0
    %1983 = vmatpush2.msra.mxu0 0.0
    %1984 = vmatprep.subr.mxu0 0.0
    %1985 = vmatpush2.msra.mxu0 0.0
    %1986 = vmatprep.subr.mxu0 0.0
    %1987 = vmatpush2.msra.mxu0 0.0
    %1988 = vmatprep.subr.mxu0 0.0
    %1989 = vmatpush2.msra.mxu0 0.0
    %1990 = vmatprep.subr.mxu0 0.0
    %1991 = vmatpush2.msra.mxu0 0.0
    %1992 = vmatprep.mubr.f32.mxu0 0.0
    %1993 = vmatmul.mubr.f32.gmra.mxu0 %v1923
    %v1994 = vpop.f32.mrf.mxu0
    %v1995 = vadd.f32 0.0, %v1994
    %v1996 = vpop.f32.mrf.mxu0
    %1997 = vmatprep.mubr.f32.mxu0 0.0
    %1998 = vmatmul.mubr.f32.gmra.mxu0 %v1926
    %v1999 = vpop.f32.mrf.mxu0
    %v2000 = vadd.f32 0.0, %v1999
    %v2001 = vpop.f32.mrf.mxu0
    %2002 = vdwg.mxu0
    %2005 = vrot.lane.b32.xlu0 %v683, 64
    %v2006 = vpop.permute.xlu0 %2005
    %2007 = vrot.lane.b32.xlu0 %v684, 64
    %v2008 = vpop.permute.xlu0 %2007
    %v2012 = vsel %vm1381, %v1552, 0
    %v2015 = vsel %vm1381, %v1553, 0
    %2017 = vmatprep.subr.mxu0 0.0
    %2018 = vmatpush1.msra.mxu0 0.0
    %2019 = vmatprep.subr.mxu0 0.0
    %2020 = vmatpush1.msra.mxu0 0.0
    %2021 = vmatprep.subr.mxu0 0.0
    %2022 = vmatpush1.msra.mxu0 0.0
    %2023 = vmatprep.subr.mxu0 0.0
    %2024 = vmatpush1.msra.mxu0 0.0
    %2025 = vmatprep.subr.mxu0 0.0
    %2026 = vmatpush1.msra.mxu0 0.0
    %2027 = vmatprep.subr.mxu0 0.0
    %2028 = vmatpush1.msra.mxu0 0.0
    %2029 = vmatprep.subr.mxu0 0.0
    %2030 = vmatpush1.msra.mxu0 0.0
    %2031 = vmatprep.subr.mxu0 0.0
    %2032 = vmatpush1.msra.mxu0 0.0
    %2033 = vmatprep.subr.mxu0 0.0
    %2034 = vmatpush1.msra.mxu0 0.0
    %2035 = vmatprep.subr.mxu0 0.0
    %2036 = vmatpush1.msra.mxu0 0.0
    %2037 = vmatprep.subr.mxu0 0.0
    %2038 = vmatpush1.msra.mxu0 0.0
    %2039 = vmatprep.subr.mxu0 0.0
    %2040 = vmatpush1.msra.mxu0 0.0
    %2041 = vmatprep.subr.mxu0 0.0
    %2042 = vmatpush1.msra.mxu0 0.0
    %2043 = vmatprep.subr.mxu0 0.0
    %2044 = vmatpush1.msra.mxu0 0.0
    %2045 = vmatprep.subr.mxu0 0.0
    %2046 = vmatpush1.msra.mxu0 %v2008
    %2047 = vmatprep.subr.mxu0 0.0
    %2048 = vmatpush1.msra.mxu0 %v2006
    %2049 = vmatprep.subr.mxu0 0.0
    %2050 = vmatpush2.msra.mxu0 0.0
    %2051 = vmatprep.subr.mxu0 0.0
    %2052 = vmatpush2.msra.mxu0 0.0
    %2053 = vmatprep.subr.mxu0 0.0
    %2054 = vmatpush2.msra.mxu0 0.0
    %2055 = vmatprep.subr.mxu0 0.0
    %2056 = vmatpush2.msra.mxu0 0.0
    %2057 = vmatprep.subr.mxu0 0.0
    %2058 = vmatpush2.msra.mxu0 0.0
    %2059 = vmatprep.subr.mxu0 0.0
    %2060 = vmatpush2.msra.mxu0 0.0
    %2061 = vmatprep.subr.mxu0 0.0
    %2062 = vmatpush2.msra.mxu0 0.0
    %2063 = vmatprep.subr.mxu0 0.0
    %2064 = vmatpush2.msra.mxu0 0.0
    %2065 = vmatprep.subr.mxu0 0.0
    %2066 = vmatpush2.msra.mxu0 0.0
    %2067 = vmatprep.subr.mxu0 0.0
    %2068 = vmatpush2.msra.mxu0 0.0
    %2069 = vmatprep.subr.mxu0 0.0
    %2070 = vmatpush2.msra.mxu0 0.0
    %2071 = vmatprep.subr.mxu0 0.0
    %2072 = vmatpush2.msra.mxu0 0.0
    %2073 = vmatprep.subr.mxu0 0.0
    %2074 = vmatpush2.msra.mxu0 0.0
    %2075 = vmatprep.subr.mxu0 0.0
    %2076 = vmatpush2.msra.mxu0 0.0
    %2077 = vmatprep.subr.mxu0 0.0
    %2078 = vmatpush2.msra.mxu0 0.0
    %2079 = vmatprep.subr.mxu0 0.0
    %2080 = vmatpush2.msra.mxu0 0.0
    %2081 = vmatprep.mubr.f32.mxu0 0.0
    %2082 = vmatmul.mubr.f32.gmra.mxu0 %v2012
    %v2083 = vpop.f32.mrf.mxu0
    %v2084 = vadd.f32 0.0, %v2083
    %v2085 = vpop.f32.mrf.mxu0
    %2086 = vmatprep.mubr.f32.mxu0 0.0
    %2087 = vmatmul.mubr.f32.gmra.mxu0 %v2015
    %v2088 = vpop.f32.mrf.mxu0
    %v2089 = vadd.f32 0.0, %v2088
    %v2090 = vpop.f32.mrf.mxu0
    %2091 = vdwg.mxu0
    %2094 = vrot.lane.b32.xlu0 %v685, 64
    %v2095 = vpop.permute.xlu0 %2094
    %2096 = vrot.lane.b32.xlu0 %v686, 64
    %v2097 = vpop.permute.xlu0 %2096
    %v2101 = vsel %vm1381, %v1554, 0
    %v2104 = vsel %vm1381, %v1555, 0
    %2106 = vmatprep.subr.mxu0 0.0
    %2107 = vmatpush1.msra.mxu0 0.0
    %2108 = vmatprep.subr.mxu0 0.0
    %2109 = vmatpush1.msra.mxu0 0.0
    %2110 = vmatprep.subr.mxu0 0.0
    %2111 = vmatpush1.msra.mxu0 0.0
    %2112 = vmatprep.subr.mxu0 0.0
    %2113 = vmatpush1.msra.mxu0 0.0
    %2114 = vmatprep.subr.mxu0 0.0
    %2115 = vmatpush1.msra.mxu0 0.0
    %2116 = vmatprep.subr.mxu0 0.0
    %2117 = vmatpush1.msra.mxu0 0.0
    %2118 = vmatprep.subr.mxu0 0.0
    %2119 = vmatpush1.msra.mxu0 0.0
    %2120 = vmatprep.subr.mxu0 0.0
    %2121 = vmatpush1.msra.mxu0 0.0
    %2122 = vmatprep.subr.mxu0 0.0
    %2123 = vmatpush1.msra.mxu0 0.0
    %2124 = vmatprep.subr.mxu0 0.0
    %2125 = vmatpush1.msra.mxu0 0.0
    %2126 = vmatprep.subr.mxu0 0.0
    %2127 = vmatpush1.msra.mxu0 0.0
    %2128 = vmatprep.subr.mxu0 0.0
    %2129 = vmatpush1.msra.mxu0 0.0
    %2130 = vmatprep.subr.mxu0 0.0
    %2131 = vmatpush1.msra.mxu0 0.0
    %2132 = vmatprep.subr.mxu0 0.0
    %2133 = vmatpush1.msra.mxu0 0.0
    %2134 = vmatprep.subr.mxu0 0.0
    %2135 = vmatpush1.msra.mxu0 %v2097
    %2136 = vmatprep.subr.mxu0 0.0
    %2137 = vmatpush1.msra.mxu0 %v2095
    %2138 = vmatprep.subr.mxu0 0.0
    %2139 = vmatpush2.msra.mxu0 0.0
    %2140 = vmatprep.subr.mxu0 0.0
    %2141 = vmatpush2.msra.mxu0 0.0
    %2142 = vmatprep.subr.mxu0 0.0
    %2143 = vmatpush2.msra.mxu0 0.0
    %2144 = vmatprep.subr.mxu0 0.0
    %2145 = vmatpush2.msra.mxu0 0.0
    %2146 = vmatprep.subr.mxu0 0.0
    %2147 = vmatpush2.msra.mxu0 0.0
    %2148 = vmatprep.subr.mxu0 0.0
    %2149 = vmatpush2.msra.mxu0 0.0
    %2150 = vmatprep.subr.mxu0 0.0
    %2151 = vmatpush2.msra.mxu0 0.0
    %2152 = vmatprep.subr.mxu0 0.0
    %2153 = vmatpush2.msra.mxu0 0.0
    %2154 = vmatprep.subr.mxu0 0.0
    %2155 = vmatpush2.msra.mxu0 0.0
    %2156 = vmatprep.subr.mxu0 0.0
    %2157 = vmatpush2.msra.mxu0 0.0
    %2158 = vmatprep.subr.mxu0 0.0
    %2159 = vmatpush2.msra.mxu0 0.0
    %2160 = vmatprep.subr.mxu0 0.0
    %2161 = vmatpush2.msra.mxu0 0.0
    %2162 = vmatprep.subr.mxu0 0.0
    %2163 = vmatpush2.msra.mxu0 0.0
    %2164 = vmatprep.subr.mxu0 0.0
    %2165 = vmatpush2.msra.mxu0 0.0
    %2166 = vmatprep.subr.mxu0 0.0
    %2167 = vmatpush2.msra.mxu0 0.0
    %2168 = vmatprep.subr.mxu0 0.0
    %2169 = vmatpush2.msra.mxu0 0.0
    %2170 = vmatprep.mubr.f32.mxu0 0.0
    %2171 = vmatmul.mubr.f32.gmra.mxu0 %v2101
    %v2172 = vpop.f32.mrf.mxu0
    %v2173 = vadd.f32 0.0, %v2172
    %v2174 = vpop.f32.mrf.mxu0
    %2175 = vmatprep.mubr.f32.mxu0 0.0
    %2176 = vmatmul.mubr.f32.gmra.mxu0 %v2104
    %v2177 = vpop.f32.mrf.mxu0
    %v2178 = vadd.f32 0.0, %v2177
    %v2179 = vpop.f32.mrf.mxu0
    %2180 = vdwg.mxu0
    %2183 = vrot.lane.b32.xlu0 %v687, 64
    %v2184 = vpop.permute.xlu0 %2183
    %2185 = vrot.lane.b32.xlu0 %v688, 64
    %v2186 = vpop.permute.xlu0 %2185
    %v2190 = vsel %vm1381, %v1556, 0
    %v2193 = vsel %vm1381, %v1557, 0
    %2195 = vmatprep.subr.mxu0 0.0
    %2196 = vmatpush1.msra.mxu0 0.0
    %2197 = vmatprep.subr.mxu0 0.0
    %2198 = vmatpush1.msra.mxu0 0.0
    %2199 = vmatprep.subr.mxu0 0.0
    %2200 = vmatpush1.msra.mxu0 0.0
    %2201 = vmatprep.subr.mxu0 0.0
    %2202 = vmatpush1.msra.mxu0 0.0
    %2203 = vmatprep.subr.mxu0 0.0
    %2204 = vmatpush1.msra.mxu0 0.0
    %2205 = vmatprep.subr.mxu0 0.0
    %2206 = vmatpush1.msra.mxu0 0.0
    %2207 = vmatprep.subr.mxu0 0.0
    %2208 = vmatpush1.msra.mxu0 0.0
    %2209 = vmatprep.subr.mxu0 0.0
    %2210 = vmatpush1.msra.mxu0 0.0
    %2211 = vmatprep.subr.mxu0 0.0
    %2212 = vmatpush1.msra.mxu0 0.0
    %2213 = vmatprep.subr.mxu0 0.0
    %2214 = vmatpush1.msra.mxu0 0.0
    %2215 = vmatprep.subr.mxu0 0.0
    %2216 = vmatpush1.msra.mxu0 0.0
    %2217 = vmatprep.subr.mxu0 0.0
    %2218 = vmatpush1.msra.mxu0 0.0
    %2219 = vmatprep.subr.mxu0 0.0
    %2220 = vmatpush1.msra.mxu0 0.0
    %2221 = vmatprep.subr.mxu0 0.0
    %2222 = vmatpush1.msra.mxu0 0.0
    %2223 = vmatprep.subr.mxu0 0.0
    %2224 = vmatpush1.msra.mxu0 %v2186
    %2225 = vmatprep.subr.mxu0 0.0
    %2226 = vmatpush1.msra.mxu0 %v2184
    %2227 = vmatprep.subr.mxu0 0.0
    %2228 = vmatpush2.msra.mxu0 0.0
    %2229 = vmatprep.subr.mxu0 0.0
    %2230 = vmatpush2.msra.mxu0 0.0
    %2231 = vmatprep.subr.mxu0 0.0
    %2232 = vmatpush2.msra.mxu0 0.0
    %2233 = vmatprep.subr.mxu0 0.0
    %2234 = vmatpush2.msra.mxu0 0.0
    %2235 = vmatprep.subr.mxu0 0.0
    %2236 = vmatpush2.msra.mxu0 0.0
    %2237 = vmatprep.subr.mxu0 0.0
    %2238 = vmatpush2.msra.mxu0 0.0
    %2239 = vmatprep.subr.mxu0 0.0
    %2240 = vmatpush2.msra.mxu0 0.0
    %2241 = vmatprep.subr.mxu0 0.0
    %2242 = vmatpush2.msra.mxu0 0.0
    %2243 = vmatprep.subr.mxu0 0.0
    %2244 = vmatpush2.msra.mxu0 0.0
    %2245 = vmatprep.subr.mxu0 0.0
    %2246 = vmatpush2.msra.mxu0 0.0
    %2247 = vmatprep.subr.mxu0 0.0
    %2248 = vmatpush2.msra.mxu0 0.0
    %2249 = vmatprep.subr.mxu0 0.0
    %2250 = vmatpush2.msra.mxu0 0.0
    %2251 = vmatprep.subr.mxu0 0.0
    %2252 = vmatpush2.msra.mxu0 0.0
    %2253 = vmatprep.subr.mxu0 0.0
    %2254 = vmatpush2.msra.mxu0 0.0
    %2255 = vmatprep.subr.mxu0 0.0
    %2256 = vmatpush2.msra.mxu0 0.0
    %2257 = vmatprep.subr.mxu0 0.0
    %2258 = vmatpush2.msra.mxu0 0.0
    %2259 = vmatprep.mubr.f32.mxu0 0.0
    %2260 = vmatmul.mubr.f32.gmra.mxu0 %v2190
    %v2261 = vpop.f32.mrf.mxu0
    %v2262 = vadd.f32 0.0, %v2261
    %v2263 = vpop.f32.mrf.mxu0
    %2264 = vmatprep.mubr.f32.mxu0 0.0
    %2265 = vmatmul.mubr.f32.gmra.mxu0 %v2193
    %v2266 = vpop.f32.mrf.mxu0
    %v2267 = vadd.f32 0.0, %v2266
    %v2268 = vpop.f32.mrf.mxu0
    %2269 = vdwg.mxu0
    %v2270 = vsel %vm336, %v1639, 0.0
    %v2271 = vsel %vm336, %v1728, 0.0
    %v2272 = vadd.f32 %v2270, %v2271
    %v2273 = vsel %vm336, %v1817, 0.0
    %v2274 = vadd.f32 %v2272, %v2273
    %v2275 = vsel %vm336, %v1906, 0.0
    %v2276 = vadd.f32 %v2274, %v2275
    %v2277 = vsel %vm336, %v1644, 0.0
    %v2278 = vsel %vm336, %v1733, 0.0
    %v2279 = vadd.f32 %v2277, %v2278
    %v2280 = vsel %vm336, %v1822, 0.0
    %v2281 = vadd.f32 %v2279, %v2280
    %v2282 = vsel %vm336, %v1911, 0.0
    %v2283 = vadd.f32 %v2281, %v2282
    %v2284 = vsel %vm336, %v1995, 0.0
    %v2285 = vsel %vm336, %v2084, 0.0
    %v2286 = vadd.f32 %v2284, %v2285
    %v2287 = vsel %vm336, %v2173, 0.0
    %v2288 = vadd.f32 %v2286, %v2287
    %v2289 = vsel %vm336, %v2262, 0.0
    %v2290 = vadd.f32 %v2288, %v2289
    %v2291 = vsel %vm336, %v2000, 0.0
    %v2292 = vsel %vm336, %v2089, 0.0
    %v2293 = vadd.f32 %v2291, %v2292
    %v2294 = vsel %vm336, %v2178, 0.0
    %v2295 = vadd.f32 %v2293, %v2294
    %v2296 = vsel %vm336, %v2267, 0.0
    %v2297 = vadd.f32 %v2295, %v2296
    %2302 = vrot.lane.b32.xlu0 %v449, 32
    %v2303 = vpop.permute.xlu0 %2302
    %2304 = vrot.lane.b32.xlu0 %v452, 32
    %v2305 = vpop.permute.xlu0 %2304
    %2306 = vrot.lane.b32.xlu0 %v455, 32
    %v2307 = vpop.permute.xlu0 %2306
    %2308 = vrot.lane.b32.xlu0 %v458, 32
    %v2309 = vpop.permute.xlu0 %2308
    %2315 = vrot.lane.b32.xlu0 %v519, 32
    %v2316 = vpop.permute.xlu0 %2315
    %v2319 = vsel %vm336, %v2276, 0
    %v2322 = vsel %vm336, %v2283, 0
    %v2325 = vsel %vm336, %v2290, 0
    %v2328 = vsel %vm336, %v2297, 0
    %2330 = vmatprep.subr.mxu0 0.0
    %2331 = vmatpush1.msra.mxu0 0.0
    %2332 = vmatprep.subr.mxu0 0.0
    %2333 = vmatpush1.msra.mxu0 0.0
    %2334 = vmatprep.subr.mxu0 0.0
    %2335 = vmatpush1.msra.mxu0 0.0
    %2336 = vmatprep.subr.mxu0 0.0
    %2337 = vmatpush1.msra.mxu0 0.0
    %2338 = vmatprep.subr.mxu0 0.0
    %2339 = vmatpush1.msra.mxu0 0.0
    %2340 = vmatprep.subr.mxu0 0.0
    %2341 = vmatpush1.msra.mxu0 0.0
    %2342 = vmatprep.subr.mxu0 0.0
    %2343 = vmatpush1.msra.mxu0 0.0
    %2344 = vmatprep.subr.mxu0 0.0
    %2345 = vmatpush1.msra.mxu0 0.0
    %2346 = vmatprep.subr.mxu0 0.0
    %2347 = vmatpush1.msra.mxu0 0.0
    %2348 = vmatprep.subr.mxu0 0.0
    %2349 = vmatpush1.msra.mxu0 0.0
    %2350 = vmatprep.subr.mxu0 0.0
    %2351 = vmatpush1.msra.mxu0 0.0
    %2352 = vmatprep.subr.mxu0 0.0
    %2353 = vmatpush1.msra.mxu0 0.0
    %2354 = vmatprep.subr.mxu0 0.0
    %2355 = vmatpush1.msra.mxu0 %v2309
    %2356 = vmatprep.subr.mxu0 0.0
    %2357 = vmatpush1.msra.mxu0 %v2307
    %2358 = vmatprep.subr.mxu0 0.0
    %2359 = vmatpush1.msra.mxu0 %v2305
    %2360 = vmatprep.subr.mxu0 0.0
    %2361 = vmatpush1.msra.mxu0 %v2303
    %2362 = vmatprep.subr.mxu0 0.0
    %2363 = vmatpush2.msra.mxu0 0.0
    %2364 = vmatprep.subr.mxu0 0.0
    %2365 = vmatpush2.msra.mxu0 0.0
    %2366 = vmatprep.subr.mxu0 0.0
    %2367 = vmatpush2.msra.mxu0 0.0
    %2368 = vmatprep.subr.mxu0 0.0
    %2369 = vmatpush2.msra.mxu0 0.0
    %2370 = vmatprep.subr.mxu0 0.0
    %2371 = vmatpush2.msra.mxu0 0.0
    %2372 = vmatprep.subr.mxu0 0.0
    %2373 = vmatpush2.msra.mxu0 0.0
    %2374 = vmatprep.subr.mxu0 0.0
    %2375 = vmatpush2.msra.mxu0 0.0
    %2376 = vmatprep.subr.mxu0 0.0
    %2377 = vmatpush2.msra.mxu0 0.0
    %2378 = vmatprep.subr.mxu0 0.0
    %2379 = vmatpush2.msra.mxu0 0.0
    %2380 = vmatprep.subr.mxu0 0.0
    %2381 = vmatpush2.msra.mxu0 0.0
    %2382 = vmatprep.subr.mxu0 0.0
    %2383 = vmatpush2.msra.mxu0 0.0
    %2384 = vmatprep.subr.mxu0 0.0
    %2385 = vmatpush2.msra.mxu0 0.0
    %2386 = vmatprep.subr.mxu0 0.0
    %2387 = vmatpush2.msra.mxu0 0.0
    %2388 = vmatprep.subr.mxu0 0.0
    %2389 = vmatpush2.msra.mxu0 0.0
    %2390 = vmatprep.subr.mxu0 0.0
    %2391 = vmatpush2.msra.mxu0 0.0
    %2392 = vmatprep.subr.mxu0 0.0
    %2393 = vmatpush2.msra.mxu0 0.0
    %2394 = vmatprep.mubr.f32.mxu0 0.0
    %2395 = vmatmul.mubr.f32.gmra.mxu0 %v2319
    %v2396 = vpop.f32.mrf.mxu0
    %v2397 = vadd.f32 %v2316, %v2396
    %v2398 = vpop.f32.mrf.mxu0
    %2399 = vmatprep.mubr.f32.mxu0 0.0
    %2400 = vmatmul.mubr.f32.gmra.mxu0 %v2322
    %v2401 = vpop.f32.mrf.mxu0
    %v2402 = vadd.f32 %v2316, %v2401
    %v2403 = vpop.f32.mrf.mxu0
    %2404 = vmatprep.mubr.f32.mxu0 0.0
    %2405 = vmatmul.mubr.f32.gmra.mxu0 %v2325
    %v2406 = vpop.f32.mrf.mxu0
    %v2407 = vadd.f32 %v2316, %v2406
    %v2408 = vpop.f32.mrf.mxu0
    %2409 = vmatprep.mubr.f32.mxu0 0.0
    %2410 = vmatmul.mubr.f32.gmra.mxu0 %v2328
    %v2411 = vpop.f32.mrf.mxu0
    %v2412 = vadd.f32 %v2316, %v2411
    %v2413 = vpop.f32.mrf.mxu0
    %2414 = vdwg.mxu0
    %v2415 = vadd.f32 %v237, %v2397
    %v2416 = vadd.f32 %v238, %v2402
    %v2417 = vadd.f32 %v239, %v2407
    %v2418 = vadd.f32 %v240, %v2412
    %v2419 = vsel %vm336, %v2415, 0.0
    %2420 = vadd.xlane.f32.xlu0 %v2419
    %v2421 = vpop.xlane.xlu0 %2420
    %v2422 = vsel %vm336, %v2416, 0.0
    %2423 = vadd.xlane.f32.xlu0 %v2422
    %v2424 = vpop.xlane.xlu0 %2423
    %v2425 = vsel %vm336, %v2417, 0.0
    %2426 = vadd.xlane.f32.xlu0 %v2425
    %v2427 = vpop.xlane.xlu0 %2426
    %v2428 = vsel %vm336, %v2418, 0.0
    %2429 = vadd.xlane.f32.xlu0 %v2428
    %v2430 = vpop.xlane.xlu0 %2429
    %v2431 = vmul.f32 %v2421, %v343
    %v2432 = vmul.f32 %v2424, %v343
    %v2433 = vmul.f32 %v2427, %v343
    %v2434 = vmul.f32 %v2430, %v343
    %v2435 = vsub.f32 %v2415, %v2431
    %v2436 = vsub.f32 %v2416, %v2432
    %v2437 = vsub.f32 %v2417, %v2433
    %v2438 = vsub.f32 %v2418, %v2434
    %v2439 = vmul.f32 %v2435, %v2435
    %v2440 = vmul.f32 %v2436, %v2436
    %v2441 = vmul.f32 %v2437, %v2437
    %v2442 = vmul.f32 %v2438, %v2438
    %v2443 = vsel %vm336, %v2439, 0.0
    %2444 = vadd.xlane.f32.xlu0 %v2443
    %v2445 = vpop.xlane.xlu0 %2444
    %v2446 = vsel %vm336, %v2440, 0.0
    %2447 = vadd.xlane.f32.xlu0 %v2446
    %v2448 = vpop.xlane.xlu0 %2447
    %v2449 = vsel %vm336, %v2441, 0.0
    %2450 = vadd.xlane.f32.xlu0 %v2449
    %v2451 = vpop.xlane.xlu0 %2450
    %v2452 = vsel %vm336, %v2442, 0.0
    %2453 = vadd.xlane.f32.xlu0 %v2452
    %v2454 = vpop.xlane.xlu0 %2453
    %v2455 = vmul.f32 %v2445, %v343
    %v2456 = vmul.f32 %v2448, %v343
    %v2457 = vmul.f32 %v2451, %v343
    %v2458 = vmul.f32 %v2454, %v343
    %v2459 = vadd.f32 %v2455, 1e-05
    %v2460 = vadd.f32 %v2456, 1e-05
    %v2461 = vadd.f32 %v2457, 1e-05
    %v2462 = vadd.f32 %v2458, 1e-05
    %v2463 = vrsqrt.pop %v2459
    %v2464 = vrsqrt.pop %v2460
    %v2465 = vrsqrt.pop %v2461
    %v2466 = vrsqrt.pop %v2462
    %v2467 = vmul.f32 %v2435, %v2463
    %v2468 = vmul.f32 %v2436, %v2464
    %v2469 = vmul.f32 %v2437, %v2465
    %v2470 = vmul.f32 %v2438, %v2466
    %v2471 = vlaneseq
    %v2472 = vshrl.u32 %v2471, 7
    %v2473 = vsub.s32 0, %v2472
    %v2474 = vrot.slane %v462, %v2473
    %v2476 = vsel %vm336, %v2467, 0
    %v2479 = vsel %vm336, %v2468, 0
    %v2482 = vsel %vm336, %v2469, 0
    %v2485 = vsel %vm336, %v2470, 0
    %2487 = vmatprep.subr.mxu0 0.0
    %2488 = vmatpush1.msra.mxu0 0.0
    %2489 = vmatprep.subr.mxu0 0.0
    %2490 = vmatpush1.msra.mxu0 0.0
    %2491 = vmatprep.subr.mxu0 0.0
    %2492 = vmatpush1.msra.mxu0 0.0
    %2493 = vmatprep.subr.mxu0 0.0
    %2494 = vmatpush1.msra.mxu0 0.0
    %2495 = vmatprep.subr.mxu0 0.0
    %2496 = vmatpush1.msra.mxu0 0.0
    %2497 = vmatprep.subr.mxu0 0.0
    %2498 = vmatpush1.msra.mxu0 0.0
    %2499 = vmatprep.subr.mxu0 0.0
    %2500 = vmatpush1.msra.mxu0 0.0
    %2501 = vmatprep.subr.mxu0 0.0
    %2502 = vmatpush1.msra.mxu0 0.0
    %2503 = vmatprep.subr.mxu0 0.0
    %2504 = vmatpush1.msra.mxu0 0.0
    %2505 = vmatprep.subr.mxu0 0.0
    %2506 = vmatpush1.msra.mxu0 0.0
    %2507 = vmatprep.subr.mxu0 0.0
    %2508 = vmatpush1.msra.mxu0 0.0
    %2509 = vmatprep.subr.mxu0 0.0
    %2510 = vmatpush1.msra.mxu0 0.0
    %2511 = vmatprep.subr.mxu0 0.0
    %2512 = vmatpush1.msra.mxu0 %v459
    %2513 = vmatprep.subr.mxu0 0.0
    %2514 = vmatpush1.msra.mxu0 %v456
    %2515 = vmatprep.subr.mxu0 0.0
    %2516 = vmatpush1.msra.mxu0 %v453
    %2517 = vmatprep.subr.mxu0 0.0
    %2518 = vmatpush1.msra.mxu0 %v450
    %2519 = vmatprep.subr.mxu0 0.0
    %2520 = vmatpush2.msra.mxu0 0.0
    %2521 = vmatprep.subr.mxu0 0.0
    %2522 = vmatpush2.msra.mxu0 0.0
    %2523 = vmatprep.subr.mxu0 0.0
    %2524 = vmatpush2.msra.mxu0 0.0
    %2525 = vmatprep.subr.mxu0 0.0
    %2526 = vmatpush2.msra.mxu0 0.0
    %2527 = vmatprep.subr.mxu0 0.0
    %2528 = vmatpush2.msra.mxu0 0.0
    %2529 = vmatprep.subr.mxu0 0.0
    %2530 = vmatpush2.msra.mxu0 0.0
    %2531 = vmatprep.subr.mxu0 0.0
    %2532 = vmatpush2.msra.mxu0 0.0
    %2533 = vmatprep.subr.mxu0 0.0
    %2534 = vmatpush2.msra.mxu0 0.0
    %2535 = vmatprep.subr.mxu0 0.0
    %2536 = vmatpush2.msra.mxu0 0.0
    %2537 = vmatprep.subr.mxu0 0.0
    %2538 = vmatpush2.msra.mxu0 0.0
    %2539 = vmatprep.subr.mxu0 0.0
    %2540 = vmatpush2.msra.mxu0 0.0
    %2541 = vmatprep.subr.mxu0 0.0
    %2542 = vmatpush2.msra.mxu0 0.0
    %2543 = vmatprep.subr.mxu0 0.0
    %2544 = vmatpush2.msra.mxu0 0.0
    %2545 = vmatprep.subr.mxu0 0.0
    %2546 = vmatpush2.msra.mxu0 0.0
    %2547 = vmatprep.subr.mxu0 0.0
    %2548 = vmatpush2.msra.mxu0 0.0
    %2549 = vmatprep.subr.mxu0 0.0
    %2550 = vmatpush2.msra.mxu0 0.0
    %2551 = vmatprep.mubr.f32.mxu0 0.0
    %2552 = vmatmul.mubr.f32.gmra.mxu0 %v2476
    %v2553 = vpop.f32.mrf.mxu0
    %v2554 = vadd.f32 %v2474, %v2553
    %v2555 = vpop.f32.mrf.mxu0
    %2556 = vmatprep.mubr.f32.mxu0 0.0
    %2557 = vmatmul.mubr.f32.gmra.mxu0 %v2479
    %v2558 = vpop.f32.mrf.mxu0
    %v2559 = vadd.f32 %v2474, %v2558
    %v2560 = vpop.f32.mrf.mxu0
    %2561 = vmatprep.mubr.f32.mxu0 0.0
    %2562 = vmatmul.mubr.f32.gmra.mxu0 %v2482
    %v2563 = vpop.f32.mrf.mxu0
    %v2564 = vadd.f32 %v2474, %v2563
    %v2565 = vpop.f32.mrf.mxu0
    %2566 = vmatprep.mubr.f32.mxu0 0.0
    %2567 = vmatmul.mubr.f32.gmra.mxu0 %v2485
    %v2568 = vpop.f32.mrf.mxu0
    %v2569 = vadd.f32 %v2474, %v2568
    %v2570 = vpop.f32.mrf.mxu0
    %2571 = vdwg.mxu0
    %v2576 = vmul.f32 %v441, %v620
    %v2577 = vmul.f32 %v441, %v624
    %v2578 = vmul.f32 %v441, %v628
    %v2579 = vmul.f32 %v441, %v632
    %v2580 = vmul.f32 %v446, %v620
    %v2581 = vmul.f32 %v446, %v624
    %v2582 = vmul.f32 %v446, %v628
    %v2583 = vmul.f32 %v446, %v632
    %v2584 = vmul.f32 %v441, %v634
    %v2585 = vmul.f32 %v441, %v636
    %v2586 = vmul.f32 %v441, %v638
    %v2587 = vmul.f32 %v441, %v640
    %v2588 = vmul.f32 %v446, %v634
    %v2589 = vmul.f32 %v446, %v636
    %v2590 = vmul.f32 %v446, %v638
    %v2591 = vmul.f32 %v446, %v640
    %v2593 = vsel %vm336, %v2554, 0
    %v2596 = vsel %vm336, %v2559, 0
    %v2599 = vsel %vm336, %v2576, 0
    %2601 = vmatprep.subr.mxu0 0.0
    %2602 = vmatpush1.xpose.msra.mxu0 0.0
    %2603 = vmatprep.subr.mxu0 0.0
    %2604 = vmatpush1.xpose.msra.mxu0 0.0
    %2605 = vmatprep.subr.mxu0 0.0
    %2606 = vmatpush1.xpose.msra.mxu0 0.0
    %2607 = vmatprep.subr.mxu0 0.0
    %2608 = vmatpush1.xpose.msra.mxu0 0.0
    %2609 = vmatprep.subr.mxu0 0.0
    %2610 = vmatpush1.xpose.msra.mxu0 0.0
    %2611 = vmatprep.subr.mxu0 0.0
    %2612 = vmatpush1.xpose.msra.mxu0 0.0
    %2613 = vmatprep.subr.mxu0 0.0
    %2614 = vmatpush1.xpose.msra.mxu0 0.0
    %2615 = vmatprep.subr.mxu0 0.0
    %2616 = vmatpush1.xpose.msra.mxu0 0.0
    %2617 = vmatprep.subr.mxu0 0.0
    %2618 = vmatpush1.xpose.msra.mxu0 0.0
    %2619 = vmatprep.subr.mxu0 0.0
    %2620 = vmatpush1.xpose.msra.mxu0 0.0
    %2621 = vmatprep.subr.mxu0 0.0
    %2622 = vmatpush1.xpose.msra.mxu0 0.0
    %2623 = vmatprep.subr.mxu0 0.0
    %2624 = vmatpush1.xpose.msra.mxu0 0.0
    %2625 = vmatprep.subr.mxu0 0.0
    %2626 = vmatpush1.xpose.msra.mxu0 0.0
    %2627 = vmatprep.subr.mxu0 0.0
    %2628 = vmatpush1.xpose.msra.mxu0 0.0
    %2629 = vmatprep.subr.mxu0 0.0
    %2630 = vmatpush1.xpose.msra.mxu0 0.0
    %2631 = vmatprep.subr.mxu0 0.0
    %2632 = vmatpush1.xpose.msra.mxu0 %v2599
    %2633 = vmatprep.subr.mxu0 0.0
    %2634 = vmatpush2.xpose.msra.mxu0 0.0
    %2635 = vmatprep.subr.mxu0 0.0
    %2636 = vmatpush2.xpose.msra.mxu0 0.0
    %2637 = vmatprep.subr.mxu0 0.0
    %2638 = vmatpush2.xpose.msra.mxu0 0.0
    %2639 = vmatprep.subr.mxu0 0.0
    %2640 = vmatpush2.xpose.msra.mxu0 0.0
    %2641 = vmatprep.subr.mxu0 0.0
    %2642 = vmatpush2.xpose.msra.mxu0 0.0
    %2643 = vmatprep.subr.mxu0 0.0
    %2644 = vmatpush2.xpose.msra.mxu0 0.0
    %2645 = vmatprep.subr.mxu0 0.0
    %2646 = vmatpush2.xpose.msra.mxu0 0.0
    %2647 = vmatprep.subr.mxu0 0.0
    %2648 = vmatpush2.xpose.msra.mxu0 0.0
    %2649 = vmatprep.subr.mxu0 0.0
    %2650 = vmatpush2.xpose.msra.mxu0 0.0
    %2651 = vmatprep.subr.mxu0 0.0
    %2652 = vmatpush2.xpose.msra.mxu0 0.0
    %2653 = vmatprep.subr.mxu0 0.0
    %2654 = vmatpush2.xpose.msra.mxu0 0.0
    %2655 = vmatprep.subr.mxu0 0.0
    %2656 = vmatpush2.xpose.msra.mxu0 0.0
    %2657 = vmatprep.subr.mxu0 0.0
    %2658 = vmatpush2.xpose.msra.mxu0 0.0
    %2659 = vmatprep.subr.mxu0 0.0
    %2660 = vmatpush2.xpose.msra.mxu0 0.0
    %2661 = vmatprep.subr.mxu0 0.0
    %2662 = vmatpush2.xpose.msra.mxu0 0.0
    %2663 = vmatprep.subr.mxu0 0.0
    %2664 = vmatpush2.xpose.msra.mxu0 0.0
    %2665 = vmatprep.mubr.f32.mxu0 0.0
    %2666 = vmatmul.mubr.f32.gmra.mxu0 %v2593
    %v2667 = vpop.f32.mrf.mxu0
    %v2668 = vadd.f32 0.0, %v2667
    %v2669 = vpop.f32.mrf.mxu0
    %2670 = vmatprep.mubr.f32.mxu0 0.0
    %2671 = vmatmul.mubr.f32.gmra.mxu0 %v2596
    %v2672 = vpop.f32.mrf.mxu0
    %v2673 = vadd.f32 0.0, %v2672
    %v2674 = vpop.f32.mrf.mxu0
    %2675 = vdwg.mxu0
    %v2677 = vsel %vm336, %v2577, 0
    %2679 = vmatprep.subr.mxu0 0.0
    %2680 = vmatpush1.xpose.msra.mxu0 0.0
    %2681 = vmatprep.subr.mxu0 0.0
    %2682 = vmatpush1.xpose.msra.mxu0 0.0
    %2683 = vmatprep.subr.mxu0 0.0
    %2684 = vmatpush1.xpose.msra.mxu0 0.0
    %2685 = vmatprep.subr.mxu0 0.0
    %2686 = vmatpush1.xpose.msra.mxu0 0.0
    %2687 = vmatprep.subr.mxu0 0.0
    %2688 = vmatpush1.xpose.msra.mxu0 0.0
    %2689 = vmatprep.subr.mxu0 0.0
    %2690 = vmatpush1.xpose.msra.mxu0 0.0
    %2691 = vmatprep.subr.mxu0 0.0
    %2692 = vmatpush1.xpose.msra.mxu0 0.0
    %2693 = vmatprep.subr.mxu0 0.0
    %2694 = vmatpush1.xpose.msra.mxu0 0.0
    %2695 = vmatprep.subr.mxu0 0.0
    %2696 = vmatpush1.xpose.msra.mxu0 0.0
    %2697 = vmatprep.subr.mxu0 0.0
    %2698 = vmatpush1.xpose.msra.mxu0 0.0
    %2699 = vmatprep.subr.mxu0 0.0
    %2700 = vmatpush1.xpose.msra.mxu0 0.0
    %2701 = vmatprep.subr.mxu0 0.0
    %2702 = vmatpush1.xpose.msra.mxu0 0.0
    %2703 = vmatprep.subr.mxu0 0.0
    %2704 = vmatpush1.xpose.msra.mxu0 0.0
    %2705 = vmatprep.subr.mxu0 0.0
    %2706 = vmatpush1.xpose.msra.mxu0 0.0
    %2707 = vmatprep.subr.mxu0 0.0
    %2708 = vmatpush1.xpose.msra.mxu0 0.0
    %2709 = vmatprep.subr.mxu0 0.0
    %2710 = vmatpush1.xpose.msra.mxu0 %v2677
    %2711 = vmatprep.subr.mxu0 0.0
    %2712 = vmatpush2.xpose.msra.mxu0 0.0
    %2713 = vmatprep.subr.mxu0 0.0
    %2714 = vmatpush2.xpose.msra.mxu0 0.0
    %2715 = vmatprep.subr.mxu0 0.0
    %2716 = vmatpush2.xpose.msra.mxu0 0.0
    %2717 = vmatprep.subr.mxu0 0.0
    %2718 = vmatpush2.xpose.msra.mxu0 0.0
    %2719 = vmatprep.subr.mxu0 0.0
    %2720 = vmatpush2.xpose.msra.mxu0 0.0
    %2721 = vmatprep.subr.mxu0 0.0
    %2722 = vmatpush2.xpose.msra.mxu0 0.0
    %2723 = vmatprep.subr.mxu0 0.0
    %2724 = vmatpush2.xpose.msra.mxu0 0.0
    %2725 = vmatprep.subr.mxu0 0.0
    %2726 = vmatpush2.xpose.msra.mxu0 0.0
    %2727 = vmatprep.subr.mxu0 0.0
    %2728 = vmatpush2.xpose.msra.mxu0 0.0
    %2729 = vmatprep.subr.mxu0 0.0
    %2730 = vmatpush2.xpose.msra.mxu0 0.0
    %2731 = vmatprep.subr.mxu0 0.0
    %2732 = vmatpush2.xpose.msra.mxu0 0.0
    %2733 = vmatprep.subr.mxu0 0.0
    %2734 = vmatpush2.xpose.msra.mxu0 0.0
    %2735 = vmatprep.subr.mxu0 0.0
    %2736 = vmatpush2.xpose.msra.mxu0 0.0
    %2737 = vmatprep.subr.mxu0 0.0
    %2738 = vmatpush2.xpose.msra.mxu0 0.0
    %2739 = vmatprep.subr.mxu0 0.0
    %2740 = vmatpush2.xpose.msra.mxu0 0.0
    %2741 = vmatprep.subr.mxu0 0.0
    %2742 = vmatpush2.xpose.msra.mxu0 0.0
    %2743 = vmatprep.mubr.f32.mxu0 0.0
    %2744 = vmatmul.mubr.f32.gmra.mxu0 %v2593
    %v2745 = vpop.f32.mrf.mxu0
    %v2746 = vadd.f32 0.0, %v2745
    %v2747 = vpop.f32.mrf.mxu0
    %2748 = vmatprep.mubr.f32.mxu0 0.0
    %2749 = vmatmul.mubr.f32.gmra.mxu0 %v2596
    %v2750 = vpop.f32.mrf.mxu0
    %v2751 = vadd.f32 0.0, %v2750
    %v2752 = vpop.f32.mrf.mxu0
    %2753 = vdwg.mxu0
    %v2755 = vsel %vm336, %v2578, 0
    %2757 = vmatprep.subr.mxu0 0.0
    %2758 = vmatpush1.xpose.msra.mxu0 0.0
    %2759 = vmatprep.subr.mxu0 0.0
    %2760 = vmatpush1.xpose.msra.mxu0 0.0
    %2761 = vmatprep.subr.mxu0 0.0
    %2762 = vmatpush1.xpose.msra.mxu0 0.0
    %2763 = vmatprep.subr.mxu0 0.0
    %2764 = vmatpush1.xpose.msra.mxu0 0.0
    %2765 = vmatprep.subr.mxu0 0.0
    %2766 = vmatpush1.xpose.msra.mxu0 0.0
    %2767 = vmatprep.subr.mxu0 0.0
    %2768 = vmatpush1.xpose.msra.mxu0 0.0
    %2769 = vmatprep.subr.mxu0 0.0
    %2770 = vmatpush1.xpose.msra.mxu0 0.0
    %2771 = vmatprep.subr.mxu0 0.0
    %2772 = vmatpush1.xpose.msra.mxu0 0.0
    %2773 = vmatprep.subr.mxu0 0.0
    %2774 = vmatpush1.xpose.msra.mxu0 0.0
    %2775 = vmatprep.subr.mxu0 0.0
    %2776 = vmatpush1.xpose.msra.mxu0 0.0
    %2777 = vmatprep.subr.mxu0 0.0
    %2778 = vmatpush1.xpose.msra.mxu0 0.0
    %2779 = vmatprep.subr.mxu0 0.0
    %2780 = vmatpush1.xpose.msra.mxu0 0.0
    %2781 = vmatprep.subr.mxu0 0.0
    %2782 = vmatpush1.xpose.msra.mxu0 0.0
    %2783 = vmatprep.subr.mxu0 0.0
    %2784 = vmatpush1.xpose.msra.mxu0 0.0
    %2785 = vmatprep.subr.mxu0 0.0
    %2786 = vmatpush1.xpose.msra.mxu0 0.0
    %2787 = vmatprep.subr.mxu0 0.0
    %2788 = vmatpush1.xpose.msra.mxu0 %v2755
    %2789 = vmatprep.subr.mxu0 0.0
    %2790 = vmatpush2.xpose.msra.mxu0 0.0
    %2791 = vmatprep.subr.mxu0 0.0
    %2792 = vmatpush2.xpose.msra.mxu0 0.0
    %2793 = vmatprep.subr.mxu0 0.0
    %2794 = vmatpush2.xpose.msra.mxu0 0.0
    %2795 = vmatprep.subr.mxu0 0.0
    %2796 = vmatpush2.xpose.msra.mxu0 0.0
    %2797 = vmatprep.subr.mxu0 0.0
    %2798 = vmatpush2.xpose.msra.mxu0 0.0
    %2799 = vmatprep.subr.mxu0 0.0
    %2800 = vmatpush2.xpose.msra.mxu0 0.0
    %2801 = vmatprep.subr.mxu0 0.0
    %2802 = vmatpush2.xpose.msra.mxu0 0.0
    %2803 = vmatprep.subr.mxu0 0.0
    %2804 = vmatpush2.xpose.msra.mxu0 0.0
    %2805 = vmatprep.subr.mxu0 0.0
    %2806 = vmatpush2.xpose.msra.mxu0 0.0
    %2807 = vmatprep.subr.mxu0 0.0
    %2808 = vmatpush2.xpose.msra.mxu0 0.0
    %2809 = vmatprep.subr.mxu0 0.0
    %2810 = vmatpush2.xpose.msra.mxu0 0.0
    %2811 = vmatprep.subr.mxu0 0.0
    %2812 = vmatpush2.xpose.msra.mxu0 0.0
    %2813 = vmatprep.subr.mxu0 0.0
    %2814 = vmatpush2.xpose.msra.mxu0 0.0
    %2815 = vmatprep.subr.mxu0 0.0
    %2816 = vmatpush2.xpose.msra.mxu0 0.0
    %2817 = vmatprep.subr.mxu0 0.0
    %2818 = vmatpush2.xpose.msra.mxu0 0.0
    %2819 = vmatprep.subr.mxu0 0.0
    %2820 = vmatpush2.xpose.msra.mxu0 0.0
    %2821 = vmatprep.mubr.f32.mxu0 0.0
    %2822 = vmatmul.mubr.f32.gmra.mxu0 %v2593
    %v2823 = vpop.f32.mrf.mxu0
    %v2824 = vadd.f32 0.0, %v2823
    %v2825 = vpop.f32.mrf.mxu0
    %2826 = vmatprep.mubr.f32.mxu0 0.0
    %2827 = vmatmul.mubr.f32.gmra.mxu0 %v2596
    %v2828 = vpop.f32.mrf.mxu0
    %v2829 = vadd.f32 0.0, %v2828
    %v2830 = vpop.f32.mrf.mxu0
    %2831 = vdwg.mxu0
    %v2833 = vsel %vm336, %v2579, 0
    %2835 = vmatprep.subr.mxu0 0.0
    %2836 = vmatpush1.xpose.msra.mxu0 0.0
    %2837 = vmatprep.subr.mxu0 0.0
    %2838 = vmatpush1.xpose.msra.mxu0 0.0
    %2839 = vmatprep.subr.mxu0 0.0
    %2840 = vmatpush1.xpose.msra.mxu0 0.0
    %2841 = vmatprep.subr.mxu0 0.0
    %2842 = vmatpush1.xpose.msra.mxu0 0.0
    %2843 = vmatprep.subr.mxu0 0.0
    %2844 = vmatpush1.xpose.msra.mxu0 0.0
    %2845 = vmatprep.subr.mxu0 0.0
    %2846 = vmatpush1.xpose.msra.mxu0 0.0
    %2847 = vmatprep.subr.mxu0 0.0
    %2848 = vmatpush1.xpose.msra.mxu0 0.0
    %2849 = vmatprep.subr.mxu0 0.0
    %2850 = vmatpush1.xpose.msra.mxu0 0.0
    %2851 = vmatprep.subr.mxu0 0.0
    %2852 = vmatpush1.xpose.msra.mxu0 0.0
    %2853 = vmatprep.subr.mxu0 0.0
    %2854 = vmatpush1.xpose.msra.mxu0 0.0
    %2855 = vmatprep.subr.mxu0 0.0
    %2856 = vmatpush1.xpose.msra.mxu0 0.0
    %2857 = vmatprep.subr.mxu0 0.0
    %2858 = vmatpush1.xpose.msra.mxu0 0.0
    %2859 = vmatprep.subr.mxu0 0.0
    %2860 = vmatpush1.xpose.msra.mxu0 0.0
    %2861 = vmatprep.subr.mxu0 0.0
    %2862 = vmatpush1.xpose.msra.mxu0 0.0
    %2863 = vmatprep.subr.mxu0 0.0
    %2864 = vmatpush1.xpose.msra.mxu0 0.0
    %2865 = vmatprep.subr.mxu0 0.0
    %2866 = vmatpush1.xpose.msra.mxu0 %v2833
    %2867 = vmatprep.subr.mxu0 0.0
    %2868 = vmatpush2.xpose.msra.mxu0 0.0
    %2869 = vmatprep.subr.mxu0 0.0
    %2870 = vmatpush2.xpose.msra.mxu0 0.0
    %2871 = vmatprep.subr.mxu0 0.0
    %2872 = vmatpush2.xpose.msra.mxu0 0.0
    %2873 = vmatprep.subr.mxu0 0.0
    %2874 = vmatpush2.xpose.msra.mxu0 0.0
    %2875 = vmatprep.subr.mxu0 0.0
    %2876 = vmatpush2.xpose.msra.mxu0 0.0
    %2877 = vmatprep.subr.mxu0 0.0
    %2878 = vmatpush2.xpose.msra.mxu0 0.0
    %2879 = vmatprep.subr.mxu0 0.0
    %2880 = vmatpush2.xpose.msra.mxu0 0.0
    %2881 = vmatprep.subr.mxu0 0.0
    %2882 = vmatpush2.xpose.msra.mxu0 0.0
    %2883 = vmatprep.subr.mxu0 0.0
    %2884 = vmatpush2.xpose.msra.mxu0 0.0
    %2885 = vmatprep.subr.mxu0 0.0
    %2886 = vmatpush2.xpose.msra.mxu0 0.0
    %2887 = vmatprep.subr.mxu0 0.0
    %2888 = vmatpush2.xpose.msra.mxu0 0.0
    %2889 = vmatprep.subr.mxu0 0.0
    %2890 = vmatpush2.xpose.msra.mxu0 0.0
    %2891 = vmatprep.subr.mxu0 0.0
    %2892 = vmatpush2.xpose.msra.mxu0 0.0
    %2893 = vmatprep.subr.mxu0 0.0
    %2894 = vmatpush2.xpose.msra.mxu0 0.0
    %2895 = vmatprep.subr.mxu0 0.0
    %2896 = vmatpush2.xpose.msra.mxu0 0.0
    %2897 = vmatprep.subr.mxu0 0.0
    %2898 = vmatpush2.xpose.msra.mxu0 0.0
    %2899 = vmatprep.mubr.f32.mxu0 0.0
    %2900 = vmatmul.mubr.f32.gmra.mxu0 %v2593
    %v2901 = vpop.f32.mrf.mxu0
    %v2902 = vadd.f32 0.0, %v2901
    %v2903 = vpop.f32.mrf.mxu0
    %2904 = vmatprep.mubr.f32.mxu0 0.0
    %2905 = vmatmul.mubr.f32.gmra.mxu0 %v2596
    %v2906 = vpop.f32.mrf.mxu0
    %v2907 = vadd.f32 0.0, %v2906
    %v2908 = vpop.f32.mrf.mxu0
    %2909 = vdwg.mxu0
    %v2911 = vsel %vm336, %v2564, 0
    %v2914 = vsel %vm336, %v2569, 0
    %v2917 = vsel %vm336, %v2580, 0
    %2919 = vmatprep.subr.mxu0 0.0
    %2920 = vmatpush1.xpose.msra.mxu0 0.0
    %2921 = vmatprep.subr.mxu0 0.0
    %2922 = vmatpush1.xpose.msra.mxu0 0.0
    %2923 = vmatprep.subr.mxu0 0.0
    %2924 = vmatpush1.xpose.msra.mxu0 0.0
    %2925 = vmatprep.subr.mxu0 0.0
    %2926 = vmatpush1.xpose.msra.mxu0 0.0
    %2927 = vmatprep.subr.mxu0 0.0
    %2928 = vmatpush1.xpose.msra.mxu0 0.0
    %2929 = vmatprep.subr.mxu0 0.0
    %2930 = vmatpush1.xpose.msra.mxu0 0.0
    %2931 = vmatprep.subr.mxu0 0.0
    %2932 = vmatpush1.xpose.msra.mxu0 0.0
    %2933 = vmatprep.subr.mxu0 0.0
    %2934 = vmatpush1.xpose.msra.mxu0 0.0
    %2935 = vmatprep.subr.mxu0 0.0
    %2936 = vmatpush1.xpose.msra.mxu0 0.0
    %2937 = vmatprep.subr.mxu0 0.0
    %2938 = vmatpush1.xpose.msra.mxu0 0.0
    %2939 = vmatprep.subr.mxu0 0.0
    %2940 = vmatpush1.xpose.msra.mxu0 0.0
    %2941 = vmatprep.subr.mxu0 0.0
    %2942 = vmatpush1.xpose.msra.mxu0 0.0
    %2943 = vmatprep.subr.mxu0 0.0
    %2944 = vmatpush1.xpose.msra.mxu0 0.0
    %2945 = vmatprep.subr.mxu0 0.0
    %2946 = vmatpush1.xpose.msra.mxu0 0.0
    %2947 = vmatprep.subr.mxu0 0.0
    %2948 = vmatpush1.xpose.msra.mxu0 0.0
    %2949 = vmatprep.subr.mxu0 0.0
    %2950 = vmatpush1.xpose.msra.mxu0 %v2917
    %2951 = vmatprep.subr.mxu0 0.0
    %2952 = vmatpush2.xpose.msra.mxu0 0.0
    %2953 = vmatprep.subr.mxu0 0.0
    %2954 = vmatpush2.xpose.msra.mxu0 0.0
    %2955 = vmatprep.subr.mxu0 0.0
    %2956 = vmatpush2.xpose.msra.mxu0 0.0
    %2957 = vmatprep.subr.mxu0 0.0
    %2958 = vmatpush2.xpose.msra.mxu0 0.0
    %2959 = vmatprep.subr.mxu0 0.0
    %2960 = vmatpush2.xpose.msra.mxu0 0.0
    %2961 = vmatprep.subr.mxu0 0.0
    %2962 = vmatpush2.xpose.msra.mxu0 0.0
    %2963 = vmatprep.subr.mxu0 0.0
    %2964 = vmatpush2.xpose.msra.mxu0 0.0
    %2965 = vmatprep.subr.mxu0 0.0
    %2966 = vmatpush2.xpose.msra.mxu0 0.0
    %2967 = vmatprep.subr.mxu0 0.0
    %2968 = vmatpush2.xpose.msra.mxu0 0.0
    %2969 = vmatprep.subr.mxu0 0.0
    %2970 = vmatpush2.xpose.msra.mxu0 0.0
    %2971 = vmatprep.subr.mxu0 0.0
    %2972 = vmatpush2.xpose.msra.mxu0 0.0
    %2973 = vmatprep.subr.mxu0 0.0
    %2974 = vmatpush2.xpose.msra.mxu0 0.0
    %2975 = vmatprep.subr.mxu0 0.0
    %2976 = vmatpush2.xpose.msra.mxu0 0.0
    %2977 = vmatprep.subr.mxu0 0.0
    %2978 = vmatpush2.xpose.msra.mxu0 0.0
    %2979 = vmatprep.subr.mxu0 0.0
    %2980 = vmatpush2.xpose.msra.mxu0 0.0
    %2981 = vmatprep.subr.mxu0 0.0
    %2982 = vmatpush2.xpose.msra.mxu0 0.0
    %2983 = vmatprep.mubr.f32.mxu0 0.0
    %2984 = vmatmul.mubr.f32.gmra.mxu0 %v2911
    %v2985 = vpop.f32.mrf.mxu0
    %v2986 = vadd.f32 0.0, %v2985
    %v2987 = vpop.f32.mrf.mxu0
    %2988 = vmatprep.mubr.f32.mxu0 0.0
    %2989 = vmatmul.mubr.f32.gmra.mxu0 %v2914
    %v2990 = vpop.f32.mrf.mxu0
    %v2991 = vadd.f32 0.0, %v2990
    %v2992 = vpop.f32.mrf.mxu0
    %2993 = vdwg.mxu0
    %v2995 = vsel %vm336, %v2581, 0
    %2997 = vmatprep.subr.mxu0 0.0
    %2998 = vmatpush1.xpose.msra.mxu0 0.0
    %2999 = vmatprep.subr.mxu0 0.0
    %3000 = vmatpush1.xpose.msra.mxu0 0.0
    %3001 = vmatprep.subr.mxu0 0.0
    %3002 = vmatpush1.xpose.msra.mxu0 0.0
    %3003 = vmatprep.subr.mxu0 0.0
    %3004 = vmatpush1.xpose.msra.mxu0 0.0
    %3005 = vmatprep.subr.mxu0 0.0
    %3006 = vmatpush1.xpose.msra.mxu0 0.0
    %3007 = vmatprep.subr.mxu0 0.0
    %3008 = vmatpush1.xpose.msra.mxu0 0.0
    %3009 = vmatprep.subr.mxu0 0.0
    %3010 = vmatpush1.xpose.msra.mxu0 0.0
    %3011 = vmatprep.subr.mxu0 0.0
    %3012 = vmatpush1.xpose.msra.mxu0 0.0
    %3013 = vmatprep.subr.mxu0 0.0
    %3014 = vmatpush1.xpose.msra.mxu0 0.0
    %3015 = vmatprep.subr.mxu0 0.0
    %3016 = vmatpush1.xpose.msra.mxu0 0.0
    %3017 = vmatprep.subr.mxu0 0.0
    %3018 = vmatpush1.xpose.msra.mxu0 0.0
    %3019 = vmatprep.subr.mxu0 0.0
    %3020 = vmatpush1.xpose.msra.mxu0 0.0
    %3021 = vmatprep.subr.mxu0 0.0
    %3022 = vmatpush1.xpose.msra.mxu0 0.0
    %3023 = vmatprep.subr.mxu0 0.0
    %3024 = vmatpush1.xpose.msra.mxu0 0.0
    %3025 = vmatprep.subr.mxu0 0.0
    %3026 = vmatpush1.xpose.msra.mxu0 0.0
    %3027 = vmatprep.subr.mxu0 0.0
    %3028 = vmatpush1.xpose.msra.mxu0 %v2995
    %3029 = vmatprep.subr.mxu0 0.0
    %3030 = vmatpush2.xpose.msra.mxu0 0.0
    %3031 = vmatprep.subr.mxu0 0.0
    %3032 = vmatpush2.xpose.msra.mxu0 0.0
    %3033 = vmatprep.subr.mxu0 0.0
    %3034 = vmatpush2.xpose.msra.mxu0 0.0
    %3035 = vmatprep.subr.mxu0 0.0
    %3036 = vmatpush2.xpose.msra.mxu0 0.0
    %3037 = vmatprep.subr.mxu0 0.0
    %3038 = vmatpush2.xpose.msra.mxu0 0.0
    %3039 = vmatprep.subr.mxu0 0.0
    %3040 = vmatpush2.xpose.msra.mxu0 0.0
    %3041 = vmatprep.subr.mxu0 0.0
    %3042 = vmatpush2.xpose.msra.mxu0 0.0
    %3043 = vmatprep.subr.mxu0 0.0
    %3044 = vmatpush2.xpose.msra.mxu0 0.0
    %3045 = vmatprep.subr.mxu0 0.0
    %3046 = vmatpush2.xpose.msra.mxu0 0.0
    %3047 = vmatprep.subr.mxu0 0.0
    %3048 = vmatpush2.xpose.msra.mxu0 0.0
    %3049 = vmatprep.subr.mxu0 0.0
    %3050 = vmatpush2.xpose.msra.mxu0 0.0
    %3051 = vmatprep.subr.mxu0 0.0
    %3052 = vmatpush2.xpose.msra.mxu0 0.0
    %3053 = vmatprep.subr.mxu0 0.0
    %3054 = vmatpush2.xpose.msra.mxu0 0.0
    %3055 = vmatprep.subr.mxu0 0.0
    %3056 = vmatpush2.xpose.msra.mxu0 0.0
    %3057 = vmatprep.subr.mxu0 0.0
    %3058 = vmatpush2.xpose.msra.mxu0 0.0
    %3059 = vmatprep.subr.mxu0 0.0
    %3060 = vmatpush2.xpose.msra.mxu0 0.0
    %3061 = vmatprep.mubr.f32.mxu0 0.0
    %3062 = vmatmul.mubr.f32.gmra.mxu0 %v2911
    %v3063 = vpop.f32.mrf.mxu0
    %v3064 = vadd.f32 0.0, %v3063
    %v3065 = vpop.f32.mrf.mxu0
    %3066 = vmatprep.mubr.f32.mxu0 0.0
    %3067 = vmatmul.mubr.f32.gmra.mxu0 %v2914
    %v3068 = vpop.f32.mrf.mxu0
    %v3069 = vadd.f32 0.0, %v3068
    %v3070 = vpop.f32.mrf.mxu0
    %3071 = vdwg.mxu0
    %v3073 = vsel %vm336, %v2582, 0
    %3075 = vmatprep.subr.mxu0 0.0
    %3076 = vmatpush1.xpose.msra.mxu0 0.0
    %3077 = vmatprep.subr.mxu0 0.0
    %3078 = vmatpush1.xpose.msra.mxu0 0.0
    %3079 = vmatprep.subr.mxu0 0.0
    %3080 = vmatpush1.xpose.msra.mxu0 0.0
    %3081 = vmatprep.subr.mxu0 0.0
    %3082 = vmatpush1.xpose.msra.mxu0 0.0
    %3083 = vmatprep.subr.mxu0 0.0
    %3084 = vmatpush1.xpose.msra.mxu0 0.0
    %3085 = vmatprep.subr.mxu0 0.0
    %3086 = vmatpush1.xpose.msra.mxu0 0.0
    %3087 = vmatprep.subr.mxu0 0.0
    %3088 = vmatpush1.xpose.msra.mxu0 0.0
    %3089 = vmatprep.subr.mxu0 0.0
    %3090 = vmatpush1.xpose.msra.mxu0 0.0
    %3091 = vmatprep.subr.mxu0 0.0
    %3092 = vmatpush1.xpose.msra.mxu0 0.0
    %3093 = vmatprep.subr.mxu0 0.0
    %3094 = vmatpush1.xpose.msra.mxu0 0.0
    %3095 = vmatprep.subr.mxu0 0.0
    %3096 = vmatpush1.xpose.msra.mxu0 0.0
    %3097 = vmatprep.subr.mxu0 0.0
    %3098 = vmatpush1.xpose.msra.mxu0 0.0
    %3099 = vmatprep.subr.mxu0 0.0
    %3100 = vmatpush1.xpose.msra.mxu0 0.0
    %3101 = vmatprep.subr.mxu0 0.0
    %3102 = vmatpush1.xpose.msra.mxu0 0.0
    %3103 = vmatprep.subr.mxu0 0.0
    %3104 = vmatpush1.xpose.msra.mxu0 0.0
    %3105 = vmatprep.subr.mxu0 0.0
    %3106 = vmatpush1.xpose.msra.mxu0 %v3073
    %3107 = vmatprep.subr.mxu0 0.0
    %3108 = vmatpush2.xpose.msra.mxu0 0.0
    %3109 = vmatprep.subr.mxu0 0.0
    %3110 = vmatpush2.xpose.msra.mxu0 0.0
    %3111 = vmatprep.subr.mxu0 0.0
    %3112 = vmatpush2.xpose.msra.mxu0 0.0
    %3113 = vmatprep.subr.mxu0 0.0
    %3114 = vmatpush2.xpose.msra.mxu0 0.0
    %3115 = vmatprep.subr.mxu0 0.0
    %3116 = vmatpush2.xpose.msra.mxu0 0.0
    %3117 = vmatprep.subr.mxu0 0.0
    %3118 = vmatpush2.xpose.msra.mxu0 0.0
    %3119 = vmatprep.subr.mxu0 0.0
    %3120 = vmatpush2.xpose.msra.mxu0 0.0
    %3121 = vmatprep.subr.mxu0 0.0
    %3122 = vmatpush2.xpose.msra.mxu0 0.0
    %3123 = vmatprep.subr.mxu0 0.0
    %3124 = vmatpush2.xpose.msra.mxu0 0.0
    %3125 = vmatprep.subr.mxu0 0.0
    %3126 = vmatpush2.xpose.msra.mxu0 0.0
    %3127 = vmatprep.subr.mxu0 0.0
    %3128 = vmatpush2.xpose.msra.mxu0 0.0
    %3129 = vmatprep.subr.mxu0 0.0
    %3130 = vmatpush2.xpose.msra.mxu0 0.0
    %3131 = vmatprep.subr.mxu0 0.0
    %3132 = vmatpush2.xpose.msra.mxu0 0.0
    %3133 = vmatprep.subr.mxu0 0.0
    %3134 = vmatpush2.xpose.msra.mxu0 0.0
    %3135 = vmatprep.subr.mxu0 0.0
    %3136 = vmatpush2.xpose.msra.mxu0 0.0
    %3137 = vmatprep.subr.mxu0 0.0
    %3138 = vmatpush2.xpose.msra.mxu0 0.0
    %3139 = vmatprep.mubr.f32.mxu0 0.0
    %3140 = vmatmul.mubr.f32.gmra.mxu0 %v2911
    %v3141 = vpop.f32.mrf.mxu0
    %v3142 = vadd.f32 0.0, %v3141
    %v3143 = vpop.f32.mrf.mxu0
    %3144 = vmatprep.mubr.f32.mxu0 0.0
    %3145 = vmatmul.mubr.f32.gmra.mxu0 %v2914
    %v3146 = vpop.f32.mrf.mxu0
    %v3147 = vadd.f32 0.0, %v3146
    %v3148 = vpop.f32.mrf.mxu0
    %3149 = vdwg.mxu0
    %v3151 = vsel %vm336, %v2583, 0
    %3153 = vmatprep.subr.mxu0 0.0
    %3154 = vmatpush1.xpose.msra.mxu0 0.0
    %3155 = vmatprep.subr.mxu0 0.0
    %3156 = vmatpush1.xpose.msra.mxu0 0.0
    %3157 = vmatprep.subr.mxu0 0.0
    %3158 = vmatpush1.xpose.msra.mxu0 0.0
    %3159 = vmatprep.subr.mxu0 0.0
    %3160 = vmatpush1.xpose.msra.mxu0 0.0
    %3161 = vmatprep.subr.mxu0 0.0
    %3162 = vmatpush1.xpose.msra.mxu0 0.0
    %3163 = vmatprep.subr.mxu0 0.0
    %3164 = vmatpush1.xpose.msra.mxu0 0.0
    %3165 = vmatprep.subr.mxu0 0.0
    %3166 = vmatpush1.xpose.msra.mxu0 0.0
    %3167 = vmatprep.subr.mxu0 0.0
    %3168 = vmatpush1.xpose.msra.mxu0 0.0
    %3169 = vmatprep.subr.mxu0 0.0
    %3170 = vmatpush1.xpose.msra.mxu0 0.0
    %3171 = vmatprep.subr.mxu0 0.0
    %3172 = vmatpush1.xpose.msra.mxu0 0.0
    %3173 = vmatprep.subr.mxu0 0.0
    %3174 = vmatpush1.xpose.msra.mxu0 0.0
    %3175 = vmatprep.subr.mxu0 0.0
    %3176 = vmatpush1.xpose.msra.mxu0 0.0
    %3177 = vmatprep.subr.mxu0 0.0
    %3178 = vmatpush1.xpose.msra.mxu0 0.0
    %3179 = vmatprep.subr.mxu0 0.0
    %3180 = vmatpush1.xpose.msra.mxu0 0.0
    %3181 = vmatprep.subr.mxu0 0.0
    %3182 = vmatpush1.xpose.msra.mxu0 0.0
    %3183 = vmatprep.subr.mxu0 0.0
    %3184 = vmatpush1.xpose.msra.mxu0 %v3151
    %3185 = vmatprep.subr.mxu0 0.0
    %3186 = vmatpush2.xpose.msra.mxu0 0.0
    %3187 = vmatprep.subr.mxu0 0.0
    %3188 = vmatpush2.xpose.msra.mxu0 0.0
    %3189 = vmatprep.subr.mxu0 0.0
    %3190 = vmatpush2.xpose.msra.mxu0 0.0
    %3191 = vmatprep.subr.mxu0 0.0
    %3192 = vmatpush2.xpose.msra.mxu0 0.0
    %3193 = vmatprep.subr.mxu0 0.0
    %3194 = vmatpush2.xpose.msra.mxu0 0.0
    %3195 = vmatprep.subr.mxu0 0.0
    %3196 = vmatpush2.xpose.msra.mxu0 0.0
    %3197 = vmatprep.subr.mxu0 0.0
    %3198 = vmatpush2.xpose.msra.mxu0 0.0
    %3199 = vmatprep.subr.mxu0 0.0
    %3200 = vmatpush2.xpose.msra.mxu0 0.0
    %3201 = vmatprep.subr.mxu0 0.0
    %3202 = vmatpush2.xpose.msra.mxu0 0.0
    %3203 = vmatprep.subr.mxu0 0.0
    %3204 = vmatpush2.xpose.msra.mxu0 0.0
    %3205 = vmatprep.subr.mxu0 0.0
    %3206 = vmatpush2.xpose.msra.mxu0 0.0
    %3207 = vmatprep.subr.mxu0 0.0
    %3208 = vmatpush2.xpose.msra.mxu0 0.0
    %3209 = vmatprep.subr.mxu0 0.0
    %3210 = vmatpush2.xpose.msra.mxu0 0.0
    %3211 = vmatprep.subr.mxu0 0.0
    %3212 = vmatpush2.xpose.msra.mxu0 0.0
    %3213 = vmatprep.subr.mxu0 0.0
    %3214 = vmatpush2.xpose.msra.mxu0 0.0
    %3215 = vmatprep.subr.mxu0 0.0
    %3216 = vmatpush2.xpose.msra.mxu0 0.0
    %3217 = vmatprep.mubr.f32.mxu0 0.0
    %3218 = vmatmul.mubr.f32.gmra.mxu0 %v2911
    %v3219 = vpop.f32.mrf.mxu0
    %v3220 = vadd.f32 0.0, %v3219
    %v3221 = vpop.f32.mrf.mxu0
    %3222 = vmatprep.mubr.f32.mxu0 0.0
    %3223 = vmatmul.mubr.f32.gmra.mxu0 %v2914
    %v3224 = vpop.f32.mrf.mxu0
    %v3225 = vadd.f32 0.0, %v3224
    %v3226 = vpop.f32.mrf.mxu0
    %3227 = vdwg.mxu0
    %v3228 = vlaneseq
    %v3229 = vshrl.u32 %v3228, 7
    %v3230 = vsub.s32 0, %v3229
    %v3231 = vrot.slane %v132, %v3230
    %v3232 = vlaneseq
    %v3233 = vshrl.u32 %v3232, 7
    %v3234 = vsub.s32 0, %v3233
    %v3235 = vrot.slane %v139, %v3234
    %v3238 = vadd.f32 %v2668, %v3231
    %v3239 = vadd.f32 %v2673, %v3231
    %v3240 = vadd.f32 %v2746, %v3231
    %v3241 = vadd.f32 %v2751, %v3231
    %v3242 = vadd.f32 %v2824, %v3231
    %v3243 = vadd.f32 %v2829, %v3231
    %v3244 = vadd.f32 %v2902, %v3231
    %v3245 = vadd.f32 %v2907, %v3231
    %v3246 = vadd.f32 %v2986, %v3235
    %v3247 = vadd.f32 %v2991, %v3235
    %v3248 = vadd.f32 %v3064, %v3235
    %v3249 = vadd.f32 %v3069, %v3235
    %v3250 = vadd.f32 %v3142, %v3235
    %v3251 = vadd.f32 %v3147, %v3235
    %v3252 = vadd.f32 %v3220, %v3235
    %v3253 = vadd.f32 %v3225, %v3235
    %vm3254 = vcmask 64512
    %v3255 = vsel %vm3254, %v3238, -inf
    %3256 = vmax.xlane.f32.xlu0 %v3255
    %v3257 = vpop.xlane.xlu0 %3256
    %v3258 = vsel %vm3254, %v3239, -inf
    %3259 = vmax.xlane.f32.xlu0 %v3258
    %v3260 = vpop.xlane.xlu0 %3259
    %v3261 = vsel %vm3254, %v3240, -inf
    %3262 = vmax.xlane.f32.xlu0 %v3261
    %v3263 = vpop.xlane.xlu0 %3262
    %v3264 = vsel %vm3254, %v3241, -inf
    %3265 = vmax.xlane.f32.xlu0 %v3264
    %v3266 = vpop.xlane.xlu0 %3265
    %v3267 = vsel %vm3254, %v3242, -inf
    %3268 = vmax.xlane.f32.xlu0 %v3267
    %v3269 = vpop.xlane.xlu0 %3268
    %v3270 = vsel %vm3254, %v3243, -inf
    %3271 = vmax.xlane.f32.xlu0 %v3270
    %v3272 = vpop.xlane.xlu0 %3271
    %v3273 = vsel %vm3254, %v3244, -inf
    %3274 = vmax.xlane.f32.xlu0 %v3273
    %v3275 = vpop.xlane.xlu0 %3274
    %v3276 = vsel %vm3254, %v3245, -inf
    %3277 = vmax.xlane.f32.xlu0 %v3276
    %v3278 = vpop.xlane.xlu0 %3277
    %v3279 = vsel %vm3254, %v3246, -inf
    %3280 = vmax.xlane.f32.xlu0 %v3279
    %v3281 = vpop.xlane.xlu0 %3280
    %v3282 = vsel %vm3254, %v3247, -inf
    %3283 = vmax.xlane.f32.xlu0 %v3282
    %v3284 = vpop.xlane.xlu0 %3283
    %v3285 = vsel %vm3254, %v3248, -inf
    %3286 = vmax.xlane.f32.xlu0 %v3285
    %v3287 = vpop.xlane.xlu0 %3286
    %v3288 = vsel %vm3254, %v3249, -inf
    %3289 = vmax.xlane.f32.xlu0 %v3288
    %v3290 = vpop.xlane.xlu0 %3289
    %v3291 = vsel %vm3254, %v3250, -inf
    %3292 = vmax.xlane.f32.xlu0 %v3291
    %v3293 = vpop.xlane.xlu0 %3292
    %v3294 = vsel %vm3254, %v3251, -inf
    %3295 = vmax.xlane.f32.xlu0 %v3294
    %v3296 = vpop.xlane.xlu0 %3295
    %v3297 = vsel %vm3254, %v3252, -inf
    %3298 = vmax.xlane.f32.xlu0 %v3297
    %v3299 = vpop.xlane.xlu0 %3298
    %v3300 = vsel %vm3254, %v3253, -inf
    %3301 = vmax.xlane.f32.xlu0 %v3300
    %v3302 = vpop.xlane.xlu0 %3301
    %v3303 = vsub.f32 %v3238, %v3257
    %v3304 = vsub.f32 %v3239, %v3260
    %v3305 = vsub.f32 %v3240, %v3263
    %v3306 = vsub.f32 %v3241, %v3266
    %v3307 = vsub.f32 %v3242, %v3269
    %v3308 = vsub.f32 %v3243, %v3272
    %v3309 = vsub.f32 %v3244, %v3275
    %v3310 = vsub.f32 %v3245, %v3278
    %v3311 = vsub.f32 %v3246, %v3281
    %v3312 = vsub.f32 %v3247, %v3284
    %v3313 = vsub.f32 %v3248, %v3287
    %v3314 = vsub.f32 %v3249, %v3290
    %v3315 = vsub.f32 %v3250, %v3293
    %v3316 = vsub.f32 %v3251, %v3296
    %v3317 = vsub.f32 %v3252, %v3299
    %v3318 = vsub.f32 %v3253, %v3302
    %v3319 = vmul.f32 %v3303, 1.442695
    %v3320 = vpow.pop %v3319
    %v3321 = vmul.f32 %v3304, 1.442695
    %v3322 = vpow.pop %v3321
    %v3323 = vmul.f32 %v3305, 1.442695
    %v3324 = vpow.pop %v3323
    %v3325 = vmul.f32 %v3306, 1.442695
    %v3326 = vpow.pop %v3325
    %v3327 = vmul.f32 %v3307, 1.442695
    %v3328 = vpow.pop %v3327
    %v3329 = vmul.f32 %v3308, 1.442695
    %v3330 = vpow.pop %v3329
    %v3331 = vmul.f32 %v3309, 1.442695
    %v3332 = vpow.pop %v3331
    %v3333 = vmul.f32 %v3310, 1.442695
    %v3334 = vpow.pop %v3333
    %v3335 = vmul.f32 %v3311, 1.442695
    %v3336 = vpow.pop %v3335
    %v3337 = vmul.f32 %v3312, 1.442695
    %v3338 = vpow.pop %v3337
    %v3339 = vmul.f32 %v3313, 1.442695
    %v3340 = vpow.pop %v3339
    %v3341 = vmul.f32 %v3314, 1.442695
    %v3342 = vpow.pop %v3341
    %v3343 = vmul.f32 %v3315, 1.442695
    %v3344 = vpow.pop %v3343
    %v3345 = vmul.f32 %v3316, 1.442695
    %v3346 = vpow.pop %v3345
    %v3347 = vmul.f32 %v3317, 1.442695
    %v3348 = vpow.pop %v3347
    %v3349 = vmul.f32 %v3318, 1.442695
    %v3350 = vpow.pop %v3349
    %v3351 = vsel %vm3254, %v3320, 0.0
    %3352 = vadd.xlane.f32.xlu0 %v3351
    %v3353 = vpop.xlane.xlu0 %3352
    %v3354 = vsel %vm3254, %v3322, 0.0
    %3355 = vadd.xlane.f32.xlu0 %v3354
    %v3356 = vpop.xlane.xlu0 %3355
    %v3357 = vsel %vm3254, %v3324, 0.0
    %3358 = vadd.xlane.f32.xlu0 %v3357
    %v3359 = vpop.xlane.xlu0 %3358
    %v3360 = vsel %vm3254, %v3326, 0.0
    %3361 = vadd.xlane.f32.xlu0 %v3360
    %v3362 = vpop.xlane.xlu0 %3361
    %v3363 = vsel %vm3254, %v3328, 0.0
    %3364 = vadd.xlane.f32.xlu0 %v3363
    %v3365 = vpop.xlane.xlu0 %3364
    %v3366 = vsel %vm3254, %v3330, 0.0
    %3367 = vadd.xlane.f32.xlu0 %v3366
    %v3368 = vpop.xlane.xlu0 %3367
    %v3369 = vsel %vm3254, %v3332, 0.0
    %3370 = vadd.xlane.f32.xlu0 %v3369
    %v3371 = vpop.xlane.xlu0 %3370
    %v3372 = vsel %vm3254, %v3334, 0.0
    %3373 = vadd.xlane.f32.xlu0 %v3372
    %v3374 = vpop.xlane.xlu0 %3373
    %v3375 = vsel %vm3254, %v3336, 0.0
    %3376 = vadd.xlane.f32.xlu0 %v3375
    %v3377 = vpop.xlane.xlu0 %3376
    %v3378 = vsel %vm3254, %v3338, 0.0
    %3379 = vadd.xlane.f32.xlu0 %v3378
    %v3380 = vpop.xlane.xlu0 %3379
    %v3381 = vsel %vm3254, %v3340, 0.0
    %3382 = vadd.xlane.f32.xlu0 %v3381
    %v3383 = vpop.xlane.xlu0 %3382
    %v3384 = vsel %vm3254, %v3342, 0.0
    %3385 = vadd.xlane.f32.xlu0 %v3384
    %v3386 = vpop.xlane.xlu0 %3385
    %v3387 = vsel %vm3254, %v3344, 0.0
    %3388 = vadd.xlane.f32.xlu0 %v3387
    %v3389 = vpop.xlane.xlu0 %3388
    %v3390 = vsel %vm3254, %v3346, 0.0
    %3391 = vadd.xlane.f32.xlu0 %v3390
    %v3392 = vpop.xlane.xlu0 %3391
    %v3393 = vsel %vm3254, %v3348, 0.0
    %3394 = vadd.xlane.f32.xlu0 %v3393
    %v3395 = vpop.xlane.xlu0 %3394
    %v3396 = vsel %vm3254, %v3350, 0.0
    %3397 = vadd.xlane.f32.xlu0 %v3396
    %v3398 = vpop.xlane.xlu0 %3397
    %v3399 = vrcp.pop %v3353
    %v3400 = vrcp.pop %v3356
    %v3401 = vrcp.pop %v3359
    %v3402 = vrcp.pop %v3362
    %v3403 = vrcp.pop %v3365
    %v3404 = vrcp.pop %v3368
    %v3405 = vrcp.pop %v3371
    %v3406 = vrcp.pop %v3374
    %v3407 = vrcp.pop %v3377
    %v3408 = vrcp.pop %v3380
    %v3409 = vrcp.pop %v3383
    %v3410 = vrcp.pop %v3386
    %v3411 = vrcp.pop %v3389
    %v3412 = vrcp.pop %v3392
    %v3413 = vrcp.pop %v3395
    %v3414 = vrcp.pop %v3398
    %v3415 = vmul.f32 %v3320, %v3399
    %v3416 = vmul.f32 %v3322, %v3400
    %v3417 = vmul.f32 %v3324, %v3401
    %v3418 = vmul.f32 %v3326, %v3402
    %v3419 = vmul.f32 %v3328, %v3403
    %v3420 = vmul.f32 %v3330, %v3404
    %v3421 = vmul.f32 %v3332, %v3405
    %v3422 = vmul.f32 %v3334, %v3406
    %v3423 = vmul.f32 %v3336, %v3407
    %v3424 = vmul.f32 %v3338, %v3408
    %v3425 = vmul.f32 %v3340, %v3409
    %v3426 = vmul.f32 %v3342, %v3410
    %v3427 = vmul.f32 %v3344, %v3411
    %v3428 = vmul.f32 %v3346, %v3412
    %v3429 = vmul.f32 %v3348, %v3413
    %v3430 = vmul.f32 %v3350, %v3414
    %3432 = vrot.lane.b32.xlu0 %v2584, 96
    %v3433 = vpop.permute.xlu0 %3432
    %v3436 = vsel %vm3254, %v3415, 0
    %v3439 = vsel %vm3254, %v3416, 0
    %3441 = vmatprep.subr.mxu0 0.0
    %3442 = vmatpush1.msra.mxu0 0.0
    %3443 = vmatprep.subr.mxu0 0.0
    %3444 = vmatpush1.msra.mxu0 0.0
    %3445 = vmatprep.subr.mxu0 0.0
    %3446 = vmatpush1.msra.mxu0 0.0
    %3447 = vmatprep.subr.mxu0 0.0
    %3448 = vmatpush1.msra.mxu0 0.0
    %3449 = vmatprep.subr.mxu0 0.0
    %3450 = vmatpush1.msra.mxu0 0.0
    %3451 = vmatprep.subr.mxu0 0.0
    %3452 = vmatpush1.msra.mxu0 0.0
    %3453 = vmatprep.subr.mxu0 0.0
    %3454 = vmatpush1.msra.mxu0 0.0
    %3455 = vmatprep.subr.mxu0 0.0
    %3456 = vmatpush1.msra.mxu0 0.0
    %3457 = vmatprep.subr.mxu0 0.0
    %3458 = vmatpush1.msra.mxu0 0.0
    %3459 = vmatprep.subr.mxu0 0.0
    %3460 = vmatpush1.msra.mxu0 0.0
    %3461 = vmatprep.subr.mxu0 0.0
    %3462 = vmatpush1.msra.mxu0 0.0
    %3463 = vmatprep.subr.mxu0 0.0
    %3464 = vmatpush1.msra.mxu0 0.0
    %3465 = vmatprep.subr.mxu0 0.0
    %3466 = vmatpush1.msra.mxu0 0.0
    %3467 = vmatprep.subr.mxu0 0.0
    %3468 = vmatpush1.msra.mxu0 0.0
    %3469 = vmatprep.subr.mxu0 0.0
    %3470 = vmatpush1.msra.mxu0 0.0
    %3471 = vmatprep.subr.mxu0 0.0
    %3472 = vmatpush1.msra.mxu0 %v3433
    %3473 = vmatprep.subr.mxu0 0.0
    %3474 = vmatpush2.msra.mxu0 0.0
    %3475 = vmatprep.subr.mxu0 0.0
    %3476 = vmatpush2.msra.mxu0 0.0
    %3477 = vmatprep.subr.mxu0 0.0
    %3478 = vmatpush2.msra.mxu0 0.0
    %3479 = vmatprep.subr.mxu0 0.0
    %3480 = vmatpush2.msra.mxu0 0.0
    %3481 = vmatprep.subr.mxu0 0.0
    %3482 = vmatpush2.msra.mxu0 0.0
    %3483 = vmatprep.subr.mxu0 0.0
    %3484 = vmatpush2.msra.mxu0 0.0
    %3485 = vmatprep.subr.mxu0 0.0
    %3486 = vmatpush2.msra.mxu0 0.0
    %3487 = vmatprep.subr.mxu0 0.0
    %3488 = vmatpush2.msra.mxu0 0.0
    %3489 = vmatprep.subr.mxu0 0.0
    %3490 = vmatpush2.msra.mxu0 0.0
    %3491 = vmatprep.subr.mxu0 0.0
    %3492 = vmatpush2.msra.mxu0 0.0
    %3493 = vmatprep.subr.mxu0 0.0
    %3494 = vmatpush2.msra.mxu0 0.0
    %3495 = vmatprep.subr.mxu0 0.0
    %3496 = vmatpush2.msra.mxu0 0.0
    %3497 = vmatprep.subr.mxu0 0.0
    %3498 = vmatpush2.msra.mxu0 0.0
    %3499 = vmatprep.subr.mxu0 0.0
    %3500 = vmatpush2.msra.mxu0 0.0
    %3501 = vmatprep.subr.mxu0 0.0
    %3502 = vmatpush2.msra.mxu0 0.0
    %3503 = vmatprep.subr.mxu0 0.0
    %3504 = vmatpush2.msra.mxu0 0.0
    %3505 = vmatprep.mubr.f32.mxu0 0.0
    %3506 = vmatmul.mubr.f32.gmra.mxu0 %v3436
    %v3507 = vpop.f32.mrf.mxu0
    %v3508 = vadd.f32 0.0, %v3507
    %v3509 = vpop.f32.mrf.mxu0
    %3510 = vmatprep.mubr.f32.mxu0 0.0
    %3511 = vmatmul.mubr.f32.gmra.mxu0 %v3439
    %v3512 = vpop.f32.mrf.mxu0
    %v3513 = vadd.f32 0.0, %v3512
    %v3514 = vpop.f32.mrf.mxu0
    %3515 = vdwg.mxu0
    %3517 = vrot.lane.b32.xlu0 %v2585, 96
    %v3518 = vpop.permute.xlu0 %3517
    %v3521 = vsel %vm3254, %v3417, 0
    %v3524 = vsel %vm3254, %v3418, 0
    %3526 = vmatprep.subr.mxu0 0.0
    %3527 = vmatpush1.msra.mxu0 0.0
    %3528 = vmatprep.subr.mxu0 0.0
    %3529 = vmatpush1.msra.mxu0 0.0
    %3530 = vmatprep.subr.mxu0 0.0
    %3531 = vmatpush1.msra.mxu0 0.0
    %3532 = vmatprep.subr.mxu0 0.0
    %3533 = vmatpush1.msra.mxu0 0.0
    %3534 = vmatprep.subr.mxu0 0.0
    %3535 = vmatpush1.msra.mxu0 0.0
    %3536 = vmatprep.subr.mxu0 0.0
    %3537 = vmatpush1.msra.mxu0 0.0
    %3538 = vmatprep.subr.mxu0 0.0
    %3539 = vmatpush1.msra.mxu0 0.0
    %3540 = vmatprep.subr.mxu0 0.0
    %3541 = vmatpush1.msra.mxu0 0.0
    %3542 = vmatprep.subr.mxu0 0.0
    %3543 = vmatpush1.msra.mxu0 0.0
    %3544 = vmatprep.subr.mxu0 0.0
    %3545 = vmatpush1.msra.mxu0 0.0
    %3546 = vmatprep.subr.mxu0 0.0
    %3547 = vmatpush1.msra.mxu0 0.0
    %3548 = vmatprep.subr.mxu0 0.0
    %3549 = vmatpush1.msra.mxu0 0.0
    %3550 = vmatprep.subr.mxu0 0.0
    %3551 = vmatpush1.msra.mxu0 0.0
    %3552 = vmatprep.subr.mxu0 0.0
    %3553 = vmatpush1.msra.mxu0 0.0
    %3554 = vmatprep.subr.mxu0 0.0
    %3555 = vmatpush1.msra.mxu0 0.0
    %3556 = vmatprep.subr.mxu0 0.0
    %3557 = vmatpush1.msra.mxu0 %v3518
    %3558 = vmatprep.subr.mxu0 0.0
    %3559 = vmatpush2.msra.mxu0 0.0
    %3560 = vmatprep.subr.mxu0 0.0
    %3561 = vmatpush2.msra.mxu0 0.0
    %3562 = vmatprep.subr.mxu0 0.0
    %3563 = vmatpush2.msra.mxu0 0.0
    %3564 = vmatprep.subr.mxu0 0.0
    %3565 = vmatpush2.msra.mxu0 0.0
    %3566 = vmatprep.subr.mxu0 0.0
    %3567 = vmatpush2.msra.mxu0 0.0
    %3568 = vmatprep.subr.mxu0 0.0
    %3569 = vmatpush2.msra.mxu0 0.0
    %3570 = vmatprep.subr.mxu0 0.0
    %3571 = vmatpush2.msra.mxu0 0.0
    %3572 = vmatprep.subr.mxu0 0.0
    %3573 = vmatpush2.msra.mxu0 0.0
    %3574 = vmatprep.subr.mxu0 0.0
    %3575 = vmatpush2.msra.mxu0 0.0
    %3576 = vmatprep.subr.mxu0 0.0
    %3577 = vmatpush2.msra.mxu0 0.0
    %3578 = vmatprep.subr.mxu0 0.0
    %3579 = vmatpush2.msra.mxu0 0.0
    %3580 = vmatprep.subr.mxu0 0.0
    %3581 = vmatpush2.msra.mxu0 0.0
    %3582 = vmatprep.subr.mxu0 0.0
    %3583 = vmatpush2.msra.mxu0 0.0
    %3584 = vmatprep.subr.mxu0 0.0
    %3585 = vmatpush2.msra.mxu0 0.0
    %3586 = vmatprep.subr.mxu0 0.0
    %3587 = vmatpush2.msra.mxu0 0.0
    %3588 = vmatprep.subr.mxu0 0.0
    %3589 = vmatpush2.msra.mxu0 0.0
    %3590 = vmatprep.mubr.f32.mxu0 0.0
    %3591 = vmatmul.mubr.f32.gmra.mxu0 %v3521
    %v3592 = vpop.f32.mrf.mxu0
    %v3593 = vadd.f32 0.0, %v3592
    %v3594 = vpop.f32.mrf.mxu0
    %3595 = vmatprep.mubr.f32.mxu0 0.0
    %3596 = vmatmul.mubr.f32.gmra.mxu0 %v3524
    %v3597 = vpop.f32.mrf.mxu0
    %v3598 = vadd.f32 0.0, %v3597
    %v3599 = vpop.f32.mrf.mxu0
    %3600 = vdwg.mxu0
    %3602 = vrot.lane.b32.xlu0 %v2586, 96
    %v3603 = vpop.permute.xlu0 %3602
    %v3606 = vsel %vm3254, %v3419, 0
    %v3609 = vsel %vm3254, %v3420, 0
    %3611 = vmatprep.subr.mxu0 0.0
    %3612 = vmatpush1.msra.mxu0 0.0
    %3613 = vmatprep.subr.mxu0 0.0
    %3614 = vmatpush1.msra.mxu0 0.0
    %3615 = vmatprep.subr.mxu0 0.0
    %3616 = vmatpush1.msra.mxu0 0.0
    %3617 = vmatprep.subr.mxu0 0.0
    %3618 = vmatpush1.msra.mxu0 0.0
    %3619 = vmatprep.subr.mxu0 0.0
    %3620 = vmatpush1.msra.mxu0 0.0
    %3621 = vmatprep.subr.mxu0 0.0
    %3622 = vmatpush1.msra.mxu0 0.0
    %3623 = vmatprep.subr.mxu0 0.0
    %3624 = vmatpush1.msra.mxu0 0.0
    %3625 = vmatprep.subr.mxu0 0.0
    %3626 = vmatpush1.msra.mxu0 0.0
    %3627 = vmatprep.subr.mxu0 0.0
    %3628 = vmatpush1.msra.mxu0 0.0
    %3629 = vmatprep.subr.mxu0 0.0
    %3630 = vmatpush1.msra.mxu0 0.0
    %3631 = vmatprep.subr.mxu0 0.0
    %3632 = vmatpush1.msra.mxu0 0.0
    %3633 = vmatprep.subr.mxu0 0.0
    %3634 = vmatpush1.msra.mxu0 0.0
    %3635 = vmatprep.subr.mxu0 0.0
    %3636 = vmatpush1.msra.mxu0 0.0
    %3637 = vmatprep.subr.mxu0 0.0
    %3638 = vmatpush1.msra.mxu0 0.0
    %3639 = vmatprep.subr.mxu0 0.0
    %3640 = vmatpush1.msra.mxu0 0.0
    %3641 = vmatprep.subr.mxu0 0.0
    %3642 = vmatpush1.msra.mxu0 %v3603
    %3643 = vmatprep.subr.mxu0 0.0
    %3644 = vmatpush2.msra.mxu0 0.0
    %3645 = vmatprep.subr.mxu0 0.0
    %3646 = vmatpush2.msra.mxu0 0.0
    %3647 = vmatprep.subr.mxu0 0.0
    %3648 = vmatpush2.msra.mxu0 0.0
    %3649 = vmatprep.subr.mxu0 0.0
    %3650 = vmatpush2.msra.mxu0 0.0
    %3651 = vmatprep.subr.mxu0 0.0
    %3652 = vmatpush2.msra.mxu0 0.0
    %3653 = vmatprep.subr.mxu0 0.0
    %3654 = vmatpush2.msra.mxu0 0.0
    %3655 = vmatprep.subr.mxu0 0.0
    %3656 = vmatpush2.msra.mxu0 0.0
    %3657 = vmatprep.subr.mxu0 0.0
    %3658 = vmatpush2.msra.mxu0 0.0
    %3659 = vmatprep.subr.mxu0 0.0
    %3660 = vmatpush2.msra.mxu0 0.0
    %3661 = vmatprep.subr.mxu0 0.0
    %3662 = vmatpush2.msra.mxu0 0.0
    %3663 = vmatprep.subr.mxu0 0.0
    %3664 = vmatpush2.msra.mxu0 0.0
    %3665 = vmatprep.subr.mxu0 0.0
    %3666 = vmatpush2.msra.mxu0 0.0
    %3667 = vmatprep.subr.mxu0 0.0
    %3668 = vmatpush2.msra.mxu0 0.0
    %3669 = vmatprep.subr.mxu0 0.0
    %3670 = vmatpush2.msra.mxu0 0.0
    %3671 = vmatprep.subr.mxu0 0.0
    %3672 = vmatpush2.msra.mxu0 0.0
    %3673 = vmatprep.subr.mxu0 0.0
    %3674 = vmatpush2.msra.mxu0 0.0
    %3675 = vmatprep.mubr.f32.mxu0 0.0
    %3676 = vmatmul.mubr.f32.gmra.mxu0 %v3606
    %v3677 = vpop.f32.mrf.mxu0
    %v3678 = vadd.f32 0.0, %v3677
    %v3679 = vpop.f32.mrf.mxu0
    %3680 = vmatprep.mubr.f32.mxu0 0.0
    %3681 = vmatmul.mubr.f32.gmra.mxu0 %v3609
    %v3682 = vpop.f32.mrf.mxu0
    %v3683 = vadd.f32 0.0, %v3682
    %v3684 = vpop.f32.mrf.mxu0
    %3685 = vdwg.mxu0
    %3687 = vrot.lane.b32.xlu0 %v2587, 96
    %v3688 = vpop.permute.xlu0 %3687
    %v3691 = vsel %vm3254, %v3421, 0
    %v3694 = vsel %vm3254, %v3422, 0
    %3696 = vmatprep.subr.mxu0 0.0
    %3697 = vmatpush1.msra.mxu0 0.0
    %3698 = vmatprep.subr.mxu0 0.0
    %3699 = vmatpush1.msra.mxu0 0.0
    %3700 = vmatprep.subr.mxu0 0.0
    %3701 = vmatpush1.msra.mxu0 0.0
    %3702 = vmatprep.subr.mxu0 0.0
    %3703 = vmatpush1.msra.mxu0 0.0
    %3704 = vmatprep.subr.mxu0 0.0
    %3705 = vmatpush1.msra.mxu0 0.0
    %3706 = vmatprep.subr.mxu0 0.0
    %3707 = vmatpush1.msra.mxu0 0.0
    %3708 = vmatprep.subr.mxu0 0.0
    %3709 = vmatpush1.msra.mxu0 0.0
    %3710 = vmatprep.subr.mxu0 0.0
    %3711 = vmatpush1.msra.mxu0 0.0
    %3712 = vmatprep.subr.mxu0 0.0
    %3713 = vmatpush1.msra.mxu0 0.0
    %3714 = vmatprep.subr.mxu0 0.0
    %3715 = vmatpush1.msra.mxu0 0.0
    %3716 = vmatprep.subr.mxu0 0.0
    %3717 = vmatpush1.msra.mxu0 0.0
    %3718 = vmatprep.subr.mxu0 0.0
    %3719 = vmatpush1.msra.mxu0 0.0
    %3720 = vmatprep.subr.mxu0 0.0
    %3721 = vmatpush1.msra.mxu0 0.0
    %3722 = vmatprep.subr.mxu0 0.0
    %3723 = vmatpush1.msra.mxu0 0.0
    %3724 = vmatprep.subr.mxu0 0.0
    %3725 = vmatpush1.msra.mxu0 0.0
    %3726 = vmatprep.subr.mxu0 0.0
    %3727 = vmatpush1.msra.mxu0 %v3688
    %3728 = vmatprep.subr.mxu0 0.0
    %3729 = vmatpush2.msra.mxu0 0.0
    %3730 = vmatprep.subr.mxu0 0.0
    %3731 = vmatpush2.msra.mxu0 0.0
    %3732 = vmatprep.subr.mxu0 0.0
    %3733 = vmatpush2.msra.mxu0 0.0
    %3734 = vmatprep.subr.mxu0 0.0
    %3735 = vmatpush2.msra.mxu0 0.0
    %3736 = vmatprep.subr.mxu0 0.0
    %3737 = vmatpush2.msra.mxu0 0.0
    %3738 = vmatprep.subr.mxu0 0.0
    %3739 = vmatpush2.msra.mxu0 0.0
    %3740 = vmatprep.subr.mxu0 0.0
    %3741 = vmatpush2.msra.mxu0 0.0
    %3742 = vmatprep.subr.mxu0 0.0
    %3743 = vmatpush2.msra.mxu0 0.0
    %3744 = vmatprep.subr.mxu0 0.0
    %3745 = vmatpush2.msra.mxu0 0.0
    %3746 = vmatprep.subr.mxu0 0.0
    %3747 = vmatpush2.msra.mxu0 0.0
    %3748 = vmatprep.subr.mxu0 0.0
    %3749 = vmatpush2.msra.mxu0 0.0
    %3750 = vmatprep.subr.mxu0 0.0
    %3751 = vmatpush2.msra.mxu0 0.0
    %3752 = vmatprep.subr.mxu0 0.0
    %3753 = vmatpush2.msra.mxu0 0.0
    %3754 = vmatprep.subr.mxu0 0.0
    %3755 = vmatpush2.msra.mxu0 0.0
    %3756 = vmatprep.subr.mxu0 0.0
    %3757 = vmatpush2.msra.mxu0 0.0
    %3758 = vmatprep.subr.mxu0 0.0
    %3759 = vmatpush2.msra.mxu0 0.0
    %3760 = vmatprep.mubr.f32.mxu0 0.0
    %3761 = vmatmul.mubr.f32.gmra.mxu0 %v3691
    %v3762 = vpop.f32.mrf.mxu0
    %v3763 = vadd.f32 0.0, %v3762
    %v3764 = vpop.f32.mrf.mxu0
    %3765 = vmatprep.mubr.f32.mxu0 0.0
    %3766 = vmatmul.mubr.f32.gmra.mxu0 %v3694
    %v3767 = vpop.f32.mrf.mxu0
    %v3768 = vadd.f32 0.0, %v3767
    %v3769 = vpop.f32.mrf.mxu0
    %3770 = vdwg.mxu0
    %3772 = vrot.lane.b32.xlu0 %v2588, 96
    %v3773 = vpop.permute.xlu0 %3772
    %v3776 = vsel %vm3254, %v3423, 0
    %v3779 = vsel %vm3254, %v3424, 0
    %3781 = vmatprep.subr.mxu0 0.0
    %3782 = vmatpush1.msra.mxu0 0.0
    %3783 = vmatprep.subr.mxu0 0.0
    %3784 = vmatpush1.msra.mxu0 0.0
    %3785 = vmatprep.subr.mxu0 0.0
    %3786 = vmatpush1.msra.mxu0 0.0
    %3787 = vmatprep.subr.mxu0 0.0
    %3788 = vmatpush1.msra.mxu0 0.0
    %3789 = vmatprep.subr.mxu0 0.0
    %3790 = vmatpush1.msra.mxu0 0.0
    %3791 = vmatprep.subr.mxu0 0.0
    %3792 = vmatpush1.msra.mxu0 0.0
    %3793 = vmatprep.subr.mxu0 0.0
    %3794 = vmatpush1.msra.mxu0 0.0
    %3795 = vmatprep.subr.mxu0 0.0
    %3796 = vmatpush1.msra.mxu0 0.0
    %3797 = vmatprep.subr.mxu0 0.0
    %3798 = vmatpush1.msra.mxu0 0.0
    %3799 = vmatprep.subr.mxu0 0.0
    %3800 = vmatpush1.msra.mxu0 0.0
    %3801 = vmatprep.subr.mxu0 0.0
    %3802 = vmatpush1.msra.mxu0 0.0
    %3803 = vmatprep.subr.mxu0 0.0
    %3804 = vmatpush1.msra.mxu0 0.0
    %3805 = vmatprep.subr.mxu0 0.0
    %3806 = vmatpush1.msra.mxu0 0.0
    %3807 = vmatprep.subr.mxu0 0.0
    %3808 = vmatpush1.msra.mxu0 0.0
    %3809 = vmatprep.subr.mxu0 0.0
    %3810 = vmatpush1.msra.mxu0 0.0
    %3811 = vmatprep.subr.mxu0 0.0
    %3812 = vmatpush1.msra.mxu0 %v3773
    %3813 = vmatprep.subr.mxu0 0.0
    %3814 = vmatpush2.msra.mxu0 0.0
    %3815 = vmatprep.subr.mxu0 0.0
    %3816 = vmatpush2.msra.mxu0 0.0
    %3817 = vmatprep.subr.mxu0 0.0
    %3818 = vmatpush2.msra.mxu0 0.0
    %3819 = vmatprep.subr.mxu0 0.0
    %3820 = vmatpush2.msra.mxu0 0.0
    %3821 = vmatprep.subr.mxu0 0.0
    %3822 = vmatpush2.msra.mxu0 0.0
    %3823 = vmatprep.subr.mxu0 0.0
    %3824 = vmatpush2.msra.mxu0 0.0
    %3825 = vmatprep.subr.mxu0 0.0
    %3826 = vmatpush2.msra.mxu0 0.0
    %3827 = vmatprep.subr.mxu0 0.0
    %3828 = vmatpush2.msra.mxu0 0.0
    %3829 = vmatprep.subr.mxu0 0.0
    %3830 = vmatpush2.msra.mxu0 0.0
    %3831 = vmatprep.subr.mxu0 0.0
    %3832 = vmatpush2.msra.mxu0 0.0
    %3833 = vmatprep.subr.mxu0 0.0
    %3834 = vmatpush2.msra.mxu0 0.0
    %3835 = vmatprep.subr.mxu0 0.0
    %3836 = vmatpush2.msra.mxu0 0.0
    %3837 = vmatprep.subr.mxu0 0.0
    %3838 = vmatpush2.msra.mxu0 0.0
    %3839 = vmatprep.subr.mxu0 0.0
    %3840 = vmatpush2.msra.mxu0 0.0
    %3841 = vmatprep.subr.mxu0 0.0
    %3842 = vmatpush2.msra.mxu0 0.0
    %3843 = vmatprep.subr.mxu0 0.0
    %3844 = vmatpush2.msra.mxu0 0.0
    %3845 = vmatprep.mubr.f32.mxu0 0.0
    %3846 = vmatmul.mubr.f32.gmra.mxu0 %v3776
    %v3847 = vpop.f32.mrf.mxu0
    %v3848 = vadd.f32 0.0, %v3847
    %v3849 = vpop.f32.mrf.mxu0
    %3850 = vmatprep.mubr.f32.mxu0 0.0
    %3851 = vmatmul.mubr.f32.gmra.mxu0 %v3779
    %v3852 = vpop.f32.mrf.mxu0
    %v3853 = vadd.f32 0.0, %v3852
    %v3854 = vpop.f32.mrf.mxu0
    %3855 = vdwg.mxu0
    %3857 = vrot.lane.b32.xlu0 %v2589, 96
    %v3858 = vpop.permute.xlu0 %3857
    %v3861 = vsel %vm3254, %v3425, 0
    %v3864 = vsel %vm3254, %v3426, 0
    %3866 = vmatprep.subr.mxu0 0.0
    %3867 = vmatpush1.msra.mxu0 0.0
    %3868 = vmatprep.subr.mxu0 0.0
    %3869 = vmatpush1.msra.mxu0 0.0
    %3870 = vmatprep.subr.mxu0 0.0
    %3871 = vmatpush1.msra.mxu0 0.0
    %3872 = vmatprep.subr.mxu0 0.0
    %3873 = vmatpush1.msra.mxu0 0.0
    %3874 = vmatprep.subr.mxu0 0.0
    %3875 = vmatpush1.msra.mxu0 0.0
    %3876 = vmatprep.subr.mxu0 0.0
    %3877 = vmatpush1.msra.mxu0 0.0
    %3878 = vmatprep.subr.mxu0 0.0
    %3879 = vmatpush1.msra.mxu0 0.0
    %3880 = vmatprep.subr.mxu0 0.0
    %3881 = vmatpush1.msra.mxu0 0.0
    %3882 = vmatprep.subr.mxu0 0.0
    %3883 = vmatpush1.msra.mxu0 0.0
    %3884 = vmatprep.subr.mxu0 0.0
    %3885 = vmatpush1.msra.mxu0 0.0
    %3886 = vmatprep.subr.mxu0 0.0
    %3887 = vmatpush1.msra.mxu0 0.0
    %3888 = vmatprep.subr.mxu0 0.0
    %3889 = vmatpush1.msra.mxu0 0.0
    %3890 = vmatprep.subr.mxu0 0.0
    %3891 = vmatpush1.msra.mxu0 0.0
    %3892 = vmatprep.subr.mxu0 0.0
    %3893 = vmatpush1.msra.mxu0 0.0
    %3894 = vmatprep.subr.mxu0 0.0
    %3895 = vmatpush1.msra.mxu0 0.0
    %3896 = vmatprep.subr.mxu0 0.0
    %3897 = vmatpush1.msra.mxu0 %v3858
    %3898 = vmatprep.subr.mxu0 0.0
    %3899 = vmatpush2.msra.mxu0 0.0
    %3900 = vmatprep.subr.mxu0 0.0
    %3901 = vmatpush2.msra.mxu0 0.0
    %3902 = vmatprep.subr.mxu0 0.0
    %3903 = vmatpush2.msra.mxu0 0.0
    %3904 = vmatprep.subr.mxu0 0.0
    %3905 = vmatpush2.msra.mxu0 0.0
    %3906 = vmatprep.subr.mxu0 0.0
    %3907 = vmatpush2.msra.mxu0 0.0
    %3908 = vmatprep.subr.mxu0 0.0
    %3909 = vmatpush2.msra.mxu0 0.0
    %3910 = vmatprep.subr.mxu0 0.0
    %3911 = vmatpush2.msra.mxu0 0.0
    %3912 = vmatprep.subr.mxu0 0.0
    %3913 = vmatpush2.msra.mxu0 0.0
    %3914 = vmatprep.subr.mxu0 0.0
    %3915 = vmatpush2.msra.mxu0 0.0
    %3916 = vmatprep.subr.mxu0 0.0
    %3917 = vmatpush2.msra.mxu0 0.0
    %3918 = vmatprep.subr.mxu0 0.0
    %3919 = vmatpush2.msra.mxu0 0.0
    %3920 = vmatprep.subr.mxu0 0.0
    %3921 = vmatpush2.msra.mxu0 0.0
    %3922 = vmatprep.subr.mxu0 0.0
    %3923 = vmatpush2.msra.mxu0 0.0
    %3924 = vmatprep.subr.mxu0 0.0
    %3925 = vmatpush2.msra.mxu0 0.0
    %3926 = vmatprep.subr.mxu0 0.0
    %3927 = vmatpush2.msra.mxu0 0.0
    %3928 = vmatprep.subr.mxu0 0.0
    %3929 = vmatpush2.msra.mxu0 0.0
    %3930 = vmatprep.mubr.f32.mxu0 0.0
    %3931 = vmatmul.mubr.f32.gmra.mxu0 %v3861
    %v3932 = vpop.f32.mrf.mxu0
    %v3933 = vadd.f32 0.0, %v3932
    %v3934 = vpop.f32.mrf.mxu0
    %3935 = vmatprep.mubr.f32.mxu0 0.0
    %3936 = vmatmul.mubr.f32.gmra.mxu0 %v3864
    %v3937 = vpop.f32.mrf.mxu0
    %v3938 = vadd.f32 0.0, %v3937
    %v3939 = vpop.f32.mrf.mxu0
    %3940 = vdwg.mxu0
    %3942 = vrot.lane.b32.xlu0 %v2590, 96
    %v3943 = vpop.permute.xlu0 %3942
    %v3946 = vsel %vm3254, %v3427, 0
    %v3949 = vsel %vm3254, %v3428, 0
    %3951 = vmatprep.subr.mxu0 0.0
    %3952 = vmatpush1.msra.mxu0 0.0
    %3953 = vmatprep.subr.mxu0 0.0
    %3954 = vmatpush1.msra.mxu0 0.0
    %3955 = vmatprep.subr.mxu0 0.0
    %3956 = vmatpush1.msra.mxu0 0.0
    %3957 = vmatprep.subr.mxu0 0.0
    %3958 = vmatpush1.msra.mxu0 0.0
    %3959 = vmatprep.subr.mxu0 0.0
    %3960 = vmatpush1.msra.mxu0 0.0
    %3961 = vmatprep.subr.mxu0 0.0
    %3962 = vmatpush1.msra.mxu0 0.0
    %3963 = vmatprep.subr.mxu0 0.0
    %3964 = vmatpush1.msra.mxu0 0.0
    %3965 = vmatprep.subr.mxu0 0.0
    %3966 = vmatpush1.msra.mxu0 0.0
    %3967 = vmatprep.subr.mxu0 0.0
    %3968 = vmatpush1.msra.mxu0 0.0
    %3969 = vmatprep.subr.mxu0 0.0
    %3970 = vmatpush1.msra.mxu0 0.0
    %3971 = vmatprep.subr.mxu0 0.0
    %3972 = vmatpush1.msra.mxu0 0.0
    %3973 = vmatprep.subr.mxu0 0.0
    %3974 = vmatpush1.msra.mxu0 0.0
    %3975 = vmatprep.subr.mxu0 0.0
    %3976 = vmatpush1.msra.mxu0 0.0
    %3977 = vmatprep.subr.mxu0 0.0
    %3978 = vmatpush1.msra.mxu0 0.0
    %3979 = vmatprep.subr.mxu0 0.0
    %3980 = vmatpush1.msra.mxu0 0.0
    %3981 = vmatprep.subr.mxu0 0.0
    %3982 = vmatpush1.msra.mxu0 %v3943
    %3983 = vmatprep.subr.mxu0 0.0
    %3984 = vmatpush2.msra.mxu0 0.0
    %3985 = vmatprep.subr.mxu0 0.0
    %3986 = vmatpush2.msra.mxu0 0.0
    %3987 = vmatprep.subr.mxu0 0.0
    %3988 = vmatpush2.msra.mxu0 0.0
    %3989 = vmatprep.subr.mxu0 0.0
    %3990 = vmatpush2.msra.mxu0 0.0
    %3991 = vmatprep.subr.mxu0 0.0
    %3992 = vmatpush2.msra.mxu0 0.0
    %3993 = vmatprep.subr.mxu0 0.0
    %3994 = vmatpush2.msra.mxu0 0.0
    %3995 = vmatprep.subr.mxu0 0.0
    %3996 = vmatpush2.msra.mxu0 0.0
    %3997 = vmatprep.subr.mxu0 0.0
    %3998 = vmatpush2.msra.mxu0 0.0
    %3999 = vmatprep.subr.mxu0 0.0
    %4000 = vmatpush2.msra.mxu0 0.0
    %4001 = vmatprep.subr.mxu0 0.0
    %4002 = vmatpush2.msra.mxu0 0.0
    %4003 = vmatprep.subr.mxu0 0.0
    %4004 = vmatpush2.msra.mxu0 0.0
    %4005 = vmatprep.subr.mxu0 0.0
    %4006 = vmatpush2.msra.mxu0 0.0
    %4007 = vmatprep.subr.mxu0 0.0
    %4008 = vmatpush2.msra.mxu0 0.0
    %4009 = vmatprep.subr.mxu0 0.0
    %4010 = vmatpush2.msra.mxu0 0.0
    %4011 = vmatprep.subr.mxu0 0.0
    %4012 = vmatpush2.msra.mxu0 0.0
    %4013 = vmatprep.subr.mxu0 0.0
    %4014 = vmatpush2.msra.mxu0 0.0
    %4015 = vmatprep.mubr.f32.mxu0 0.0
    %4016 = vmatmul.mubr.f32.gmra.mxu0 %v3946
    %v4017 = vpop.f32.mrf.mxu0
    %v4018 = vadd.f32 0.0, %v4017
    %v4019 = vpop.f32.mrf.mxu0
    %4020 = vmatprep.mubr.f32.mxu0 0.0
    %4021 = vmatmul.mubr.f32.gmra.mxu0 %v3949
    %v4022 = vpop.f32.mrf.mxu0
    %v4023 = vadd.f32 0.0, %v4022
    %v4024 = vpop.f32.mrf.mxu0
    %4025 = vdwg.mxu0
    %4027 = vrot.lane.b32.xlu0 %v2591, 96
    %v4028 = vpop.permute.xlu0 %4027
    %v4031 = vsel %vm3254, %v3429, 0
    %v4034 = vsel %vm3254, %v3430, 0
    %4036 = vmatprep.subr.mxu0 0.0
    %4037 = vmatpush1.msra.mxu0 0.0
    %4038 = vmatprep.subr.mxu0 0.0
    %4039 = vmatpush1.msra.mxu0 0.0
    %4040 = vmatprep.subr.mxu0 0.0
    %4041 = vmatpush1.msra.mxu0 0.0
    %4042 = vmatprep.subr.mxu0 0.0
    %4043 = vmatpush1.msra.mxu0 0.0
    %4044 = vmatprep.subr.mxu0 0.0
    %4045 = vmatpush1.msra.mxu0 0.0
    %4046 = vmatprep.subr.mxu0 0.0
    %4047 = vmatpush1.msra.mxu0 0.0
    %4048 = vmatprep.subr.mxu0 0.0
    %4049 = vmatpush1.msra.mxu0 0.0
    %4050 = vmatprep.subr.mxu0 0.0
    %4051 = vmatpush1.msra.mxu0 0.0
    %4052 = vmatprep.subr.mxu0 0.0
    %4053 = vmatpush1.msra.mxu0 0.0
    %4054 = vmatprep.subr.mxu0 0.0
    %4055 = vmatpush1.msra.mxu0 0.0
    %4056 = vmatprep.subr.mxu0 0.0
    %4057 = vmatpush1.msra.mxu0 0.0
    %4058 = vmatprep.subr.mxu0 0.0
    %4059 = vmatpush1.msra.mxu0 0.0
    %4060 = vmatprep.subr.mxu0 0.0
    %4061 = vmatpush1.msra.mxu0 0.0
    %4062 = vmatprep.subr.mxu0 0.0
    %4063 = vmatpush1.msra.mxu0 0.0
    %4064 = vmatprep.subr.mxu0 0.0
    %4065 = vmatpush1.msra.mxu0 0.0
    %4066 = vmatprep.subr.mxu0 0.0
    %4067 = vmatpush1.msra.mxu0 %v4028
    %4068 = vmatprep.subr.mxu0 0.0
    %4069 = vmatpush2.msra.mxu0 0.0
    %4070 = vmatprep.subr.mxu0 0.0
    %4071 = vmatpush2.msra.mxu0 0.0
    %4072 = vmatprep.subr.mxu0 0.0
    %4073 = vmatpush2.msra.mxu0 0.0
    %4074 = vmatprep.subr.mxu0 0.0
    %4075 = vmatpush2.msra.mxu0 0.0
    %4076 = vmatprep.subr.mxu0 0.0
    %4077 = vmatpush2.msra.mxu0 0.0
    %4078 = vmatprep.subr.mxu0 0.0
    %4079 = vmatpush2.msra.mxu0 0.0
    %4080 = vmatprep.subr.mxu0 0.0
    %4081 = vmatpush2.msra.mxu0 0.0
    %4082 = vmatprep.subr.mxu0 0.0
    %4083 = vmatpush2.msra.mxu0 0.0
    %4084 = vmatprep.subr.mxu0 0.0
    %4085 = vmatpush2.msra.mxu0 0.0
    %4086 = vmatprep.subr.mxu0 0.0
    %4087 = vmatpush2.msra.mxu0 0.0
    %4088 = vmatprep.subr.mxu0 0.0
    %4089 = vmatpush2.msra.mxu0 0.0
    %4090 = vmatprep.subr.mxu0 0.0
    %4091 = vmatpush2.msra.mxu0 0.0
    %4092 = vmatprep.subr.mxu0 0.0
    %4093 = vmatpush2.msra.mxu0 0.0
    %4094 = vmatprep.subr.mxu0 0.0
    %4095 = vmatpush2.msra.mxu0 0.0
    %4096 = vmatprep.subr.mxu0 0.0
    %4097 = vmatpush2.msra.mxu0 0.0
    %4098 = vmatprep.subr.mxu0 0.0
    %4099 = vmatpush2.msra.mxu0 0.0
    %4100 = vmatprep.mubr.f32.mxu0 0.0
    %4101 = vmatmul.mubr.f32.gmra.mxu0 %v4031
    %v4102 = vpop.f32.mrf.mxu0
    %v4103 = vadd.f32 0.0, %v4102
    %v4104 = vpop.f32.mrf.mxu0
    %4105 = vmatprep.mubr.f32.mxu0 0.0
    %4106 = vmatmul.mubr.f32.gmra.mxu0 %v4034
    %v4107 = vpop.f32.mrf.mxu0
    %v4108 = vadd.f32 0.0, %v4107
    %v4109 = vpop.f32.mrf.mxu0
    %4110 = vdwg.mxu0
    %v4111 = vsel %vm336, %v3508, 0.0
    %v4112 = vsel %vm336, %v3593, 0.0
    %v4113 = vadd.f32 %v4111, %v4112
    %v4114 = vsel %vm336, %v3678, 0.0
    %v4115 = vadd.f32 %v4113, %v4114
    %v4116 = vsel %vm336, %v3763, 0.0
    %v4117 = vadd.f32 %v4115, %v4116
    %v4118 = vsel %vm336, %v3513, 0.0
    %v4119 = vsel %vm336, %v3598, 0.0
    %v4120 = vadd.f32 %v4118, %v4119
    %v4121 = vsel %vm336, %v3683, 0.0
    %v4122 = vadd.f32 %v4120, %v4121
    %v4123 = vsel %vm336, %v3768, 0.0
    %v4124 = vadd.f32 %v4122, %v4123
    %v4125 = vsel %vm336, %v3848, 0.0
    %v4126 = vsel %vm336, %v3933, 0.0
    %v4127 = vadd.f32 %v4125, %v4126
    %v4128 = vsel %vm336, %v4018, 0.0
    %v4129 = vadd.f32 %v4127, %v4128
    %v4130 = vsel %vm336, %v4103, 0.0
    %v4131 = vadd.f32 %v4129, %v4130
    %v4132 = vsel %vm336, %v3853, 0.0
    %v4133 = vsel %vm336, %v3938, 0.0
    %v4134 = vadd.f32 %v4132, %v4133
    %v4135 = vsel %vm336, %v4023, 0.0
    %v4136 = vadd.f32 %v4134, %v4135
    %v4137 = vsel %vm336, %v4108, 0.0
    %v4138 = vadd.f32 %v4136, %v4137
    %4143 = vrot.lane.b32.xlu0 %v450, 96
    %v4144 = vpop.permute.xlu0 %4143
    %4145 = vrot.lane.b32.xlu0 %v453, 96
    %v4146 = vpop.permute.xlu0 %4145
    %4147 = vrot.lane.b32.xlu0 %v456, 96
    %v4148 = vpop.permute.xlu0 %4147
    %4149 = vrot.lane.b32.xlu0 %v459, 96
    %v4150 = vpop.permute.xlu0 %4149
    %4156 = vrot.lane.b32.xlu0 %v2474, 96
    %v4157 = vpop.permute.xlu0 %4156
    %v4160 = vsel %vm336, %v4117, 0
    %v4163 = vsel %vm336, %v4124, 0
    %v4166 = vsel %vm336, %v4131, 0
    %v4169 = vsel %vm336, %v4138, 0
    %4171 = vmatprep.subr.mxu0 0.0
    %4172 = vmatpush1.msra.mxu0 0.0
    %4173 = vmatprep.subr.mxu0 0.0
    %4174 = vmatpush1.msra.mxu0 0.0
    %4175 = vmatprep.subr.mxu0 0.0
    %4176 = vmatpush1.msra.mxu0 0.0
    %4177 = vmatprep.subr.mxu0 0.0
    %4178 = vmatpush1.msra.mxu0 0.0
    %4179 = vmatprep.subr.mxu0 0.0
    %4180 = vmatpush1.msra.mxu0 0.0
    %4181 = vmatprep.subr.mxu0 0.0
    %4182 = vmatpush1.msra.mxu0 0.0
    %4183 = vmatprep.subr.mxu0 0.0
    %4184 = vmatpush1.msra.mxu0 0.0
    %4185 = vmatprep.subr.mxu0 0.0
    %4186 = vmatpush1.msra.mxu0 0.0
    %4187 = vmatprep.subr.mxu0 0.0
    %4188 = vmatpush1.msra.mxu0 0.0
    %4189 = vmatprep.subr.mxu0 0.0
    %4190 = vmatpush1.msra.mxu0 0.0
    %4191 = vmatprep.subr.mxu0 0.0
    %4192 = vmatpush1.msra.mxu0 0.0
    %4193 = vmatprep.subr.mxu0 0.0
    %4194 = vmatpush1.msra.mxu0 0.0
    %4195 = vmatprep.subr.mxu0 0.0
    %4196 = vmatpush1.msra.mxu0 %v4150
    %4197 = vmatprep.subr.mxu0 0.0
    %4198 = vmatpush1.msra.mxu0 %v4148
    %4199 = vmatprep.subr.mxu0 0.0
    %4200 = vmatpush1.msra.mxu0 %v4146
    %4201 = vmatprep.subr.mxu0 0.0
    %4202 = vmatpush1.msra.mxu0 %v4144
    %4203 = vmatprep.subr.mxu0 0.0
    %4204 = vmatpush2.msra.mxu0 0.0
    %4205 = vmatprep.subr.mxu0 0.0
    %4206 = vmatpush2.msra.mxu0 0.0
    %4207 = vmatprep.subr.mxu0 0.0
    %4208 = vmatpush2.msra.mxu0 0.0
    %4209 = vmatprep.subr.mxu0 0.0
    %4210 = vmatpush2.msra.mxu0 0.0
    %4211 = vmatprep.subr.mxu0 0.0
    %4212 = vmatpush2.msra.mxu0 0.0
    %4213 = vmatprep.subr.mxu0 0.0
    %4214 = vmatpush2.msra.mxu0 0.0
    %4215 = vmatprep.subr.mxu0 0.0
    %4216 = vmatpush2.msra.mxu0 0.0
    %4217 = vmatprep.subr.mxu0 0.0
    %4218 = vmatpush2.msra.mxu0 0.0
    %4219 = vmatprep.subr.mxu0 0.0
    %4220 = vmatpush2.msra.mxu0 0.0
    %4221 = vmatprep.subr.mxu0 0.0
    %4222 = vmatpush2.msra.mxu0 0.0
    %4223 = vmatprep.subr.mxu0 0.0
    %4224 = vmatpush2.msra.mxu0 0.0
    %4225 = vmatprep.subr.mxu0 0.0
    %4226 = vmatpush2.msra.mxu0 0.0
    %4227 = vmatprep.subr.mxu0 0.0
    %4228 = vmatpush2.msra.mxu0 0.0
    %4229 = vmatprep.subr.mxu0 0.0
    %4230 = vmatpush2.msra.mxu0 0.0
    %4231 = vmatprep.subr.mxu0 0.0
    %4232 = vmatpush2.msra.mxu0 0.0
    %4233 = vmatprep.subr.mxu0 0.0
    %4234 = vmatpush2.msra.mxu0 0.0
    %4235 = vmatprep.mubr.f32.mxu0 0.0
    %4236 = vmatmul.mubr.f32.gmra.mxu0 %v4160
    %v4237 = vpop.f32.mrf.mxu0
    %v4238 = vadd.f32 %v4157, %v4237
    %v4239 = vpop.f32.mrf.mxu0
    %4240 = vmatprep.mubr.f32.mxu0 0.0
    %4241 = vmatmul.mubr.f32.gmra.mxu0 %v4163
    %v4242 = vpop.f32.mrf.mxu0
    %v4243 = vadd.f32 %v4157, %v4242
    %v4244 = vpop.f32.mrf.mxu0
    %4245 = vmatprep.mubr.f32.mxu0 0.0
    %4246 = vmatmul.mubr.f32.gmra.mxu0 %v4166
    %v4247 = vpop.f32.mrf.mxu0
    %v4248 = vadd.f32 %v4157, %v4247
    %v4249 = vpop.f32.mrf.mxu0
    %4250 = vmatprep.mubr.f32.mxu0 0.0
    %4251 = vmatmul.mubr.f32.gmra.mxu0 %v4169
    %v4252 = vpop.f32.mrf.mxu0
    %v4253 = vadd.f32 %v4157, %v4252
    %v4254 = vpop.f32.mrf.mxu0
    %4255 = vdwg.mxu0
    %v4256 = vadd.f32 %v2415, %v4238
    %v4257 = vadd.f32 %v2416, %v4243
    %v4258 = vadd.f32 %v2417, %v4248
    %v4259 = vadd.f32 %v2418, %v4253
    %v4260 = vsel %vm336, %v4256, 0.0
    %4261 = vadd.xlane.f32.xlu0 %v4260
    %v4262 = vpop.xlane.xlu0 %4261
    %v4263 = vsel %vm336, %v4257, 0.0
    %4264 = vadd.xlane.f32.xlu0 %v4263
    %v4265 = vpop.xlane.xlu0 %4264
    %v4266 = vsel %vm336, %v4258, 0.0
    %4267 = vadd.xlane.f32.xlu0 %v4266
    %v4268 = vpop.xlane.xlu0 %4267
    %v4269 = vsel %vm336, %v4259, 0.0
    %4270 = vadd.xlane.f32.xlu0 %v4269
    %v4271 = vpop.xlane.xlu0 %4270
    %v4272 = vmul.f32 %v4262, %v343
    %v4273 = vmul.f32 %v4265, %v343
    %v4274 = vmul.f32 %v4268, %v343
    %v4275 = vmul.f32 %v4271, %v343
    %v4276 = vsub.f32 %v4256, %v4272
    %v4277 = vsub.f32 %v4257, %v4273
    %v4278 = vsub.f32 %v4258, %v4274
    %v4279 = vsub.f32 %v4259, %v4275
    %v4280 = vmul.f32 %v4276, %v4276
    %v4281 = vmul.f32 %v4277, %v4277
    %v4282 = vmul.f32 %v4278, %v4278
    %v4283 = vmul.f32 %v4279, %v4279
    %v4284 = vsel %vm336, %v4280, 0.0
    %4285 = vadd.xlane.f32.xlu0 %v4284
    %v4286 = vpop.xlane.xlu0 %4285
    %v4287 = vsel %vm336, %v4281, 0.0
    %4288 = vadd.xlane.f32.xlu0 %v4287
    %v4289 = vpop.xlane.xlu0 %4288
    %v4290 = vsel %vm336, %v4282, 0.0
    %4291 = vadd.xlane.f32.xlu0 %v4290
    %v4292 = vpop.xlane.xlu0 %4291
    %v4293 = vsel %vm336, %v4283, 0.0
    %4294 = vadd.xlane.f32.xlu0 %v4293
    %v4295 = vpop.xlane.xlu0 %4294
    %v4296 = vmul.f32 %v4286, %v343
    %v4297 = vmul.f32 %v4289, %v343
    %v4298 = vmul.f32 %v4292, %v343
    %v4299 = vmul.f32 %v4295, %v343
    %v4300 = vadd.f32 %v4296, 1e-05
    %v4301 = vadd.f32 %v4297, 1e-05
    %v4302 = vadd.f32 %v4298, 1e-05
    %v4303 = vadd.f32 %v4299, 1e-05
    %v4304 = vrsqrt.pop %v4300
    %v4305 = vrsqrt.pop %v4301
    %v4306 = vrsqrt.pop %v4302
    %v4307 = vrsqrt.pop %v4303
    %v4308 = vmul.f32 %v4276, %v4304
    %v4309 = vmul.f32 %v4277, %v4305
    %v4310 = vmul.f32 %v4278, %v4306
    %v4311 = vmul.f32 %v4279, %v4307
    %4312 = vrot.lane.b32.xlu0 %v450, 64
    %v4313 = vpop.permute.xlu0 %4312
    %4314 = vrot.lane.b32.xlu0 %v453, 64
    %v4315 = vpop.permute.xlu0 %4314
    %4316 = vrot.lane.b32.xlu0 %v456, 64
    %v4317 = vpop.permute.xlu0 %4316
    %4318 = vrot.lane.b32.xlu0 %v459, 64
    %v4319 = vpop.permute.xlu0 %4318
    %4324 = vrot.lane.b32.xlu0 %v2474, 64
    %v4325 = vpop.permute.xlu0 %4324
    %v4328 = vsel %vm336, %v4308, 0
    %v4331 = vsel %vm336, %v4309, 0
    %v4334 = vsel %vm336, %v4310, 0
    %v4337 = vsel %vm336, %v4311, 0
    %4339 = vmatprep.subr.mxu0 0.0
    %4340 = vmatpush1.msra.mxu0 0.0
    %4341 = vmatprep.subr.mxu0 0.0
    %4342 = vmatpush1.msra.mxu0 0.0
    %4343 = vmatprep.subr.mxu0 0.0
    %4344 = vmatpush1.msra.mxu0 0.0
    %4345 = vmatprep.subr.mxu0 0.0
    %4346 = vmatpush1.msra.mxu0 0.0
    %4347 = vmatprep.subr.mxu0 0.0
    %4348 = vmatpush1.msra.mxu0 0.0
    %4349 = vmatprep.subr.mxu0 0.0
    %4350 = vmatpush1.msra.mxu0 0.0
    %4351 = vmatprep.subr.mxu0 0.0
    %4352 = vmatpush1.msra.mxu0 0.0
    %4353 = vmatprep.subr.mxu0 0.0
    %4354 = vmatpush1.msra.mxu0 0.0
    %4355 = vmatprep.subr.mxu0 0.0
    %4356 = vmatpush1.msra.mxu0 0.0
    %4357 = vmatprep.subr.mxu0 0.0
    %4358 = vmatpush1.msra.mxu0 0.0
    %4359 = vmatprep.subr.mxu0 0.0
    %4360 = vmatpush1.msra.mxu0 0.0
    %4361 = vmatprep.subr.mxu0 0.0
    %4362 = vmatpush1.msra.mxu0 0.0
    %4363 = vmatprep.subr.mxu0 0.0
    %4364 = vmatpush1.msra.mxu0 %v4319
    %4365 = vmatprep.subr.mxu0 0.0
    %4366 = vmatpush1.msra.mxu0 %v4317
    %4367 = vmatprep.subr.mxu0 0.0
    %4368 = vmatpush1.msra.mxu0 %v4315
    %4369 = vmatprep.subr.mxu0 0.0
    %4370 = vmatpush1.msra.mxu0 %v4313
    %4371 = vmatprep.subr.mxu0 0.0
    %4372 = vmatpush2.msra.mxu0 0.0
    %4373 = vmatprep.subr.mxu0 0.0
    %4374 = vmatpush2.msra.mxu0 0.0
    %4375 = vmatprep.subr.mxu0 0.0
    %4376 = vmatpush2.msra.mxu0 0.0
    %4377 = vmatprep.subr.mxu0 0.0
    %4378 = vmatpush2.msra.mxu0 0.0
    %4379 = vmatprep.subr.mxu0 0.0
    %4380 = vmatpush2.msra.mxu0 0.0
    %4381 = vmatprep.subr.mxu0 0.0
    %4382 = vmatpush2.msra.mxu0 0.0
    %4383 = vmatprep.subr.mxu0 0.0
    %4384 = vmatpush2.msra.mxu0 0.0
    %4385 = vmatprep.subr.mxu0 0.0
    %4386 = vmatpush2.msra.mxu0 0.0
    %4387 = vmatprep.subr.mxu0 0.0
    %4388 = vmatpush2.msra.mxu0 0.0
    %4389 = vmatprep.subr.mxu0 0.0
    %4390 = vmatpush2.msra.mxu0 0.0
    %4391 = vmatprep.subr.mxu0 0.0
    %4392 = vmatpush2.msra.mxu0 0.0
    %4393 = vmatprep.subr.mxu0 0.0
    %4394 = vmatpush2.msra.mxu0 0.0
    %4395 = vmatprep.subr.mxu0 0.0
    %4396 = vmatpush2.msra.mxu0 0.0
    %4397 = vmatprep.subr.mxu0 0.0
    %4398 = vmatpush2.msra.mxu0 0.0
    %4399 = vmatprep.subr.mxu0 0.0
    %4400 = vmatpush2.msra.mxu0 0.0
    %4401 = vmatprep.subr.mxu0 0.0
    %4402 = vmatpush2.msra.mxu0 0.0
    %4403 = vmatprep.mubr.f32.mxu0 0.0
    %4404 = vmatmul.mubr.f32.gmra.mxu0 %v4328
    %v4405 = vpop.f32.mrf.mxu0
    %v4406 = vadd.f32 %v4325, %v4405
    %v4407 = vpop.f32.mrf.mxu0
    %4408 = vmatprep.mubr.f32.mxu0 0.0
    %4409 = vmatmul.mubr.f32.gmra.mxu0 %v4331
    %v4410 = vpop.f32.mrf.mxu0
    %v4411 = vadd.f32 %v4325, %v4410
    %v4412 = vpop.f32.mrf.mxu0
    %4413 = vmatprep.mubr.f32.mxu0 0.0
    %4414 = vmatmul.mubr.f32.gmra.mxu0 %v4334
    %v4415 = vpop.f32.mrf.mxu0
    %v4416 = vadd.f32 %v4325, %v4415
    %v4417 = vpop.f32.mrf.mxu0
    %4418 = vmatprep.mubr.f32.mxu0 0.0
    %4419 = vmatmul.mubr.f32.gmra.mxu0 %v4337
    %v4420 = vpop.f32.mrf.mxu0
    %v4421 = vadd.f32 %v4325, %v4420
    %v4422 = vpop.f32.mrf.mxu0
    %4423 = vdwg.mxu0
    %v4424 = vxor.u32 %v4406, 2147483648
    %v4425 = vxor.u32 %v4411, 2147483648
    %v4426 = vxor.u32 %v4416, 2147483648
    %v4427 = vxor.u32 %v4421, 2147483648
    %v4428 = vmul.f32 %v4424, 1.442695
    %v4429 = vpow.pop %v4428
    %v4430 = vmul.f32 %v4425, 1.442695
    %v4431 = vpow.pop %v4430
    %v4432 = vmul.f32 %v4426, 1.442695
    %v4433 = vpow.pop %v4432
    %v4434 = vmul.f32 %v4427, 1.442695
    %v4435 = vpow.pop %v4434
    %v4436 = vadd.f32 %v4429, 1.0
    %v4437 = vadd.f32 %v4431, 1.0
    %v4438 = vadd.f32 %v4433, 1.0
    %v4439 = vadd.f32 %v4435, 1.0
    %v4440 = vrcp.pop %v4436
    %v4441 = vmul.f32 1.0, %v4440
    %v4442 = vrcp.pop %v4437
    %v4443 = vmul.f32 1.0, %v4442
    %v4444 = vrcp.pop %v4438
    %v4445 = vmul.f32 1.0, %v4444
    %v4446 = vrcp.pop %v4439
    %v4447 = vmul.f32 1.0, %v4446
    %v4448 = vmul.f32 %v4406, %v4441
    %v4449 = vmul.f32 %v4411, %v4443
    %v4450 = vmul.f32 %v4416, %v4445
    %v4451 = vmul.f32 %v4421, %v4447
    %4456 = vrot.lane.b32.xlu0 %v4406, 96
    %v4457 = vpop.permute.xlu0 %4456
    %4458 = vrot.lane.b32.xlu0 %v4411, 96
    %v4459 = vpop.permute.xlu0 %4458
    %4460 = vrot.lane.b32.xlu0 %v4416, 96
    %v4461 = vpop.permute.xlu0 %4460
    %4462 = vrot.lane.b32.xlu0 %v4421, 96
    %v4463 = vpop.permute.xlu0 %4462
    %v4468 = vmul.f32 %v4448, %v4457
    %v4469 = vmul.f32 %v4449, %v4459
    %v4470 = vmul.f32 %v4450, %v4461
    %v4471 = vmul.f32 %v4451, %v4463
    %v4472 = vlaneseq
    %v4473 = vshrl.u32 %v4472, 7
    %v4474 = vsub.s32 0, %v4473
    %v4475 = vrot.slane %v463, %v4474
    %v4477 = vsel %vm336, %v4468, 0
    %v4480 = vsel %vm336, %v4469, 0
    %v4483 = vsel %vm336, %v4470, 0
    %v4486 = vsel %vm336, %v4471, 0
    %4488 = vmatprep.subr.mxu0 0.0
    %4489 = vmatpush1.msra.mxu0 0.0
    %4490 = vmatprep.subr.mxu0 0.0
    %4491 = vmatpush1.msra.mxu0 0.0
    %4492 = vmatprep.subr.mxu0 0.0
    %4493 = vmatpush1.msra.mxu0 0.0
    %4494 = vmatprep.subr.mxu0 0.0
    %4495 = vmatpush1.msra.mxu0 0.0
    %4496 = vmatprep.subr.mxu0 0.0
    %4497 = vmatpush1.msra.mxu0 0.0
    %4498 = vmatprep.subr.mxu0 0.0
    %4499 = vmatpush1.msra.mxu0 0.0
    %4500 = vmatprep.subr.mxu0 0.0
    %4501 = vmatpush1.msra.mxu0 0.0
    %4502 = vmatprep.subr.mxu0 0.0
    %4503 = vmatpush1.msra.mxu0 0.0
    %4504 = vmatprep.subr.mxu0 0.0
    %4505 = vmatpush1.msra.mxu0 0.0
    %4506 = vmatprep.subr.mxu0 0.0
    %4507 = vmatpush1.msra.mxu0 0.0
    %4508 = vmatprep.subr.mxu0 0.0
    %4509 = vmatpush1.msra.mxu0 0.0
    %4510 = vmatprep.subr.mxu0 0.0
    %4511 = vmatpush1.msra.mxu0 0.0
    %4512 = vmatprep.subr.mxu0 0.0
    %4513 = vmatpush1.msra.mxu0 %v460
    %4514 = vmatprep.subr.mxu0 0.0
    %4515 = vmatpush1.msra.mxu0 %v457
    %4516 = vmatprep.subr.mxu0 0.0
    %4517 = vmatpush1.msra.mxu0 %v454
    %4518 = vmatprep.subr.mxu0 0.0
    %4519 = vmatpush1.msra.mxu0 %v451
    %4520 = vmatprep.subr.mxu0 0.0
    %4521 = vmatpush2.msra.mxu0 0.0
    %4522 = vmatprep.subr.mxu0 0.0
    %4523 = vmatpush2.msra.mxu0 0.0
    %4524 = vmatprep.subr.mxu0 0.0
    %4525 = vmatpush2.msra.mxu0 0.0
    %4526 = vmatprep.subr.mxu0 0.0
    %4527 = vmatpush2.msra.mxu0 0.0
    %4528 = vmatprep.subr.mxu0 0.0
    %4529 = vmatpush2.msra.mxu0 0.0
    %4530 = vmatprep.subr.mxu0 0.0
    %4531 = vmatpush2.msra.mxu0 0.0
    %4532 = vmatprep.subr.mxu0 0.0
    %4533 = vmatpush2.msra.mxu0 0.0
    %4534 = vmatprep.subr.mxu0 0.0
    %4535 = vmatpush2.msra.mxu0 0.0
    %4536 = vmatprep.subr.mxu0 0.0
    %4537 = vmatpush2.msra.mxu0 0.0
    %4538 = vmatprep.subr.mxu0 0.0
    %4539 = vmatpush2.msra.mxu0 0.0
    %4540 = vmatprep.subr.mxu0 0.0
    %4541 = vmatpush2.msra.mxu0 0.0
    %4542 = vmatprep.subr.mxu0 0.0
    %4543 = vmatpush2.msra.mxu0 0.0
    %4544 = vmatprep.subr.mxu0 0.0
    %4545 = vmatpush2.msra.mxu0 0.0
    %4546 = vmatprep.subr.mxu0 0.0
    %4547 = vmatpush2.msra.mxu0 0.0
    %4548 = vmatprep.subr.mxu0 0.0
    %4549 = vmatpush2.msra.mxu0 0.0
    %4550 = vmatprep.subr.mxu0 0.0
    %4551 = vmatpush2.msra.mxu0 0.0
    %4552 = vmatprep.mubr.f32.mxu0 0.0
    %4553 = vmatmul.mubr.f32.gmra.mxu0 %v4477
    %v4554 = vpop.f32.mrf.mxu0
    %v4555 = vadd.f32 %v4475, %v4554
    %v4556 = vpop.f32.mrf.mxu0
    %4557 = vmatprep.mubr.f32.mxu0 0.0
    %4558 = vmatmul.mubr.f32.gmra.mxu0 %v4480
    %v4559 = vpop.f32.mrf.mxu0
    %v4560 = vadd.f32 %v4475, %v4559
    %v4561 = vpop.f32.mrf.mxu0
    %4562 = vmatprep.mubr.f32.mxu0 0.0
    %4563 = vmatmul.mubr.f32.gmra.mxu0 %v4483
    %v4564 = vpop.f32.mrf.mxu0
    %v4565 = vadd.f32 %v4475, %v4564
    %v4566 = vpop.f32.mrf.mxu0
    %4567 = vmatprep.mubr.f32.mxu0 0.0
    %4568 = vmatmul.mubr.f32.gmra.mxu0 %v4486
    %v4569 = vpop.f32.mrf.mxu0
    %v4570 = vadd.f32 %v4475, %v4569
    %v4571 = vpop.f32.mrf.mxu0
    %4572 = vdwg.mxu0
    %v4573 = vadd.f32 %v4256, %v4555
    %v4574 = vadd.f32 %v4257, %v4560
    %v4575 = vadd.f32 %v4258, %v4565
    %v4576 = vadd.f32 %v4259, %v4570
    %s4577 = scalar_lea.vmem %s7, 120
    %v4578 = vld [vmem:[%s4577] sm:$0xff]
    %v4579 = vld [vmem:[%s4577 + $0x8] sm:$0xff]
    %v4580 = vld [vmem:[%s4577 + $0x10] sm:$0xff]
    %v4581 = vld [vmem:[%s4577 + $0x18] sm:$0xff]
    %v4582 = vld [vmem:[%s4577 + $0x20] sm:$0xff]
    %v4583 = vld [vmem:[%s4577 + $0x28] sm:$0xff]
    %v4584 = vld [vmem:[%s4577 + $0x30] sm:$0xff]
    %v4585 = vld [vmem:[%s4577 + $0x38] sm:$0xff]
    %v4586 = vld [vmem:[%s4577 + $0x40] sm:$0xff]
    %v4587 = vld [vmem:[%s4577 + $0x48] sm:$0xff]
    %v4588 = vld [vmem:[%s4577 + $0x50] sm:$0xff]
    %v4589 = vld [vmem:[%s4577 + $0x58] sm:$0xff]
    %v4590 = vld [vmem:[%s4577 + $0x60] sm:$0x1]
    %v4591 = vld [vmem:[%s4577 + $0x68] sm:$0x1]
    %v4592 = vld [vmem:[%s4577 + $0x70] sm:$0x1]
    %v4593 = vsel %vm336, %v4573, 0.0
    %4594 = vadd.xlane.f32.xlu0 %v4593
    %v4595 = vpop.xlane.xlu0 %4594
    %v4596 = vsel %vm336, %v4574, 0.0
    %4597 = vadd.xlane.f32.xlu0 %v4596
    %v4598 = vpop.xlane.xlu0 %4597
    %v4599 = vsel %vm336, %v4575, 0.0
    %4600 = vadd.xlane.f32.xlu0 %v4599
    %v4601 = vpop.xlane.xlu0 %4600
    %v4602 = vsel %vm336, %v4576, 0.0
    %4603 = vadd.xlane.f32.xlu0 %v4602
    %v4604 = vpop.xlane.xlu0 %4603
    %v4605 = vmul.f32 %v4595, %v343
    %v4606 = vmul.f32 %v4598, %v343
    %v4607 = vmul.f32 %v4601, %v343
    %v4608 = vmul.f32 %v4604, %v343
    %v4609 = vsub.f32 %v4573, %v4605
    %v4610 = vsub.f32 %v4574, %v4606
    %v4611 = vsub.f32 %v4575, %v4607
    %v4612 = vsub.f32 %v4576, %v4608
    %v4613 = vmul.f32 %v4609, %v4609
    %v4614 = vmul.f32 %v4610, %v4610
    %v4615 = vmul.f32 %v4611, %v4611
    %v4616 = vmul.f32 %v4612, %v4612
    %v4617 = vsel %vm336, %v4613, 0.0
    %4618 = vadd.xlane.f32.xlu0 %v4617
    %v4619 = vpop.xlane.xlu0 %4618
    %v4620 = vsel %vm336, %v4614, 0.0
    %4621 = vadd.xlane.f32.xlu0 %v4620
    %v4622 = vpop.xlane.xlu0 %4621
    %v4623 = vsel %vm336, %v4615, 0.0
    %4624 = vadd.xlane.f32.xlu0 %v4623
    %v4625 = vpop.xlane.xlu0 %4624
    %v4626 = vsel %vm336, %v4616, 0.0
    %4627 = vadd.xlane.f32.xlu0 %v4626
    %v4628 = vpop.xlane.xlu0 %4627
    %v4629 = vmul.f32 %v4619, %v343
    %v4630 = vmul.f32 %v4622, %v343
    %v4631 = vmul.f32 %v4625, %v343
    %v4632 = vmul.f32 %v4628, %v343
    %v4633 = vadd.f32 %v4629, 1e-05
    %v4634 = vadd.f32 %v4630, 1e-05
    %v4635 = vadd.f32 %v4631, 1e-05
    %v4636 = vadd.f32 %v4632, 1e-05
    %v4637 = vrsqrt.pop %v4633
    %v4638 = vrsqrt.pop %v4634
    %v4639 = vrsqrt.pop %v4635
    %v4640 = vrsqrt.pop %v4636
    %v4641 = vmul.f32 %v4609, %v4637
    %v4642 = vmul.f32 %v4610, %v4638
    %v4643 = vmul.f32 %v4611, %v4639
    %v4644 = vmul.f32 %v4612, %v4640
    %v4645 = vlaneseq
    %v4646 = vshrl.u32 %v4645, 7
    %v4647 = vsub.s32 0, %v4646
    %v4648 = vrot.slane %v4590, %v4647
    %v4650 = vsel %vm336, %v4641, 0
    %v4653 = vsel %vm336, %v4642, 0
    %v4656 = vsel %vm336, %v4643, 0
    %v4659 = vsel %vm336, %v4644, 0
    %4661 = vmatprep.subr.mxu0 0.0
    %4662 = vmatpush1.msra.mxu0 0.0
    %4663 = vmatprep.subr.mxu0 0.0
    %4664 = vmatpush1.msra.mxu0 0.0
    %4665 = vmatprep.subr.mxu0 0.0
    %4666 = vmatpush1.msra.mxu0 0.0
    %4667 = vmatprep.subr.mxu0 0.0
    %4668 = vmatpush1.msra.mxu0 0.0
    %4669 = vmatprep.subr.mxu0 0.0
    %4670 = vmatpush1.msra.mxu0 0.0
    %4671 = vmatprep.subr.mxu0 0.0
    %4672 = vmatpush1.msra.mxu0 0.0
    %4673 = vmatprep.subr.mxu0 0.0
    %4674 = vmatpush1.msra.mxu0 0.0
    %4675 = vmatprep.subr.mxu0 0.0
    %4676 = vmatpush1.msra.mxu0 0.0
    %4677 = vmatprep.subr.mxu0 0.0
    %4678 = vmatpush1.msra.mxu0 0.0
    %4679 = vmatprep.subr.mxu0 0.0
    %4680 = vmatpush1.msra.mxu0 0.0
    %4681 = vmatprep.subr.mxu0 0.0
    %4682 = vmatpush1.msra.mxu0 0.0
    %4683 = vmatprep.subr.mxu0 0.0
    %4684 = vmatpush1.msra.mxu0 0.0
    %4685 = vmatprep.subr.mxu0 0.0
    %4686 = vmatpush1.msra.mxu0 %v4587
    %4687 = vmatprep.subr.mxu0 0.0
    %4688 = vmatpush1.msra.mxu0 %v4584
    %4689 = vmatprep.subr.mxu0 0.0
    %4690 = vmatpush1.msra.mxu0 %v4581
    %4691 = vmatprep.subr.mxu0 0.0
    %4692 = vmatpush1.msra.mxu0 %v4578
    %4693 = vmatprep.subr.mxu0 0.0
    %4694 = vmatpush2.msra.mxu0 0.0
    %4695 = vmatprep.subr.mxu0 0.0
    %4696 = vmatpush2.msra.mxu0 0.0
    %4697 = vmatprep.subr.mxu0 0.0
    %4698 = vmatpush2.msra.mxu0 0.0
    %4699 = vmatprep.subr.mxu0 0.0
    %4700 = vmatpush2.msra.mxu0 0.0
    %4701 = vmatprep.subr.mxu0 0.0
    %4702 = vmatpush2.msra.mxu0 0.0
    %4703 = vmatprep.subr.mxu0 0.0
    %4704 = vmatpush2.msra.mxu0 0.0
    %4705 = vmatprep.subr.mxu0 0.0
    %4706 = vmatpush2.msra.mxu0 0.0
    %4707 = vmatprep.subr.mxu0 0.0
    %4708 = vmatpush2.msra.mxu0 0.0
    %4709 = vmatprep.subr.mxu0 0.0
    %4710 = vmatpush2.msra.mxu0 0.0
    %4711 = vmatprep.subr.mxu0 0.0
    %4712 = vmatpush2.msra.mxu0 0.0
    %4713 = vmatprep.subr.mxu0 0.0
    %4714 = vmatpush2.msra.mxu0 0.0
    %4715 = vmatprep.subr.mxu0 0.0
    %4716 = vmatpush2.msra.mxu0 0.0
    %4717 = vmatprep.subr.mxu0 0.0
    %4718 = vmatpush2.msra.mxu0 0.0
    %4719 = vmatprep.subr.mxu0 0.0
    %4720 = vmatpush2.msra.mxu0 0.0
    %4721 = vmatprep.subr.mxu0 0.0
    %4722 = vmatpush2.msra.mxu0 0.0
    %4723 = vmatprep.subr.mxu0 0.0
    %4724 = vmatpush2.msra.mxu0 0.0
    %4725 = vmatprep.mubr.f32.mxu0 0.0
    %4726 = vmatmul.mubr.f32.gmra.mxu0 %v4650
    %v4727 = vpop.f32.mrf.mxu0
    %v4728 = vadd.f32 %v4648, %v4727
    %v4729 = vpop.f32.mrf.mxu0
    %4730 = vmatprep.mubr.f32.mxu0 0.0
    %4731 = vmatmul.mubr.f32.gmra.mxu0 %v4653
    %v4732 = vpop.f32.mrf.mxu0
    %v4733 = vadd.f32 %v4648, %v4732
    %v4734 = vpop.f32.mrf.mxu0
    %4735 = vmatprep.mubr.f32.mxu0 0.0
    %4736 = vmatmul.mubr.f32.gmra.mxu0 %v4656
    %v4737 = vpop.f32.mrf.mxu0
    %v4738 = vadd.f32 %v4648, %v4737
    %v4739 = vpop.f32.mrf.mxu0
    %4740 = vmatprep.mubr.f32.mxu0 0.0
    %4741 = vmatmul.mubr.f32.gmra.mxu0 %v4659
    %v4742 = vpop.f32.mrf.mxu0
    %v4743 = vadd.f32 %v4648, %v4742
    %v4744 = vpop.f32.mrf.mxu0
    %4745 = vdwg.mxu0
    %v4746 = vmul.f32 %v4728, %v634
    %v4747 = vmul.f32 %v4733, %v634
    %v4748 = vmul.f32 %v4728, %v636
    %v4749 = vmul.f32 %v4733, %v636
    %v4750 = vmul.f32 %v4728, %v638
    %v4751 = vmul.f32 %v4733, %v638
    %v4752 = vmul.f32 %v4728, %v640
    %v4753 = vmul.f32 %v4733, %v640
    %v4754 = vmul.f32 %v4738, %v634
    %v4755 = vmul.f32 %v4743, %v634
    %v4756 = vmul.f32 %v4738, %v636
    %v4757 = vmul.f32 %v4743, %v636
    %v4758 = vmul.f32 %v4738, %v638
    %v4759 = vmul.f32 %v4743, %v638
    %v4760 = vmul.f32 %v4738, %v640
    %v4761 = vmul.f32 %v4743, %v640
    %v4762 = vmul.f32 %v4728, %v662
    %v4763 = vmul.f32 %v4733, %v662
    %v4764 = vmul.f32 %v4728, %v664
    %v4765 = vmul.f32 %v4733, %v664
    %v4766 = vmul.f32 %v4728, %v666
    %v4767 = vmul.f32 %v4733, %v666
    %v4768 = vmul.f32 %v4728, %v668
    %v4769 = vmul.f32 %v4733, %v668
    %v4770 = vmul.f32 %v4738, %v662
    %v4771 = vmul.f32 %v4743, %v662
    %v4772 = vmul.f32 %v4738, %v664
    %v4773 = vmul.f32 %v4743, %v664
    %v4774 = vmul.f32 %v4738, %v666
    %v4775 = vmul.f32 %v4743, %v666
    %v4776 = vmul.f32 %v4738, %v668
    %v4777 = vmul.f32 %v4743, %v668
    %4780 = vrot.lane.b32.xlu0 %v4746, 96
    %v4781 = vpop.permute.xlu0 %4780
    %4782 = vrot.lane.b32.xlu0 %v4747, 96
    %v4783 = vpop.permute.xlu0 %4782
    %v4785 = vsel %vm336, %v4728, 0
    %v4788 = vsel %vm336, %v4733, 0
    %v4790 = vsel %vm336, %v4781, 0
    %v4792 = vsel %vm336, %v4783, 0
    %4794 = vmatprep.subr.mxu0 0.0
    %4795 = vmatpush1.xpose.msra.mxu0 0.0
    %4796 = vmatprep.subr.mxu0 0.0
    %4797 = vmatpush1.xpose.msra.mxu0 0.0
    %4798 = vmatprep.subr.mxu0 0.0
    %4799 = vmatpush1.xpose.msra.mxu0 0.0
    %4800 = vmatprep.subr.mxu0 0.0
    %4801 = vmatpush1.xpose.msra.mxu0 0.0
    %4802 = vmatprep.subr.mxu0 0.0
    %4803 = vmatpush1.xpose.msra.mxu0 0.0
    %4804 = vmatprep.subr.mxu0 0.0
    %4805 = vmatpush1.xpose.msra.mxu0 0.0
    %4806 = vmatprep.subr.mxu0 0.0
    %4807 = vmatpush1.xpose.msra.mxu0 0.0
    %4808 = vmatprep.subr.mxu0 0.0
    %4809 = vmatpush1.xpose.msra.mxu0 0.0
    %4810 = vmatprep.subr.mxu0 0.0
    %4811 = vmatpush1.xpose.msra.mxu0 0.0
    %4812 = vmatprep.subr.mxu0 0.0
    %4813 = vmatpush1.xpose.msra.mxu0 0.0
    %4814 = vmatprep.subr.mxu0 0.0
    %4815 = vmatpush1.xpose.msra.mxu0 0.0
    %4816 = vmatprep.subr.mxu0 0.0
    %4817 = vmatpush1.xpose.msra.mxu0 0.0
    %4818 = vmatprep.subr.mxu0 0.0
    %4819 = vmatpush1.xpose.msra.mxu0 0.0
    %4820 = vmatprep.subr.mxu0 0.0
    %4821 = vmatpush1.xpose.msra.mxu0 0.0
    %4822 = vmatprep.subr.mxu0 0.0
    %4823 = vmatpush1.xpose.msra.mxu0 %v4792
    %4824 = vmatprep.subr.mxu0 0.0
    %4825 = vmatpush1.xpose.msra.mxu0 %v4790
    %4826 = vmatprep.subr.mxu0 0.0
    %4827 = vmatpush2.xpose.msra.mxu0 0.0
    %4828 = vmatprep.subr.mxu0 0.0
    %4829 = vmatpush2.xpose.msra.mxu0 0.0
    %4830 = vmatprep.subr.mxu0 0.0
    %4831 = vmatpush2.xpose.msra.mxu0 0.0
    %4832 = vmatprep.subr.mxu0 0.0
    %4833 = vmatpush2.xpose.msra.mxu0 0.0
    %4834 = vmatprep.subr.mxu0 0.0
    %4835 = vmatpush2.xpose.msra.mxu0 0.0
    %4836 = vmatprep.subr.mxu0 0.0
    %4837 = vmatpush2.xpose.msra.mxu0 0.0
    %4838 = vmatprep.subr.mxu0 0.0
    %4839 = vmatpush2.xpose.msra.mxu0 0.0
    %4840 = vmatprep.subr.mxu0 0.0
    %4841 = vmatpush2.xpose.msra.mxu0 0.0
    %4842 = vmatprep.subr.mxu0 0.0
    %4843 = vmatpush2.xpose.msra.mxu0 0.0
    %4844 = vmatprep.subr.mxu0 0.0
    %4845 = vmatpush2.xpose.msra.mxu0 0.0
    %4846 = vmatprep.subr.mxu0 0.0
    %4847 = vmatpush2.xpose.msra.mxu0 0.0
    %4848 = vmatprep.subr.mxu0 0.0
    %4849 = vmatpush2.xpose.msra.mxu0 0.0
    %4850 = vmatprep.subr.mxu0 0.0
    %4851 = vmatpush2.xpose.msra.mxu0 0.0
    %4852 = vmatprep.subr.mxu0 0.0
    %4853 = vmatpush2.xpose.msra.mxu0 0.0
    %4854 = vmatprep.subr.mxu0 0.0
    %4855 = vmatpush2.xpose.msra.mxu0 0.0
    %4856 = vmatprep.subr.mxu0 0.0
    %4857 = vmatpush2.xpose.msra.mxu0 0.0
    %4858 = vmatprep.mubr.f32.mxu0 0.0
    %4859 = vmatmul.mubr.f32.gmra.mxu0 %v4785
    %v4860 = vpop.f32.mrf.mxu0
    %v4861 = vadd.f32 0.0, %v4860
    %v4862 = vpop.f32.mrf.mxu0
    %4863 = vmatprep.mubr.f32.mxu0 0.0
    %4864 = vmatmul.mubr.f32.gmra.mxu0 %v4788
    %v4865 = vpop.f32.mrf.mxu0
    %v4866 = vadd.f32 0.0, %v4865
    %v4867 = vpop.f32.mrf.mxu0
    %4868 = vdwg.mxu0
    %4871 = vrot.lane.b32.xlu0 %v4748, 96
    %v4872 = vpop.permute.xlu0 %4871
    %4873 = vrot.lane.b32.xlu0 %v4749, 96
    %v4874 = vpop.permute.xlu0 %4873
    %v4875 = vsel %vm336, %v4872, 0
    %v4877 = vsel %vm336, %v4874, 0
    %4879 = vmatprep.subr.mxu0 0.0
    %4880 = vmatpush1.xpose.msra.mxu0 0.0
    %4881 = vmatprep.subr.mxu0 0.0
    %4882 = vmatpush1.xpose.msra.mxu0 0.0
    %4883 = vmatprep.subr.mxu0 0.0
    %4884 = vmatpush1.xpose.msra.mxu0 0.0
    %4885 = vmatprep.subr.mxu0 0.0
    %4886 = vmatpush1.xpose.msra.mxu0 0.0
    %4887 = vmatprep.subr.mxu0 0.0
    %4888 = vmatpush1.xpose.msra.mxu0 0.0
    %4889 = vmatprep.subr.mxu0 0.0
    %4890 = vmatpush1.xpose.msra.mxu0 0.0
    %4891 = vmatprep.subr.mxu0 0.0
    %4892 = vmatpush1.xpose.msra.mxu0 0.0
    %4893 = vmatprep.subr.mxu0 0.0
    %4894 = vmatpush1.xpose.msra.mxu0 0.0
    %4895 = vmatprep.subr.mxu0 0.0
    %4896 = vmatpush1.xpose.msra.mxu0 0.0
    %4897 = vmatprep.subr.mxu0 0.0
    %4898 = vmatpush1.xpose.msra.mxu0 0.0
    %4899 = vmatprep.subr.mxu0 0.0
    %4900 = vmatpush1.xpose.msra.mxu0 0.0
    %4901 = vmatprep.subr.mxu0 0.0
    %4902 = vmatpush1.xpose.msra.mxu0 0.0
    %4903 = vmatprep.subr.mxu0 0.0
    %4904 = vmatpush1.xpose.msra.mxu0 0.0
    %4905 = vmatprep.subr.mxu0 0.0
    %4906 = vmatpush1.xpose.msra.mxu0 0.0
    %4907 = vmatprep.subr.mxu0 0.0
    %4908 = vmatpush1.xpose.msra.mxu0 %v4877
    %4909 = vmatprep.subr.mxu0 0.0
    %4910 = vmatpush1.xpose.msra.mxu0 %v4875
    %4911 = vmatprep.subr.mxu0 0.0
    %4912 = vmatpush2.xpose.msra.mxu0 0.0
    %4913 = vmatprep.subr.mxu0 0.0
    %4914 = vmatpush2.xpose.msra.mxu0 0.0
    %4915 = vmatprep.subr.mxu0 0.0
    %4916 = vmatpush2.xpose.msra.mxu0 0.0
    %4917 = vmatprep.subr.mxu0 0.0
    %4918 = vmatpush2.xpose.msra.mxu0 0.0
    %4919 = vmatprep.subr.mxu0 0.0
    %4920 = vmatpush2.xpose.msra.mxu0 0.0
    %4921 = vmatprep.subr.mxu0 0.0
    %4922 = vmatpush2.xpose.msra.mxu0 0.0
    %4923 = vmatprep.subr.mxu0 0.0
    %4924 = vmatpush2.xpose.msra.mxu0 0.0
    %4925 = vmatprep.subr.mxu0 0.0
    %4926 = vmatpush2.xpose.msra.mxu0 0.0
    %4927 = vmatprep.subr.mxu0 0.0
    %4928 = vmatpush2.xpose.msra.mxu0 0.0
    %4929 = vmatprep.subr.mxu0 0.0
    %4930 = vmatpush2.xpose.msra.mxu0 0.0
    %4931 = vmatprep.subr.mxu0 0.0
    %4932 = vmatpush2.xpose.msra.mxu0 0.0
    %4933 = vmatprep.subr.mxu0 0.0
    %4934 = vmatpush2.xpose.msra.mxu0 0.0
    %4935 = vmatprep.subr.mxu0 0.0
    %4936 = vmatpush2.xpose.msra.mxu0 0.0
    %4937 = vmatprep.subr.mxu0 0.0
    %4938 = vmatpush2.xpose.msra.mxu0 0.0
    %4939 = vmatprep.subr.mxu0 0.0
    %4940 = vmatpush2.xpose.msra.mxu0 0.0
    %4941 = vmatprep.subr.mxu0 0.0
    %4942 = vmatpush2.xpose.msra.mxu0 0.0
    %4943 = vmatprep.mubr.f32.mxu0 0.0
    %4944 = vmatmul.mubr.f32.gmra.mxu0 %v4785
    %v4945 = vpop.f32.mrf.mxu0
    %v4946 = vadd.f32 0.0, %v4945
    %v4947 = vpop.f32.mrf.mxu0
    %4948 = vmatprep.mubr.f32.mxu0 0.0
    %4949 = vmatmul.mubr.f32.gmra.mxu0 %v4788
    %v4950 = vpop.f32.mrf.mxu0
    %v4951 = vadd.f32 0.0, %v4950
    %v4952 = vpop.f32.mrf.mxu0
    %4953 = vdwg.mxu0
    %4956 = vrot.lane.b32.xlu0 %v4750, 96
    %v4957 = vpop.permute.xlu0 %4956
    %4958 = vrot.lane.b32.xlu0 %v4751, 96
    %v4959 = vpop.permute.xlu0 %4958
    %v4960 = vsel %vm336, %v4957, 0
    %v4962 = vsel %vm336, %v4959, 0
    %4964 = vmatprep.subr.mxu0 0.0
    %4965 = vmatpush1.xpose.msra.mxu0 0.0
    %4966 = vmatprep.subr.mxu0 0.0
    %4967 = vmatpush1.xpose.msra.mxu0 0.0
    %4968 = vmatprep.subr.mxu0 0.0
    %4969 = vmatpush1.xpose.msra.mxu0 0.0
    %4970 = vmatprep.subr.mxu0 0.0
    %4971 = vmatpush1.xpose.msra.mxu0 0.0
    %4972 = vmatprep.subr.mxu0 0.0
    %4973 = vmatpush1.xpose.msra.mxu0 0.0
    %4974 = vmatprep.subr.mxu0 0.0
    %4975 = vmatpush1.xpose.msra.mxu0 0.0
    %4976 = vmatprep.subr.mxu0 0.0
    %4977 = vmatpush1.xpose.msra.mxu0 0.0
    %4978 = vmatprep.subr.mxu0 0.0
    %4979 = vmatpush1.xpose.msra.mxu0 0.0
    %4980 = vmatprep.subr.mxu0 0.0
    %4981 = vmatpush1.xpose.msra.mxu0 0.0
    %4982 = vmatprep.subr.mxu0 0.0
    %4983 = vmatpush1.xpose.msra.mxu0 0.0
    %4984 = vmatprep.subr.mxu0 0.0
    %4985 = vmatpush1.xpose.msra.mxu0 0.0
    %4986 = vmatprep.subr.mxu0 0.0
    %4987 = vmatpush1.xpose.msra.mxu0 0.0
    %4988 = vmatprep.subr.mxu0 0.0
    %4989 = vmatpush1.xpose.msra.mxu0 0.0
    %4990 = vmatprep.subr.mxu0 0.0
    %4991 = vmatpush1.xpose.msra.mxu0 0.0
    %4992 = vmatprep.subr.mxu0 0.0
    %4993 = vmatpush1.xpose.msra.mxu0 %v4962
    %4994 = vmatprep.subr.mxu0 0.0
    %4995 = vmatpush1.xpose.msra.mxu0 %v4960
    %4996 = vmatprep.subr.mxu0 0.0
    %4997 = vmatpush2.xpose.msra.mxu0 0.0
    %4998 = vmatprep.subr.mxu0 0.0
    %4999 = vmatpush2.xpose.msra.mxu0 0.0
    %5000 = vmatprep.subr.mxu0 0.0
    %5001 = vmatpush2.xpose.msra.mxu0 0.0
    %5002 = vmatprep.subr.mxu0 0.0
    %5003 = vmatpush2.xpose.msra.mxu0 0.0
    %5004 = vmatprep.subr.mxu0 0.0
    %5005 = vmatpush2.xpose.msra.mxu0 0.0
    %5006 = vmatprep.subr.mxu0 0.0
    %5007 = vmatpush2.xpose.msra.mxu0 0.0
    %5008 = vmatprep.subr.mxu0 0.0
    %5009 = vmatpush2.xpose.msra.mxu0 0.0
    %5010 = vmatprep.subr.mxu0 0.0
    %5011 = vmatpush2.xpose.msra.mxu0 0.0
    %5012 = vmatprep.subr.mxu0 0.0
    %5013 = vmatpush2.xpose.msra.mxu0 0.0
    %5014 = vmatprep.subr.mxu0 0.0
    %5015 = vmatpush2.xpose.msra.mxu0 0.0
    %5016 = vmatprep.subr.mxu0 0.0
    %5017 = vmatpush2.xpose.msra.mxu0 0.0
    %5018 = vmatprep.subr.mxu0 0.0
    %5019 = vmatpush2.xpose.msra.mxu0 0.0
    %5020 = vmatprep.subr.mxu0 0.0
    %5021 = vmatpush2.xpose.msra.mxu0 0.0
    %5022 = vmatprep.subr.mxu0 0.0
    %5023 = vmatpush2.xpose.msra.mxu0 0.0
    %5024 = vmatprep.subr.mxu0 0.0
    %5025 = vmatpush2.xpose.msra.mxu0 0.0
    %5026 = vmatprep.subr.mxu0 0.0
    %5027 = vmatpush2.xpose.msra.mxu0 0.0
    %5028 = vmatprep.mubr.f32.mxu0 0.0
    %5029 = vmatmul.mubr.f32.gmra.mxu0 %v4785
    %v5030 = vpop.f32.mrf.mxu0
    %v5031 = vadd.f32 0.0, %v5030
    %v5032 = vpop.f32.mrf.mxu0
    %5033 = vmatprep.mubr.f32.mxu0 0.0
    %5034 = vmatmul.mubr.f32.gmra.mxu0 %v4788
    %v5035 = vpop.f32.mrf.mxu0
    %v5036 = vadd.f32 0.0, %v5035
    %v5037 = vpop.f32.mrf.mxu0
    %5038 = vdwg.mxu0
    %5041 = vrot.lane.b32.xlu0 %v4752, 96
    %v5042 = vpop.permute.xlu0 %5041
    %5043 = vrot.lane.b32.xlu0 %v4753, 96
    %v5044 = vpop.permute.xlu0 %5043
    %v5045 = vsel %vm336, %v5042, 0
    %v5047 = vsel %vm336, %v5044, 0
    %5049 = vmatprep.subr.mxu0 0.0
    %5050 = vmatpush1.xpose.msra.mxu0 0.0
    %5051 = vmatprep.subr.mxu0 0.0
    %5052 = vmatpush1.xpose.msra.mxu0 0.0
    %5053 = vmatprep.subr.mxu0 0.0
    %5054 = vmatpush1.xpose.msra.mxu0 0.0
    %5055 = vmatprep.subr.mxu0 0.0
    %5056 = vmatpush1.xpose.msra.mxu0 0.0
    %5057 = vmatprep.subr.mxu0 0.0
    %5058 = vmatpush1.xpose.msra.mxu0 0.0
    %5059 = vmatprep.subr.mxu0 0.0
    %5060 = vmatpush1.xpose.msra.mxu0 0.0
    %5061 = vmatprep.subr.mxu0 0.0
    %5062 = vmatpush1.xpose.msra.mxu0 0.0
    %5063 = vmatprep.subr.mxu0 0.0
    %5064 = vmatpush1.xpose.msra.mxu0 0.0
    %5065 = vmatprep.subr.mxu0 0.0
    %5066 = vmatpush1.xpose.msra.mxu0 0.0
    %5067 = vmatprep.subr.mxu0 0.0
    %5068 = vmatpush1.xpose.msra.mxu0 0.0
    %5069 = vmatprep.subr.mxu0 0.0
    %5070 = vmatpush1.xpose.msra.mxu0 0.0
    %5071 = vmatprep.subr.mxu0 0.0
    %5072 = vmatpush1.xpose.msra.mxu0 0.0
    %5073 = vmatprep.subr.mxu0 0.0
    %5074 = vmatpush1.xpose.msra.mxu0 0.0
    %5075 = vmatprep.subr.mxu0 0.0
    %5076 = vmatpush1.xpose.msra.mxu0 0.0
    %5077 = vmatprep.subr.mxu0 0.0
    %5078 = vmatpush1.xpose.msra.mxu0 %v5047
    %5079 = vmatprep.subr.mxu0 0.0
    %5080 = vmatpush1.xpose.msra.mxu0 %v5045
    %5081 = vmatprep.subr.mxu0 0.0
    %5082 = vmatpush2.xpose.msra.mxu0 0.0
    %5083 = vmatprep.subr.mxu0 0.0
    %5084 = vmatpush2.xpose.msra.mxu0 0.0
    %5085 = vmatprep.subr.mxu0 0.0
    %5086 = vmatpush2.xpose.msra.mxu0 0.0
    %5087 = vmatprep.subr.mxu0 0.0
    %5088 = vmatpush2.xpose.msra.mxu0 0.0
    %5089 = vmatprep.subr.mxu0 0.0
    %5090 = vmatpush2.xpose.msra.mxu0 0.0
    %5091 = vmatprep.subr.mxu0 0.0
    %5092 = vmatpush2.xpose.msra.mxu0 0.0
    %5093 = vmatprep.subr.mxu0 0.0
    %5094 = vmatpush2.xpose.msra.mxu0 0.0
    %5095 = vmatprep.subr.mxu0 0.0
    %5096 = vmatpush2.xpose.msra.mxu0 0.0
    %5097 = vmatprep.subr.mxu0 0.0
    %5098 = vmatpush2.xpose.msra.mxu0 0.0
    %5099 = vmatprep.subr.mxu0 0.0
    %5100 = vmatpush2.xpose.msra.mxu0 0.0
    %5101 = vmatprep.subr.mxu0 0.0
    %5102 = vmatpush2.xpose.msra.mxu0 0.0
    %5103 = vmatprep.subr.mxu0 0.0
    %5104 = vmatpush2.xpose.msra.mxu0 0.0
    %5105 = vmatprep.subr.mxu0 0.0
    %5106 = vmatpush2.xpose.msra.mxu0 0.0
    %5107 = vmatprep.subr.mxu0 0.0
    %5108 = vmatpush2.xpose.msra.mxu0 0.0
    %5109 = vmatprep.subr.mxu0 0.0
    %5110 = vmatpush2.xpose.msra.mxu0 0.0
    %5111 = vmatprep.subr.mxu0 0.0
    %5112 = vmatpush2.xpose.msra.mxu0 0.0
    %5113 = vmatprep.mubr.f32.mxu0 0.0
    %5114 = vmatmul.mubr.f32.gmra.mxu0 %v4785
    %v5115 = vpop.f32.mrf.mxu0
    %v5116 = vadd.f32 0.0, %v5115
    %v5117 = vpop.f32.mrf.mxu0
    %5118 = vmatprep.mubr.f32.mxu0 0.0
    %5119 = vmatmul.mubr.f32.gmra.mxu0 %v4788
    %v5120 = vpop.f32.mrf.mxu0
    %v5121 = vadd.f32 0.0, %v5120
    %v5122 = vpop.f32.mrf.mxu0
    %5123 = vdwg.mxu0
    %5126 = vrot.lane.b32.xlu0 %v4754, 96
    %v5127 = vpop.permute.xlu0 %5126
    %5128 = vrot.lane.b32.xlu0 %v4755, 96
    %v5129 = vpop.permute.xlu0 %5128
    %v5131 = vsel %vm336, %v4738, 0
    %v5134 = vsel %vm336, %v4743, 0
    %v5136 = vsel %vm336, %v5127, 0
    %v5138 = vsel %vm336, %v5129, 0
    %5140 = vmatprep.subr.mxu0 0.0
    %5141 = vmatpush1.xpose.msra.mxu0 0.0
    %5142 = vmatprep.subr.mxu0 0.0
    %5143 = vmatpush1.xpose.msra.mxu0 0.0
    %5144 = vmatprep.subr.mxu0 0.0
    %5145 = vmatpush1.xpose.msra.mxu0 0.0
    %5146 = vmatprep.subr.mxu0 0.0
    %5147 = vmatpush1.xpose.msra.mxu0 0.0
    %5148 = vmatprep.subr.mxu0 0.0
    %5149 = vmatpush1.xpose.msra.mxu0 0.0
    %5150 = vmatprep.subr.mxu0 0.0
    %5151 = vmatpush1.xpose.msra.mxu0 0.0
    %5152 = vmatprep.subr.mxu0 0.0
    %5153 = vmatpush1.xpose.msra.mxu0 0.0
    %5154 = vmatprep.subr.mxu0 0.0
    %5155 = vmatpush1.xpose.msra.mxu0 0.0
    %5156 = vmatprep.subr.mxu0 0.0
    %5157 = vmatpush1.xpose.msra.mxu0 0.0
    %5158 = vmatprep.subr.mxu0 0.0
    %5159 = vmatpush1.xpose.msra.mxu0 0.0
    %5160 = vmatprep.subr.mxu0 0.0
    %5161 = vmatpush1.xpose.msra.mxu0 0.0
    %5162 = vmatprep.subr.mxu0 0.0
    %5163 = vmatpush1.xpose.msra.mxu0 0.0
    %5164 = vmatprep.subr.mxu0 0.0
    %5165 = vmatpush1.xpose.msra.mxu0 0.0
    %5166 = vmatprep.subr.mxu0 0.0
    %5167 = vmatpush1.xpose.msra.mxu0 0.0
    %5168 = vmatprep.subr.mxu0 0.0
    %5169 = vmatpush1.xpose.msra.mxu0 %v5138
    %5170 = vmatprep.subr.mxu0 0.0
    %5171 = vmatpush1.xpose.msra.mxu0 %v5136
    %5172 = vmatprep.subr.mxu0 0.0
    %5173 = vmatpush2.xpose.msra.mxu0 0.0
    %5174 = vmatprep.subr.mxu0 0.0
    %5175 = vmatpush2.xpose.msra.mxu0 0.0
    %5176 = vmatprep.subr.mxu0 0.0
    %5177 = vmatpush2.xpose.msra.mxu0 0.0
    %5178 = vmatprep.subr.mxu0 0.0
    %5179 = vmatpush2.xpose.msra.mxu0 0.0
    %5180 = vmatprep.subr.mxu0 0.0
    %5181 = vmatpush2.xpose.msra.mxu0 0.0
    %5182 = vmatprep.subr.mxu0 0.0
    %5183 = vmatpush2.xpose.msra.mxu0 0.0
    %5184 = vmatprep.subr.mxu0 0.0
    %5185 = vmatpush2.xpose.msra.mxu0 0.0
    %5186 = vmatprep.subr.mxu0 0.0
    %5187 = vmatpush2.xpose.msra.mxu0 0.0
    %5188 = vmatprep.subr.mxu0 0.0
    %5189 = vmatpush2.xpose.msra.mxu0 0.0
    %5190 = vmatprep.subr.mxu0 0.0
    %5191 = vmatpush2.xpose.msra.mxu0 0.0
    %5192 = vmatprep.subr.mxu0 0.0
    %5193 = vmatpush2.xpose.msra.mxu0 0.0
    %5194 = vmatprep.subr.mxu0 0.0
    %5195 = vmatpush2.xpose.msra.mxu0 0.0
    %5196 = vmatprep.subr.mxu0 0.0
    %5197 = vmatpush2.xpose.msra.mxu0 0.0
    %5198 = vmatprep.subr.mxu0 0.0
    %5199 = vmatpush2.xpose.msra.mxu0 0.0
    %5200 = vmatprep.subr.mxu0 0.0
    %5201 = vmatpush2.xpose.msra.mxu0 0.0
    %5202 = vmatprep.subr.mxu0 0.0
    %5203 = vmatpush2.xpose.msra.mxu0 0.0
    %5204 = vmatprep.mubr.f32.mxu0 0.0
    %5205 = vmatmul.mubr.f32.gmra.mxu0 %v5131
    %v5206 = vpop.f32.mrf.mxu0
    %v5207 = vadd.f32 0.0, %v5206
    %v5208 = vpop.f32.mrf.mxu0
    %5209 = vmatprep.mubr.f32.mxu0 0.0
    %5210 = vmatmul.mubr.f32.gmra.mxu0 %v5134
    %v5211 = vpop.f32.mrf.mxu0
    %v5212 = vadd.f32 0.0, %v5211
    %v5213 = vpop.f32.mrf.mxu0
    %5214 = vdwg.mxu0
    %5217 = vrot.lane.b32.xlu0 %v4756, 96
    %v5218 = vpop.permute.xlu0 %5217
    %5219 = vrot.lane.b32.xlu0 %v4757, 96
    %v5220 = vpop.permute.xlu0 %5219
    %v5221 = vsel %vm336, %v5218, 0
    %v5223 = vsel %vm336, %v5220, 0
    %5225 = vmatprep.subr.mxu0 0.0
    %5226 = vmatpush1.xpose.msra.mxu0 0.0
    %5227 = vmatprep.subr.mxu0 0.0
    %5228 = vmatpush1.xpose.msra.mxu0 0.0
    %5229 = vmatprep.subr.mxu0 0.0
    %5230 = vmatpush1.xpose.msra.mxu0 0.0
    %5231 = vmatprep.subr.mxu0 0.0
    %5232 = vmatpush1.xpose.msra.mxu0 0.0
    %5233 = vmatprep.subr.mxu0 0.0
    %5234 = vmatpush1.xpose.msra.mxu0 0.0
    %5235 = vmatprep.subr.mxu0 0.0
    %5236 = vmatpush1.xpose.msra.mxu0 0.0
    %5237 = vmatprep.subr.mxu0 0.0
    %5238 = vmatpush1.xpose.msra.mxu0 0.0
    %5239 = vmatprep.subr.mxu0 0.0
    %5240 = vmatpush1.xpose.msra.mxu0 0.0
    %5241 = vmatprep.subr.mxu0 0.0
    %5242 = vmatpush1.xpose.msra.mxu0 0.0
    %5243 = vmatprep.subr.mxu0 0.0
    %5244 = vmatpush1.xpose.msra.mxu0 0.0
    %5245 = vmatprep.subr.mxu0 0.0
    %5246 = vmatpush1.xpose.msra.mxu0 0.0
    %5247 = vmatprep.subr.mxu0 0.0
    %5248 = vmatpush1.xpose.msra.mxu0 0.0
    %5249 = vmatprep.subr.mxu0 0.0
    %5250 = vmatpush1.xpose.msra.mxu0 0.0
    %5251 = vmatprep.subr.mxu0 0.0
    %5252 = vmatpush1.xpose.msra.mxu0 0.0
    %5253 = vmatprep.subr.mxu0 0.0
    %5254 = vmatpush1.xpose.msra.mxu0 %v5223
    %5255 = vmatprep.subr.mxu0 0.0
    %5256 = vmatpush1.xpose.msra.mxu0 %v5221
    %5257 = vmatprep.subr.mxu0 0.0
    %5258 = vmatpush2.xpose.msra.mxu0 0.0
    %5259 = vmatprep.subr.mxu0 0.0
    %5260 = vmatpush2.xpose.msra.mxu0 0.0
    %5261 = vmatprep.subr.mxu0 0.0
    %5262 = vmatpush2.xpose.msra.mxu0 0.0
    %5263 = vmatprep.subr.mxu0 0.0
    %5264 = vmatpush2.xpose.msra.mxu0 0.0
    %5265 = vmatprep.subr.mxu0 0.0
    %5266 = vmatpush2.xpose.msra.mxu0 0.0
    %5267 = vmatprep.subr.mxu0 0.0
    %5268 = vmatpush2.xpose.msra.mxu0 0.0
    %5269 = vmatprep.subr.mxu0 0.0
    %5270 = vmatpush2.xpose.msra.mxu0 0.0
    %5271 = vmatprep.subr.mxu0 0.0
    %5272 = vmatpush2.xpose.msra.mxu0 0.0
    %5273 = vmatprep.subr.mxu0 0.0
    %5274 = vmatpush2.xpose.msra.mxu0 0.0
    %5275 = vmatprep.subr.mxu0 0.0
    %5276 = vmatpush2.xpose.msra.mxu0 0.0
    %5277 = vmatprep.subr.mxu0 0.0
    %5278 = vmatpush2.xpose.msra.mxu0 0.0
    %5279 = vmatprep.subr.mxu0 0.0
    %5280 = vmatpush2.xpose.msra.mxu0 0.0
    %5281 = vmatprep.subr.mxu0 0.0
    %5282 = vmatpush2.xpose.msra.mxu0 0.0
    %5283 = vmatprep.subr.mxu0 0.0
    %5284 = vmatpush2.xpose.msra.mxu0 0.0
    %5285 = vmatprep.subr.mxu0 0.0
    %5286 = vmatpush2.xpose.msra.mxu0 0.0
    %5287 = vmatprep.subr.mxu0 0.0
    %5288 = vmatpush2.xpose.msra.mxu0 0.0
    %5289 = vmatprep.mubr.f32.mxu0 0.0
    %5290 = vmatmul.mubr.f32.gmra.mxu0 %v5131
    %v5291 = vpop.f32.mrf.mxu0
    %v5292 = vadd.f32 0.0, %v5291
    %v5293 = vpop.f32.mrf.mxu0
    %5294 = vmatprep.mubr.f32.mxu0 0.0
    %5295 = vmatmul.mubr.f32.gmra.mxu0 %v5134
    %v5296 = vpop.f32.mrf.mxu0
    %v5297 = vadd.f32 0.0, %v5296
    %v5298 = vpop.f32.mrf.mxu0
    %5299 = vdwg.mxu0
    %5302 = vrot.lane.b32.xlu0 %v4758, 96
    %v5303 = vpop.permute.xlu0 %5302
    %5304 = vrot.lane.b32.xlu0 %v4759, 96
    %v5305 = vpop.permute.xlu0 %5304
    %v5306 = vsel %vm336, %v5303, 0
    %v5308 = vsel %vm336, %v5305, 0
    %5310 = vmatprep.subr.mxu0 0.0
    %5311 = vmatpush1.xpose.msra.mxu0 0.0
    %5312 = vmatprep.subr.mxu0 0.0
    %5313 = vmatpush1.xpose.msra.mxu0 0.0
    %5314 = vmatprep.subr.mxu0 0.0
    %5315 = vmatpush1.xpose.msra.mxu0 0.0
    %5316 = vmatprep.subr.mxu0 0.0
    %5317 = vmatpush1.xpose.msra.mxu0 0.0
    %5318 = vmatprep.subr.mxu0 0.0
    %5319 = vmatpush1.xpose.msra.mxu0 0.0
    %5320 = vmatprep.subr.mxu0 0.0
    %5321 = vmatpush1.xpose.msra.mxu0 0.0
    %5322 = vmatprep.subr.mxu0 0.0
    %5323 = vmatpush1.xpose.msra.mxu0 0.0
    %5324 = vmatprep.subr.mxu0 0.0
    %5325 = vmatpush1.xpose.msra.mxu0 0.0
    %5326 = vmatprep.subr.mxu0 0.0
    %5327 = vmatpush1.xpose.msra.mxu0 0.0
    %5328 = vmatprep.subr.mxu0 0.0
    %5329 = vmatpush1.xpose.msra.mxu0 0.0
    %5330 = vmatprep.subr.mxu0 0.0
    %5331 = vmatpush1.xpose.msra.mxu0 0.0
    %5332 = vmatprep.subr.mxu0 0.0
    %5333 = vmatpush1.xpose.msra.mxu0 0.0
    %5334 = vmatprep.subr.mxu0 0.0
    %5335 = vmatpush1.xpose.msra.mxu0 0.0
    %5336 = vmatprep.subr.mxu0 0.0
    %5337 = vmatpush1.xpose.msra.mxu0 0.0
    %5338 = vmatprep.subr.mxu0 0.0
    %5339 = vmatpush1.xpose.msra.mxu0 %v5308
    %5340 = vmatprep.subr.mxu0 0.0
    %5341 = vmatpush1.xpose.msra.mxu0 %v5306
    %5342 = vmatprep.subr.mxu0 0.0
    %5343 = vmatpush2.xpose.msra.mxu0 0.0
    %5344 = vmatprep.subr.mxu0 0.0
    %5345 = vmatpush2.xpose.msra.mxu0 0.0
    %5346 = vmatprep.subr.mxu0 0.0
    %5347 = vmatpush2.xpose.msra.mxu0 0.0
    %5348 = vmatprep.subr.mxu0 0.0
    %5349 = vmatpush2.xpose.msra.mxu0 0.0
    %5350 = vmatprep.subr.mxu0 0.0
    %5351 = vmatpush2.xpose.msra.mxu0 0.0
    %5352 = vmatprep.subr.mxu0 0.0
    %5353 = vmatpush2.xpose.msra.mxu0 0.0
    %5354 = vmatprep.subr.mxu0 0.0
    %5355 = vmatpush2.xpose.msra.mxu0 0.0
    %5356 = vmatprep.subr.mxu0 0.0
    %5357 = vmatpush2.xpose.msra.mxu0 0.0
    %5358 = vmatprep.subr.mxu0 0.0
    %5359 = vmatpush2.xpose.msra.mxu0 0.0
    %5360 = vmatprep.subr.mxu0 0.0
    %5361 = vmatpush2.xpose.msra.mxu0 0.0
    %5362 = vmatprep.subr.mxu0 0.0
    %5363 = vmatpush2.xpose.msra.mxu0 0.0
    %5364 = vmatprep.subr.mxu0 0.0
    %5365 = vmatpush2.xpose.msra.mxu0 0.0
    %5366 = vmatprep.subr.mxu0 0.0
    %5367 = vmatpush2.xpose.msra.mxu0 0.0
    %5368 = vmatprep.subr.mxu0 0.0
    %5369 = vmatpush2.xpose.msra.mxu0 0.0
    %5370 = vmatprep.subr.mxu0 0.0
    %5371 = vmatpush2.xpose.msra.mxu0 0.0
    %5372 = vmatprep.subr.mxu0 0.0
    %5373 = vmatpush2.xpose.msra.mxu0 0.0
    %5374 = vmatprep.mubr.f32.mxu0 0.0
    %5375 = vmatmul.mubr.f32.gmra.mxu0 %v5131
    %v5376 = vpop.f32.mrf.mxu0
    %v5377 = vadd.f32 0.0, %v5376
    %v5378 = vpop.f32.mrf.mxu0
    %5379 = vmatprep.mubr.f32.mxu0 0.0
    %5380 = vmatmul.mubr.f32.gmra.mxu0 %v5134
    %v5381 = vpop.f32.mrf.mxu0
    %v5382 = vadd.f32 0.0, %v5381
    %v5383 = vpop.f32.mrf.mxu0
    %5384 = vdwg.mxu0
    %5387 = vrot.lane.b32.xlu0 %v4760, 96
    %v5388 = vpop.permute.xlu0 %5387
    %5389 = vrot.lane.b32.xlu0 %v4761, 96
    %v5390 = vpop.permute.xlu0 %5389
    %v5391 = vsel %vm336, %v5388, 0
    %v5393 = vsel %vm336, %v5390, 0
    %5395 = vmatprep.subr.mxu0 0.0
    %5396 = vmatpush1.xpose.msra.mxu0 0.0
    %5397 = vmatprep.subr.mxu0 0.0
    %5398 = vmatpush1.xpose.msra.mxu0 0.0
    %5399 = vmatprep.subr.mxu0 0.0
    %5400 = vmatpush1.xpose.msra.mxu0 0.0
    %5401 = vmatprep.subr.mxu0 0.0
    %5402 = vmatpush1.xpose.msra.mxu0 0.0
    %5403 = vmatprep.subr.mxu0 0.0
    %5404 = vmatpush1.xpose.msra.mxu0 0.0
    %5405 = vmatprep.subr.mxu0 0.0
    %5406 = vmatpush1.xpose.msra.mxu0 0.0
    %5407 = vmatprep.subr.mxu0 0.0
    %5408 = vmatpush1.xpose.msra.mxu0 0.0
    %5409 = vmatprep.subr.mxu0 0.0
    %5410 = vmatpush1.xpose.msra.mxu0 0.0
    %5411 = vmatprep.subr.mxu0 0.0
    %5412 = vmatpush1.xpose.msra.mxu0 0.0
    %5413 = vmatprep.subr.mxu0 0.0
    %5414 = vmatpush1.xpose.msra.mxu0 0.0
    %5415 = vmatprep.subr.mxu0 0.0
    %5416 = vmatpush1.xpose.msra.mxu0 0.0
    %5417 = vmatprep.subr.mxu0 0.0
    %5418 = vmatpush1.xpose.msra.mxu0 0.0
    %5419 = vmatprep.subr.mxu0 0.0
    %5420 = vmatpush1.xpose.msra.mxu0 0.0
    %5421 = vmatprep.subr.mxu0 0.0
    %5422 = vmatpush1.xpose.msra.mxu0 0.0
    %5423 = vmatprep.subr.mxu0 0.0
    %5424 = vmatpush1.xpose.msra.mxu0 %v5393
    %5425 = vmatprep.subr.mxu0 0.0
    %5426 = vmatpush1.xpose.msra.mxu0 %v5391
    %5427 = vmatprep.subr.mxu0 0.0
    %5428 = vmatpush2.xpose.msra.mxu0 0.0
    %5429 = vmatprep.subr.mxu0 0.0
    %5430 = vmatpush2.xpose.msra.mxu0 0.0
    %5431 = vmatprep.subr.mxu0 0.0
    %5432 = vmatpush2.xpose.msra.mxu0 0.0
    %5433 = vmatprep.subr.mxu0 0.0
    %5434 = vmatpush2.xpose.msra.mxu0 0.0
    %5435 = vmatprep.subr.mxu0 0.0
    %5436 = vmatpush2.xpose.msra.mxu0 0.0
    %5437 = vmatprep.subr.mxu0 0.0
    %5438 = vmatpush2.xpose.msra.mxu0 0.0
    %5439 = vmatprep.subr.mxu0 0.0
    %5440 = vmatpush2.xpose.msra.mxu0 0.0
    %5441 = vmatprep.subr.mxu0 0.0
    %5442 = vmatpush2.xpose.msra.mxu0 0.0
    %5443 = vmatprep.subr.mxu0 0.0
    %5444 = vmatpush2.xpose.msra.mxu0 0.0
    %5445 = vmatprep.subr.mxu0 0.0
    %5446 = vmatpush2.xpose.msra.mxu0 0.0
    %5447 = vmatprep.subr.mxu0 0.0
    %5448 = vmatpush2.xpose.msra.mxu0 0.0
    %5449 = vmatprep.subr.mxu0 0.0
    %5450 = vmatpush2.xpose.msra.mxu0 0.0
    %5451 = vmatprep.subr.mxu0 0.0
    %5452 = vmatpush2.xpose.msra.mxu0 0.0
    %5453 = vmatprep.subr.mxu0 0.0
    %5454 = vmatpush2.xpose.msra.mxu0 0.0
    %5455 = vmatprep.subr.mxu0 0.0
    %5456 = vmatpush2.xpose.msra.mxu0 0.0
    %5457 = vmatprep.subr.mxu0 0.0
    %5458 = vmatpush2.xpose.msra.mxu0 0.0
    %5459 = vmatprep.mubr.f32.mxu0 0.0
    %5460 = vmatmul.mubr.f32.gmra.mxu0 %v5131
    %v5461 = vpop.f32.mrf.mxu0
    %v5462 = vadd.f32 0.0, %v5461
    %v5463 = vpop.f32.mrf.mxu0
    %5464 = vmatprep.mubr.f32.mxu0 0.0
    %5465 = vmatmul.mubr.f32.gmra.mxu0 %v5134
    %v5466 = vpop.f32.mrf.mxu0
    %v5467 = vadd.f32 0.0, %v5466
    %v5468 = vpop.f32.mrf.mxu0
    %5469 = vdwg.mxu0
    %v5470 = vsel %vm1381, %v4861, -inf
    %5471 = vmax.xlane.f32.xlu0 %v5470
    %v5472 = vpop.xlane.xlu0 %5471
    %v5473 = vsel %vm1381, %v4866, -inf
    %5474 = vmax.xlane.f32.xlu0 %v5473
    %v5475 = vpop.xlane.xlu0 %5474
    %v5476 = vsel %vm1381, %v4946, -inf
    %5477 = vmax.xlane.f32.xlu0 %v5476
    %v5478 = vpop.xlane.xlu0 %5477
    %v5479 = vsel %vm1381, %v4951, -inf
    %5480 = vmax.xlane.f32.xlu0 %v5479
    %v5481 = vpop.xlane.xlu0 %5480
    %v5482 = vsel %vm1381, %v5031, -inf
    %5483 = vmax.xlane.f32.xlu0 %v5482
    %v5484 = vpop.xlane.xlu0 %5483
    %v5485 = vsel %vm1381, %v5036, -inf
    %5486 = vmax.xlane.f32.xlu0 %v5485
    %v5487 = vpop.xlane.xlu0 %5486
    %v5488 = vsel %vm1381, %v5116, -inf
    %5489 = vmax.xlane.f32.xlu0 %v5488
    %v5490 = vpop.xlane.xlu0 %5489
    %v5491 = vsel %vm1381, %v5121, -inf
    %5492 = vmax.xlane.f32.xlu0 %v5491
    %v5493 = vpop.xlane.xlu0 %5492
    %v5494 = vsel %vm1381, %v5207, -inf
    %5495 = vmax.xlane.f32.xlu0 %v5494
    %v5496 = vpop.xlane.xlu0 %5495
    %v5497 = vsel %vm1381, %v5212, -inf
    %5498 = vmax.xlane.f32.xlu0 %v5497
    %v5499 = vpop.xlane.xlu0 %5498
    %v5500 = vsel %vm1381, %v5292, -inf
    %5501 = vmax.xlane.f32.xlu0 %v5500
    %v5502 = vpop.xlane.xlu0 %5501
    %v5503 = vsel %vm1381, %v5297, -inf
    %5504 = vmax.xlane.f32.xlu0 %v5503
    %v5505 = vpop.xlane.xlu0 %5504
    %v5506 = vsel %vm1381, %v5377, -inf
    %5507 = vmax.xlane.f32.xlu0 %v5506
    %v5508 = vpop.xlane.xlu0 %5507
    %v5509 = vsel %vm1381, %v5382, -inf
    %5510 = vmax.xlane.f32.xlu0 %v5509
    %v5511 = vpop.xlane.xlu0 %5510
    %v5512 = vsel %vm1381, %v5462, -inf
    %5513 = vmax.xlane.f32.xlu0 %v5512
    %v5514 = vpop.xlane.xlu0 %5513
    %v5515 = vsel %vm1381, %v5467, -inf
    %5516 = vmax.xlane.f32.xlu0 %v5515
    %v5517 = vpop.xlane.xlu0 %5516
    %v5518 = vsub.f32 %v4861, %v5472
    %v5519 = vsub.f32 %v4866, %v5475
    %v5520 = vsub.f32 %v4946, %v5478
    %v5521 = vsub.f32 %v4951, %v5481
    %v5522 = vsub.f32 %v5031, %v5484
    %v5523 = vsub.f32 %v5036, %v5487
    %v5524 = vsub.f32 %v5116, %v5490
    %v5525 = vsub.f32 %v5121, %v5493
    %v5526 = vsub.f32 %v5207, %v5496
    %v5527 = vsub.f32 %v5212, %v5499
    %v5528 = vsub.f32 %v5292, %v5502
    %v5529 = vsub.f32 %v5297, %v5505
    %v5530 = vsub.f32 %v5377, %v5508
    %v5531 = vsub.f32 %v5382, %v5511
    %v5532 = vsub.f32 %v5462, %v5514
    %v5533 = vsub.f32 %v5467, %v5517
    %v5534 = vmul.f32 %v5518, 1.442695
    %v5535 = vpow.pop %v5534
    %v5536 = vmul.f32 %v5519, 1.442695
    %v5537 = vpow.pop %v5536
    %v5538 = vmul.f32 %v5520, 1.442695
    %v5539 = vpow.pop %v5538
    %v5540 = vmul.f32 %v5521, 1.442695
    %v5541 = vpow.pop %v5540
    %v5542 = vmul.f32 %v5522, 1.442695
    %v5543 = vpow.pop %v5542
    %v5544 = vmul.f32 %v5523, 1.442695
    %v5545 = vpow.pop %v5544
    %v5546 = vmul.f32 %v5524, 1.442695
    %v5547 = vpow.pop %v5546
    %v5548 = vmul.f32 %v5525, 1.442695
    %v5549 = vpow.pop %v5548
    %v5550 = vmul.f32 %v5526, 1.442695
    %v5551 = vpow.pop %v5550
    %v5552 = vmul.f32 %v5527, 1.442695
    %v5553 = vpow.pop %v5552
    %v5554 = vmul.f32 %v5528, 1.442695
    %v5555 = vpow.pop %v5554
    %v5556 = vmul.f32 %v5529, 1.442695
    %v5557 = vpow.pop %v5556
    %v5558 = vmul.f32 %v5530, 1.442695
    %v5559 = vpow.pop %v5558
    %v5560 = vmul.f32 %v5531, 1.442695
    %v5561 = vpow.pop %v5560
    %v5562 = vmul.f32 %v5532, 1.442695
    %v5563 = vpow.pop %v5562
    %v5564 = vmul.f32 %v5533, 1.442695
    %v5565 = vpow.pop %v5564
    %v5566 = vsel %vm1381, %v5535, 0.0
    %5567 = vadd.xlane.f32.xlu0 %v5566
    %v5568 = vpop.xlane.xlu0 %5567
    %v5569 = vsel %vm1381, %v5537, 0.0
    %5570 = vadd.xlane.f32.xlu0 %v5569
    %v5571 = vpop.xlane.xlu0 %5570
    %v5572 = vsel %vm1381, %v5539, 0.0
    %5573 = vadd.xlane.f32.xlu0 %v5572
    %v5574 = vpop.xlane.xlu0 %5573
    %v5575 = vsel %vm1381, %v5541, 0.0
    %5576 = vadd.xlane.f32.xlu0 %v5575
    %v5577 = vpop.xlane.xlu0 %5576
    %v5578 = vsel %vm1381, %v5543, 0.0
    %5579 = vadd.xlane.f32.xlu0 %v5578
    %v5580 = vpop.xlane.xlu0 %5579
    %v5581 = vsel %vm1381, %v5545, 0.0
    %5582 = vadd.xlane.f32.xlu0 %v5581
    %v5583 = vpop.xlane.xlu0 %5582
    %v5584 = vsel %vm1381, %v5547, 0.0
    %5585 = vadd.xlane.f32.xlu0 %v5584
    %v5586 = vpop.xlane.xlu0 %5585
    %v5587 = vsel %vm1381, %v5549, 0.0
    %5588 = vadd.xlane.f32.xlu0 %v5587
    %v5589 = vpop.xlane.xlu0 %5588
    %v5590 = vsel %vm1381, %v5551, 0.0
    %5591 = vadd.xlane.f32.xlu0 %v5590
    %v5592 = vpop.xlane.xlu0 %5591
    %v5593 = vsel %vm1381, %v5553, 0.0
    %5594 = vadd.xlane.f32.xlu0 %v5593
    %v5595 = vpop.xlane.xlu0 %5594
    %v5596 = vsel %vm1381, %v5555, 0.0
    %5597 = vadd.xlane.f32.xlu0 %v5596
    %v5598 = vpop.xlane.xlu0 %5597
    %v5599 = vsel %vm1381, %v5557, 0.0
    %5600 = vadd.xlane.f32.xlu0 %v5599
    %v5601 = vpop.xlane.xlu0 %5600
    %v5602 = vsel %vm1381, %v5559, 0.0
    %5603 = vadd.xlane.f32.xlu0 %v5602
    %v5604 = vpop.xlane.xlu0 %5603
    %v5605 = vsel %vm1381, %v5561, 0.0
    %5606 = vadd.xlane.f32.xlu0 %v5605
    %v5607 = vpop.xlane.xlu0 %5606
    %v5608 = vsel %vm1381, %v5563, 0.0
    %5609 = vadd.xlane.f32.xlu0 %v5608
    %v5610 = vpop.xlane.xlu0 %5609
    %v5611 = vsel %vm1381, %v5565, 0.0
    %5612 = vadd.xlane.f32.xlu0 %v5611
    %v5613 = vpop.xlane.xlu0 %5612
    %v5614 = vrcp.pop %v5568
    %v5615 = vrcp.pop %v5571
    %v5616 = vrcp.pop %v5574
    %v5617 = vrcp.pop %v5577
    %v5618 = vrcp.pop %v5580
    %v5619 = vrcp.pop %v5583
    %v5620 = vrcp.pop %v5586
    %v5621 = vrcp.pop %v5589
    %v5622 = vrcp.pop %v5592
    %v5623 = vrcp.pop %v5595
    %v5624 = vrcp.pop %v5598
    %v5625 = vrcp.pop %v5601
    %v5626 = vrcp.pop %v5604
    %v5627 = vrcp.pop %v5607
    %v5628 = vrcp.pop %v5610
    %v5629 = vrcp.pop %v5613
    %v5630 = vmul.f32 %v5535, %v5614
    %v5631 = vmul.f32 %v5537, %v5615
    %v5632 = vmul.f32 %v5539, %v5616
    %v5633 = vmul.f32 %v5541, %v5617
    %v5634 = vmul.f32 %v5543, %v5618
    %v5635 = vmul.f32 %v5545, %v5619
    %v5636 = vmul.f32 %v5547, %v5620
    %v5637 = vmul.f32 %v5549, %v5621
    %v5638 = vmul.f32 %v5551, %v5622
    %v5639 = vmul.f32 %v5553, %v5623
    %v5640 = vmul.f32 %v5555, %v5624
    %v5641 = vmul.f32 %v5557, %v5625
    %v5642 = vmul.f32 %v5559, %v5626
    %v5643 = vmul.f32 %v5561, %v5627
    %v5644 = vmul.f32 %v5563, %v5628
    %v5645 = vmul.f32 %v5565, %v5629
    %5648 = vrot.lane.b32.xlu0 %v4762, 64
    %v5649 = vpop.permute.xlu0 %5648
    %5650 = vrot.lane.b32.xlu0 %v4763, 64
    %v5651 = vpop.permute.xlu0 %5650
    %v5655 = vsel %vm1381, %v5630, 0
    %v5658 = vsel %vm1381, %v5631, 0
    %5660 = vmatprep.subr.mxu0 0.0
    %5661 = vmatpush1.msra.mxu0 0.0
    %5662 = vmatprep.subr.mxu0 0.0
    %5663 = vmatpush1.msra.mxu0 0.0
    %5664 = vmatprep.subr.mxu0 0.0
    %5665 = vmatpush1.msra.mxu0 0.0
    %5666 = vmatprep.subr.mxu0 0.0
    %5667 = vmatpush1.msra.mxu0 0.0
    %5668 = vmatprep.subr.mxu0 0.0
    %5669 = vmatpush1.msra.mxu0 0.0
    %5670 = vmatprep.subr.mxu0 0.0
    %5671 = vmatpush1.msra.mxu0 0.0
    %5672 = vmatprep.subr.mxu0 0.0
    %5673 = vmatpush1.msra.mxu0 0.0
    %5674 = vmatprep.subr.mxu0 0.0
    %5675 = vmatpush1.msra.mxu0 0.0
    %5676 = vmatprep.subr.mxu0 0.0
    %5677 = vmatpush1.msra.mxu0 0.0
    %5678 = vmatprep.subr.mxu0 0.0
    %5679 = vmatpush1.msra.mxu0 0.0
    %5680 = vmatprep.subr.mxu0 0.0
    %5681 = vmatpush1.msra.mxu0 0.0
    %5682 = vmatprep.subr.mxu0 0.0
    %5683 = vmatpush1.msra.mxu0 0.0
    %5684 = vmatprep.subr.mxu0 0.0
    %5685 = vmatpush1.msra.mxu0 0.0
    %5686 = vmatprep.subr.mxu0 0.0
    %5687 = vmatpush1.msra.mxu0 0.0
    %5688 = vmatprep.subr.mxu0 0.0
    %5689 = vmatpush1.msra.mxu0 %v5651
    %5690 = vmatprep.subr.mxu0 0.0
    %5691 = vmatpush1.msra.mxu0 %v5649
    %5692 = vmatprep.subr.mxu0 0.0
    %5693 = vmatpush2.msra.mxu0 0.0
    %5694 = vmatprep.subr.mxu0 0.0
    %5695 = vmatpush2.msra.mxu0 0.0
    %5696 = vmatprep.subr.mxu0 0.0
    %5697 = vmatpush2.msra.mxu0 0.0
    %5698 = vmatprep.subr.mxu0 0.0
    %5699 = vmatpush2.msra.mxu0 0.0
    %5700 = vmatprep.subr.mxu0 0.0
    %5701 = vmatpush2.msra.mxu0 0.0
    %5702 = vmatprep.subr.mxu0 0.0
    %5703 = vmatpush2.msra.mxu0 0.0
    %5704 = vmatprep.subr.mxu0 0.0
    %5705 = vmatpush2.msra.mxu0 0.0
    %5706 = vmatprep.subr.mxu0 0.0
    %5707 = vmatpush2.msra.mxu0 0.0
    %5708 = vmatprep.subr.mxu0 0.0
    %5709 = vmatpush2.msra.mxu0 0.0
    %5710 = vmatprep.subr.mxu0 0.0
    %5711 = vmatpush2.msra.mxu0 0.0
    %5712 = vmatprep.subr.mxu0 0.0
    %5713 = vmatpush2.msra.mxu0 0.0
    %5714 = vmatprep.subr.mxu0 0.0
    %5715 = vmatpush2.msra.mxu0 0.0
    %5716 = vmatprep.subr.mxu0 0.0
    %5717 = vmatpush2.msra.mxu0 0.0
    %5718 = vmatprep.subr.mxu0 0.0
    %5719 = vmatpush2.msra.mxu0 0.0
    %5720 = vmatprep.subr.mxu0 0.0
    %5721 = vmatpush2.msra.mxu0 0.0
    %5722 = vmatprep.subr.mxu0 0.0
    %5723 = vmatpush2.msra.mxu0 0.0
    %5724 = vmatprep.mubr.f32.mxu0 0.0
    %5725 = vmatmul.mubr.f32.gmra.mxu0 %v5655
    %v5726 = vpop.f32.mrf.mxu0
    %v5727 = vadd.f32 0.0, %v5726
    %v5728 = vpop.f32.mrf.mxu0
    %5729 = vmatprep.mubr.f32.mxu0 0.0
    %5730 = vmatmul.mubr.f32.gmra.mxu0 %v5658
    %v5731 = vpop.f32.mrf.mxu0
    %v5732 = vadd.f32 0.0, %v5731
    %v5733 = vpop.f32.mrf.mxu0
    %5734 = vdwg.mxu0
    %5737 = vrot.lane.b32.xlu0 %v4764, 64
    %v5738 = vpop.permute.xlu0 %5737
    %5739 = vrot.lane.b32.xlu0 %v4765, 64
    %v5740 = vpop.permute.xlu0 %5739
    %v5744 = vsel %vm1381, %v5632, 0
    %v5747 = vsel %vm1381, %v5633, 0
    %5749 = vmatprep.subr.mxu0 0.0
    %5750 = vmatpush1.msra.mxu0 0.0
    %5751 = vmatprep.subr.mxu0 0.0
    %5752 = vmatpush1.msra.mxu0 0.0
    %5753 = vmatprep.subr.mxu0 0.0
    %5754 = vmatpush1.msra.mxu0 0.0
    %5755 = vmatprep.subr.mxu0 0.0
    %5756 = vmatpush1.msra.mxu0 0.0
    %5757 = vmatprep.subr.mxu0 0.0
    %5758 = vmatpush1.msra.mxu0 0.0
    %5759 = vmatprep.subr.mxu0 0.0
    %5760 = vmatpush1.msra.mxu0 0.0
    %5761 = vmatprep.subr.mxu0 0.0
    %5762 = vmatpush1.msra.mxu0 0.0
    %5763 = vmatprep.subr.mxu0 0.0
    %5764 = vmatpush1.msra.mxu0 0.0
    %5765 = vmatprep.subr.mxu0 0.0
    %5766 = vmatpush1.msra.mxu0 0.0
    %5767 = vmatprep.subr.mxu0 0.0
    %5768 = vmatpush1.msra.mxu0 0.0
    %5769 = vmatprep.subr.mxu0 0.0
    %5770 = vmatpush1.msra.mxu0 0.0
    %5771 = vmatprep.subr.mxu0 0.0
    %5772 = vmatpush1.msra.mxu0 0.0
    %5773 = vmatprep.subr.mxu0 0.0
    %5774 = vmatpush1.msra.mxu0 0.0
    %5775 = vmatprep.subr.mxu0 0.0
    %5776 = vmatpush1.msra.mxu0 0.0
    %5777 = vmatprep.subr.mxu0 0.0
    %5778 = vmatpush1.msra.mxu0 %v5740
    %5779 = vmatprep.subr.mxu0 0.0
    %5780 = vmatpush1.msra.mxu0 %v5738
    %5781 = vmatprep.subr.mxu0 0.0
    %5782 = vmatpush2.msra.mxu0 0.0
    %5783 = vmatprep.subr.mxu0 0.0
    %5784 = vmatpush2.msra.mxu0 0.0
    %5785 = vmatprep.subr.mxu0 0.0
    %5786 = vmatpush2.msra.mxu0 0.0
    %5787 = vmatprep.subr.mxu0 0.0
    %5788 = vmatpush2.msra.mxu0 0.0
    %5789 = vmatprep.subr.mxu0 0.0
    %5790 = vmatpush2.msra.mxu0 0.0
    %5791 = vmatprep.subr.mxu0 0.0
    %5792 = vmatpush2.msra.mxu0 0.0
    %5793 = vmatprep.subr.mxu0 0.0
    %5794 = vmatpush2.msra.mxu0 0.0
    %5795 = vmatprep.subr.mxu0 0.0
    %5796 = vmatpush2.msra.mxu0 0.0
    %5797 = vmatprep.subr.mxu0 0.0
    %5798 = vmatpush2.msra.mxu0 0.0
    %5799 = vmatprep.subr.mxu0 0.0
    %5800 = vmatpush2.msra.mxu0 0.0
    %5801 = vmatprep.subr.mxu0 0.0
    %5802 = vmatpush2.msra.mxu0 0.0
    %5803 = vmatprep.subr.mxu0 0.0
    %5804 = vmatpush2.msra.mxu0 0.0
    %5805 = vmatprep.subr.mxu0 0.0
    %5806 = vmatpush2.msra.mxu0 0.0
    %5807 = vmatprep.subr.mxu0 0.0
    %5808 = vmatpush2.msra.mxu0 0.0
    %5809 = vmatprep.subr.mxu0 0.0
    %5810 = vmatpush2.msra.mxu0 0.0
    %5811 = vmatprep.subr.mxu0 0.0
    %5812 = vmatpush2.msra.mxu0 0.0
    %5813 = vmatprep.mubr.f32.mxu0 0.0
    %5814 = vmatmul.mubr.f32.gmra.mxu0 %v5744
    %v5815 = vpop.f32.mrf.mxu0
    %v5816 = vadd.f32 0.0, %v5815
    %v5817 = vpop.f32.mrf.mxu0
    %5818 = vmatprep.mubr.f32.mxu0 0.0
    %5819 = vmatmul.mubr.f32.gmra.mxu0 %v5747
    %v5820 = vpop.f32.mrf.mxu0
    %v5821 = vadd.f32 0.0, %v5820
    %v5822 = vpop.f32.mrf.mxu0
    %5823 = vdwg.mxu0
    %5826 = vrot.lane.b32.xlu0 %v4766, 64
    %v5827 = vpop.permute.xlu0 %5826
    %5828 = vrot.lane.b32.xlu0 %v4767, 64
    %v5829 = vpop.permute.xlu0 %5828
    %v5833 = vsel %vm1381, %v5634, 0
    %v5836 = vsel %vm1381, %v5635, 0
    %5838 = vmatprep.subr.mxu0 0.0
    %5839 = vmatpush1.msra.mxu0 0.0
    %5840 = vmatprep.subr.mxu0 0.0
    %5841 = vmatpush1.msra.mxu0 0.0
    %5842 = vmatprep.subr.mxu0 0.0
    %5843 = vmatpush1.msra.mxu0 0.0
    %5844 = vmatprep.subr.mxu0 0.0
    %5845 = vmatpush1.msra.mxu0 0.0
    %5846 = vmatprep.subr.mxu0 0.0
    %5847 = vmatpush1.msra.mxu0 0.0
    %5848 = vmatprep.subr.mxu0 0.0
    %5849 = vmatpush1.msra.mxu0 0.0
    %5850 = vmatprep.subr.mxu0 0.0
    %5851 = vmatpush1.msra.mxu0 0.0
    %5852 = vmatprep.subr.mxu0 0.0
    %5853 = vmatpush1.msra.mxu0 0.0
    %5854 = vmatprep.subr.mxu0 0.0
    %5855 = vmatpush1.msra.mxu0 0.0
    %5856 = vmatprep.subr.mxu0 0.0
    %5857 = vmatpush1.msra.mxu0 0.0
    %5858 = vmatprep.subr.mxu0 0.0
    %5859 = vmatpush1.msra.mxu0 0.0
    %5860 = vmatprep.subr.mxu0 0.0
    %5861 = vmatpush1.msra.mxu0 0.0
    %5862 = vmatprep.subr.mxu0 0.0
    %5863 = vmatpush1.msra.mxu0 0.0
    %5864 = vmatprep.subr.mxu0 0.0
    %5865 = vmatpush1.msra.mxu0 0.0
    %5866 = vmatprep.subr.mxu0 0.0
    %5867 = vmatpush1.msra.mxu0 %v5829
    %5868 = vmatprep.subr.mxu0 0.0
    %5869 = vmatpush1.msra.mxu0 %v5827
    %5870 = vmatprep.subr.mxu0 0.0
    %5871 = vmatpush2.msra.mxu0 0.0
    %5872 = vmatprep.subr.mxu0 0.0
    %5873 = vmatpush2.msra.mxu0 0.0
    %5874 = vmatprep.subr.mxu0 0.0
    %5875 = vmatpush2.msra.mxu0 0.0
    %5876 = vmatprep.subr.mxu0 0.0
    %5877 = vmatpush2.msra.mxu0 0.0
    %5878 = vmatprep.subr.mxu0 0.0
    %5879 = vmatpush2.msra.mxu0 0.0
    %5880 = vmatprep.subr.mxu0 0.0
    %5881 = vmatpush2.msra.mxu0 0.0
    %5882 = vmatprep.subr.mxu0 0.0
    %5883 = vmatpush2.msra.mxu0 0.0
    %5884 = vmatprep.subr.mxu0 0.0
    %5885 = vmatpush2.msra.mxu0 0.0
    %5886 = vmatprep.subr.mxu0 0.0
    %5887 = vmatpush2.msra.mxu0 0.0
    %5888 = vmatprep.subr.mxu0 0.0
    %5889 = vmatpush2.msra.mxu0 0.0
    %5890 = vmatprep.subr.mxu0 0.0
    %5891 = vmatpush2.msra.mxu0 0.0
    %5892 = vmatprep.subr.mxu0 0.0
    %5893 = vmatpush2.msra.mxu0 0.0
    %5894 = vmatprep.subr.mxu0 0.0
    %5895 = vmatpush2.msra.mxu0 0.0
    %5896 = vmatprep.subr.mxu0 0.0
    %5897 = vmatpush2.msra.mxu0 0.0
    %5898 = vmatprep.subr.mxu0 0.0
    %5899 = vmatpush2.msra.mxu0 0.0
    %5900 = vmatprep.subr.mxu0 0.0
    %5901 = vmatpush2.msra.mxu0 0.0
    %5902 = vmatprep.mubr.f32.mxu0 0.0
    %5903 = vmatmul.mubr.f32.gmra.mxu0 %v5833
    %v5904 = vpop.f32.mrf.mxu0
    %v5905 = vadd.f32 0.0, %v5904
    %v5906 = vpop.f32.mrf.mxu0
    %5907 = vmatprep.mubr.f32.mxu0 0.0
    %5908 = vmatmul.mubr.f32.gmra.mxu0 %v5836
    %v5909 = vpop.f32.mrf.mxu0
    %v5910 = vadd.f32 0.0, %v5909
    %v5911 = vpop.f32.mrf.mxu0
    %5912 = vdwg.mxu0
    %5915 = vrot.lane.b32.xlu0 %v4768, 64
    %v5916 = vpop.permute.xlu0 %5915
    %5917 = vrot.lane.b32.xlu0 %v4769, 64
    %v5918 = vpop.permute.xlu0 %5917
    %v5922 = vsel %vm1381, %v5636, 0
    %v5925 = vsel %vm1381, %v5637, 0
    %5927 = vmatprep.subr.mxu0 0.0
    %5928 = vmatpush1.msra.mxu0 0.0
    %5929 = vmatprep.subr.mxu0 0.0
    %5930 = vmatpush1.msra.mxu0 0.0
    %5931 = vmatprep.subr.mxu0 0.0
    %5932 = vmatpush1.msra.mxu0 0.0
    %5933 = vmatprep.subr.mxu0 0.0
    %5934 = vmatpush1.msra.mxu0 0.0
    %5935 = vmatprep.subr.mxu0 0.0
    %5936 = vmatpush1.msra.mxu0 0.0
    %5937 = vmatprep.subr.mxu0 0.0
    %5938 = vmatpush1.msra.mxu0 0.0
    %5939 = vmatprep.subr.mxu0 0.0
    %5940 = vmatpush1.msra.mxu0 0.0
    %5941 = vmatprep.subr.mxu0 0.0
    %5942 = vmatpush1.msra.mxu0 0.0
    %5943 = vmatprep.subr.mxu0 0.0
    %5944 = vmatpush1.msra.mxu0 0.0
    %5945 = vmatprep.subr.mxu0 0.0
    %5946 = vmatpush1.msra.mxu0 0.0
    %5947 = vmatprep.subr.mxu0 0.0
    %5948 = vmatpush1.msra.mxu0 0.0
    %5949 = vmatprep.subr.mxu0 0.0
    %5950 = vmatpush1.msra.mxu0 0.0
    %5951 = vmatprep.subr.mxu0 0.0
    %5952 = vmatpush1.msra.mxu0 0.0
    %5953 = vmatprep.subr.mxu0 0.0
    %5954 = vmatpush1.msra.mxu0 0.0
    %5955 = vmatprep.subr.mxu0 0.0
    %5956 = vmatpush1.msra.mxu0 %v5918
    %5957 = vmatprep.subr.mxu0 0.0
    %5958 = vmatpush1.msra.mxu0 %v5916
    %5959 = vmatprep.subr.mxu0 0.0
    %5960 = vmatpush2.msra.mxu0 0.0
    %5961 = vmatprep.subr.mxu0 0.0
    %5962 = vmatpush2.msra.mxu0 0.0
    %5963 = vmatprep.subr.mxu0 0.0
    %5964 = vmatpush2.msra.mxu0 0.0
    %5965 = vmatprep.subr.mxu0 0.0
    %5966 = vmatpush2.msra.mxu0 0.0
    %5967 = vmatprep.subr.mxu0 0.0
    %5968 = vmatpush2.msra.mxu0 0.0
    %5969 = vmatprep.subr.mxu0 0.0
    %5970 = vmatpush2.msra.mxu0 0.0
    %5971 = vmatprep.subr.mxu0 0.0
    %5972 = vmatpush2.msra.mxu0 0.0
    %5973 = vmatprep.subr.mxu0 0.0
    %5974 = vmatpush2.msra.mxu0 0.0
    %5975 = vmatprep.subr.mxu0 0.0
    %5976 = vmatpush2.msra.mxu0 0.0
    %5977 = vmatprep.subr.mxu0 0.0
    %5978 = vmatpush2.msra.mxu0 0.0
    %5979 = vmatprep.subr.mxu0 0.0
    %5980 = vmatpush2.msra.mxu0 0.0
    %5981 = vmatprep.subr.mxu0 0.0
    %5982 = vmatpush2.msra.mxu0 0.0
    %5983 = vmatprep.subr.mxu0 0.0
    %5984 = vmatpush2.msra.mxu0 0.0
    %5985 = vmatprep.subr.mxu0 0.0
    %5986 = vmatpush2.msra.mxu0 0.0
    %5987 = vmatprep.subr.mxu0 0.0
    %5988 = vmatpush2.msra.mxu0 0.0
    %5989 = vmatprep.subr.mxu0 0.0
    %5990 = vmatpush2.msra.mxu0 0.0
    %5991 = vmatprep.mubr.f32.mxu0 0.0
    %5992 = vmatmul.mubr.f32.gmra.mxu0 %v5922
    %v5993 = vpop.f32.mrf.mxu0
    %v5994 = vadd.f32 0.0, %v5993
    %v5995 = vpop.f32.mrf.mxu0
    %5996 = vmatprep.mubr.f32.mxu0 0.0
    %5997 = vmatmul.mubr.f32.gmra.mxu0 %v5925
    %v5998 = vpop.f32.mrf.mxu0
    %v5999 = vadd.f32 0.0, %v5998
    %v6000 = vpop.f32.mrf.mxu0
    %6001 = vdwg.mxu0
    %6004 = vrot.lane.b32.xlu0 %v4770, 64
    %v6005 = vpop.permute.xlu0 %6004
    %6006 = vrot.lane.b32.xlu0 %v4771, 64
    %v6007 = vpop.permute.xlu0 %6006
    %v6011 = vsel %vm1381, %v5638, 0
    %v6014 = vsel %vm1381, %v5639, 0
    %6016 = vmatprep.subr.mxu0 0.0
    %6017 = vmatpush1.msra.mxu0 0.0
    %6018 = vmatprep.subr.mxu0 0.0
    %6019 = vmatpush1.msra.mxu0 0.0
    %6020 = vmatprep.subr.mxu0 0.0
    %6021 = vmatpush1.msra.mxu0 0.0
    %6022 = vmatprep.subr.mxu0 0.0
    %6023 = vmatpush1.msra.mxu0 0.0
    %6024 = vmatprep.subr.mxu0 0.0
    %6025 = vmatpush1.msra.mxu0 0.0
    %6026 = vmatprep.subr.mxu0 0.0
    %6027 = vmatpush1.msra.mxu0 0.0
    %6028 = vmatprep.subr.mxu0 0.0
    %6029 = vmatpush1.msra.mxu0 0.0
    %6030 = vmatprep.subr.mxu0 0.0
    %6031 = vmatpush1.msra.mxu0 0.0
    %6032 = vmatprep.subr.mxu0 0.0
    %6033 = vmatpush1.msra.mxu0 0.0
    %6034 = vmatprep.subr.mxu0 0.0
    %6035 = vmatpush1.msra.mxu0 0.0
    %6036 = vmatprep.subr.mxu0 0.0
    %6037 = vmatpush1.msra.mxu0 0.0
    %6038 = vmatprep.subr.mxu0 0.0
    %6039 = vmatpush1.msra.mxu0 0.0
    %6040 = vmatprep.subr.mxu0 0.0
    %6041 = vmatpush1.msra.mxu0 0.0
    %6042 = vmatprep.subr.mxu0 0.0
    %6043 = vmatpush1.msra.mxu0 0.0
    %6044 = vmatprep.subr.mxu0 0.0
    %6045 = vmatpush1.msra.mxu0 %v6007
    %6046 = vmatprep.subr.mxu0 0.0
    %6047 = vmatpush1.msra.mxu0 %v6005
    %6048 = vmatprep.subr.mxu0 0.0
    %6049 = vmatpush2.msra.mxu0 0.0
    %6050 = vmatprep.subr.mxu0 0.0
    %6051 = vmatpush2.msra.mxu0 0.0
    %6052 = vmatprep.subr.mxu0 0.0
    %6053 = vmatpush2.msra.mxu0 0.0
    %6054 = vmatprep.subr.mxu0 0.0
    %6055 = vmatpush2.msra.mxu0 0.0
    %6056 = vmatprep.subr.mxu0 0.0
    %6057 = vmatpush2.msra.mxu0 0.0
    %6058 = vmatprep.subr.mxu0 0.0
    %6059 = vmatpush2.msra.mxu0 0.0
    %6060 = vmatprep.subr.mxu0 0.0
    %6061 = vmatpush2.msra.mxu0 0.0
    %6062 = vmatprep.subr.mxu0 0.0
    %6063 = vmatpush2.msra.mxu0 0.0
    %6064 = vmatprep.subr.mxu0 0.0
    %6065 = vmatpush2.msra.mxu0 0.0
    %6066 = vmatprep.subr.mxu0 0.0
    %6067 = vmatpush2.msra.mxu0 0.0
    %6068 = vmatprep.subr.mxu0 0.0
    %6069 = vmatpush2.msra.mxu0 0.0
    %6070 = vmatprep.subr.mxu0 0.0
    %6071 = vmatpush2.msra.mxu0 0.0
    %6072 = vmatprep.subr.mxu0 0.0
    %6073 = vmatpush2.msra.mxu0 0.0
    %6074 = vmatprep.subr.mxu0 0.0
    %6075 = vmatpush2.msra.mxu0 0.0
    %6076 = vmatprep.subr.mxu0 0.0
    %6077 = vmatpush2.msra.mxu0 0.0
    %6078 = vmatprep.subr.mxu0 0.0
    %6079 = vmatpush2.msra.mxu0 0.0
    %6080 = vmatprep.mubr.f32.mxu0 0.0
    %6081 = vmatmul.mubr.f32.gmra.mxu0 %v6011
    %v6082 = vpop.f32.mrf.mxu0
    %v6083 = vadd.f32 0.0, %v6082
    %v6084 = vpop.f32.mrf.mxu0
    %6085 = vmatprep.mubr.f32.mxu0 0.0
    %6086 = vmatmul.mubr.f32.gmra.mxu0 %v6014
    %v6087 = vpop.f32.mrf.mxu0
    %v6088 = vadd.f32 0.0, %v6087
    %v6089 = vpop.f32.mrf.mxu0
    %6090 = vdwg.mxu0
    %6093 = vrot.lane.b32.xlu0 %v4772, 64
    %v6094 = vpop.permute.xlu0 %6093
    %6095 = vrot.lane.b32.xlu0 %v4773, 64
    %v6096 = vpop.permute.xlu0 %6095
    %v6100 = vsel %vm1381, %v5640, 0
    %v6103 = vsel %vm1381, %v5641, 0
    %6105 = vmatprep.subr.mxu0 0.0
    %6106 = vmatpush1.msra.mxu0 0.0
    %6107 = vmatprep.subr.mxu0 0.0
    %6108 = vmatpush1.msra.mxu0 0.0
    %6109 = vmatprep.subr.mxu0 0.0
    %6110 = vmatpush1.msra.mxu0 0.0
    %6111 = vmatprep.subr.mxu0 0.0
    %6112 = vmatpush1.msra.mxu0 0.0
    %6113 = vmatprep.subr.mxu0 0.0
    %6114 = vmatpush1.msra.mxu0 0.0
    %6115 = vmatprep.subr.mxu0 0.0
    %6116 = vmatpush1.msra.mxu0 0.0
    %6117 = vmatprep.subr.mxu0 0.0
    %6118 = vmatpush1.msra.mxu0 0.0
    %6119 = vmatprep.subr.mxu0 0.0
    %6120 = vmatpush1.msra.mxu0 0.0
    %6121 = vmatprep.subr.mxu0 0.0
    %6122 = vmatpush1.msra.mxu0 0.0
    %6123 = vmatprep.subr.mxu0 0.0
    %6124 = vmatpush1.msra.mxu0 0.0
    %6125 = vmatprep.subr.mxu0 0.0
    %6126 = vmatpush1.msra.mxu0 0.0
    %6127 = vmatprep.subr.mxu0 0.0
    %6128 = vmatpush1.msra.mxu0 0.0
    %6129 = vmatprep.subr.mxu0 0.0
    %6130 = vmatpush1.msra.mxu0 0.0
    %6131 = vmatprep.subr.mxu0 0.0
    %6132 = vmatpush1.msra.mxu0 0.0
    %6133 = vmatprep.subr.mxu0 0.0
    %6134 = vmatpush1.msra.mxu0 %v6096
    %6135 = vmatprep.subr.mxu0 0.0
    %6136 = vmatpush1.msra.mxu0 %v6094
    %6137 = vmatprep.subr.mxu0 0.0
    %6138 = vmatpush2.msra.mxu0 0.0
    %6139 = vmatprep.subr.mxu0 0.0
    %6140 = vmatpush2.msra.mxu0 0.0
    %6141 = vmatprep.subr.mxu0 0.0
    %6142 = vmatpush2.msra.mxu0 0.0
    %6143 = vmatprep.subr.mxu0 0.0
    %6144 = vmatpush2.msra.mxu0 0.0
    %6145 = vmatprep.subr.mxu0 0.0
    %6146 = vmatpush2.msra.mxu0 0.0
    %6147 = vmatprep.subr.mxu0 0.0
    %6148 = vmatpush2.msra.mxu0 0.0
    %6149 = vmatprep.subr.mxu0 0.0
    %6150 = vmatpush2.msra.mxu0 0.0
    %6151 = vmatprep.subr.mxu0 0.0
    %6152 = vmatpush2.msra.mxu0 0.0
    %6153 = vmatprep.subr.mxu0 0.0
    %6154 = vmatpush2.msra.mxu0 0.0
    %6155 = vmatprep.subr.mxu0 0.0
    %6156 = vmatpush2.msra.mxu0 0.0
    %6157 = vmatprep.subr.mxu0 0.0
    %6158 = vmatpush2.msra.mxu0 0.0
    %6159 = vmatprep.subr.mxu0 0.0
    %6160 = vmatpush2.msra.mxu0 0.0
    %6161 = vmatprep.subr.mxu0 0.0
    %6162 = vmatpush2.msra.mxu0 0.0
    %6163 = vmatprep.subr.mxu0 0.0
    %6164 = vmatpush2.msra.mxu0 0.0
    %6165 = vmatprep.subr.mxu0 0.0
    %6166 = vmatpush2.msra.mxu0 0.0
    %6167 = vmatprep.subr.mxu0 0.0
    %6168 = vmatpush2.msra.mxu0 0.0
    %6169 = vmatprep.mubr.f32.mxu0 0.0
    %6170 = vmatmul.mubr.f32.gmra.mxu0 %v6100
    %v6171 = vpop.f32.mrf.mxu0
    %v6172 = vadd.f32 0.0, %v6171
    %v6173 = vpop.f32.mrf.mxu0
    %6174 = vmatprep.mubr.f32.mxu0 0.0
    %6175 = vmatmul.mubr.f32.gmra.mxu0 %v6103
    %v6176 = vpop.f32.mrf.mxu0
    %v6177 = vadd.f32 0.0, %v6176
    %v6178 = vpop.f32.mrf.mxu0
    %6179 = vdwg.mxu0
    %6182 = vrot.lane.b32.xlu0 %v4774, 64
    %v6183 = vpop.permute.xlu0 %6182
    %6184 = vrot.lane.b32.xlu0 %v4775, 64
    %v6185 = vpop.permute.xlu0 %6184
    %v6189 = vsel %vm1381, %v5642, 0
    %v6192 = vsel %vm1381, %v5643, 0
    %6194 = vmatprep.subr.mxu0 0.0
    %6195 = vmatpush1.msra.mxu0 0.0
    %6196 = vmatprep.subr.mxu0 0.0
    %6197 = vmatpush1.msra.mxu0 0.0
    %6198 = vmatprep.subr.mxu0 0.0
    %6199 = vmatpush1.msra.mxu0 0.0
    %6200 = vmatprep.subr.mxu0 0.0
    %6201 = vmatpush1.msra.mxu0 0.0
    %6202 = vmatprep.subr.mxu0 0.0
    %6203 = vmatpush1.msra.mxu0 0.0
    %6204 = vmatprep.subr.mxu0 0.0
    %6205 = vmatpush1.msra.mxu0 0.0
    %6206 = vmatprep.subr.mxu0 0.0
    %6207 = vmatpush1.msra.mxu0 0.0
    %6208 = vmatprep.subr.mxu0 0.0
    %6209 = vmatpush1.msra.mxu0 0.0
    %6210 = vmatprep.subr.mxu0 0.0
    %6211 = vmatpush1.msra.mxu0 0.0
    %6212 = vmatprep.subr.mxu0 0.0
    %6213 = vmatpush1.msra.mxu0 0.0
    %6214 = vmatprep.subr.mxu0 0.0
    %6215 = vmatpush1.msra.mxu0 0.0
    %6216 = vmatprep.subr.mxu0 0.0
    %6217 = vmatpush1.msra.mxu0 0.0
    %6218 = vmatprep.subr.mxu0 0.0
    %6219 = vmatpush1.msra.mxu0 0.0
    %6220 = vmatprep.subr.mxu0 0.0
    %6221 = vmatpush1.msra.mxu0 0.0
    %6222 = vmatprep.subr.mxu0 0.0
    %6223 = vmatpush1.msra.mxu0 %v6185
    %6224 = vmatprep.subr.mxu0 0.0
    %6225 = vmatpush1.msra.mxu0 %v6183
    %6226 = vmatprep.subr.mxu0 0.0
    %6227 = vmatpush2.msra.mxu0 0.0
    %6228 = vmatprep.subr.mxu0 0.0
    %6229 = vmatpush2.msra.mxu0 0.0
    %6230 = vmatprep.subr.mxu0 0.0
    %6231 = vmatpush2.msra.mxu0 0.0
    %6232 = vmatprep.subr.mxu0 0.0
    %6233 = vmatpush2.msra.mxu0 0.0
    %6234 = vmatprep.subr.mxu0 0.0
    %6235 = vmatpush2.msra.mxu0 0.0
    %6236 = vmatprep.subr.mxu0 0.0
    %6237 = vmatpush2.msra.mxu0 0.0
    %6238 = vmatprep.subr.mxu0 0.0
    %6239 = vmatpush2.msra.mxu0 0.0
    %6240 = vmatprep.subr.mxu0 0.0
    %6241 = vmatpush2.msra.mxu0 0.0
    %6242 = vmatprep.subr.mxu0 0.0
    %6243 = vmatpush2.msra.mxu0 0.0
    %6244 = vmatprep.subr.mxu0 0.0
    %6245 = vmatpush2.msra.mxu0 0.0
    %6246 = vmatprep.subr.mxu0 0.0
    %6247 = vmatpush2.msra.mxu0 0.0
    %6248 = vmatprep.subr.mxu0 0.0
    %6249 = vmatpush2.msra.mxu0 0.0
    %6250 = vmatprep.subr.mxu0 0.0
    %6251 = vmatpush2.msra.mxu0 0.0
    %6252 = vmatprep.subr.mxu0 0.0
    %6253 = vmatpush2.msra.mxu0 0.0
    %6254 = vmatprep.subr.mxu0 0.0
    %6255 = vmatpush2.msra.mxu0 0.0
    %6256 = vmatprep.subr.mxu0 0.0
    %6257 = vmatpush2.msra.mxu0 0.0
    %6258 = vmatprep.mubr.f32.mxu0 0.0
    %6259 = vmatmul.mubr.f32.gmra.mxu0 %v6189
    %v6260 = vpop.f32.mrf.mxu0
    %v6261 = vadd.f32 0.0, %v6260
    %v6262 = vpop.f32.mrf.mxu0
    %6263 = vmatprep.mubr.f32.mxu0 0.0
    %6264 = vmatmul.mubr.f32.gmra.mxu0 %v6192
    %v6265 = vpop.f32.mrf.mxu0
    %v6266 = vadd.f32 0.0, %v6265
    %v6267 = vpop.f32.mrf.mxu0
    %6268 = vdwg.mxu0
    %6271 = vrot.lane.b32.xlu0 %v4776, 64
    %v6272 = vpop.permute.xlu0 %6271
    %6273 = vrot.lane.b32.xlu0 %v4777, 64
    %v6274 = vpop.permute.xlu0 %6273
    %v6278 = vsel %vm1381, %v5644, 0
    %v6281 = vsel %vm1381, %v5645, 0
    %6283 = vmatprep.subr.mxu0 0.0
    %6284 = vmatpush1.msra.mxu0 0.0
    %6285 = vmatprep.subr.mxu0 0.0
    %6286 = vmatpush1.msra.mxu0 0.0
    %6287 = vmatprep.subr.mxu0 0.0
    %6288 = vmatpush1.msra.mxu0 0.0
    %6289 = vmatprep.subr.mxu0 0.0
    %6290 = vmatpush1.msra.mxu0 0.0
    %6291 = vmatprep.subr.mxu0 0.0
    %6292 = vmatpush1.msra.mxu0 0.0
    %6293 = vmatprep.subr.mxu0 0.0
    %6294 = vmatpush1.msra.mxu0 0.0
    %6295 = vmatprep.subr.mxu0 0.0
    %6296 = vmatpush1.msra.mxu0 0.0
    %6297 = vmatprep.subr.mxu0 0.0
    %6298 = vmatpush1.msra.mxu0 0.0
    %6299 = vmatprep.subr.mxu0 0.0
    %6300 = vmatpush1.msra.mxu0 0.0
    %6301 = vmatprep.subr.mxu0 0.0
    %6302 = vmatpush1.msra.mxu0 0.0
    %6303 = vmatprep.subr.mxu0 0.0
    %6304 = vmatpush1.msra.mxu0 0.0
    %6305 = vmatprep.subr.mxu0 0.0
    %6306 = vmatpush1.msra.mxu0 0.0
    %6307 = vmatprep.subr.mxu0 0.0
    %6308 = vmatpush1.msra.mxu0 0.0
    %6309 = vmatprep.subr.mxu0 0.0
    %6310 = vmatpush1.msra.mxu0 0.0
    %6311 = vmatprep.subr.mxu0 0.0
    %6312 = vmatpush1.msra.mxu0 %v6274
    %6313 = vmatprep.subr.mxu0 0.0
    %6314 = vmatpush1.msra.mxu0 %v6272
    %6315 = vmatprep.subr.mxu0 0.0
    %6316 = vmatpush2.msra.mxu0 0.0
    %6317 = vmatprep.subr.mxu0 0.0
    %6318 = vmatpush2.msra.mxu0 0.0
    %6319 = vmatprep.subr.mxu0 0.0
    %6320 = vmatpush2.msra.mxu0 0.0
    %6321 = vmatprep.subr.mxu0 0.0
    %6322 = vmatpush2.msra.mxu0 0.0
    %6323 = vmatprep.subr.mxu0 0.0
    %6324 = vmatpush2.msra.mxu0 0.0
    %6325 = vmatprep.subr.mxu0 0.0
    %6326 = vmatpush2.msra.mxu0 0.0
    %6327 = vmatprep.subr.mxu0 0.0
    %6328 = vmatpush2.msra.mxu0 0.0
    %6329 = vmatprep.subr.mxu0 0.0
    %6330 = vmatpush2.msra.mxu0 0.0
    %6331 = vmatprep.subr.mxu0 0.0
    %6332 = vmatpush2.msra.mxu0 0.0
    %6333 = vmatprep.subr.mxu0 0.0
    %6334 = vmatpush2.msra.mxu0 0.0
    %6335 = vmatprep.subr.mxu0 0.0
    %6336 = vmatpush2.msra.mxu0 0.0
    %6337 = vmatprep.subr.mxu0 0.0
    %6338 = vmatpush2.msra.mxu0 0.0
    %6339 = vmatprep.subr.mxu0 0.0
    %6340 = vmatpush2.msra.mxu0 0.0
    %6341 = vmatprep.subr.mxu0 0.0
    %6342 = vmatpush2.msra.mxu0 0.0
    %6343 = vmatprep.subr.mxu0 0.0
    %6344 = vmatpush2.msra.mxu0 0.0
    %6345 = vmatprep.subr.mxu0 0.0
    %6346 = vmatpush2.msra.mxu0 0.0
    %6347 = vmatprep.mubr.f32.mxu0 0.0
    %6348 = vmatmul.mubr.f32.gmra.mxu0 %v6278
    %v6349 = vpop.f32.mrf.mxu0
    %v6350 = vadd.f32 0.0, %v6349
    %v6351 = vpop.f32.mrf.mxu0
    %6352 = vmatprep.mubr.f32.mxu0 0.0
    %6353 = vmatmul.mubr.f32.gmra.mxu0 %v6281
    %v6354 = vpop.f32.mrf.mxu0
    %v6355 = vadd.f32 0.0, %v6354
    %v6356 = vpop.f32.mrf.mxu0
    %6357 = vdwg.mxu0
    %v6358 = vsel %vm336, %v5727, 0.0
    %v6359 = vsel %vm336, %v5816, 0.0
    %v6360 = vadd.f32 %v6358, %v6359
    %v6361 = vsel %vm336, %v5905, 0.0
    %v6362 = vadd.f32 %v6360, %v6361
    %v6363 = vsel %vm336, %v5994, 0.0
    %v6364 = vadd.f32 %v6362, %v6363
    %v6365 = vsel %vm336, %v5732, 0.0
    %v6366 = vsel %vm336, %v5821, 0.0
    %v6367 = vadd.f32 %v6365, %v6366
    %v6368 = vsel %vm336, %v5910, 0.0
    %v6369 = vadd.f32 %v6367, %v6368
    %v6370 = vsel %vm336, %v5999, 0.0
    %v6371 = vadd.f32 %v6369, %v6370
    %v6372 = vsel %vm336, %v6083, 0.0
    %v6373 = vsel %vm336, %v6172, 0.0
    %v6374 = vadd.f32 %v6372, %v6373
    %v6375 = vsel %vm336, %v6261, 0.0
    %v6376 = vadd.f32 %v6374, %v6375
    %v6377 = vsel %vm336, %v6350, 0.0
    %v6378 = vadd.f32 %v6376, %v6377
    %v6379 = vsel %vm336, %v6088, 0.0
    %v6380 = vsel %vm336, %v6177, 0.0
    %v6381 = vadd.f32 %v6379, %v6380
    %v6382 = vsel %vm336, %v6266, 0.0
    %v6383 = vadd.f32 %v6381, %v6382
    %v6384 = vsel %vm336, %v6355, 0.0
    %v6385 = vadd.f32 %v6383, %v6384
    %6390 = vrot.lane.b32.xlu0 %v4578, 32
    %v6391 = vpop.permute.xlu0 %6390
    %6392 = vrot.lane.b32.xlu0 %v4581, 32
    %v6393 = vpop.permute.xlu0 %6392
    %6394 = vrot.lane.b32.xlu0 %v4584, 32
    %v6395 = vpop.permute.xlu0 %6394
    %6396 = vrot.lane.b32.xlu0 %v4587, 32
    %v6397 = vpop.permute.xlu0 %6396
    %6403 = vrot.lane.b32.xlu0 %v4648, 32
    %v6404 = vpop.permute.xlu0 %6403
    %v6407 = vsel %vm336, %v6364, 0
    %v6410 = vsel %vm336, %v6371, 0
    %v6413 = vsel %vm336, %v6378, 0
    %v6416 = vsel %vm336, %v6385, 0
    %6418 = vmatprep.subr.mxu0 0.0
    %6419 = vmatpush1.msra.mxu0 0.0
    %6420 = vmatprep.subr.mxu0 0.0
    %6421 = vmatpush1.msra.mxu0 0.0
    %6422 = vmatprep.subr.mxu0 0.0
    %6423 = vmatpush1.msra.mxu0 0.0
    %6424 = vmatprep.subr.mxu0 0.0
    %6425 = vmatpush1.msra.mxu0 0.0
    %6426 = vmatprep.subr.mxu0 0.0
    %6427 = vmatpush1.msra.mxu0 0.0
    %6428 = vmatprep.subr.mxu0 0.0
    %6429 = vmatpush1.msra.mxu0 0.0
    %6430 = vmatprep.subr.mxu0 0.0
    %6431 = vmatpush1.msra.mxu0 0.0
    %6432 = vmatprep.subr.mxu0 0.0
    %6433 = vmatpush1.msra.mxu0 0.0
    %6434 = vmatprep.subr.mxu0 0.0
    %6435 = vmatpush1.msra.mxu0 0.0
    %6436 = vmatprep.subr.mxu0 0.0
    %6437 = vmatpush1.msra.mxu0 0.0
    %6438 = vmatprep.subr.mxu0 0.0
    %6439 = vmatpush1.msra.mxu0 0.0
    %6440 = vmatprep.subr.mxu0 0.0
    %6441 = vmatpush1.msra.mxu0 0.0
    %6442 = vmatprep.subr.mxu0 0.0
    %6443 = vmatpush1.msra.mxu0 %v6397
    %6444 = vmatprep.subr.mxu0 0.0
    %6445 = vmatpush1.msra.mxu0 %v6395
    %6446 = vmatprep.subr.mxu0 0.0
    %6447 = vmatpush1.msra.mxu0 %v6393
    %6448 = vmatprep.subr.mxu0 0.0
    %6449 = vmatpush1.msra.mxu0 %v6391
    %6450 = vmatprep.subr.mxu0 0.0
    %6451 = vmatpush2.msra.mxu0 0.0
    %6452 = vmatprep.subr.mxu0 0.0
    %6453 = vmatpush2.msra.mxu0 0.0
    %6454 = vmatprep.subr.mxu0 0.0
    %6455 = vmatpush2.msra.mxu0 0.0
    %6456 = vmatprep.subr.mxu0 0.0
    %6457 = vmatpush2.msra.mxu0 0.0
    %6458 = vmatprep.subr.mxu0 0.0
    %6459 = vmatpush2.msra.mxu0 0.0
    %6460 = vmatprep.subr.mxu0 0.0
    %6461 = vmatpush2.msra.mxu0 0.0
    %6462 = vmatprep.subr.mxu0 0.0
    %6463 = vmatpush2.msra.mxu0 0.0
    %6464 = vmatprep.subr.mxu0 0.0
    %6465 = vmatpush2.msra.mxu0 0.0
    %6466 = vmatprep.subr.mxu0 0.0
    %6467 = vmatpush2.msra.mxu0 0.0
    %6468 = vmatprep.subr.mxu0 0.0
    %6469 = vmatpush2.msra.mxu0 0.0
    %6470 = vmatprep.subr.mxu0 0.0
    %6471 = vmatpush2.msra.mxu0 0.0
    %6472 = vmatprep.subr.mxu0 0.0
    %6473 = vmatpush2.msra.mxu0 0.0
    %6474 = vmatprep.subr.mxu0 0.0
    %6475 = vmatpush2.msra.mxu0 0.0
    %6476 = vmatprep.subr.mxu0 0.0
    %6477 = vmatpush2.msra.mxu0 0.0
    %6478 = vmatprep.subr.mxu0 0.0
    %6479 = vmatpush2.msra.mxu0 0.0
    %6480 = vmatprep.subr.mxu0 0.0
    %6481 = vmatpush2.msra.mxu0 0.0
    %6482 = vmatprep.mubr.f32.mxu0 0.0
    %6483 = vmatmul.mubr.f32.gmra.mxu0 %v6407
    %v6484 = vpop.f32.mrf.mxu0
    %v6485 = vadd.f32 %v6404, %v6484
    %v6486 = vpop.f32.mrf.mxu0
    %6487 = vmatprep.mubr.f32.mxu0 0.0
    %6488 = vmatmul.mubr.f32.gmra.mxu0 %v6410
    %v6489 = vpop.f32.mrf.mxu0
    %v6490 = vadd.f32 %v6404, %v6489
    %v6491 = vpop.f32.mrf.mxu0
    %6492 = vmatprep.mubr.f32.mxu0 0.0
    %6493 = vmatmul.mubr.f32.gmra.mxu0 %v6413
    %v6494 = vpop.f32.mrf.mxu0
    %v6495 = vadd.f32 %v6404, %v6494
    %v6496 = vpop.f32.mrf.mxu0
    %6497 = vmatprep.mubr.f32.mxu0 0.0
    %6498 = vmatmul.mubr.f32.gmra.mxu0 %v6416
    %v6499 = vpop.f32.mrf.mxu0
    %v6500 = vadd.f32 %v6404, %v6499
    %v6501 = vpop.f32.mrf.mxu0
    %6502 = vdwg.mxu0
    %v6503 = vadd.f32 %v4573, %v6485
    %v6504 = vadd.f32 %v4574, %v6490
    %v6505 = vadd.f32 %v4575, %v6495
    %v6506 = vadd.f32 %v4576, %v6500
    %v6507 = vsel %vm336, %v6503, 0.0
    %6508 = vadd.xlane.f32.xlu0 %v6507
    %v6509 = vpop.xlane.xlu0 %6508
    %v6510 = vsel %vm336, %v6504, 0.0
    %6511 = vadd.xlane.f32.xlu0 %v6510
    %v6512 = vpop.xlane.xlu0 %6511
    %v6513 = vsel %vm336, %v6505, 0.0
    %6514 = vadd.xlane.f32.xlu0 %v6513
    %v6515 = vpop.xlane.xlu0 %6514
    %v6516 = vsel %vm336, %v6506, 0.0
    %6517 = vadd.xlane.f32.xlu0 %v6516
    %v6518 = vpop.xlane.xlu0 %6517
    %v6519 = vmul.f32 %v6509, %v343
    %v6520 = vmul.f32 %v6512, %v343
    %v6521 = vmul.f32 %v6515, %v343
    %v6522 = vmul.f32 %v6518, %v343
    %v6523 = vsub.f32 %v6503, %v6519
    %v6524 = vsub.f32 %v6504, %v6520
    %v6525 = vsub.f32 %v6505, %v6521
    %v6526 = vsub.f32 %v6506, %v6522
    %v6527 = vmul.f32 %v6523, %v6523
    %v6528 = vmul.f32 %v6524, %v6524
    %v6529 = vmul.f32 %v6525, %v6525
    %v6530 = vmul.f32 %v6526, %v6526
    %v6531 = vsel %vm336, %v6527, 0.0
    %6532 = vadd.xlane.f32.xlu0 %v6531
    %v6533 = vpop.xlane.xlu0 %6532
    %v6534 = vsel %vm336, %v6528, 0.0
    %6535 = vadd.xlane.f32.xlu0 %v6534
    %v6536 = vpop.xlane.xlu0 %6535
    %v6537 = vsel %vm336, %v6529, 0.0
    %6538 = vadd.xlane.f32.xlu0 %v6537
    %v6539 = vpop.xlane.xlu0 %6538
    %v6540 = vsel %vm336, %v6530, 0.0
    %6541 = vadd.xlane.f32.xlu0 %v6540
    %v6542 = vpop.xlane.xlu0 %6541
    %v6543 = vmul.f32 %v6533, %v343
    %v6544 = vmul.f32 %v6536, %v343
    %v6545 = vmul.f32 %v6539, %v343
    %v6546 = vmul.f32 %v6542, %v343
    %v6547 = vadd.f32 %v6543, 1e-05
    %v6548 = vadd.f32 %v6544, 1e-05
    %v6549 = vadd.f32 %v6545, 1e-05
    %v6550 = vadd.f32 %v6546, 1e-05
    %v6551 = vrsqrt.pop %v6547
    %v6552 = vrsqrt.pop %v6548
    %v6553 = vrsqrt.pop %v6549
    %v6554 = vrsqrt.pop %v6550
    %v6555 = vmul.f32 %v6523, %v6551
    %v6556 = vmul.f32 %v6524, %v6552
    %v6557 = vmul.f32 %v6525, %v6553
    %v6558 = vmul.f32 %v6526, %v6554
    %v6559 = vlaneseq
    %v6560 = vshrl.u32 %v6559, 7
    %v6561 = vsub.s32 0, %v6560
    %v6562 = vrot.slane %v4591, %v6561
    %v6564 = vsel %vm336, %v6555, 0
    %v6567 = vsel %vm336, %v6556, 0
    %v6570 = vsel %vm336, %v6557, 0
    %v6573 = vsel %vm336, %v6558, 0
    %6575 = vmatprep.subr.mxu0 0.0
    %6576 = vmatpush1.msra.mxu0 0.0
    %6577 = vmatprep.subr.mxu0 0.0
    %6578 = vmatpush1.msra.mxu0 0.0
    %6579 = vmatprep.subr.mxu0 0.0
    %6580 = vmatpush1.msra.mxu0 0.0
    %6581 = vmatprep.subr.mxu0 0.0
    %6582 = vmatpush1.msra.mxu0 0.0
    %6583 = vmatprep.subr.mxu0 0.0
    %6584 = vmatpush1.msra.mxu0 0.0
    %6585 = vmatprep.subr.mxu0 0.0
    %6586 = vmatpush1.msra.mxu0 0.0
    %6587 = vmatprep.subr.mxu0 0.0
    %6588 = vmatpush1.msra.mxu0 0.0
    %6589 = vmatprep.subr.mxu0 0.0
    %6590 = vmatpush1.msra.mxu0 0.0
    %6591 = vmatprep.subr.mxu0 0.0
    %6592 = vmatpush1.msra.mxu0 0.0
    %6593 = vmatprep.subr.mxu0 0.0
    %6594 = vmatpush1.msra.mxu0 0.0
    %6595 = vmatprep.subr.mxu0 0.0
    %6596 = vmatpush1.msra.mxu0 0.0
    %6597 = vmatprep.subr.mxu0 0.0
    %6598 = vmatpush1.msra.mxu0 0.0
    %6599 = vmatprep.subr.mxu0 0.0
    %6600 = vmatpush1.msra.mxu0 %v4588
    %6601 = vmatprep.subr.mxu0 0.0
    %6602 = vmatpush1.msra.mxu0 %v4585
    %6603 = vmatprep.subr.mxu0 0.0
    %6604 = vmatpush1.msra.mxu0 %v4582
    %6605 = vmatprep.subr.mxu0 0.0
    %6606 = vmatpush1.msra.mxu0 %v4579
    %6607 = vmatprep.subr.mxu0 0.0
    %6608 = vmatpush2.msra.mxu0 0.0
    %6609 = vmatprep.subr.mxu0 0.0
    %6610 = vmatpush2.msra.mxu0 0.0
    %6611 = vmatprep.subr.mxu0 0.0
    %6612 = vmatpush2.msra.mxu0 0.0
    %6613 = vmatprep.subr.mxu0 0.0
    %6614 = vmatpush2.msra.mxu0 0.0
    %6615 = vmatprep.subr.mxu0 0.0
    %6616 = vmatpush2.msra.mxu0 0.0
    %6617 = vmatprep.subr.mxu0 0.0
    %6618 = vmatpush2.msra.mxu0 0.0
    %6619 = vmatprep.subr.mxu0 0.0
    %6620 = vmatpush2.msra.mxu0 0.0
    %6621 = vmatprep.subr.mxu0 0.0
    %6622 = vmatpush2.msra.mxu0 0.0
    %6623 = vmatprep.subr.mxu0 0.0
    %6624 = vmatpush2.msra.mxu0 0.0
    %6625 = vmatprep.subr.mxu0 0.0
    %6626 = vmatpush2.msra.mxu0 0.0
    %6627 = vmatprep.subr.mxu0 0.0
    %6628 = vmatpush2.msra.mxu0 0.0
    %6629 = vmatprep.subr.mxu0 0.0
    %6630 = vmatpush2.msra.mxu0 0.0
    %6631 = vmatprep.subr.mxu0 0.0
    %6632 = vmatpush2.msra.mxu0 0.0
    %6633 = vmatprep.subr.mxu0 0.0
    %6634 = vmatpush2.msra.mxu0 0.0
    %6635 = vmatprep.subr.mxu0 0.0
    %6636 = vmatpush2.msra.mxu0 0.0
    %6637 = vmatprep.subr.mxu0 0.0
    %6638 = vmatpush2.msra.mxu0 0.0
    %6639 = vmatprep.mubr.f32.mxu0 0.0
    %6640 = vmatmul.mubr.f32.gmra.mxu0 %v6564
    %v6641 = vpop.f32.mrf.mxu0
    %v6642 = vadd.f32 %v6562, %v6641
    %v6643 = vpop.f32.mrf.mxu0
    %6644 = vmatprep.mubr.f32.mxu0 0.0
    %6645 = vmatmul.mubr.f32.gmra.mxu0 %v6567
    %v6646 = vpop.f32.mrf.mxu0
    %v6647 = vadd.f32 %v6562, %v6646
    %v6648 = vpop.f32.mrf.mxu0
    %6649 = vmatprep.mubr.f32.mxu0 0.0
    %6650 = vmatmul.mubr.f32.gmra.mxu0 %v6570
    %v6651 = vpop.f32.mrf.mxu0
    %v6652 = vadd.f32 %v6562, %v6651
    %v6653 = vpop.f32.mrf.mxu0
    %6654 = vmatprep.mubr.f32.mxu0 0.0
    %6655 = vmatmul.mubr.f32.gmra.mxu0 %v6573
    %v6656 = vpop.f32.mrf.mxu0
    %v6657 = vadd.f32 %v6562, %v6656
    %v6658 = vpop.f32.mrf.mxu0
    %6659 = vdwg.mxu0
    %v6660 = vmul.f32 %v441, %v662
    %v6661 = vmul.f32 %v441, %v664
    %v6662 = vmul.f32 %v441, %v666
    %v6663 = vmul.f32 %v441, %v668
    %v6664 = vmul.f32 %v446, %v662
    %v6665 = vmul.f32 %v446, %v664
    %v6666 = vmul.f32 %v446, %v666
    %v6667 = vmul.f32 %v446, %v668
    %6668 = vrot.lane.b32.xlu0 %v620, 96
    %v6669 = vpop.permute.xlu0 %6668
    %6670 = vrot.lane.b32.xlu0 %v624, 96
    %v6671 = vpop.permute.xlu0 %6670
    %6672 = vrot.lane.b32.xlu0 %v628, 96
    %v6673 = vpop.permute.xlu0 %6672
    %6674 = vrot.lane.b32.xlu0 %v632, 96
    %v6675 = vpop.permute.xlu0 %6674
    %v6680 = vmul.f32 %v441, %v6669
    %v6681 = vmul.f32 %v441, %v6671
    %v6682 = vmul.f32 %v441, %v6673
    %v6683 = vmul.f32 %v441, %v6675
    %v6684 = vmul.f32 %v446, %v6669
    %v6685 = vmul.f32 %v446, %v6671
    %v6686 = vmul.f32 %v446, %v6673
    %v6687 = vmul.f32 %v446, %v6675
    %6689 = vrot.lane.b32.xlu0 %v6660, 64
    %v6690 = vpop.permute.xlu0 %6689
    %v6692 = vsel %vm336, %v6642, 0
    %v6695 = vsel %vm336, %v6647, 0
    %v6697 = vsel %vm336, %v6690, 0
    %6699 = vmatprep.subr.mxu0 0.0
    %6700 = vmatpush1.xpose.msra.mxu0 0.0
    %6701 = vmatprep.subr.mxu0 0.0
    %6702 = vmatpush1.xpose.msra.mxu0 0.0
    %6703 = vmatprep.subr.mxu0 0.0
    %6704 = vmatpush1.xpose.msra.mxu0 0.0
    %6705 = vmatprep.subr.mxu0 0.0
    %6706 = vmatpush1.xpose.msra.mxu0 0.0
    %6707 = vmatprep.subr.mxu0 0.0
    %6708 = vmatpush1.xpose.msra.mxu0 0.0
    %6709 = vmatprep.subr.mxu0 0.0
    %6710 = vmatpush1.xpose.msra.mxu0 0.0
    %6711 = vmatprep.subr.mxu0 0.0
    %6712 = vmatpush1.xpose.msra.mxu0 0.0
    %6713 = vmatprep.subr.mxu0 0.0
    %6714 = vmatpush1.xpose.msra.mxu0 0.0
    %6715 = vmatprep.subr.mxu0 0.0
    %6716 = vmatpush1.xpose.msra.mxu0 0.0
    %6717 = vmatprep.subr.mxu0 0.0
    %6718 = vmatpush1.xpose.msra.mxu0 0.0
    %6719 = vmatprep.subr.mxu0 0.0
    %6720 = vmatpush1.xpose.msra.mxu0 0.0
    %6721 = vmatprep.subr.mxu0 0.0
    %6722 = vmatpush1.xpose.msra.mxu0 0.0
    %6723 = vmatprep.subr.mxu0 0.0
    %6724 = vmatpush1.xpose.msra.mxu0 0.0
    %6725 = vmatprep.subr.mxu0 0.0
    %6726 = vmatpush1.xpose.msra.mxu0 0.0
    %6727 = vmatprep.subr.mxu0 0.0
    %6728 = vmatpush1.xpose.msra.mxu0 0.0
    %6729 = vmatprep.subr.mxu0 0.0
    %6730 = vmatpush1.xpose.msra.mxu0 %v6697
    %6731 = vmatprep.subr.mxu0 0.0
    %6732 = vmatpush2.xpose.msra.mxu0 0.0
    %6733 = vmatprep.subr.mxu0 0.0
    %6734 = vmatpush2.xpose.msra.mxu0 0.0
    %6735 = vmatprep.subr.mxu0 0.0
    %6736 = vmatpush2.xpose.msra.mxu0 0.0
    %6737 = vmatprep.subr.mxu0 0.0
    %6738 = vmatpush2.xpose.msra.mxu0 0.0
    %6739 = vmatprep.subr.mxu0 0.0
    %6740 = vmatpush2.xpose.msra.mxu0 0.0
    %6741 = vmatprep.subr.mxu0 0.0
    %6742 = vmatpush2.xpose.msra.mxu0 0.0
    %6743 = vmatprep.subr.mxu0 0.0
    %6744 = vmatpush2.xpose.msra.mxu0 0.0
    %6745 = vmatprep.subr.mxu0 0.0
    %6746 = vmatpush2.xpose.msra.mxu0 0.0
    %6747 = vmatprep.subr.mxu0 0.0
    %6748 = vmatpush2.xpose.msra.mxu0 0.0
    %6749 = vmatprep.subr.mxu0 0.0
    %6750 = vmatpush2.xpose.msra.mxu0 0.0
    %6751 = vmatprep.subr.mxu0 0.0
    %6752 = vmatpush2.xpose.msra.mxu0 0.0
    %6753 = vmatprep.subr.mxu0 0.0
    %6754 = vmatpush2.xpose.msra.mxu0 0.0
    %6755 = vmatprep.subr.mxu0 0.0
    %6756 = vmatpush2.xpose.msra.mxu0 0.0
    %6757 = vmatprep.subr.mxu0 0.0
    %6758 = vmatpush2.xpose.msra.mxu0 0.0
    %6759 = vmatprep.subr.mxu0 0.0
    %6760 = vmatpush2.xpose.msra.mxu0 0.0
    %6761 = vmatprep.subr.mxu0 0.0
    %6762 = vmatpush2.xpose.msra.mxu0 0.0
    %6763 = vmatprep.mubr.f32.mxu0 0.0
    %6764 = vmatmul.mubr.f32.gmra.mxu0 %v6692
    %v6765 = vpop.f32.mrf.mxu0
    %v6766 = vadd.f32 0.0, %v6765
    %v6767 = vpop.f32.mrf.mxu0
    %6768 = vmatprep.mubr.f32.mxu0 0.0
    %6769 = vmatmul.mubr.f32.gmra.mxu0 %v6695
    %v6770 = vpop.f32.mrf.mxu0
    %v6771 = vadd.f32 0.0, %v6770
    %v6772 = vpop.f32.mrf.mxu0
    %6773 = vdwg.mxu0
    %6775 = vrot.lane.b32.xlu0 %v6661, 64
    %v6776 = vpop.permute.xlu0 %6775
    %v6777 = vsel %vm336, %v6776, 0
    %6779 = vmatprep.subr.mxu0 0.0
    %6780 = vmatpush1.xpose.msra.mxu0 0.0
    %6781 = vmatprep.subr.mxu0 0.0
    %6782 = vmatpush1.xpose.msra.mxu0 0.0
    %6783 = vmatprep.subr.mxu0 0.0
    %6784 = vmatpush1.xpose.msra.mxu0 0.0
    %6785 = vmatprep.subr.mxu0 0.0
    %6786 = vmatpush1.xpose.msra.mxu0 0.0
    %6787 = vmatprep.subr.mxu0 0.0
    %6788 = vmatpush1.xpose.msra.mxu0 0.0
    %6789 = vmatprep.subr.mxu0 0.0
    %6790 = vmatpush1.xpose.msra.mxu0 0.0
    %6791 = vmatprep.subr.mxu0 0.0
    %6792 = vmatpush1.xpose.msra.mxu0 0.0
    %6793 = vmatprep.subr.mxu0 0.0
    %6794 = vmatpush1.xpose.msra.mxu0 0.0
    %6795 = vmatprep.subr.mxu0 0.0
    %6796 = vmatpush1.xpose.msra.mxu0 0.0
    %6797 = vmatprep.subr.mxu0 0.0
    %6798 = vmatpush1.xpose.msra.mxu0 0.0
    %6799 = vmatprep.subr.mxu0 0.0
    %6800 = vmatpush1.xpose.msra.mxu0 0.0
    %6801 = vmatprep.subr.mxu0 0.0
    %6802 = vmatpush1.xpose.msra.mxu0 0.0
    %6803 = vmatprep.subr.mxu0 0.0
    %6804 = vmatpush1.xpose.msra.mxu0 0.0
    %6805 = vmatprep.subr.mxu0 0.0
    %6806 = vmatpush1.xpose.msra.mxu0 0.0
    %6807 = vmatprep.subr.mxu0 0.0
    %6808 = vmatpush1.xpose.msra.mxu0 0.0
    %6809 = vmatprep.subr.mxu0 0.0
    %6810 = vmatpush1.xpose.msra.mxu0 %v6777
    %6811 = vmatprep.subr.mxu0 0.0
    %6812 = vmatpush2.xpose.msra.mxu0 0.0
    %6813 = vmatprep.subr.mxu0 0.0
    %6814 = vmatpush2.xpose.msra.mxu0 0.0
    %6815 = vmatprep.subr.mxu0 0.0
    %6816 = vmatpush2.xpose.msra.mxu0 0.0
    %6817 = vmatprep.subr.mxu0 0.0
    %6818 = vmatpush2.xpose.msra.mxu0 0.0
    %6819 = vmatprep.subr.mxu0 0.0
    %6820 = vmatpush2.xpose.msra.mxu0 0.0
    %6821 = vmatprep.subr.mxu0 0.0
    %6822 = vmatpush2.xpose.msra.mxu0 0.0
    %6823 = vmatprep.subr.mxu0 0.0
    %6824 = vmatpush2.xpose.msra.mxu0 0.0
    %6825 = vmatprep.subr.mxu0 0.0
    %6826 = vmatpush2.xpose.msra.mxu0 0.0
    %6827 = vmatprep.subr.mxu0 0.0
    %6828 = vmatpush2.xpose.msra.mxu0 0.0
    %6829 = vmatprep.subr.mxu0 0.0
    %6830 = vmatpush2.xpose.msra.mxu0 0.0
    %6831 = vmatprep.subr.mxu0 0.0
    %6832 = vmatpush2.xpose.msra.mxu0 0.0
    %6833 = vmatprep.subr.mxu0 0.0
    %6834 = vmatpush2.xpose.msra.mxu0 0.0
    %6835 = vmatprep.subr.mxu0 0.0
    %6836 = vmatpush2.xpose.msra.mxu0 0.0
    %6837 = vmatprep.subr.mxu0 0.0
    %6838 = vmatpush2.xpose.msra.mxu0 0.0
    %6839 = vmatprep.subr.mxu0 0.0
    %6840 = vmatpush2.xpose.msra.mxu0 0.0
    %6841 = vmatprep.subr.mxu0 0.0
    %6842 = vmatpush2.xpose.msra.mxu0 0.0
    %6843 = vmatprep.mubr.f32.mxu0 0.0
    %6844 = vmatmul.mubr.f32.gmra.mxu0 %v6692
    %v6845 = vpop.f32.mrf.mxu0
    %v6846 = vadd.f32 0.0, %v6845
    %v6847 = vpop.f32.mrf.mxu0
    %6848 = vmatprep.mubr.f32.mxu0 0.0
    %6849 = vmatmul.mubr.f32.gmra.mxu0 %v6695
    %v6850 = vpop.f32.mrf.mxu0
    %v6851 = vadd.f32 0.0, %v6850
    %v6852 = vpop.f32.mrf.mxu0
    %6853 = vdwg.mxu0
    %6855 = vrot.lane.b32.xlu0 %v6662, 64
    %v6856 = vpop.permute.xlu0 %6855
    %v6857 = vsel %vm336, %v6856, 0
    %6859 = vmatprep.subr.mxu0 0.0
    %6860 = vmatpush1.xpose.msra.mxu0 0.0
    %6861 = vmatprep.subr.mxu0 0.0
    %6862 = vmatpush1.xpose.msra.mxu0 0.0
    %6863 = vmatprep.subr.mxu0 0.0
    %6864 = vmatpush1.xpose.msra.mxu0 0.0
    %6865 = vmatprep.subr.mxu0 0.0
    %6866 = vmatpush1.xpose.msra.mxu0 0.0
    %6867 = vmatprep.subr.mxu0 0.0
    %6868 = vmatpush1.xpose.msra.mxu0 0.0
    %6869 = vmatprep.subr.mxu0 0.0
    %6870 = vmatpush1.xpose.msra.mxu0 0.0
    %6871 = vmatprep.subr.mxu0 0.0
    %6872 = vmatpush1.xpose.msra.mxu0 0.0
    %6873 = vmatprep.subr.mxu0 0.0
    %6874 = vmatpush1.xpose.msra.mxu0 0.0
    %6875 = vmatprep.subr.mxu0 0.0
    %6876 = vmatpush1.xpose.msra.mxu0 0.0
    %6877 = vmatprep.subr.mxu0 0.0
    %6878 = vmatpush1.xpose.msra.mxu0 0.0
    %6879 = vmatprep.subr.mxu0 0.0
    %6880 = vmatpush1.xpose.msra.mxu0 0.0
    %6881 = vmatprep.subr.mxu0 0.0
    %6882 = vmatpush1.xpose.msra.mxu0 0.0
    %6883 = vmatprep.subr.mxu0 0.0
    %6884 = vmatpush1.xpose.msra.mxu0 0.0
    %6885 = vmatprep.subr.mxu0 0.0
    %6886 = vmatpush1.xpose.msra.mxu0 0.0
    %6887 = vmatprep.subr.mxu0 0.0
    %6888 = vmatpush1.xpose.msra.mxu0 0.0
    %6889 = vmatprep.subr.mxu0 0.0
    %6890 = vmatpush1.xpose.msra.mxu0 %v6857
    %6891 = vmatprep.subr.mxu0 0.0
    %6892 = vmatpush2.xpose.msra.mxu0 0.0
    %6893 = vmatprep.subr.mxu0 0.0
    %6894 = vmatpush2.xpose.msra.mxu0 0.0
    %6895 = vmatprep.subr.mxu0 0.0
    %6896 = vmatpush2.xpose.msra.mxu0 0.0
    %6897 = vmatprep.subr.mxu0 0.0
    %6898 = vmatpush2.xpose.msra.mxu0 0.0
    %6899 = vmatprep.subr.mxu0 0.0
    %6900 = vmatpush2.xpose.msra.mxu0 0.0
    %6901 = vmatprep.subr.mxu0 0.0
    %6902 = vmatpush2.xpose.msra.mxu0 0.0
    %6903 = vmatprep.subr.mxu0 0.0
    %6904 = vmatpush2.xpose.msra.mxu0 0.0
    %6905 = vmatprep.subr.mxu0 0.0
    %6906 = vmatpush2.xpose.msra.mxu0 0.0
    %6907 = vmatprep.subr.mxu0 0.0
    %6908 = vmatpush2.xpose.msra.mxu0 0.0
    %6909 = vmatprep.subr.mxu0 0.0
    %6910 = vmatpush2.xpose.msra.mxu0 0.0
    %6911 = vmatprep.subr.mxu0 0.0
    %6912 = vmatpush2.xpose.msra.mxu0 0.0
    %6913 = vmatprep.subr.mxu0 0.0
    %6914 = vmatpush2.xpose.msra.mxu0 0.0
    %6915 = vmatprep.subr.mxu0 0.0
    %6916 = vmatpush2.xpose.msra.mxu0 0.0
    %6917 = vmatprep.subr.mxu0 0.0
    %6918 = vmatpush2.xpose.msra.mxu0 0.0
    %6919 = vmatprep.subr.mxu0 0.0
    %6920 = vmatpush2.xpose.msra.mxu0 0.0
    %6921 = vmatprep.subr.mxu0 0.0
    %6922 = vmatpush2.xpose.msra.mxu0 0.0
    %6923 = vmatprep.mubr.f32.mxu0 0.0
    %6924 = vmatmul.mubr.f32.gmra.mxu0 %v6692
    %v6925 = vpop.f32.mrf.mxu0
    %v6926 = vadd.f32 0.0, %v6925
    %v6927 = vpop.f32.mrf.mxu0
    %6928 = vmatprep.mubr.f32.mxu0 0.0
    %6929 = vmatmul.mubr.f32.gmra.mxu0 %v6695
    %v6930 = vpop.f32.mrf.mxu0
    %v6931 = vadd.f32 0.0, %v6930
    %v6932 = vpop.f32.mrf.mxu0
    %6933 = vdwg.mxu0
    %6935 = vrot.lane.b32.xlu0 %v6663, 64
    %v6936 = vpop.permute.xlu0 %6935
    %v6937 = vsel %vm336, %v6936, 0
    %6939 = vmatprep.subr.mxu0 0.0
    %6940 = vmatpush1.xpose.msra.mxu0 0.0
    %6941 = vmatprep.subr.mxu0 0.0
    %6942 = vmatpush1.xpose.msra.mxu0 0.0
    %6943 = vmatprep.subr.mxu0 0.0
    %6944 = vmatpush1.xpose.msra.mxu0 0.0
    %6945 = vmatprep.subr.mxu0 0.0
    %6946 = vmatpush1.xpose.msra.mxu0 0.0
    %6947 = vmatprep.subr.mxu0 0.0
    %6948 = vmatpush1.xpose.msra.mxu0 0.0
    %6949 = vmatprep.subr.mxu0 0.0
    %6950 = vmatpush1.xpose.msra.mxu0 0.0
    %6951 = vmatprep.subr.mxu0 0.0
    %6952 = vmatpush1.xpose.msra.mxu0 0.0
    %6953 = vmatprep.subr.mxu0 0.0
    %6954 = vmatpush1.xpose.msra.mxu0 0.0
    %6955 = vmatprep.subr.mxu0 0.0
    %6956 = vmatpush1.xpose.msra.mxu0 0.0
    %6957 = vmatprep.subr.mxu0 0.0
    %6958 = vmatpush1.xpose.msra.mxu0 0.0
    %6959 = vmatprep.subr.mxu0 0.0
    %6960 = vmatpush1.xpose.msra.mxu0 0.0
    %6961 = vmatprep.subr.mxu0 0.0
    %6962 = vmatpush1.xpose.msra.mxu0 0.0
    %6963 = vmatprep.subr.mxu0 0.0
    %6964 = vmatpush1.xpose.msra.mxu0 0.0
    %6965 = vmatprep.subr.mxu0 0.0
    %6966 = vmatpush1.xpose.msra.mxu0 0.0
    %6967 = vmatprep.subr.mxu0 0.0
    %6968 = vmatpush1.xpose.msra.mxu0 0.0
    %6969 = vmatprep.subr.mxu0 0.0
    %6970 = vmatpush1.xpose.msra.mxu0 %v6937
    %6971 = vmatprep.subr.mxu0 0.0
    %6972 = vmatpush2.xpose.msra.mxu0 0.0
    %6973 = vmatprep.subr.mxu0 0.0
    %6974 = vmatpush2.xpose.msra.mxu0 0.0
    %6975 = vmatprep.subr.mxu0 0.0
    %6976 = vmatpush2.xpose.msra.mxu0 0.0
    %6977 = vmatprep.subr.mxu0 0.0
    %6978 = vmatpush2.xpose.msra.mxu0 0.0
    %6979 = vmatprep.subr.mxu0 0.0
    %6980 = vmatpush2.xpose.msra.mxu0 0.0
    %6981 = vmatprep.subr.mxu0 0.0
    %6982 = vmatpush2.xpose.msra.mxu0 0.0
    %6983 = vmatprep.subr.mxu0 0.0
    %6984 = vmatpush2.xpose.msra.mxu0 0.0
    %6985 = vmatprep.subr.mxu0 0.0
    %6986 = vmatpush2.xpose.msra.mxu0 0.0
    %6987 = vmatprep.subr.mxu0 0.0
    %6988 = vmatpush2.xpose.msra.mxu0 0.0
    %6989 = vmatprep.subr.mxu0 0.0
    %6990 = vmatpush2.xpose.msra.mxu0 0.0
    %6991 = vmatprep.subr.mxu0 0.0
    %6992 = vmatpush2.xpose.msra.mxu0 0.0
    %6993 = vmatprep.subr.mxu0 0.0
    %6994 = vmatpush2.xpose.msra.mxu0 0.0
    %6995 = vmatprep.subr.mxu0 0.0
    %6996 = vmatpush2.xpose.msra.mxu0 0.0
    %6997 = vmatprep.subr.mxu0 0.0
    %6998 = vmatpush2.xpose.msra.mxu0 0.0
    %6999 = vmatprep.subr.mxu0 0.0
    %7000 = vmatpush2.xpose.msra.mxu0 0.0
    %7001 = vmatprep.subr.mxu0 0.0
    %7002 = vmatpush2.xpose.msra.mxu0 0.0
    %7003 = vmatprep.mubr.f32.mxu0 0.0
    %7004 = vmatmul.mubr.f32.gmra.mxu0 %v6692
    %v7005 = vpop.f32.mrf.mxu0
    %v7006 = vadd.f32 0.0, %v7005
    %v7007 = vpop.f32.mrf.mxu0
    %7008 = vmatprep.mubr.f32.mxu0 0.0
    %7009 = vmatmul.mubr.f32.gmra.mxu0 %v6695
    %v7010 = vpop.f32.mrf.mxu0
    %v7011 = vadd.f32 0.0, %v7010
    %v7012 = vpop.f32.mrf.mxu0
    %7013 = vdwg.mxu0
    %7015 = vrot.lane.b32.xlu0 %v6664, 64
    %v7016 = vpop.permute.xlu0 %7015
    %v7018 = vsel %vm336, %v6652, 0
    %v7021 = vsel %vm336, %v6657, 0
    %v7023 = vsel %vm336, %v7016, 0
    %7025 = vmatprep.subr.mxu0 0.0
    %7026 = vmatpush1.xpose.msra.mxu0 0.0
    %7027 = vmatprep.subr.mxu0 0.0
    %7028 = vmatpush1.xpose.msra.mxu0 0.0
    %7029 = vmatprep.subr.mxu0 0.0
    %7030 = vmatpush1.xpose.msra.mxu0 0.0
    %7031 = vmatprep.subr.mxu0 0.0
    %7032 = vmatpush1.xpose.msra.mxu0 0.0
    %7033 = vmatprep.subr.mxu0 0.0
    %7034 = vmatpush1.xpose.msra.mxu0 0.0
    %7035 = vmatprep.subr.mxu0 0.0
    %7036 = vmatpush1.xpose.msra.mxu0 0.0
    %7037 = vmatprep.subr.mxu0 0.0
    %7038 = vmatpush1.xpose.msra.mxu0 0.0
    %7039 = vmatprep.subr.mxu0 0.0
    %7040 = vmatpush1.xpose.msra.mxu0 0.0
    %7041 = vmatprep.subr.mxu0 0.0
    %7042 = vmatpush1.xpose.msra.mxu0 0.0
    %7043 = vmatprep.subr.mxu0 0.0
    %7044 = vmatpush1.xpose.msra.mxu0 0.0
    %7045 = vmatprep.subr.mxu0 0.0
    %7046 = vmatpush1.xpose.msra.mxu0 0.0
    %7047 = vmatprep.subr.mxu0 0.0
    %7048 = vmatpush1.xpose.msra.mxu0 0.0
    %7049 = vmatprep.subr.mxu0 0.0
    %7050 = vmatpush1.xpose.msra.mxu0 0.0
    %7051 = vmatprep.subr.mxu0 0.0
    %7052 = vmatpush1.xpose.msra.mxu0 0.0
    %7053 = vmatprep.subr.mxu0 0.0
    %7054 = vmatpush1.xpose.msra.mxu0 0.0
    %7055 = vmatprep.subr.mxu0 0.0
    %7056 = vmatpush1.xpose.msra.mxu0 %v7023
    %7057 = vmatprep.subr.mxu0 0.0
    %7058 = vmatpush2.xpose.msra.mxu0 0.0
    %7059 = vmatprep.subr.mxu0 0.0
    %7060 = vmatpush2.xpose.msra.mxu0 0.0
    %7061 = vmatprep.subr.mxu0 0.0
    %7062 = vmatpush2.xpose.msra.mxu0 0.0
    %7063 = vmatprep.subr.mxu0 0.0
    %7064 = vmatpush2.xpose.msra.mxu0 0.0
    %7065 = vmatprep.subr.mxu0 0.0
    %7066 = vmatpush2.xpose.msra.mxu0 0.0
    %7067 = vmatprep.subr.mxu0 0.0
    %7068 = vmatpush2.xpose.msra.mxu0 0.0
    %7069 = vmatprep.subr.mxu0 0.0
    %7070 = vmatpush2.xpose.msra.mxu0 0.0
    %7071 = vmatprep.subr.mxu0 0.0
    %7072 = vmatpush2.xpose.msra.mxu0 0.0
    %7073 = vmatprep.subr.mxu0 0.0
    %7074 = vmatpush2.xpose.msra.mxu0 0.0
    %7075 = vmatprep.subr.mxu0 0.0
    %7076 = vmatpush2.xpose.msra.mxu0 0.0
    %7077 = vmatprep.subr.mxu0 0.0
    %7078 = vmatpush2.xpose.msra.mxu0 0.0
    %7079 = vmatprep.subr.mxu0 0.0
    %7080 = vmatpush2.xpose.msra.mxu0 0.0
    %7081 = vmatprep.subr.mxu0 0.0
    %7082 = vmatpush2.xpose.msra.mxu0 0.0
    %7083 = vmatprep.subr.mxu0 0.0
    %7084 = vmatpush2.xpose.msra.mxu0 0.0
    %7085 = vmatprep.subr.mxu0 0.0
    %7086 = vmatpush2.xpose.msra.mxu0 0.0
    %7087 = vmatprep.subr.mxu0 0.0
    %7088 = vmatpush2.xpose.msra.mxu0 0.0
    %7089 = vmatprep.mubr.f32.mxu0 0.0
    %7090 = vmatmul.mubr.f32.gmra.mxu0 %v7018
    %v7091 = vpop.f32.mrf.mxu0
    %v7092 = vadd.f32 0.0, %v7091
    %v7093 = vpop.f32.mrf.mxu0
    %7094 = vmatprep.mubr.f32.mxu0 0.0
    %7095 = vmatmul.mubr.f32.gmra.mxu0 %v7021
    %v7096 = vpop.f32.mrf.mxu0
    %v7097 = vadd.f32 0.0, %v7096
    %v7098 = vpop.f32.mrf.mxu0
    %7099 = vdwg.mxu0
    %7101 = vrot.lane.b32.xlu0 %v6665, 64
    %v7102 = vpop.permute.xlu0 %7101
    %v7103 = vsel %vm336, %v7102, 0
    %7105 = vmatprep.subr.mxu0 0.0
    %7106 = vmatpush1.xpose.msra.mxu0 0.0
    %7107 = vmatprep.subr.mxu0 0.0
    %7108 = vmatpush1.xpose.msra.mxu0 0.0
    %7109 = vmatprep.subr.mxu0 0.0
    %7110 = vmatpush1.xpose.msra.mxu0 0.0
    %7111 = vmatprep.subr.mxu0 0.0
    %7112 = vmatpush1.xpose.msra.mxu0 0.0
    %7113 = vmatprep.subr.mxu0 0.0
    %7114 = vmatpush1.xpose.msra.mxu0 0.0
    %7115 = vmatprep.subr.mxu0 0.0
    %7116 = vmatpush1.xpose.msra.mxu0 0.0
    %7117 = vmatprep.subr.mxu0 0.0
    %7118 = vmatpush1.xpose.msra.mxu0 0.0
    %7119 = vmatprep.subr.mxu0 0.0
    %7120 = vmatpush1.xpose.msra.mxu0 0.0
    %7121 = vmatprep.subr.mxu0 0.0
    %7122 = vmatpush1.xpose.msra.mxu0 0.0
    %7123 = vmatprep.subr.mxu0 0.0
    %7124 = vmatpush1.xpose.msra.mxu0 0.0
    %7125 = vmatprep.subr.mxu0 0.0
    %7126 = vmatpush1.xpose.msra.mxu0 0.0
    %7127 = vmatprep.subr.mxu0 0.0
    %7128 = vmatpush1.xpose.msra.mxu0 0.0
    %7129 = vmatprep.subr.mxu0 0.0
    %7130 = vmatpush1.xpose.msra.mxu0 0.0
    %7131 = vmatprep.subr.mxu0 0.0
    %7132 = vmatpush1.xpose.msra.mxu0 0.0
    %7133 = vmatprep.subr.mxu0 0.0
    %7134 = vmatpush1.xpose.msra.mxu0 0.0
    %7135 = vmatprep.subr.mxu0 0.0
    %7136 = vmatpush1.xpose.msra.mxu0 %v7103
    %7137 = vmatprep.subr.mxu0 0.0
    %7138 = vmatpush2.xpose.msra.mxu0 0.0
    %7139 = vmatprep.subr.mxu0 0.0
    %7140 = vmatpush2.xpose.msra.mxu0 0.0
    %7141 = vmatprep.subr.mxu0 0.0
    %7142 = vmatpush2.xpose.msra.mxu0 0.0
    %7143 = vmatprep.subr.mxu0 0.0
    %7144 = vmatpush2.xpose.msra.mxu0 0.0
    %7145 = vmatprep.subr.mxu0 0.0
    %7146 = vmatpush2.xpose.msra.mxu0 0.0
    %7147 = vmatprep.subr.mxu0 0.0
    %7148 = vmatpush2.xpose.msra.mxu0 0.0
    %7149 = vmatprep.subr.mxu0 0.0
    %7150 = vmatpush2.xpose.msra.mxu0 0.0
    %7151 = vmatprep.subr.mxu0 0.0
    %7152 = vmatpush2.xpose.msra.mxu0 0.0
    %7153 = vmatprep.subr.mxu0 0.0
    %7154 = vmatpush2.xpose.msra.mxu0 0.0
    %7155 = vmatprep.subr.mxu0 0.0
    %7156 = vmatpush2.xpose.msra.mxu0 0.0
    %7157 = vmatprep.subr.mxu0 0.0
    %7158 = vmatpush2.xpose.msra.mxu0 0.0
    %7159 = vmatprep.subr.mxu0 0.0
    %7160 = vmatpush2.xpose.msra.mxu0 0.0
    %7161 = vmatprep.subr.mxu0 0.0
    %7162 = vmatpush2.xpose.msra.mxu0 0.0
    %7163 = vmatprep.subr.mxu0 0.0
    %7164 = vmatpush2.xpose.msra.mxu0 0.0
    %7165 = vmatprep.subr.mxu0 0.0
    %7166 = vmatpush2.xpose.msra.mxu0 0.0
    %7167 = vmatprep.subr.mxu0 0.0
    %7168 = vmatpush2.xpose.msra.mxu0 0.0
    %7169 = vmatprep.mubr.f32.mxu0 0.0
    %7170 = vmatmul.mubr.f32.gmra.mxu0 %v7018
    %v7171 = vpop.f32.mrf.mxu0
    %v7172 = vadd.f32 0.0, %v7171
    %v7173 = vpop.f32.mrf.mxu0
    %7174 = vmatprep.mubr.f32.mxu0 0.0
    %7175 = vmatmul.mubr.f32.gmra.mxu0 %v7021
    %v7176 = vpop.f32.mrf.mxu0
    %v7177 = vadd.f32 0.0, %v7176
    %v7178 = vpop.f32.mrf.mxu0
    %7179 = vdwg.mxu0
    %7181 = vrot.lane.b32.xlu0 %v6666, 64
    %v7182 = vpop.permute.xlu0 %7181
    %v7183 = vsel %vm336, %v7182, 0
    %7185 = vmatprep.subr.mxu0 0.0
    %7186 = vmatpush1.xpose.msra.mxu0 0.0
    %7187 = vmatprep.subr.mxu0 0.0
    %7188 = vmatpush1.xpose.msra.mxu0 0.0
    %7189 = vmatprep.subr.mxu0 0.0
    %7190 = vmatpush1.xpose.msra.mxu0 0.0
    %7191 = vmatprep.subr.mxu0 0.0
    %7192 = vmatpush1.xpose.msra.mxu0 0.0
    %7193 = vmatprep.subr.mxu0 0.0
    %7194 = vmatpush1.xpose.msra.mxu0 0.0
    %7195 = vmatprep.subr.mxu0 0.0
    %7196 = vmatpush1.xpose.msra.mxu0 0.0
    %7197 = vmatprep.subr.mxu0 0.0
    %7198 = vmatpush1.xpose.msra.mxu0 0.0
    %7199 = vmatprep.subr.mxu0 0.0
    %7200 = vmatpush1.xpose.msra.mxu0 0.0
    %7201 = vmatprep.subr.mxu0 0.0
    %7202 = vmatpush1.xpose.msra.mxu0 0.0
    %7203 = vmatprep.subr.mxu0 0.0
    %7204 = vmatpush1.xpose.msra.mxu0 0.0
    %7205 = vmatprep.subr.mxu0 0.0
    %7206 = vmatpush1.xpose.msra.mxu0 0.0
    %7207 = vmatprep.subr.mxu0 0.0
    %7208 = vmatpush1.xpose.msra.mxu0 0.0
    %7209 = vmatprep.subr.mxu0 0.0
    %7210 = vmatpush1.xpose.msra.mxu0 0.0
    %7211 = vmatprep.subr.mxu0 0.0
    %7212 = vmatpush1.xpose.msra.mxu0 0.0
    %7213 = vmatprep.subr.mxu0 0.0
    %7214 = vmatpush1.xpose.msra.mxu0 0.0
    %7215 = vmatprep.subr.mxu0 0.0
    %7216 = vmatpush1.xpose.msra.mxu0 %v7183
    %7217 = vmatprep.subr.mxu0 0.0
    %7218 = vmatpush2.xpose.msra.mxu0 0.0
    %7219 = vmatprep.subr.mxu0 0.0
    %7220 = vmatpush2.xpose.msra.mxu0 0.0
    %7221 = vmatprep.subr.mxu0 0.0
    %7222 = vmatpush2.xpose.msra.mxu0 0.0
    %7223 = vmatprep.subr.mxu0 0.0
    %7224 = vmatpush2.xpose.msra.mxu0 0.0
    %7225 = vmatprep.subr.mxu0 0.0
    %7226 = vmatpush2.xpose.msra.mxu0 0.0
    %7227 = vmatprep.subr.mxu0 0.0
    %7228 = vmatpush2.xpose.msra.mxu0 0.0
    %7229 = vmatprep.subr.mxu0 0.0
    %7230 = vmatpush2.xpose.msra.mxu0 0.0
    %7231 = vmatprep.subr.mxu0 0.0
    %7232 = vmatpush2.xpose.msra.mxu0 0.0
    %7233 = vmatprep.subr.mxu0 0.0
    %7234 = vmatpush2.xpose.msra.mxu0 0.0
    %7235 = vmatprep.subr.mxu0 0.0
    %7236 = vmatpush2.xpose.msra.mxu0 0.0
    %7237 = vmatprep.subr.mxu0 0.0
    %7238 = vmatpush2.xpose.msra.mxu0 0.0
    %7239 = vmatprep.subr.mxu0 0.0
    %7240 = vmatpush2.xpose.msra.mxu0 0.0
    %7241 = vmatprep.subr.mxu0 0.0
    %7242 = vmatpush2.xpose.msra.mxu0 0.0
    %7243 = vmatprep.subr.mxu0 0.0
    %7244 = vmatpush2.xpose.msra.mxu0 0.0
    %7245 = vmatprep.subr.mxu0 0.0
    %7246 = vmatpush2.xpose.msra.mxu0 0.0
    %7247 = vmatprep.subr.mxu0 0.0
    %7248 = vmatpush2.xpose.msra.mxu0 0.0
    %7249 = vmatprep.mubr.f32.mxu0 0.0
    %7250 = vmatmul.mubr.f32.gmra.mxu0 %v7018
    %v7251 = vpop.f32.mrf.mxu0
    %v7252 = vadd.f32 0.0, %v7251
    %v7253 = vpop.f32.mrf.mxu0
    %7254 = vmatprep.mubr.f32.mxu0 0.0
    %7255 = vmatmul.mubr.f32.gmra.mxu0 %v7021
    %v7256 = vpop.f32.mrf.mxu0
    %v7257 = vadd.f32 0.0, %v7256
    %v7258 = vpop.f32.mrf.mxu0
    %7259 = vdwg.mxu0
    %7261 = vrot.lane.b32.xlu0 %v6667, 64
    %v7262 = vpop.permute.xlu0 %7261
    %v7263 = vsel %vm336, %v7262, 0
    %7265 = vmatprep.subr.mxu0 0.0
    %7266 = vmatpush1.xpose.msra.mxu0 0.0
    %7267 = vmatprep.subr.mxu0 0.0
    %7268 = vmatpush1.xpose.msra.mxu0 0.0
    %7269 = vmatprep.subr.mxu0 0.0
    %7270 = vmatpush1.xpose.msra.mxu0 0.0
    %7271 = vmatprep.subr.mxu0 0.0
    %7272 = vmatpush1.xpose.msra.mxu0 0.0
    %7273 = vmatprep.subr.mxu0 0.0
    %7274 = vmatpush1.xpose.msra.mxu0 0.0
    %7275 = vmatprep.subr.mxu0 0.0
    %7276 = vmatpush1.xpose.msra.mxu0 0.0
    %7277 = vmatprep.subr.mxu0 0.0
    %7278 = vmatpush1.xpose.msra.mxu0 0.0
    %7279 = vmatprep.subr.mxu0 0.0
    %7280 = vmatpush1.xpose.msra.mxu0 0.0
    %7281 = vmatprep.subr.mxu0 0.0
    %7282 = vmatpush1.xpose.msra.mxu0 0.0
    %7283 = vmatprep.subr.mxu0 0.0
    %7284 = vmatpush1.xpose.msra.mxu0 0.0
    %7285 = vmatprep.subr.mxu0 0.0
    %7286 = vmatpush1.xpose.msra.mxu0 0.0
    %7287 = vmatprep.subr.mxu0 0.0
    %7288 = vmatpush1.xpose.msra.mxu0 0.0
    %7289 = vmatprep.subr.mxu0 0.0
    %7290 = vmatpush1.xpose.msra.mxu0 0.0
    %7291 = vmatprep.subr.mxu0 0.0
    %7292 = vmatpush1.xpose.msra.mxu0 0.0
    %7293 = vmatprep.subr.mxu0 0.0
    %7294 = vmatpush1.xpose.msra.mxu0 0.0
    %7295 = vmatprep.subr.mxu0 0.0
    %7296 = vmatpush1.xpose.msra.mxu0 %v7263
    %7297 = vmatprep.subr.mxu0 0.0
    %7298 = vmatpush2.xpose.msra.mxu0 0.0
    %7299 = vmatprep.subr.mxu0 0.0
    %7300 = vmatpush2.xpose.msra.mxu0 0.0
    %7301 = vmatprep.subr.mxu0 0.0
    %7302 = vmatpush2.xpose.msra.mxu0 0.0
    %7303 = vmatprep.subr.mxu0 0.0
    %7304 = vmatpush2.xpose.msra.mxu0 0.0
    %7305 = vmatprep.subr.mxu0 0.0
    %7306 = vmatpush2.xpose.msra.mxu0 0.0
    %7307 = vmatprep.subr.mxu0 0.0
    %7308 = vmatpush2.xpose.msra.mxu0 0.0
    %7309 = vmatprep.subr.mxu0 0.0
    %7310 = vmatpush2.xpose.msra.mxu0 0.0
    %7311 = vmatprep.subr.mxu0 0.0
    %7312 = vmatpush2.xpose.msra.mxu0 0.0
    %7313 = vmatprep.subr.mxu0 0.0
    %7314 = vmatpush2.xpose.msra.mxu0 0.0
    %7315 = vmatprep.subr.mxu0 0.0
    %7316 = vmatpush2.xpose.msra.mxu0 0.0
    %7317 = vmatprep.subr.mxu0 0.0
    %7318 = vmatpush2.xpose.msra.mxu0 0.0
    %7319 = vmatprep.subr.mxu0 0.0
    %7320 = vmatpush2.xpose.msra.mxu0 0.0
    %7321 = vmatprep.subr.mxu0 0.0
    %7322 = vmatpush2.xpose.msra.mxu0 0.0
    %7323 = vmatprep.subr.mxu0 0.0
    %7324 = vmatpush2.xpose.msra.mxu0 0.0
    %7325 = vmatprep.subr.mxu0 0.0
    %7326 = vmatpush2.xpose.msra.mxu0 0.0
    %7327 = vmatprep.subr.mxu0 0.0
    %7328 = vmatpush2.xpose.msra.mxu0 0.0
    %7329 = vmatprep.mubr.f32.mxu0 0.0
    %7330 = vmatmul.mubr.f32.gmra.mxu0 %v7018
    %v7331 = vpop.f32.mrf.mxu0
    %v7332 = vadd.f32 0.0, %v7331
    %v7333 = vpop.f32.mrf.mxu0
    %7334 = vmatprep.mubr.f32.mxu0 0.0
    %7335 = vmatmul.mubr.f32.gmra.mxu0 %v7021
    %v7336 = vpop.f32.mrf.mxu0
    %v7337 = vadd.f32 0.0, %v7336
    %v7338 = vpop.f32.mrf.mxu0
    %7339 = vdwg.mxu0
    %v7340 = vadd.f32 %v6766, %v3231
    %v7341 = vadd.f32 %v6771, %v3231
    %v7342 = vadd.f32 %v6846, %v3231
    %v7343 = vadd.f32 %v6851, %v3231
    %v7344 = vadd.f32 %v6926, %v3231
    %v7345 = vadd.f32 %v6931, %v3231
    %v7346 = vadd.f32 %v7006, %v3231
    %v7347 = vadd.f32 %v7011, %v3231
    %v7348 = vadd.f32 %v7092, %v3235
    %v7349 = vadd.f32 %v7097, %v3235
    %v7350 = vadd.f32 %v7172, %v3235
    %v7351 = vadd.f32 %v7177, %v3235
    %v7352 = vadd.f32 %v7252, %v3235
    %v7353 = vadd.f32 %v7257, %v3235
    %v7354 = vadd.f32 %v7332, %v3235
    %v7355 = vadd.f32 %v7337, %v3235
    %v7356 = vsel %vm3254, %v7340, -inf
    %7357 = vmax.xlane.f32.xlu0 %v7356
    %v7358 = vpop.xlane.xlu0 %7357
    %v7359 = vsel %vm3254, %v7341, -inf
    %7360 = vmax.xlane.f32.xlu0 %v7359
    %v7361 = vpop.xlane.xlu0 %7360
    %v7362 = vsel %vm3254, %v7342, -inf
    %7363 = vmax.xlane.f32.xlu0 %v7362
    %v7364 = vpop.xlane.xlu0 %7363
    %v7365 = vsel %vm3254, %v7343, -inf
    %7366 = vmax.xlane.f32.xlu0 %v7365
    %v7367 = vpop.xlane.xlu0 %7366
    %v7368 = vsel %vm3254, %v7344, -inf
    %7369 = vmax.xlane.f32.xlu0 %v7368
    %v7370 = vpop.xlane.xlu0 %7369
    %v7371 = vsel %vm3254, %v7345, -inf
    %7372 = vmax.xlane.f32.xlu0 %v7371
    %v7373 = vpop.xlane.xlu0 %7372
    %v7374 = vsel %vm3254, %v7346, -inf
    %7375 = vmax.xlane.f32.xlu0 %v7374
    %v7376 = vpop.xlane.xlu0 %7375
    %v7377 = vsel %vm3254, %v7347, -inf
    %7378 = vmax.xlane.f32.xlu0 %v7377
    %v7379 = vpop.xlane.xlu0 %7378
    %v7380 = vsel %vm3254, %v7348, -inf
    %7381 = vmax.xlane.f32.xlu0 %v7380
    %v7382 = vpop.xlane.xlu0 %7381
    %v7383 = vsel %vm3254, %v7349, -inf
    %7384 = vmax.xlane.f32.xlu0 %v7383
    %v7385 = vpop.xlane.xlu0 %7384
    %v7386 = vsel %vm3254, %v7350, -inf
    %7387 = vmax.xlane.f32.xlu0 %v7386
    %v7388 = vpop.xlane.xlu0 %7387
    %v7389 = vsel %vm3254, %v7351, -inf
    %7390 = vmax.xlane.f32.xlu0 %v7389
    %v7391 = vpop.xlane.xlu0 %7390
    %v7392 = vsel %vm3254, %v7352, -inf
    %7393 = vmax.xlane.f32.xlu0 %v7392
    %v7394 = vpop.xlane.xlu0 %7393
    %v7395 = vsel %vm3254, %v7353, -inf
    %7396 = vmax.xlane.f32.xlu0 %v7395
    %v7397 = vpop.xlane.xlu0 %7396
    %v7398 = vsel %vm3254, %v7354, -inf
    %7399 = vmax.xlane.f32.xlu0 %v7398
    %v7400 = vpop.xlane.xlu0 %7399
    %v7401 = vsel %vm3254, %v7355, -inf
    %7402 = vmax.xlane.f32.xlu0 %v7401
    %v7403 = vpop.xlane.xlu0 %7402
    %v7404 = vsub.f32 %v7340, %v7358
    %v7405 = vsub.f32 %v7341, %v7361
    %v7406 = vsub.f32 %v7342, %v7364
    %v7407 = vsub.f32 %v7343, %v7367
    %v7408 = vsub.f32 %v7344, %v7370
    %v7409 = vsub.f32 %v7345, %v7373
    %v7410 = vsub.f32 %v7346, %v7376
    %v7411 = vsub.f32 %v7347, %v7379
    %v7412 = vsub.f32 %v7348, %v7382
    %v7413 = vsub.f32 %v7349, %v7385
    %v7414 = vsub.f32 %v7350, %v7388
    %v7415 = vsub.f32 %v7351, %v7391
    %v7416 = vsub.f32 %v7352, %v7394
    %v7417 = vsub.f32 %v7353, %v7397
    %v7418 = vsub.f32 %v7354, %v7400
    %v7419 = vsub.f32 %v7355, %v7403
    %v7420 = vmul.f32 %v7404, 1.442695
    %v7421 = vpow.pop %v7420
    %v7422 = vmul.f32 %v7405, 1.442695
    %v7423 = vpow.pop %v7422
    %v7424 = vmul.f32 %v7406, 1.442695
    %v7425 = vpow.pop %v7424
    %v7426 = vmul.f32 %v7407, 1.442695
    %v7427 = vpow.pop %v7426
    %v7428 = vmul.f32 %v7408, 1.442695
    %v7429 = vpow.pop %v7428
    %v7430 = vmul.f32 %v7409, 1.442695
    %v7431 = vpow.pop %v7430
    %v7432 = vmul.f32 %v7410, 1.442695
    %v7433 = vpow.pop %v7432
    %v7434 = vmul.f32 %v7411, 1.442695
    %v7435 = vpow.pop %v7434
    %v7436 = vmul.f32 %v7412, 1.442695
    %v7437 = vpow.pop %v7436
    %v7438 = vmul.f32 %v7413, 1.442695
    %v7439 = vpow.pop %v7438
    %v7440 = vmul.f32 %v7414, 1.442695
    %v7441 = vpow.pop %v7440
    %v7442 = vmul.f32 %v7415, 1.442695
    %v7443 = vpow.pop %v7442
    %v7444 = vmul.f32 %v7416, 1.442695
    %v7445 = vpow.pop %v7444
    %v7446 = vmul.f32 %v7417, 1.442695
    %v7447 = vpow.pop %v7446
    %v7448 = vmul.f32 %v7418, 1.442695
    %v7449 = vpow.pop %v7448
    %v7450 = vmul.f32 %v7419, 1.442695
    %v7451 = vpow.pop %v7450
    %v7452 = vsel %vm3254, %v7421, 0.0
    %7453 = vadd.xlane.f32.xlu0 %v7452
    %v7454 = vpop.xlane.xlu0 %7453
    %v7455 = vsel %vm3254, %v7423, 0.0
    %7456 = vadd.xlane.f32.xlu0 %v7455
    %v7457 = vpop.xlane.xlu0 %7456
    %v7458 = vsel %vm3254, %v7425, 0.0
    %7459 = vadd.xlane.f32.xlu0 %v7458
    %v7460 = vpop.xlane.xlu0 %7459
    %v7461 = vsel %vm3254, %v7427, 0.0
    %7462 = vadd.xlane.f32.xlu0 %v7461
    %v7463 = vpop.xlane.xlu0 %7462
    %v7464 = vsel %vm3254, %v7429, 0.0
    %7465 = vadd.xlane.f32.xlu0 %v7464
    %v7466 = vpop.xlane.xlu0 %7465
    %v7467 = vsel %vm3254, %v7431, 0.0
    %7468 = vadd.xlane.f32.xlu0 %v7467
    %v7469 = vpop.xlane.xlu0 %7468
    %v7470 = vsel %vm3254, %v7433, 0.0
    %7471 = vadd.xlane.f32.xlu0 %v7470
    %v7472 = vpop.xlane.xlu0 %7471
    %v7473 = vsel %vm3254, %v7435, 0.0
    %7474 = vadd.xlane.f32.xlu0 %v7473
    %v7475 = vpop.xlane.xlu0 %7474
    %v7476 = vsel %vm3254, %v7437, 0.0
    %7477 = vadd.xlane.f32.xlu0 %v7476
    %v7478 = vpop.xlane.xlu0 %7477
    %v7479 = vsel %vm3254, %v7439, 0.0
    %7480 = vadd.xlane.f32.xlu0 %v7479
    %v7481 = vpop.xlane.xlu0 %7480
    %v7482 = vsel %vm3254, %v7441, 0.0
    %7483 = vadd.xlane.f32.xlu0 %v7482
    %v7484 = vpop.xlane.xlu0 %7483
    %v7485 = vsel %vm3254, %v7443, 0.0
    %7486 = vadd.xlane.f32.xlu0 %v7485
    %v7487 = vpop.xlane.xlu0 %7486
    %v7488 = vsel %vm3254, %v7445, 0.0
    %7489 = vadd.xlane.f32.xlu0 %v7488
    %v7490 = vpop.xlane.xlu0 %7489
    %v7491 = vsel %vm3254, %v7447, 0.0
    %7492 = vadd.xlane.f32.xlu0 %v7491
    %v7493 = vpop.xlane.xlu0 %7492
    %v7494 = vsel %vm3254, %v7449, 0.0
    %7495 = vadd.xlane.f32.xlu0 %v7494
    %v7496 = vpop.xlane.xlu0 %7495
    %v7497 = vsel %vm3254, %v7451, 0.0
    %7498 = vadd.xlane.f32.xlu0 %v7497
    %v7499 = vpop.xlane.xlu0 %7498
    %v7500 = vrcp.pop %v7454
    %v7501 = vrcp.pop %v7457
    %v7502 = vrcp.pop %v7460
    %v7503 = vrcp.pop %v7463
    %v7504 = vrcp.pop %v7466
    %v7505 = vrcp.pop %v7469
    %v7506 = vrcp.pop %v7472
    %v7507 = vrcp.pop %v7475
    %v7508 = vrcp.pop %v7478
    %v7509 = vrcp.pop %v7481
    %v7510 = vrcp.pop %v7484
    %v7511 = vrcp.pop %v7487
    %v7512 = vrcp.pop %v7490
    %v7513 = vrcp.pop %v7493
    %v7514 = vrcp.pop %v7496
    %v7515 = vrcp.pop %v7499
    %v7516 = vmul.f32 %v7421, %v7500
    %v7517 = vmul.f32 %v7423, %v7501
    %v7518 = vmul.f32 %v7425, %v7502
    %v7519 = vmul.f32 %v7427, %v7503
    %v7520 = vmul.f32 %v7429, %v7504
    %v7521 = vmul.f32 %v7431, %v7505
    %v7522 = vmul.f32 %v7433, %v7506
    %v7523 = vmul.f32 %v7435, %v7507
    %v7524 = vmul.f32 %v7437, %v7508
    %v7525 = vmul.f32 %v7439, %v7509
    %v7526 = vmul.f32 %v7441, %v7510
    %v7527 = vmul.f32 %v7443, %v7511
    %v7528 = vmul.f32 %v7445, %v7512
    %v7529 = vmul.f32 %v7447, %v7513
    %v7530 = vmul.f32 %v7449, %v7514
    %v7531 = vmul.f32 %v7451, %v7515
    %7533 = vrot.lane.b32.xlu0 %v6680, 32
    %v7534 = vpop.permute.xlu0 %7533
    %v7537 = vsel %vm3254, %v7516, 0
    %v7540 = vsel %vm3254, %v7517, 0
    %7542 = vmatprep.subr.mxu0 0.0
    %7543 = vmatpush1.msra.mxu0 0.0
    %7544 = vmatprep.subr.mxu0 0.0
    %7545 = vmatpush1.msra.mxu0 0.0
    %7546 = vmatprep.subr.mxu0 0.0
    %7547 = vmatpush1.msra.mxu0 0.0
    %7548 = vmatprep.subr.mxu0 0.0
    %7549 = vmatpush1.msra.mxu0 0.0
    %7550 = vmatprep.subr.mxu0 0.0
    %7551 = vmatpush1.msra.mxu0 0.0
    %7552 = vmatprep.subr.mxu0 0.0
    %7553 = vmatpush1.msra.mxu0 0.0
    %7554 = vmatprep.subr.mxu0 0.0
    %7555 = vmatpush1.msra.mxu0 0.0
    %7556 = vmatprep.subr.mxu0 0.0
    %7557 = vmatpush1.msra.mxu0 0.0
    %7558 = vmatprep.subr.mxu0 0.0
    %7559 = vmatpush1.msra.mxu0 0.0
    %7560 = vmatprep.subr.mxu0 0.0
    %7561 = vmatpush1.msra.mxu0 0.0
    %7562 = vmatprep.subr.mxu0 0.0
    %7563 = vmatpush1.msra.mxu0 0.0
    %7564 = vmatprep.subr.mxu0 0.0
    %7565 = vmatpush1.msra.mxu0 0.0
    %7566 = vmatprep.subr.mxu0 0.0
    %7567 = vmatpush1.msra.mxu0 0.0
    %7568 = vmatprep.subr.mxu0 0.0
    %7569 = vmatpush1.msra.mxu0 0.0
    %7570 = vmatprep.subr.mxu0 0.0
    %7571 = vmatpush1.msra.mxu0 0.0
    %7572 = vmatprep.subr.mxu0 0.0
    %7573 = vmatpush1.msra.mxu0 %v7534
    %7574 = vmatprep.subr.mxu0 0.0
    %7575 = vmatpush2.msra.mxu0 0.0
    %7576 = vmatprep.subr.mxu0 0.0
    %7577 = vmatpush2.msra.mxu0 0.0
    %7578 = vmatprep.subr.mxu0 0.0
    %7579 = vmatpush2.msra.mxu0 0.0
    %7580 = vmatprep.subr.mxu0 0.0
    %7581 = vmatpush2.msra.mxu0 0.0
    %7582 = vmatprep.subr.mxu0 0.0
    %7583 = vmatpush2.msra.mxu0 0.0
    %7584 = vmatprep.subr.mxu0 0.0
    %7585 = vmatpush2.msra.mxu0 0.0
    %7586 = vmatprep.subr.mxu0 0.0
    %7587 = vmatpush2.msra.mxu0 0.0
    %7588 = vmatprep.subr.mxu0 0.0
    %7589 = vmatpush2.msra.mxu0 0.0
    %7590 = vmatprep.subr.mxu0 0.0
    %7591 = vmatpush2.msra.mxu0 0.0
    %7592 = vmatprep.subr.mxu0 0.0
    %7593 = vmatpush2.msra.mxu0 0.0
    %7594 = vmatprep.subr.mxu0 0.0
    %7595 = vmatpush2.msra.mxu0 0.0
    %7596 = vmatprep.subr.mxu0 0.0
    %7597 = vmatpush2.msra.mxu0 0.0
    %7598 = vmatprep.subr.mxu0 0.0
    %7599 = vmatpush2.msra.mxu0 0.0
    %7600 = vmatprep.subr.mxu0 0.0
    %7601 = vmatpush2.msra.mxu0 0.0
    %7602 = vmatprep.subr.mxu0 0.0
    %7603 = vmatpush2.msra.mxu0 0.0
    %7604 = vmatprep.subr.mxu0 0.0
    %7605 = vmatpush2.msra.mxu0 0.0
    %7606 = vmatprep.mubr.f32.mxu0 0.0
    %7607 = vmatmul.mubr.f32.gmra.mxu0 %v7537
    %v7608 = vpop.f32.mrf.mxu0
    %v7609 = vadd.f32 0.0, %v7608
    %v7610 = vpop.f32.mrf.mxu0
    %7611 = vmatprep.mubr.f32.mxu0 0.0
    %7612 = vmatmul.mubr.f32.gmra.mxu0 %v7540
    %v7613 = vpop.f32.mrf.mxu0
    %v7614 = vadd.f32 0.0, %v7613
    %v7615 = vpop.f32.mrf.mxu0
    %7616 = vdwg.mxu0
    %7618 = vrot.lane.b32.xlu0 %v6681, 32
    %v7619 = vpop.permute.xlu0 %7618
    %v7622 = vsel %vm3254, %v7518, 0
    %v7625 = vsel %vm3254, %v7519, 0
    %7627 = vmatprep.subr.mxu0 0.0
    %7628 = vmatpush1.msra.mxu0 0.0
    %7629 = vmatprep.subr.mxu0 0.0
    %7630 = vmatpush1.msra.mxu0 0.0
    %7631 = vmatprep.subr.mxu0 0.0
    %7632 = vmatpush1.msra.mxu0 0.0
    %7633 = vmatprep.subr.mxu0 0.0
    %7634 = vmatpush1.msra.mxu0 0.0
    %7635 = vmatprep.subr.mxu0 0.0
    %7636 = vmatpush1.msra.mxu0 0.0
    %7637 = vmatprep.subr.mxu0 0.0
    %7638 = vmatpush1.msra.mxu0 0.0
    %7639 = vmatprep.subr.mxu0 0.0
    %7640 = vmatpush1.msra.mxu0 0.0
    %7641 = vmatprep.subr.mxu0 0.0
    %7642 = vmatpush1.msra.mxu0 0.0
    %7643 = vmatprep.subr.mxu0 0.0
    %7644 = vmatpush1.msra.mxu0 0.0
    %7645 = vmatprep.subr.mxu0 0.0
    %7646 = vmatpush1.msra.mxu0 0.0
    %7647 = vmatprep.subr.mxu0 0.0
    %7648 = vmatpush1.msra.mxu0 0.0
    %7649 = vmatprep.subr.mxu0 0.0
    %7650 = vmatpush1.msra.mxu0 0.0
    %7651 = vmatprep.subr.mxu0 0.0
    %7652 = vmatpush1.msra.mxu0 0.0
    %7653 = vmatprep.subr.mxu0 0.0
    %7654 = vmatpush1.msra.mxu0 0.0
    %7655 = vmatprep.subr.mxu0 0.0
    %7656 = vmatpush1.msra.mxu0 0.0
    %7657 = vmatprep.subr.mxu0 0.0
    %7658 = vmatpush1.msra.mxu0 %v7619
    %7659 = vmatprep.subr.mxu0 0.0
    %7660 = vmatpush2.msra.mxu0 0.0
    %7661 = vmatprep.subr.mxu0 0.0
    %7662 = vmatpush2.msra.mxu0 0.0
    %7663 = vmatprep.subr.mxu0 0.0
    %7664 = vmatpush2.msra.mxu0 0.0
    %7665 = vmatprep.subr.mxu0 0.0
    %7666 = vmatpush2.msra.mxu0 0.0
    %7667 = vmatprep.subr.mxu0 0.0
    %7668 = vmatpush2.msra.mxu0 0.0
    %7669 = vmatprep.subr.mxu0 0.0
    %7670 = vmatpush2.msra.mxu0 0.0
    %7671 = vmatprep.subr.mxu0 0.0
    %7672 = vmatpush2.msra.mxu0 0.0
    %7673 = vmatprep.subr.mxu0 0.0
    %7674 = vmatpush2.msra.mxu0 0.0
    %7675 = vmatprep.subr.mxu0 0.0
    %7676 = vmatpush2.msra.mxu0 0.0
    %7677 = vmatprep.subr.mxu0 0.0
    %7678 = vmatpush2.msra.mxu0 0.0
    %7679 = vmatprep.subr.mxu0 0.0
    %7680 = vmatpush2.msra.mxu0 0.0
    %7681 = vmatprep.subr.mxu0 0.0
    %7682 = vmatpush2.msra.mxu0 0.0
    %7683 = vmatprep.subr.mxu0 0.0
    %7684 = vmatpush2.msra.mxu0 0.0
    %7685 = vmatprep.subr.mxu0 0.0
    %7686 = vmatpush2.msra.mxu0 0.0
    %7687 = vmatprep.subr.mxu0 0.0
    %7688 = vmatpush2.msra.mxu0 0.0
    %7689 = vmatprep.subr.mxu0 0.0
    %7690 = vmatpush2.msra.mxu0 0.0
    %7691 = vmatprep.mubr.f32.mxu0 0.0
    %7692 = vmatmul.mubr.f32.gmra.mxu0 %v7622
    %v7693 = vpop.f32.mrf.mxu0
    %v7694 = vadd.f32 0.0, %v7693
    %v7695 = vpop.f32.mrf.mxu0
    %7696 = vmatprep.mubr.f32.mxu0 0.0
    %7697 = vmatmul.mubr.f32.gmra.mxu0 %v7625
    %v7698 = vpop.f32.mrf.mxu0
    %v7699 = vadd.f32 0.0, %v7698
    %v7700 = vpop.f32.mrf.mxu0
    %7701 = vdwg.mxu0
    %7703 = vrot.lane.b32.xlu0 %v6682, 32
    %v7704 = vpop.permute.xlu0 %7703
    %v7707 = vsel %vm3254, %v7520, 0
    %v7710 = vsel %vm3254, %v7521, 0
    %7712 = vmatprep.subr.mxu0 0.0
    %7713 = vmatpush1.msra.mxu0 0.0
    %7714 = vmatprep.subr.mxu0 0.0
    %7715 = vmatpush1.msra.mxu0 0.0
    %7716 = vmatprep.subr.mxu0 0.0
    %7717 = vmatpush1.msra.mxu0 0.0
    %7718 = vmatprep.subr.mxu0 0.0
    %7719 = vmatpush1.msra.mxu0 0.0
    %7720 = vmatprep.subr.mxu0 0.0
    %7721 = vmatpush1.msra.mxu0 0.0
    %7722 = vmatprep.subr.mxu0 0.0
    %7723 = vmatpush1.msra.mxu0 0.0
    %7724 = vmatprep.subr.mxu0 0.0
    %7725 = vmatpush1.msra.mxu0 0.0
    %7726 = vmatprep.subr.mxu0 0.0
    %7727 = vmatpush1.msra.mxu0 0.0
    %7728 = vmatprep.subr.mxu0 0.0
    %7729 = vmatpush1.msra.mxu0 0.0
    %7730 = vmatprep.subr.mxu0 0.0
    %7731 = vmatpush1.msra.mxu0 0.0
    %7732 = vmatprep.subr.mxu0 0.0
    %7733 = vmatpush1.msra.mxu0 0.0
    %7734 = vmatprep.subr.mxu0 0.0
    %7735 = vmatpush1.msra.mxu0 0.0
    %7736 = vmatprep.subr.mxu0 0.0
    %7737 = vmatpush1.msra.mxu0 0.0
    %7738 = vmatprep.subr.mxu0 0.0
    %7739 = vmatpush1.msra.mxu0 0.0
    %7740 = vmatprep.subr.mxu0 0.0
    %7741 = vmatpush1.msra.mxu0 0.0
    %7742 = vmatprep.subr.mxu0 0.0
    %7743 = vmatpush1.msra.mxu0 %v7704
    %7744 = vmatprep.subr.mxu0 0.0
    %7745 = vmatpush2.msra.mxu0 0.0
    %7746 = vmatprep.subr.mxu0 0.0
    %7747 = vmatpush2.msra.mxu0 0.0
    %7748 = vmatprep.subr.mxu0 0.0
    %7749 = vmatpush2.msra.mxu0 0.0
    %7750 = vmatprep.subr.mxu0 0.0
    %7751 = vmatpush2.msra.mxu0 0.0
    %7752 = vmatprep.subr.mxu0 0.0
    %7753 = vmatpush2.msra.mxu0 0.0
    %7754 = vmatprep.subr.mxu0 0.0
    %7755 = vmatpush2.msra.mxu0 0.0
    %7756 = vmatprep.subr.mxu0 0.0
    %7757 = vmatpush2.msra.mxu0 0.0
    %7758 = vmatprep.subr.mxu0 0.0
    %7759 = vmatpush2.msra.mxu0 0.0
    %7760 = vmatprep.subr.mxu0 0.0
    %7761 = vmatpush2.msra.mxu0 0.0
    %7762 = vmatprep.subr.mxu0 0.0
    %7763 = vmatpush2.msra.mxu0 0.0
    %7764 = vmatprep.subr.mxu0 0.0
    %7765 = vmatpush2.msra.mxu0 0.0
    %7766 = vmatprep.subr.mxu0 0.0
    %7767 = vmatpush2.msra.mxu0 0.0
    %7768 = vmatprep.subr.mxu0 0.0
    %7769 = vmatpush2.msra.mxu0 0.0
    %7770 = vmatprep.subr.mxu0 0.0
    %7771 = vmatpush2.msra.mxu0 0.0
    %7772 = vmatprep.subr.mxu0 0.0
    %7773 = vmatpush2.msra.mxu0 0.0
    %7774 = vmatprep.subr.mxu0 0.0
    %7775 = vmatpush2.msra.mxu0 0.0
    %7776 = vmatprep.mubr.f32.mxu0 0.0
    %7777 = vmatmul.mubr.f32.gmra.mxu0 %v7707
    %v7778 = vpop.f32.mrf.mxu0
    %v7779 = vadd.f32 0.0, %v7778
    %v7780 = vpop.f32.mrf.mxu0
    %7781 = vmatprep.mubr.f32.mxu0 0.0
    %7782 = vmatmul.mubr.f32.gmra.mxu0 %v7710
    %v7783 = vpop.f32.mrf.mxu0
    %v7784 = vadd.f32 0.0, %v7783
    %v7785 = vpop.f32.mrf.mxu0
    %7786 = vdwg.mxu0
    %7788 = vrot.lane.b32.xlu0 %v6683, 32
    %v7789 = vpop.permute.xlu0 %7788
    %v7792 = vsel %vm3254, %v7522, 0
    %v7795 = vsel %vm3254, %v7523, 0
    %7797 = vmatprep.subr.mxu0 0.0
    %7798 = vmatpush1.msra.mxu0 0.0
    %7799 = vmatprep.subr.mxu0 0.0
    %7800 = vmatpush1.msra.mxu0 0.0
    %7801 = vmatprep.subr.mxu0 0.0
    %7802 = vmatpush1.msra.mxu0 0.0
    %7803 = vmatprep.subr.mxu0 0.0
    %7804 = vmatpush1.msra.mxu0 0.0
    %7805 = vmatprep.subr.mxu0 0.0
    %7806 = vmatpush1.msra.mxu0 0.0
    %7807 = vmatprep.subr.mxu0 0.0
    %7808 = vmatpush1.msra.mxu0 0.0
    %7809 = vmatprep.subr.mxu0 0.0
    %7810 = vmatpush1.msra.mxu0 0.0
    %7811 = vmatprep.subr.mxu0 0.0
    %7812 = vmatpush1.msra.mxu0 0.0
    %7813 = vmatprep.subr.mxu0 0.0
    %7814 = vmatpush1.msra.mxu0 0.0
    %7815 = vmatprep.subr.mxu0 0.0
    %7816 = vmatpush1.msra.mxu0 0.0
    %7817 = vmatprep.subr.mxu0 0.0
    %7818 = vmatpush1.msra.mxu0 0.0
    %7819 = vmatprep.subr.mxu0 0.0
    %7820 = vmatpush1.msra.mxu0 0.0
    %7821 = vmatprep.subr.mxu0 0.0
    %7822 = vmatpush1.msra.mxu0 0.0
    %7823 = vmatprep.subr.mxu0 0.0
    %7824 = vmatpush1.msra.mxu0 0.0
    %7825 = vmatprep.subr.mxu0 0.0
    %7826 = vmatpush1.msra.mxu0 0.0
    %7827 = vmatprep.subr.mxu0 0.0
    %7828 = vmatpush1.msra.mxu0 %v7789
    %7829 = vmatprep.subr.mxu0 0.0
    %7830 = vmatpush2.msra.mxu0 0.0
    %7831 = vmatprep.subr.mxu0 0.0
    %7832 = vmatpush2.msra.mxu0 0.0
    %7833 = vmatprep.subr.mxu0 0.0
    %7834 = vmatpush2.msra.mxu0 0.0
    %7835 = vmatprep.subr.mxu0 0.0
    %7836 = vmatpush2.msra.mxu0 0.0
    %7837 = vmatprep.subr.mxu0 0.0
    %7838 = vmatpush2.msra.mxu0 0.0
    %7839 = vmatprep.subr.mxu0 0.0
    %7840 = vmatpush2.msra.mxu0 0.0
    %7841 = vmatprep.subr.mxu0 0.0
    %7842 = vmatpush2.msra.mxu0 0.0
    %7843 = vmatprep.subr.mxu0 0.0
    %7844 = vmatpush2.msra.mxu0 0.0
    %7845 = vmatprep.subr.mxu0 0.0
    %7846 = vmatpush2.msra.mxu0 0.0
    %7847 = vmatprep.subr.mxu0 0.0
    %7848 = vmatpush2.msra.mxu0 0.0
    %7849 = vmatprep.subr.mxu0 0.0
    %7850 = vmatpush2.msra.mxu0 0.0
    %7851 = vmatprep.subr.mxu0 0.0
    %7852 = vmatpush2.msra.mxu0 0.0
    %7853 = vmatprep.subr.mxu0 0.0
    %7854 = vmatpush2.msra.mxu0 0.0
    %7855 = vmatprep.subr.mxu0 0.0
    %7856 = vmatpush2.msra.mxu0 0.0
    %7857 = vmatprep.subr.mxu0 0.0
    %7858 = vmatpush2.msra.mxu0 0.0
    %7859 = vmatprep.subr.mxu0 0.0
    %7860 = vmatpush2.msra.mxu0 0.0
    %7861 = vmatprep.mubr.f32.mxu0 0.0
    %7862 = vmatmul.mubr.f32.gmra.mxu0 %v7792
    %v7863 = vpop.f32.mrf.mxu0
    %v7864 = vadd.f32 0.0, %v7863
    %v7865 = vpop.f32.mrf.mxu0
    %7866 = vmatprep.mubr.f32.mxu0 0.0
    %7867 = vmatmul.mubr.f32.gmra.mxu0 %v7795
    %v7868 = vpop.f32.mrf.mxu0
    %v7869 = vadd.f32 0.0, %v7868
    %v7870 = vpop.f32.mrf.mxu0
    %7871 = vdwg.mxu0
    %7873 = vrot.lane.b32.xlu0 %v6684, 32
    %v7874 = vpop.permute.xlu0 %7873
    %v7877 = vsel %vm3254, %v7524, 0
    %v7880 = vsel %vm3254, %v7525, 0
    %7882 = vmatprep.subr.mxu0 0.0
    %7883 = vmatpush1.msra.mxu0 0.0
    %7884 = vmatprep.subr.mxu0 0.0
    %7885 = vmatpush1.msra.mxu0 0.0
    %7886 = vmatprep.subr.mxu0 0.0
    %7887 = vmatpush1.msra.mxu0 0.0
    %7888 = vmatprep.subr.mxu0 0.0
    %7889 = vmatpush1.msra.mxu0 0.0
    %7890 = vmatprep.subr.mxu0 0.0
    %7891 = vmatpush1.msra.mxu0 0.0
    %7892 = vmatprep.subr.mxu0 0.0
    %7893 = vmatpush1.msra.mxu0 0.0
    %7894 = vmatprep.subr.mxu0 0.0
    %7895 = vmatpush1.msra.mxu0 0.0
    %7896 = vmatprep.subr.mxu0 0.0
    %7897 = vmatpush1.msra.mxu0 0.0
    %7898 = vmatprep.subr.mxu0 0.0
    %7899 = vmatpush1.msra.mxu0 0.0
    %7900 = vmatprep.subr.mxu0 0.0
    %7901 = vmatpush1.msra.mxu0 0.0
    %7902 = vmatprep.subr.mxu0 0.0
    %7903 = vmatpush1.msra.mxu0 0.0
    %7904 = vmatprep.subr.mxu0 0.0
    %7905 = vmatpush1.msra.mxu0 0.0
    %7906 = vmatprep.subr.mxu0 0.0
    %7907 = vmatpush1.msra.mxu0 0.0
    %7908 = vmatprep.subr.mxu0 0.0
    %7909 = vmatpush1.msra.mxu0 0.0
    %7910 = vmatprep.subr.mxu0 0.0
    %7911 = vmatpush1.msra.mxu0 0.0
    %7912 = vmatprep.subr.mxu0 0.0
    %7913 = vmatpush1.msra.mxu0 %v7874
    %7914 = vmatprep.subr.mxu0 0.0
    %7915 = vmatpush2.msra.mxu0 0.0
    %7916 = vmatprep.subr.mxu0 0.0
    %7917 = vmatpush2.msra.mxu0 0.0
    %7918 = vmatprep.subr.mxu0 0.0
    %7919 = vmatpush2.msra.mxu0 0.0
    %7920 = vmatprep.subr.mxu0 0.0
    %7921 = vmatpush2.msra.mxu0 0.0
    %7922 = vmatprep.subr.mxu0 0.0
    %7923 = vmatpush2.msra.mxu0 0.0
    %7924 = vmatprep.subr.mxu0 0.0
    %7925 = vmatpush2.msra.mxu0 0.0
    %7926 = vmatprep.subr.mxu0 0.0
    %7927 = vmatpush2.msra.mxu0 0.0
    %7928 = vmatprep.subr.mxu0 0.0
    %7929 = vmatpush2.msra.mxu0 0.0
    %7930 = vmatprep.subr.mxu0 0.0
    %7931 = vmatpush2.msra.mxu0 0.0
    %7932 = vmatprep.subr.mxu0 0.0
    %7933 = vmatpush2.msra.mxu0 0.0
    %7934 = vmatprep.subr.mxu0 0.0
    %7935 = vmatpush2.msra.mxu0 0.0
    %7936 = vmatprep.subr.mxu0 0.0
    %7937 = vmatpush2.msra.mxu0 0.0
    %7938 = vmatprep.subr.mxu0 0.0
    %7939 = vmatpush2.msra.mxu0 0.0
    %7940 = vmatprep.subr.mxu0 0.0
    %7941 = vmatpush2.msra.mxu0 0.0
    %7942 = vmatprep.subr.mxu0 0.0
    %7943 = vmatpush2.msra.mxu0 0.0
    %7944 = vmatprep.subr.mxu0 0.0
    %7945 = vmatpush2.msra.mxu0 0.0
    %7946 = vmatprep.mubr.f32.mxu0 0.0
    %7947 = vmatmul.mubr.f32.gmra.mxu0 %v7877
    %v7948 = vpop.f32.mrf.mxu0
    %v7949 = vadd.f32 0.0, %v7948
    %v7950 = vpop.f32.mrf.mxu0
    %7951 = vmatprep.mubr.f32.mxu0 0.0
    %7952 = vmatmul.mubr.f32.gmra.mxu0 %v7880
    %v7953 = vpop.f32.mrf.mxu0
    %v7954 = vadd.f32 0.0, %v7953
    %v7955 = vpop.f32.mrf.mxu0
    %7956 = vdwg.mxu0
    %7958 = vrot.lane.b32.xlu0 %v6685, 32
    %v7959 = vpop.permute.xlu0 %7958
    %v7962 = vsel %vm3254, %v7526, 0
    %v7965 = vsel %vm3254, %v7527, 0
    %7967 = vmatprep.subr.mxu0 0.0
    %7968 = vmatpush1.msra.mxu0 0.0
    %7969 = vmatprep.subr.mxu0 0.0
    %7970 = vmatpush1.msra.mxu0 0.0
    %7971 = vmatprep.subr.mxu0 0.0
    %7972 = vmatpush1.msra.mxu0 0.0
    %7973 = vmatprep.subr.mxu0 0.0
    %7974 = vmatpush1.msra.mxu0 0.0
    %7975 = vmatprep.subr.mxu0 0.0
    %7976 = vmatpush1.msra.mxu0 0.0
    %7977 = vmatprep.subr.mxu0 0.0
    %7978 = vmatpush1.msra.mxu0 0.0
    %7979 = vmatprep.subr.mxu0 0.0
    %7980 = vmatpush1.msra.mxu0 0.0
    %7981 = vmatprep.subr.mxu0 0.0
    %7982 = vmatpush1.msra.mxu0 0.0
    %7983 = vmatprep.subr.mxu0 0.0
    %7984 = vmatpush1.msra.mxu0 0.0
    %7985 = vmatprep.subr.mxu0 0.0
    %7986 = vmatpush1.msra.mxu0 0.0
    %7987 = vmatprep.subr.mxu0 0.0
    %7988 = vmatpush1.msra.mxu0 0.0
    %7989 = vmatprep.subr.mxu0 0.0
    %7990 = vmatpush1.msra.mxu0 0.0
    %7991 = vmatprep.subr.mxu0 0.0
    %7992 = vmatpush1.msra.mxu0 0.0
    %7993 = vmatprep.subr.mxu0 0.0
    %7994 = vmatpush1.msra.mxu0 0.0
    %7995 = vmatprep.subr.mxu0 0.0
    %7996 = vmatpush1.msra.mxu0 0.0
    %7997 = vmatprep.subr.mxu0 0.0
    %7998 = vmatpush1.msra.mxu0 %v7959
    %7999 = vmatprep.subr.mxu0 0.0
    %8000 = vmatpush2.msra.mxu0 0.0
    %8001 = vmatprep.subr.mxu0 0.0
    %8002 = vmatpush2.msra.mxu0 0.0
    %8003 = vmatprep.subr.mxu0 0.0
    %8004 = vmatpush2.msra.mxu0 0.0
    %8005 = vmatprep.subr.mxu0 0.0
    %8006 = vmatpush2.msra.mxu0 0.0
    %8007 = vmatprep.subr.mxu0 0.0
    %8008 = vmatpush2.msra.mxu0 0.0
    %8009 = vmatprep.subr.mxu0 0.0
    %8010 = vmatpush2.msra.mxu0 0.0
    %8011 = vmatprep.subr.mxu0 0.0
    %8012 = vmatpush2.msra.mxu0 0.0
    %8013 = vmatprep.subr.mxu0 0.0
    %8014 = vmatpush2.msra.mxu0 0.0
    %8015 = vmatprep.subr.mxu0 0.0
    %8016 = vmatpush2.msra.mxu0 0.0
    %8017 = vmatprep.subr.mxu0 0.0
    %8018 = vmatpush2.msra.mxu0 0.0
    %8019 = vmatprep.subr.mxu0 0.0
    %8020 = vmatpush2.msra.mxu0 0.0
    %8021 = vmatprep.subr.mxu0 0.0
    %8022 = vmatpush2.msra.mxu0 0.0
    %8023 = vmatprep.subr.mxu0 0.0
    %8024 = vmatpush2.msra.mxu0 0.0
    %8025 = vmatprep.subr.mxu0 0.0
    %8026 = vmatpush2.msra.mxu0 0.0
    %8027 = vmatprep.subr.mxu0 0.0
    %8028 = vmatpush2.msra.mxu0 0.0
    %8029 = vmatprep.subr.mxu0 0.0
    %8030 = vmatpush2.msra.mxu0 0.0
    %8031 = vmatprep.mubr.f32.mxu0 0.0
    %8032 = vmatmul.mubr.f32.gmra.mxu0 %v7962
    %v8033 = vpop.f32.mrf.mxu0
    %v8034 = vadd.f32 0.0, %v8033
    %v8035 = vpop.f32.mrf.mxu0
    %8036 = vmatprep.mubr.f32.mxu0 0.0
    %8037 = vmatmul.mubr.f32.gmra.mxu0 %v7965
    %v8038 = vpop.f32.mrf.mxu0
    %v8039 = vadd.f32 0.0, %v8038
    %v8040 = vpop.f32.mrf.mxu0
    %8041 = vdwg.mxu0
    %8043 = vrot.lane.b32.xlu0 %v6686, 32
    %v8044 = vpop.permute.xlu0 %8043
    %v8047 = vsel %vm3254, %v7528, 0
    %v8050 = vsel %vm3254, %v7529, 0
    %8052 = vmatprep.subr.mxu0 0.0
    %8053 = vmatpush1.msra.mxu0 0.0
    %8054 = vmatprep.subr.mxu0 0.0
    %8055 = vmatpush1.msra.mxu0 0.0
    %8056 = vmatprep.subr.mxu0 0.0
    %8057 = vmatpush1.msra.mxu0 0.0
    %8058 = vmatprep.subr.mxu0 0.0
    %8059 = vmatpush1.msra.mxu0 0.0
    %8060 = vmatprep.subr.mxu0 0.0
    %8061 = vmatpush1.msra.mxu0 0.0
    %8062 = vmatprep.subr.mxu0 0.0
    %8063 = vmatpush1.msra.mxu0 0.0
    %8064 = vmatprep.subr.mxu0 0.0
    %8065 = vmatpush1.msra.mxu0 0.0
    %8066 = vmatprep.subr.mxu0 0.0
    %8067 = vmatpush1.msra.mxu0 0.0
    %8068 = vmatprep.subr.mxu0 0.0
    %8069 = vmatpush1.msra.mxu0 0.0
    %8070 = vmatprep.subr.mxu0 0.0
    %8071 = vmatpush1.msra.mxu0 0.0
    %8072 = vmatprep.subr.mxu0 0.0
    %8073 = vmatpush1.msra.mxu0 0.0
    %8074 = vmatprep.subr.mxu0 0.0
    %8075 = vmatpush1.msra.mxu0 0.0
    %8076 = vmatprep.subr.mxu0 0.0
    %8077 = vmatpush1.msra.mxu0 0.0
    %8078 = vmatprep.subr.mxu0 0.0
    %8079 = vmatpush1.msra.mxu0 0.0
    %8080 = vmatprep.subr.mxu0 0.0
    %8081 = vmatpush1.msra.mxu0 0.0
    %8082 = vmatprep.subr.mxu0 0.0
    %8083 = vmatpush1.msra.mxu0 %v8044
    %8084 = vmatprep.subr.mxu0 0.0
    %8085 = vmatpush2.msra.mxu0 0.0
    %8086 = vmatprep.subr.mxu0 0.0
    %8087 = vmatpush2.msra.mxu0 0.0
    %8088 = vmatprep.subr.mxu0 0.0
    %8089 = vmatpush2.msra.mxu0 0.0
    %8090 = vmatprep.subr.mxu0 0.0
    %8091 = vmatpush2.msra.mxu0 0.0
    %8092 = vmatprep.subr.mxu0 0.0
    %8093 = vmatpush2.msra.mxu0 0.0
    %8094 = vmatprep.subr.mxu0 0.0
    %8095 = vmatpush2.msra.mxu0 0.0
    %8096 = vmatprep.subr.mxu0 0.0
    %8097 = vmatpush2.msra.mxu0 0.0
    %8098 = vmatprep.subr.mxu0 0.0
    %8099 = vmatpush2.msra.mxu0 0.0
    %8100 = vmatprep.subr.mxu0 0.0
    %8101 = vmatpush2.msra.mxu0 0.0
    %8102 = vmatprep.subr.mxu0 0.0
    %8103 = vmatpush2.msra.mxu0 0.0
    %8104 = vmatprep.subr.mxu0 0.0
    %8105 = vmatpush2.msra.mxu0 0.0
    %8106 = vmatprep.subr.mxu0 0.0
    %8107 = vmatpush2.msra.mxu0 0.0
    %8108 = vmatprep.subr.mxu0 0.0
    %8109 = vmatpush2.msra.mxu0 0.0
    %8110 = vmatprep.subr.mxu0 0.0
    %8111 = vmatpush2.msra.mxu0 0.0
    %8112 = vmatprep.subr.mxu0 0.0
    %8113 = vmatpush2.msra.mxu0 0.0
    %8114 = vmatprep.subr.mxu0 0.0
    %8115 = vmatpush2.msra.mxu0 0.0
    %8116 = vmatprep.mubr.f32.mxu0 0.0
    %8117 = vmatmul.mubr.f32.gmra.mxu0 %v8047
    %v8118 = vpop.f32.mrf.mxu0
    %v8119 = vadd.f32 0.0, %v8118
    %v8120 = vpop.f32.mrf.mxu0
    %8121 = vmatprep.mubr.f32.mxu0 0.0
    %8122 = vmatmul.mubr.f32.gmra.mxu0 %v8050
    %v8123 = vpop.f32.mrf.mxu0
    %v8124 = vadd.f32 0.0, %v8123
    %v8125 = vpop.f32.mrf.mxu0
    %8126 = vdwg.mxu0
    %8128 = vrot.lane.b32.xlu0 %v6687, 32
    %v8129 = vpop.permute.xlu0 %8128
    %v8132 = vsel %vm3254, %v7530, 0
    %v8135 = vsel %vm3254, %v7531, 0
    %8137 = vmatprep.subr.mxu0 0.0
    %8138 = vmatpush1.msra.mxu0 0.0
    %8139 = vmatprep.subr.mxu0 0.0
    %8140 = vmatpush1.msra.mxu0 0.0
    %8141 = vmatprep.subr.mxu0 0.0
    %8142 = vmatpush1.msra.mxu0 0.0
    %8143 = vmatprep.subr.mxu0 0.0
    %8144 = vmatpush1.msra.mxu0 0.0
    %8145 = vmatprep.subr.mxu0 0.0
    %8146 = vmatpush1.msra.mxu0 0.0
    %8147 = vmatprep.subr.mxu0 0.0
    %8148 = vmatpush1.msra.mxu0 0.0
    %8149 = vmatprep.subr.mxu0 0.0
    %8150 = vmatpush1.msra.mxu0 0.0
    %8151 = vmatprep.subr.mxu0 0.0
    %8152 = vmatpush1.msra.mxu0 0.0
    %8153 = vmatprep.subr.mxu0 0.0
    %8154 = vmatpush1.msra.mxu0 0.0
    %8155 = vmatprep.subr.mxu0 0.0
    %8156 = vmatpush1.msra.mxu0 0.0
    %8157 = vmatprep.subr.mxu0 0.0
    %8158 = vmatpush1.msra.mxu0 0.0
    %8159 = vmatprep.subr.mxu0 0.0
    %8160 = vmatpush1.msra.mxu0 0.0
    %8161 = vmatprep.subr.mxu0 0.0
    %8162 = vmatpush1.msra.mxu0 0.0
    %8163 = vmatprep.subr.mxu0 0.0
    %8164 = vmatpush1.msra.mxu0 0.0
    %8165 = vmatprep.subr.mxu0 0.0
    %8166 = vmatpush1.msra.mxu0 0.0
    %8167 = vmatprep.subr.mxu0 0.0
    %8168 = vmatpush1.msra.mxu0 %v8129
    %8169 = vmatprep.subr.mxu0 0.0
    %8170 = vmatpush2.msra.mxu0 0.0
    %8171 = vmatprep.subr.mxu0 0.0
    %8172 = vmatpush2.msra.mxu0 0.0
    %8173 = vmatprep.subr.mxu0 0.0
    %8174 = vmatpush2.msra.mxu0 0.0
    %8175 = vmatprep.subr.mxu0 0.0
    %8176 = vmatpush2.msra.mxu0 0.0
    %8177 = vmatprep.subr.mxu0 0.0
    %8178 = vmatpush2.msra.mxu0 0.0
    %8179 = vmatprep.subr.mxu0 0.0
    %8180 = vmatpush2.msra.mxu0 0.0
    %8181 = vmatprep.subr.mxu0 0.0
    %8182 = vmatpush2.msra.mxu0 0.0
    %8183 = vmatprep.subr.mxu0 0.0
    %8184 = vmatpush2.msra.mxu0 0.0
    %8185 = vmatprep.subr.mxu0 0.0
    %8186 = vmatpush2.msra.mxu0 0.0
    %8187 = vmatprep.subr.mxu0 0.0
    %8188 = vmatpush2.msra.mxu0 0.0
    %8189 = vmatprep.subr.mxu0 0.0
    %8190 = vmatpush2.msra.mxu0 0.0
    %8191 = vmatprep.subr.mxu0 0.0
    %8192 = vmatpush2.msra.mxu0 0.0
    %8193 = vmatprep.subr.mxu0 0.0
    %8194 = vmatpush2.msra.mxu0 0.0
    %8195 = vmatprep.subr.mxu0 0.0
    %8196 = vmatpush2.msra.mxu0 0.0
    %8197 = vmatprep.subr.mxu0 0.0
    %8198 = vmatpush2.msra.mxu0 0.0
    %8199 = vmatprep.subr.mxu0 0.0
    %8200 = vmatpush2.msra.mxu0 0.0
    %8201 = vmatprep.mubr.f32.mxu0 0.0
    %8202 = vmatmul.mubr.f32.gmra.mxu0 %v8132
    %v8203 = vpop.f32.mrf.mxu0
    %v8204 = vadd.f32 0.0, %v8203
    %v8205 = vpop.f32.mrf.mxu0
    %8206 = vmatprep.mubr.f32.mxu0 0.0
    %8207 = vmatmul.mubr.f32.gmra.mxu0 %v8135
    %v8208 = vpop.f32.mrf.mxu0
    %v8209 = vadd.f32 0.0, %v8208
    %v8210 = vpop.f32.mrf.mxu0
    %8211 = vdwg.mxu0
    %v8212 = vsel %vm336, %v7609, 0.0
    %v8213 = vsel %vm336, %v7694, 0.0
    %v8214 = vadd.f32 %v8212, %v8213
    %v8215 = vsel %vm336, %v7779, 0.0
    %v8216 = vadd.f32 %v8214, %v8215
    %v8217 = vsel %vm336, %v7864, 0.0
    %v8218 = vadd.f32 %v8216, %v8217
    %v8219 = vsel %vm336, %v7614, 0.0
    %v8220 = vsel %vm336, %v7699, 0.0
    %v8221 = vadd.f32 %v8219, %v8220
    %v8222 = vsel %vm336, %v7784, 0.0
    %v8223 = vadd.f32 %v8221, %v8222
    %v8224 = vsel %vm336, %v7869, 0.0
    %v8225 = vadd.f32 %v8223, %v8224
    %v8226 = vsel %vm336, %v7949, 0.0
    %v8227 = vsel %vm336, %v8034, 0.0
    %v8228 = vadd.f32 %v8226, %v8227
    %v8229 = vsel %vm336, %v8119, 0.0
    %v8230 = vadd.f32 %v8228, %v8229
    %v8231 = vsel %vm336, %v8204, 0.0
    %v8232 = vadd.f32 %v8230, %v8231
    %v8233 = vsel %vm336, %v7954, 0.0
    %v8234 = vsel %vm336, %v8039, 0.0
    %v8235 = vadd.f32 %v8233, %v8234
    %v8236 = vsel %vm336, %v8124, 0.0
    %v8237 = vadd.f32 %v8235, %v8236
    %v8238 = vsel %vm336, %v8209, 0.0
    %v8239 = vadd.f32 %v8237, %v8238
    %8244 = vrot.lane.b32.xlu0 %v4579, 96
    %v8245 = vpop.permute.xlu0 %8244
    %8246 = vrot.lane.b32.xlu0 %v4582, 96
    %v8247 = vpop.permute.xlu0 %8246
    %8248 = vrot.lane.b32.xlu0 %v4585, 96
    %v8249 = vpop.permute.xlu0 %8248
    %8250 = vrot.lane.b32.xlu0 %v4588, 96
    %v8251 = vpop.permute.xlu0 %8250
    %8257 = vrot.lane.b32.xlu0 %v6562, 96
    %v8258 = vpop.permute.xlu0 %8257
    %v8261 = vsel %vm336, %v8218, 0
    %v8264 = vsel %vm336, %v8225, 0
    %v8267 = vsel %vm336, %v8232, 0
    %v8270 = vsel %vm336, %v8239, 0
    %8272 = vmatprep.subr.mxu0 0.0
    %8273 = vmatpush1.msra.mxu0 0.0
    %8274 = vmatprep.subr.mxu0 0.0
    %8275 = vmatpush1.msra.mxu0 0.0
    %8276 = vmatprep.subr.mxu0 0.0
    %8277 = vmatpush1.msra.mxu0 0.0
    %8278 = vmatprep.subr.mxu0 0.0
    %8279 = vmatpush1.msra.mxu0 0.0
    %8280 = vmatprep.subr.mxu0 0.0
    %8281 = vmatpush1.msra.mxu0 0.0
    %8282 = vmatprep.subr.mxu0 0.0
    %8283 = vmatpush1.msra.mxu0 0.0
    %8284 = vmatprep.subr.mxu0 0.0
    %8285 = vmatpush1.msra.mxu0 0.0
    %8286 = vmatprep.subr.mxu0 0.0
    %8287 = vmatpush1.msra.mxu0 0.0
    %8288 = vmatprep.subr.mxu0 0.0
    %8289 = vmatpush1.msra.mxu0 0.0
    %8290 = vmatprep.subr.mxu0 0.0
    %8291 = vmatpush1.msra.mxu0 0.0
    %8292 = vmatprep.subr.mxu0 0.0
    %8293 = vmatpush1.msra.mxu0 0.0
    %8294 = vmatprep.subr.mxu0 0.0
    %8295 = vmatpush1.msra.mxu0 0.0
    %8296 = vmatprep.subr.mxu0 0.0
    %8297 = vmatpush1.msra.mxu0 %v8251
    %8298 = vmatprep.subr.mxu0 0.0
    %8299 = vmatpush1.msra.mxu0 %v8249
    %8300 = vmatprep.subr.mxu0 0.0
    %8301 = vmatpush1.msra.mxu0 %v8247
    %8302 = vmatprep.subr.mxu0 0.0
    %8303 = vmatpush1.msra.mxu0 %v8245
    %8304 = vmatprep.subr.mxu0 0.0
    %8305 = vmatpush2.msra.mxu0 0.0
    %8306 = vmatprep.subr.mxu0 0.0
    %8307 = vmatpush2.msra.mxu0 0.0
    %8308 = vmatprep.subr.mxu0 0.0
    %8309 = vmatpush2.msra.mxu0 0.0
    %8310 = vmatprep.subr.mxu0 0.0
    %8311 = vmatpush2.msra.mxu0 0.0
    %8312 = vmatprep.subr.mxu0 0.0
    %8313 = vmatpush2.msra.mxu0 0.0
    %8314 = vmatprep.subr.mxu0 0.0
    %8315 = vmatpush2.msra.mxu0 0.0
    %8316 = vmatprep.subr.mxu0 0.0
    %8317 = vmatpush2.msra.mxu0 0.0
    %8318 = vmatprep.subr.mxu0 0.0
    %8319 = vmatpush2.msra.mxu0 0.0
    %8320 = vmatprep.subr.mxu0 0.0
    %8321 = vmatpush2.msra.mxu0 0.0
    %8322 = vmatprep.subr.mxu0 0.0
    %8323 = vmatpush2.msra.mxu0 0.0
    %8324 = vmatprep.subr.mxu0 0.0
    %8325 = vmatpush2.msra.mxu0 0.0
    %8326 = vmatprep.subr.mxu0 0.0
    %8327 = vmatpush2.msra.mxu0 0.0
    %8328 = vmatprep.subr.mxu0 0.0
    %8329 = vmatpush2.msra.mxu0 0.0
    %8330 = vmatprep.subr.mxu0 0.0
    %8331 = vmatpush2.msra.mxu0 0.0
    %8332 = vmatprep.subr.mxu0 0.0
    %8333 = vmatpush2.msra.mxu0 0.0
    %8334 = vmatprep.subr.mxu0 0.0
    %8335 = vmatpush2.msra.mxu0 0.0
    %8336 = vmatprep.mubr.f32.mxu0 0.0
    %8337 = vmatmul.mubr.f32.gmra.mxu0 %v8261
    %v8338 = vpop.f32.mrf.mxu0
    %v8339 = vadd.f32 %v8258, %v8338
    %v8340 = vpop.f32.mrf.mxu0
    %8341 = vmatprep.mubr.f32.mxu0 0.0
    %8342 = vmatmul.mubr.f32.gmra.mxu0 %v8264
    %v8343 = vpop.f32.mrf.mxu0
    %v8344 = vadd.f32 %v8258, %v8343
    %v8345 = vpop.f32.mrf.mxu0
    %8346 = vmatprep.mubr.f32.mxu0 0.0
    %8347 = vmatmul.mubr.f32.gmra.mxu0 %v8267
    %v8348 = vpop.f32.mrf.mxu0
    %v8349 = vadd.f32 %v8258, %v8348
    %v8350 = vpop.f32.mrf.mxu0
    %8351 = vmatprep.mubr.f32.mxu0 0.0
    %8352 = vmatmul.mubr.f32.gmra.mxu0 %v8270
    %v8353 = vpop.f32.mrf.mxu0
    %v8354 = vadd.f32 %v8258, %v8353
    %v8355 = vpop.f32.mrf.mxu0
    %8356 = vdwg.mxu0
    %v8357 = vadd.f32 %v6503, %v8339
    %v8358 = vadd.f32 %v6504, %v8344
    %v8359 = vadd.f32 %v6505, %v8349
    %v8360 = vadd.f32 %v6506, %v8354
    %v8361 = vsel %vm336, %v8357, 0.0
    %8362 = vadd.xlane.f32.xlu0 %v8361
    %v8363 = vpop.xlane.xlu0 %8362
    %v8364 = vsel %vm336, %v8358, 0.0
    %8365 = vadd.xlane.f32.xlu0 %v8364
    %v8366 = vpop.xlane.xlu0 %8365
    %v8367 = vsel %vm336, %v8359, 0.0
    %8368 = vadd.xlane.f32.xlu0 %v8367
    %v8369 = vpop.xlane.xlu0 %8368
    %v8370 = vsel %vm336, %v8360, 0.0
    %8371 = vadd.xlane.f32.xlu0 %v8370
    %v8372 = vpop.xlane.xlu0 %8371
    %v8373 = vmul.f32 %v8363, %v343
    %v8374 = vmul.f32 %v8366, %v343
    %v8375 = vmul.f32 %v8369, %v343
    %v8376 = vmul.f32 %v8372, %v343
    %v8377 = vsub.f32 %v8357, %v8373
    %v8378 = vsub.f32 %v8358, %v8374
    %v8379 = vsub.f32 %v8359, %v8375
    %v8380 = vsub.f32 %v8360, %v8376
    %v8381 = vmul.f32 %v8377, %v8377
    %v8382 = vmul.f32 %v8378, %v8378
    %v8383 = vmul.f32 %v8379, %v8379
    %v8384 = vmul.f32 %v8380, %v8380
    %v8385 = vsel %vm336, %v8381, 0.0
    %8386 = vadd.xlane.f32.xlu0 %v8385
    %v8387 = vpop.xlane.xlu0 %8386
    %v8388 = vsel %vm336, %v8382, 0.0
    %8389 = vadd.xlane.f32.xlu0 %v8388
    %v8390 = vpop.xlane.xlu0 %8389
    %v8391 = vsel %vm336, %v8383, 0.0
    %8392 = vadd.xlane.f32.xlu0 %v8391
    %v8393 = vpop.xlane.xlu0 %8392
    %v8394 = vsel %vm336, %v8384, 0.0
    %8395 = vadd.xlane.f32.xlu0 %v8394
    %v8396 = vpop.xlane.xlu0 %8395
    %v8397 = vmul.f32 %v8387, %v343
    %v8398 = vmul.f32 %v8390, %v343
    %v8399 = vmul.f32 %v8393, %v343
    %v8400 = vmul.f32 %v8396, %v343
    %v8401 = vadd.f32 %v8397, 1e-05
    %v8402 = vadd.f32 %v8398, 1e-05
    %v8403 = vadd.f32 %v8399, 1e-05
    %v8404 = vadd.f32 %v8400, 1e-05
    %v8405 = vrsqrt.pop %v8401
    %v8406 = vrsqrt.pop %v8402
    %v8407 = vrsqrt.pop %v8403
    %v8408 = vrsqrt.pop %v8404
    %v8409 = vmul.f32 %v8377, %v8405
    %v8410 = vmul.f32 %v8378, %v8406
    %v8411 = vmul.f32 %v8379, %v8407
    %v8412 = vmul.f32 %v8380, %v8408
    %8413 = vrot.lane.b32.xlu0 %v4579, 64
    %v8414 = vpop.permute.xlu0 %8413
    %8415 = vrot.lane.b32.xlu0 %v4582, 64
    %v8416 = vpop.permute.xlu0 %8415
    %8417 = vrot.lane.b32.xlu0 %v4585, 64
    %v8418 = vpop.permute.xlu0 %8417
    %8419 = vrot.lane.b32.xlu0 %v4588, 64
    %v8420 = vpop.permute.xlu0 %8419
    %8425 = vrot.lane.b32.xlu0 %v6562, 64
    %v8426 = vpop.permute.xlu0 %8425
    %v8429 = vsel %vm336, %v8409, 0
    %v8432 = vsel %vm336, %v8410, 0
    %v8435 = vsel %vm336, %v8411, 0
    %v8438 = vsel %vm336, %v8412, 0
    %8440 = vmatprep.subr.mxu0 0.0
    %8441 = vmatpush1.msra.mxu0 0.0
    %8442 = vmatprep.subr.mxu0 0.0
    %8443 = vmatpush1.msra.mxu0 0.0
    %8444 = vmatprep.subr.mxu0 0.0
    %8445 = vmatpush1.msra.mxu0 0.0
    %8446 = vmatprep.subr.mxu0 0.0
    %8447 = vmatpush1.msra.mxu0 0.0
    %8448 = vmatprep.subr.mxu0 0.0
    %8449 = vmatpush1.msra.mxu0 0.0
    %8450 = vmatprep.subr.mxu0 0.0
    %8451 = vmatpush1.msra.mxu0 0.0
    %8452 = vmatprep.subr.mxu0 0.0
    %8453 = vmatpush1.msra.mxu0 0.0
    %8454 = vmatprep.subr.mxu0 0.0
    %8455 = vmatpush1.msra.mxu0 0.0
    %8456 = vmatprep.subr.mxu0 0.0
    %8457 = vmatpush1.msra.mxu0 0.0
    %8458 = vmatprep.subr.mxu0 0.0
    %8459 = vmatpush1.msra.mxu0 0.0
    %8460 = vmatprep.subr.mxu0 0.0
    %8461 = vmatpush1.msra.mxu0 0.0
    %8462 = vmatprep.subr.mxu0 0.0
    %8463 = vmatpush1.msra.mxu0 0.0
    %8464 = vmatprep.subr.mxu0 0.0
    %8465 = vmatpush1.msra.mxu0 %v8420
    %8466 = vmatprep.subr.mxu0 0.0
    %8467 = vmatpush1.msra.mxu0 %v8418
    %8468 = vmatprep.subr.mxu0 0.0
    %8469 = vmatpush1.msra.mxu0 %v8416
    %8470 = vmatprep.subr.mxu0 0.0
    %8471 = vmatpush1.msra.mxu0 %v8414
    %8472 = vmatprep.subr.mxu0 0.0
    %8473 = vmatpush2.msra.mxu0 0.0
    %8474 = vmatprep.subr.mxu0 0.0
    %8475 = vmatpush2.msra.mxu0 0.0
    %8476 = vmatprep.subr.mxu0 0.0
    %8477 = vmatpush2.msra.mxu0 0.0
    %8478 = vmatprep.subr.mxu0 0.0
    %8479 = vmatpush2.msra.mxu0 0.0
    %8480 = vmatprep.subr.mxu0 0.0
    %8481 = vmatpush2.msra.mxu0 0.0
    %8482 = vmatprep.subr.mxu0 0.0
    %8483 = vmatpush2.msra.mxu0 0.0
    %8484 = vmatprep.subr.mxu0 0.0
    %8485 = vmatpush2.msra.mxu0 0.0
    %8486 = vmatprep.subr.mxu0 0.0
    %8487 = vmatpush2.msra.mxu0 0.0
    %8488 = vmatprep.subr.mxu0 0.0
    %8489 = vmatpush2.msra.mxu0 0.0
    %8490 = vmatprep.subr.mxu0 0.0
    %8491 = vmatpush2.msra.mxu0 0.0
    %8492 = vmatprep.subr.mxu0 0.0
    %8493 = vmatpush2.msra.mxu0 0.0
    %8494 = vmatprep.subr.mxu0 0.0
    %8495 = vmatpush2.msra.mxu0 0.0
    %8496 = vmatprep.subr.mxu0 0.0
    %8497 = vmatpush2.msra.mxu0 0.0
    %8498 = vmatprep.subr.mxu0 0.0
    %8499 = vmatpush2.msra.mxu0 0.0
    %8500 = vmatprep.subr.mxu0 0.0
    %8501 = vmatpush2.msra.mxu0 0.0
    %8502 = vmatprep.subr.mxu0 0.0
    %8503 = vmatpush2.msra.mxu0 0.0
    %8504 = vmatprep.mubr.f32.mxu0 0.0
    %8505 = vmatmul.mubr.f32.gmra.mxu0 %v8429
    %v8506 = vpop.f32.mrf.mxu0
    %v8507 = vadd.f32 %v8426, %v8506
    %v8508 = vpop.f32.mrf.mxu0
    %8509 = vmatprep.mubr.f32.mxu0 0.0
    %8510 = vmatmul.mubr.f32.gmra.mxu0 %v8432
    %v8511 = vpop.f32.mrf.mxu0
    %v8512 = vadd.f32 %v8426, %v8511
    %v8513 = vpop.f32.mrf.mxu0
    %8514 = vmatprep.mubr.f32.mxu0 0.0
    %8515 = vmatmul.mubr.f32.gmra.mxu0 %v8435
    %v8516 = vpop.f32.mrf.mxu0
    %v8517 = vadd.f32 %v8426, %v8516
    %v8518 = vpop.f32.mrf.mxu0
    %8519 = vmatprep.mubr.f32.mxu0 0.0
    %8520 = vmatmul.mubr.f32.gmra.mxu0 %v8438
    %v8521 = vpop.f32.mrf.mxu0
    %v8522 = vadd.f32 %v8426, %v8521
    %v8523 = vpop.f32.mrf.mxu0
    %8524 = vdwg.mxu0
    %v8525 = vxor.u32 %v8507, 2147483648
    %v8526 = vxor.u32 %v8512, 2147483648
    %v8527 = vxor.u32 %v8517, 2147483648
    %v8528 = vxor.u32 %v8522, 2147483648
    %v8529 = vmul.f32 %v8525, 1.442695
    %v8530 = vpow.pop %v8529
    %v8531 = vmul.f32 %v8526, 1.442695
    %v8532 = vpow.pop %v8531
    %v8533 = vmul.f32 %v8527, 1.442695
    %v8534 = vpow.pop %v8533
    %v8535 = vmul.f32 %v8528, 1.442695
    %v8536 = vpow.pop %v8535
    %v8537 = vadd.f32 %v8530, 1.0
    %v8538 = vadd.f32 %v8532, 1.0
    %v8539 = vadd.f32 %v8534, 1.0
    %v8540 = vadd.f32 %v8536, 1.0
    %v8541 = vrcp.pop %v8537
    %v8542 = vmul.f32 1.0, %v8541
    %v8543 = vrcp.pop %v8538
    %v8544 = vmul.f32 1.0, %v8543
    %v8545 = vrcp.pop %v8539
    %v8546 = vmul.f32 1.0, %v8545
    %v8547 = vrcp.pop %v8540
    %v8548 = vmul.f32 1.0, %v8547
    %v8549 = vmul.f32 %v8507, %v8542
    %v8550 = vmul.f32 %v8512, %v8544
    %v8551 = vmul.f32 %v8517, %v8546
    %v8552 = vmul.f32 %v8522, %v8548
    %8557 = vrot.lane.b32.xlu0 %v8507, 96
    %v8558 = vpop.permute.xlu0 %8557
    %8559 = vrot.lane.b32.xlu0 %v8512, 96
    %v8560 = vpop.permute.xlu0 %8559
    %8561 = vrot.lane.b32.xlu0 %v8517, 96
    %v8562 = vpop.permute.xlu0 %8561
    %8563 = vrot.lane.b32.xlu0 %v8522, 96
    %v8564 = vpop.permute.xlu0 %8563
    %v8569 = vmul.f32 %v8549, %v8558
    %v8570 = vmul.f32 %v8550, %v8560
    %v8571 = vmul.f32 %v8551, %v8562
    %v8572 = vmul.f32 %v8552, %v8564
    %v8573 = vlaneseq
    %v8574 = vshrl.u32 %v8573, 7
    %v8575 = vsub.s32 0, %v8574
    %v8576 = vrot.slane %v4592, %v8575
    %v8578 = vsel %vm336, %v8569, 0
    %v8581 = vsel %vm336, %v8570, 0
    %v8584 = vsel %vm336, %v8571, 0
    %v8587 = vsel %vm336, %v8572, 0
    %8589 = vmatprep.subr.mxu0 0.0
    %8590 = vmatpush1.msra.mxu0 0.0
    %8591 = vmatprep.subr.mxu0 0.0
    %8592 = vmatpush1.msra.mxu0 0.0
    %8593 = vmatprep.subr.mxu0 0.0
    %8594 = vmatpush1.msra.mxu0 0.0
    %8595 = vmatprep.subr.mxu0 0.0
    %8596 = vmatpush1.msra.mxu0 0.0
    %8597 = vmatprep.subr.mxu0 0.0
    %8598 = vmatpush1.msra.mxu0 0.0
    %8599 = vmatprep.subr.mxu0 0.0
    %8600 = vmatpush1.msra.mxu0 0.0
    %8601 = vmatprep.subr.mxu0 0.0
    %8602 = vmatpush1.msra.mxu0 0.0
    %8603 = vmatprep.subr.mxu0 0.0
    %8604 = vmatpush1.msra.mxu0 0.0
    %8605 = vmatprep.subr.mxu0 0.0
    %8606 = vmatpush1.msra.mxu0 0.0
    %8607 = vmatprep.subr.mxu0 0.0
    %8608 = vmatpush1.msra.mxu0 0.0
    %8609 = vmatprep.subr.mxu0 0.0
    %8610 = vmatpush1.msra.mxu0 0.0
    %8611 = vmatprep.subr.mxu0 0.0
    %8612 = vmatpush1.msra.mxu0 0.0
    %8613 = vmatprep.subr.mxu0 0.0
    %8614 = vmatpush1.msra.mxu0 %v4589
    %8615 = vmatprep.subr.mxu0 0.0
    %8616 = vmatpush1.msra.mxu0 %v4586
    %8617 = vmatprep.subr.mxu0 0.0
    %8618 = vmatpush1.msra.mxu0 %v4583
    %8619 = vmatprep.subr.mxu0 0.0
    %8620 = vmatpush1.msra.mxu0 %v4580
    %8621 = vmatprep.subr.mxu0 0.0
    %8622 = vmatpush2.msra.mxu0 0.0
    %8623 = vmatprep.subr.mxu0 0.0
    %8624 = vmatpush2.msra.mxu0 0.0
    %8625 = vmatprep.subr.mxu0 0.0
    %8626 = vmatpush2.msra.mxu0 0.0
    %8627 = vmatprep.subr.mxu0 0.0
    %8628 = vmatpush2.msra.mxu0 0.0
    %8629 = vmatprep.subr.mxu0 0.0
    %8630 = vmatpush2.msra.mxu0 0.0
    %8631 = vmatprep.subr.mxu0 0.0
    %8632 = vmatpush2.msra.mxu0 0.0
    %8633 = vmatprep.subr.mxu0 0.0
    %8634 = vmatpush2.msra.mxu0 0.0
    %8635 = vmatprep.subr.mxu0 0.0
    %8636 = vmatpush2.msra.mxu0 0.0
    %8637 = vmatprep.subr.mxu0 0.0
    %8638 = vmatpush2.msra.mxu0 0.0
    %8639 = vmatprep.subr.mxu0 0.0
    %8640 = vmatpush2.msra.mxu0 0.0
    %8641 = vmatprep.subr.mxu0 0.0
    %8642 = vmatpush2.msra.mxu0 0.0
    %8643 = vmatprep.subr.mxu0 0.0
    %8644 = vmatpush2.msra.mxu0 0.0
    %8645 = vmatprep.subr.mxu0 0.0
    %8646 = vmatpush2.msra.mxu0 0.0
    %8647 = vmatprep.subr.mxu0 0.0
    %8648 = vmatpush2.msra.mxu0 0.0
    %8649 = vmatprep.subr.mxu0 0.0
    %8650 = vmatpush2.msra.mxu0 0.0
    %8651 = vmatprep.subr.mxu0 0.0
    %8652 = vmatpush2.msra.mxu0 0.0
    %8653 = vmatprep.mubr.f32.mxu0 0.0
    %8654 = vmatmul.mubr.f32.gmra.mxu0 %v8578
    %v8655 = vpop.f32.mrf.mxu0
    %v8656 = vadd.f32 %v8576, %v8655
    %v8657 = vpop.f32.mrf.mxu0
    %8658 = vmatprep.mubr.f32.mxu0 0.0
    %8659 = vmatmul.mubr.f32.gmra.mxu0 %v8581
    %v8660 = vpop.f32.mrf.mxu0
    %v8661 = vadd.f32 %v8576, %v8660
    %v8662 = vpop.f32.mrf.mxu0
    %8663 = vmatprep.mubr.f32.mxu0 0.0
    %8664 = vmatmul.mubr.f32.gmra.mxu0 %v8584
    %v8665 = vpop.f32.mrf.mxu0
    %v8666 = vadd.f32 %v8576, %v8665
    %v8667 = vpop.f32.mrf.mxu0
    %8668 = vmatprep.mubr.f32.mxu0 0.0
    %8669 = vmatmul.mubr.f32.gmra.mxu0 %v8587
    %v8670 = vpop.f32.mrf.mxu0
    %v8671 = vadd.f32 %v8576, %v8670
    %v8672 = vpop.f32.mrf.mxu0
    %8673 = vdwg.mxu0
    %v8674 = vadd.f32 %v8357, %v8656
    %v8675 = vadd.f32 %v8358, %v8661
    %v8676 = vadd.f32 %v8359, %v8666
    %v8677 = vadd.f32 %v8360, %v8671
    %v8678 = vlaneseq
    %v8679 = vshrl.u32 %v8678, 7
    %v8680 = vsub.s32 4, %v8679
    %v8681 = vrot.slane %v40, %v8680
    %v8682 = vmul.f32 %v8674, %v8681
    %v8683 = vmul.f32 %v8675, %v8681
    %v8684 = vmul.f32 %v8676, %v8681
    %v8685 = vmul.f32 %v8677, %v8681
    %v8686 = vsel %vm336, %v8682, 0.0
    %8687 = vadd.xlane.f32.xlu0 %v8686
    %v8688 = vpop.xlane.xlu0 %8687
    %v8689 = vsel %vm336, %v8683, 0.0
    %8690 = vadd.xlane.f32.xlu0 %v8689
    %v8691 = vpop.xlane.xlu0 %8690
    %v8692 = vsel %vm336, %v8684, 0.0
    %8693 = vadd.xlane.f32.xlu0 %v8692
    %v8694 = vpop.xlane.xlu0 %8693
    %v8695 = vsel %vm336, %v8685, 0.0
    %8696 = vadd.xlane.f32.xlu0 %v8695
    %v8697 = vpop.xlane.xlu0 %8696
    %v8698 = vrot.slane %v40, 5
    %s8699 = vtos %v8698
    %v8700 = vstv %s8699
    %v8702 = vadd.f32 %v8688, %v8700
    %v8703 = vadd.f32 %v8691, %v8700
    %v8704 = vadd.f32 %v8694, %v8700
    %v8705 = vadd.f32 %v8697, %v8700
    %v8706 = vld [vmem:[%s0] sm:$0x3]
    %8707 = vset.pattern.permute.xlu0 1
    %8708 = vperm.xlu0 %8707, %v91
    %v8709 = vpop.permute.xlu0 %8708
    %v8711 = vmul.f32 %v8709, %v8706
    %8712 = vset.pattern.permute.xlu0 2
    %8713 = vperm.xlu0 %8712, %v91
    %v8714 = vpop.permute.xlu0 %8713
    %v8720 = vlaneseq
    %v8721 = vand.u32 %v8720, 127
    %v8722 = vlaneseq
    %v8723 = vshrl.u32 %v8722, 7
    %v8724 = vsub.s32 %v8721, %v8723
    %v8725 = vrot.slane %v8702, %v8724
    %v8726 = vadd.s32 %v8721, 4294967288
    %v8727 = vlaneseq
    %v8728 = vshrl.u32 %v8727, 7
    %v8729 = vsub.s32 %v8726, %v8728
    %v8730 = vrot.slane %v8703, %v8729
    %vm8731 = vcmask 130112
    %v8732 = vsel %vm8731, %v8730, %v8725
    %v8733 = vlaneseq
    %v8734 = vshrl.u32 %v8733, 7
    %v8735 = vsub.s32 %v8721, %v8734
    %v8736 = vrot.slane %v8704, %v8735
    %v8737 = vlaneseq
    %v8738 = vshrl.u32 %v8737, 7
    %v8739 = vsub.s32 %v8726, %v8738
    %v8740 = vrot.slane %v8705, %v8739
    %v8741 = vsel %vm8731, %v8740, %v8736
    %vm8742 = vcmask 1041409
    %v8743 = vsel %vm8742, %v8741, %v8732
    %v8745 = vmul.f32 %v8714, %v8743
    %v8746 = vadd.f32 %v8711, %v8745
    %vm8747 = vcmask 123904
    %8748 = vst.msk [vmem:[#allocation2] sm:$0x3] %vm8747, %v8746
    // Predicated region
    $region34: #{edm_forward.1} parent=1 // pred_check
      _
    $region35: #{edm_forward.1} parent=1 // pred_check_branch
      %8750 = sbr.rel (0) target = $region37
    $region36: #{edm_forward.1} parent=1 // pred_region
      %s8752 = ssub.s32 32, 32
      %8753 = vsyncadd [#allocation3], %s8752
      %s8755 = sshll.u32 [#allocation2], 4
      %s8756 = int_to_ptr.vmem [resolvable:$true] %s8755
      %8758 = dma.vmem_to_hbm [thread:$0]  %s8756, 32, %s8, [#allocation3]
    $region37: #{edm_forward.1} parent=1 // pred_fallthru
      _
    // Predicated region
    $region38: #{edm_forward.1} parent=1 // pred_check
      _
    $region39: #{edm_forward.1} parent=1 // pred_check_branch
      %8760 = sbr.rel (0) target = $region41
    $region40: #{edm_forward.1} parent=1 // pred_region
      %8761 = dma.done [#allocation3], 32
    $region41: #{edm_forward.1} parent=1 // pred_fallthru
      _
    %8762 = vsyncpa [#allocation3], 1

</llo_original>
